<compile_context>
chip_gen: v7x
topology: tpu7x:2x2x1
jax: 0.10.0
libtpu: 0.0.40
codegen_flags: <defaults>
</compile_context>

<pallas_src>
import functools

import jax
import jax.numpy as jnp
from jax import lax
from jax.experimental import pallas as pl
from jax.experimental.pallas import tpu as pltpu

F32 = jnp.float32
BF16 = jnp.bfloat16
VMEM = pltpu.MemorySpace.VMEM
NEG_BIG = -1e30


def _round_up(x, m):
    return ((x + m - 1) // m) * m


def _sigmoid(x):
    return 1.0 / (1.0 + jnp.exp(-x))


# -----------------------------------------------------------------------------
# Kernel 1: feature net + gated-attention pooling, tiled over the bag.
# Grid = (modality, bag-tile).
# -----------------------------------------------------------------------------
def _pool_kernel(act, block_n,
                 nvalid_ref,                        # scalar prefetch (SMEM), (M,)
                 x_ref, wf_ref, bf_ref,             # per-modality inputs
                 wvu_ref, bvu_ref, ww_ref, bw_ref,  # shared attention head
                 out_ref,                           # (1, 1, F) output block
                 m_scr, l_scr, acc_scr):            # online-softmax scratch
    mod = pl.program_id(0)
    i = pl.program_id(1)

    @pl.when(i == 0)
    def _init():
        m_scr[...] = jnp.full_like(m_scr, NEG_BIG)
        l_scr[...] = jnp.zeros_like(l_scr)
        acc_scr[...] = jnp.zeros_like(acc_scr)

    x = x_ref[0]                                                       # (block_n, din) bf16
    h = jnp.dot(x, wf_ref[0], preferred_element_type=F32) + bf_ref[0]  # (block_n, F) f32
    if act == "relu":
        h = jnp.maximum(h, 0.0)
    else:  # ELU(alpha=1.0), elementwise math kept in f32
        h = jnp.where(h > 0.0, h, jnp.exp(jnp.minimum(h, 0.0)) - 1.0)

    # gated attention: W_V|W_U fused into one 2*D-wide matmul
    vu = jnp.dot(h, wvu_ref[...], preferred_element_type=F32) + bvu_ref[...]
    d_attn = ww_ref.shape[1]
    gated = jnp.tanh(vu[:, :d_attn]) * _sigmoid(vu[:, d_attn:])        # (block_n, D)
    # score = lane-reduce against the (1, D) weight row (no (D,1) matmul)
    s = jnp.sum(gated * ww_ref[...], axis=-1, keepdims=True) + bw_ref[...]   # (block_n, 1)

    # mask padded rows of the bag
    rows = i * block_n + lax.broadcasted_iota(jnp.int32, (block_n, 1), 0)
    s = jnp.where(rows < nvalid_ref[mod], s, NEG_BIG)

    # online softmax accumulation over bag tiles
    m_prev = m_scr[...]
    m_new = jnp.maximum(m_prev, jnp.max(s, axis=0, keepdims=True))
    alpha = jnp.exp(m_prev - m_new)
    e = jnp.exp(s - m_new)                                             # masked rows -> 0
    l_scr[...] = alpha * l_scr[...] + jnp.sum(e, axis=0, keepdims=True)
    acc_scr[...] = alpha * acc_scr[...] + jnp.sum(e * h, axis=0, keepdims=True)
    m_scr[...] = m_new

    @pl.when(i == pl.num_programs(1) - 1)
    def _finalize():
        inv_l = pl.reciprocal(l_scr[...], approx=True)
        out_ref[0] = (acc_scr[...] * inv_l).astype(out_ref.dtype)


def pooled_features(xs, wf, bf, attn, act, block_rows=512):
    """Attention-pooled features for a stack of bags sharing one attention head.
    xs: list of (n_i, din) f32; wf: (M, din, F) bf16; bf: (M, 1, F) f32."""
    m_count = len(xs)
    din = xs[0].shape[1]
    feat = wf.shape[2]
    d_attn = attn["w_row"].shape[1]

    n_max = max(x.shape[0] for x in xs)
    block_n = min(block_rows, _round_up(n_max, 16))
    n_pad = _round_up(n_max, block_n)
    x_stack = jnp.stack(
        [jnp.pad(x, ((0, n_pad - x.shape[0]), (0, 0))) for x in xs]
    ).astype(BF16)
    n_valid = jnp.asarray([x.shape[0] for x in xs], jnp.int32)

    kernel = functools.partial(_pool_kernel, act, block_n)
    out = pl.pallas_call(
        kernel,
        out_shape=jax.ShapeDtypeStruct((m_count, 1, feat), F32),
        grid_spec=pltpu.PrefetchScalarGridSpec(
            num_scalar_prefetch=1,
            grid=(m_count, n_pad // block_n),
            in_specs=[
                pl.BlockSpec((1, block_n, din), lambda m, i, nv: (m, i, 0)),
                pl.BlockSpec((1, din, feat), lambda m, i, nv: (m, 0, 0)),
                pl.BlockSpec((1, 1, feat), lambda m, i, nv: (m, 0, 0)),
                pl.BlockSpec((feat, 2 * d_attn), lambda m, i, nv: (0, 0)),
                pl.BlockSpec((1, 2 * d_attn), lambda m, i, nv: (0, 0)),
                pl.BlockSpec((1, d_attn), lambda m, i, nv: (0, 0)),
                pl.BlockSpec((1, 1), lambda m, i, nv: (0, 0)),
            ],
            out_specs=pl.BlockSpec((1, 1, feat), lambda m, i, nv: (m, 0, 0)),
            scratch_shapes=[
                pltpu.VMEM((1, 1), F32),
                pltpu.VMEM((1, 1), F32),
                pltpu.VMEM((1, feat), F32),
            ],
        ),
        compiler_params=pltpu.CompilerParams(
            dimension_semantics=("parallel", "arbitrary"),
            vmem_limit_bytes=32 * 1024 * 1024),
    )(n_valid, x_stack, wf, bf,
      attn["W_VU"], attn["b_VU"], attn["w_row"], attn["b_w"])
    return out[:, 0, :]                              # (M, F)


# -----------------------------------------------------------------------------
# Kernel 2: fused tail -- both BilinearFusion blocks + classifier + softmax.
# -----------------------------------------------------------------------------
def _fusion_block(v1, v2, sel_const,
                  w1, b1, w2, b2, wo1, bo1, wo2, bo2, we1, be1, we2, be2):
    """BilinearFusion (gate1=gate2=1, use_bilinear=0, skip=0) on (1, dim) vectors."""
    d = w1.shape[1] // 3
    g1 = jnp.dot(v1, w1, preferred_element_type=F32) + b1     # [h1 | z1a | z2a]
    g2 = jnp.dot(v2, w2, preferred_element_type=F32) + b2     # [h2 | z1b | z2b]
    h1 = jnp.maximum(g1[:, :d], 0.0)
    h2 = jnp.maximum(g2[:, :d], 0.0)
    z1 = g1[:, d:2 * d] + g2[:, d:2 * d]
    z2 = g1[:, 2 * d:] + g2[:, 2 * d:]
    o1 = jnp.maximum(jnp.dot(_sigmoid(z1) * h1, wo1, preferred_element_type=F32) + bo1, 0.0)
    o2 = jnp.maximum(jnp.dot(_sigmoid(z2) * h2, wo2, preferred_element_type=F32) + bo2, 0.0)

    one = jnp.ones((1, 1), F32)
    o1c = jnp.concatenate([o1, one], axis=1)                   # (1, d+1)
    o2c = jnp.concatenate([o2, one], axis=1)                   # (1, d+1)

    # kron(o1c, o2c) @ W_e1  ==  o1c @ (kron(I, o2c) @ W_e1).  kron(I, o2c) is
    # built from a constant lane-tiling selector plus an iota block mask.
    dp = d + 1
    kpad = we1.shape[0]
    o2_tiled = jnp.dot(o2c, sel_const, preferred_element_type=F32)       # (1, kpad)
    row = lax.broadcasted_iota(jnp.int32, (dp, kpad), 0)
    col = lax.broadcasted_iota(jnp.int32, (dp, kpad), 1)
    block_mask = (col >= row * dp) & (col < row * dp + dp)
    kron = jnp.where(block_mask, o2_tiled, 0.0)                          # (dp, kpad)
    a_mat = jnp.dot(kron, we1, preferred_element_type=F32)               # (dp, 256)
    enc1 = jnp.maximum(jnp.dot(o1c, a_mat, preferred_element_type=F32) + be1, 0.0)
    enc2 = jnp.maximum(jnp.dot(enc1, we2, preferred_element_type=F32) + be2, 0.0)
    return enc2


def _tail_kernel(*refs):
    hcnv_ref, hmrna_ref, hpath_ref, sel_ref = refs[:4]
    om = [r[...] for r in refs[4:16]]
    mu = [r[...] for r in refs[16:28]]
    wc_ref, bc_ref = refs[28], refs[29]
    logits_ref, prob_ref, fusion_ref = refs[30], refs[31], refs[32]

    sel = sel_ref[...]
    h_omic = _fusion_block(hcnv_ref[...], hmrna_ref[...], sel, *om)      # mm_omic(cnv, mrna)
    fusion = _fusion_block(h_omic, hpath_ref[...], sel, *mu)             # mm_multi(omic, path)
    fusion_ref[...] = fusion

    logits = jnp.dot(fusion, wc_ref[...], preferred_element_type=F32) + bc_ref[...]
    logits_ref[...] = logits
    mx = jnp.max(logits, axis=-1, keepdims=True)
    e = jnp.exp(logits - mx)
    prob_ref[...] = e * pl.reciprocal(jnp.sum(e, axis=-1, keepdims=True), approx=True)


_FUSION_KEYS = ("W1", "B1", "W2", "B2", "W_o1", "b_o1", "W_o2", "b_o2",
                "W_e1", "b_e1", "W_e2", "b_e2")


def fusion_and_classify(h_cnv, h_mrna, h_path, params):
    om = params["mm_omic"]
    mu = params["mm_multi"]
    cls = params["classifier"]
    n_cls = cls["W_c"].shape[1]
    feat = mu["W_e2"].shape[1]
    args = ((h_cnv, h_mrna, h_path, params["kron_sel"])
            + tuple(om[k] for k in _FUSION_KEYS)
            + tuple(mu[k] for k in _FUSION_KEYS)
            + (cls["W_c"], cls["b_c"]))
    return pl.pallas_call(
        _tail_kernel,
        out_shape=(jax.ShapeDtypeStruct((1, n_cls), F32),
                   jax.ShapeDtypeStruct((1, n_cls), F32),
                   jax.ShapeDtypeStruct((1, feat), F32)),
        in_specs=[pl.BlockSpec(memory_space=VMEM)] * len(args),
        out_specs=(pl.BlockSpec(memory_space=VMEM),) * 3,
    )(*args)


# -----------------------------------------------------------------------------
# Full forward pass (matches ABMIL_SNN.forward; submodules not called there —
# coattn_*, transformer, multi_fc, self.attention — are omitted).
# -----------------------------------------------------------------------------
def abmil_snn_forward(x_path, x_mrna, x_cnv, params):
    x_mrna = x_mrna.reshape(-1, 512)
    x_cnv = x_cnv.reshape(-1, 512)

    # wsi_net (ReLU) + attention_path
    h_path = pooled_features([x_path], params["wsi"]["W_f"], params["wsi"]["b_f"],
                             params["wsi"]["attn"], act="relu")          # (1, 256)
    # mrna / cnv nets (ELU) share attention_snn: batched on one "parallel" axis
    h_om = pooled_features([x_mrna, x_cnv], params["omics"]["W_f"], params["omics"]["b_f"],
                           params["omics"]["attn"], act="elu")           # (2, 256)
    h_mrna = h_om[0:1]
    h_cnv = h_om[1:2]

    logits, y_prob, fusion = fusion_and_classify(h_cnv, h_mrna, h_path, params)
    y_hat = jnp.argmax(logits, axis=1)
    return logits, y_prob, y_hat, fusion


# -----------------------------------------------------------------------------
# Deterministic synthetic parameters, pre-packed for the kernels above.
# -----------------------------------------------------------------------------
def make_params(key, n_classes=4, feature_dim=256, attn_dim=128, scale=8):
    keys = iter(jax.random.split(key, 96))

    def lin(din, dout, w_scale=0.02, b_scale=0.01):
        w = jax.random.normal(next(keys), (din, dout), F32) * w_scale
        b = jax.random.normal(next(keys), (1, dout), F32) * b_scale
        return w, b

    def attn_gated():                                  # Attention_Gated(L=256, D=128, K=1)
        w_v, b_v = lin(feature_dim, attn_dim)
        w_u, b_u = lin(feature_dim, attn_dim)
        w_w, b_w = lin(attn_dim, 1)
        return dict(W_VU=jnp.concatenate([w_v, w_u], axis=1),   # (256, 256)
                    b_VU=jnp.concatenate([b_v, b_u], axis=1),   # (1, 256)
                    w_row=jnp.transpose(w_w),                   # (1, 128)
                    b_w=b_w)                                    # (1, 1)

    d_gate = feature_dim // scale                               # 32
    dp = d_gate + 1                                             # 33
    kfull = dp * dp                                             # 1089
    kpad = _round_up(kfull, 128)                                # 1152

    def bilinear():
        w_h1, b_h1 = lin(feature_dim, d_gate)
        w_z1, b_z1 = lin(2 * feature_dim, d_gate)
        w_o1, b_o1 = lin(d_gate, d_gate)
        w_h2, b_h2 = lin(feature_dim, d_gate)
        w_z2, b_z2 = lin(2 * feature_dim, d_gate)
        w_o2, b_o2 = lin(d_gate, d_gate)
        w_e1, b_e1 = lin(kfull, 256)
        w_e2, b_e2 = lin(256, feature_dim)
        zeros = jnp.zeros((1, d_gate), F32)
        return dict(
            # packed v1 / v2 projections: columns are [h | z1 | z2]
            W1=jnp.concatenate([w_h1, w_z1[:feature_dim], w_z2[:feature_dim]], axis=1),
            B1=jnp.concatenate([b_h1, b_z1, b_z2], axis=1),
            W2=jnp.concatenate([w_h2, w_z1[feature_dim:], w_z2[feature_dim:]], axis=1),
            B2=jnp.concatenate([b_h2, zeros, zeros], axis=1),
            W_o1=w_o1, b_o1=b_o1, W_o2=w_o2, b_o2=b_o2,
            W_e1=jnp.pad(w_e1, ((0, kpad - kfull), (0, 0))),    # zero rows: exact
            b_e1=b_e1, W_e2=w_e2, b_e2=b_e2)

    w_wsi, b_wsi = lin(1024, feature_dim)
    w_mrna, b_mrna = lin(512, feature_dim)
    w_cnv, b_cnv = lin(512, feature_dim)
    attn_path = attn_gated()
    attn_snn = attn_gated()               # shared by mrna & cnv (as in the module)
    w_c, b_c = lin(feature_dim, n_classes)

    # constant lane-tiling selector: sel[j, p] = 1 iff p % dp == j and p < dp*dp
    col = jnp.arange(kpad, dtype=jnp.int32)[None, :]
    row = jnp.arange(dp, dtype=jnp.int32)[:, None]
    kron_sel = ((col % dp == row) & (col < kfull)).astype(F32)

    return dict(
        wsi=dict(W_f=w_wsi[None].astype(BF16),                  # (1, 1024, 256)
                 b_f=b_wsi[None],                               # (1, 1, 256)
                 attn=attn_path),
        omics=dict(W_f=jnp.stack([w_mrna, w_cnv]).astype(BF16),  # (2, 512, 256) [mrna, cnv]
                   b_f=jnp.stack([b_mrna, b_cnv]),               # (2, 1, 256)
                   attn=attn_snn),
        mm_omic=bilinear(),
        mm_multi=bilinear(),
        classifier=dict(W_c=w_c, b_c=b_c),
        kron_sel=kron_sel,
    )


if __name__ == "__main__":
    root = jax.random.PRNGKey(0)
    kp, km, kc, kw = jax.random.split(root, 4)

    # small but shape-consistent inputs: bag of 16 WSI patch features (1024-d),
    # 8x512 mRNA chunks, 8x512 CNV chunks (reshaped to (-1, 512) in forward).
    x_path = jax.random.normal(kp, (16, 1024), F32)
    x_mrna = jax.random.normal(km, (1, 8, 512), F32)
    x_cnv = jax.random.normal(kc, (1, 8, 512), F32)
    params = make_params(kw)

    fwd = jax.jit(abmil_snn_forward)
    logits, y_prob, y_hat, fusion = fwd(x_path, x_mrna, x_cnv, params)
    jax.block_until_ready((logits, y_prob, y_hat, fusion))

    assert logits.shape == (1, 4)
    assert y_prob.shape == (1, 4)
    assert y_hat.shape == (1,)
    assert fusion.shape == (1, 256)
    assert bool(jnp.all(jnp.isfinite(logits)))
    assert bool(jnp.all(jnp.isfinite(y_prob)))
    assert bool(jnp.all(jnp.isfinite(fusion)))
    print("KERNEL_OK")
</pallas_src>

<mosaic_0001>
module attributes {stable_mosaic.version = 11 : i64} {
  func.func @_pool_kernel(%arg0: i32, %arg1: i32, %arg2: memref<2xi32, #tpu.memory_space<smem>>, %arg3: memref<1x16x512xbf16, #tpu.memory_space<vmem>>, %arg4: memref<1x512x256xbf16, #tpu.memory_space<vmem>>, %arg5: memref<1x1x256xf32, #tpu.memory_space<vmem>>, %arg6: memref<256x256xf32, #tpu.memory_space<vmem>>, %arg7: memref<1x256xf32, #tpu.memory_space<vmem>>, %arg8: memref<1x128xf32, #tpu.memory_space<vmem>>, %arg9: memref<1x1xf32, #tpu.memory_space<vmem>>, %arg10: memref<1x1x256xf32, #tpu.memory_space<vmem>>, %arg11: memref<1x1xf32, #tpu.memory_space<vmem>>, %arg12: memref<1x1xf32, #tpu.memory_space<vmem>>, %arg13: memref<1x256xf32, #tpu.memory_space<vmem>>) attributes {dimension_semantics = [#tpu.dimension_semantics<parallel>, #tpu.dimension_semantics<arbitrary>], iteration_bounds = array<i64: 2, 1>, scalar_prefetch = 1 : i64, scratch_operands = 3 : i64, tpu.core_type = #tpu.core_type<tc>, window_params = [{transform_indices = @transform_0, window_bounds = array<i64: 1, 16, 512>}, {transform_indices = @transform_1, window_bounds = array<i64: 1, 512, 256>}, {transform_indices = @transform_2, window_bounds = array<i64: 1, 1, 256>}, {pipeline_mode = #tpu.pipeline_mode<synchronous>, transform_indices = @transform_3, window_bounds = array<i64: 256, 256>}, {pipeline_mode = #tpu.pipeline_mode<synchronous>, transform_indices = @transform_4, window_bounds = array<i64: 1, 256>}, {pipeline_mode = #tpu.pipeline_mode<synchronous>, transform_indices = @transform_5, window_bounds = array<i64: 1, 128>}, {pipeline_mode = #tpu.pipeline_mode<synchronous>, transform_indices = @transform_6, window_bounds = array<i64: 1, 1>}, {transform_indices = @transform_7, window_bounds = array<i64: 1, 1, 256>}]} {
    %c0_i32 = arith.constant 0 : i32
    %0 = arith.cmpi eq, %arg1, %c0_i32 : i32
    %1 = arith.extui %0 : i1 to i32
    %c0_i32_0 = arith.constant 0 : i32
    %2 = arith.cmpi ne, %1, %c0_i32_0 : i32
    scf.if %2 {
      %cst_43 = arith.constant -1.000000e+30 : f32
      %82 = vector.broadcast %cst_43 : f32 to vector<1x1xf32>
      %c0_44 = arith.constant 0 : index
      %c0_45 = arith.constant 0 : index
      %83 = vector.load %arg11[%c0_44, %c0_45] : memref<1x1xf32, #tpu.memory_space<vmem>>, vector<1x1xf32>
      tpu.vector_store %arg11[%c0_44, %c0_45], %82 {strides = array<i32>} : memref<1x1xf32, #tpu.memory_space<vmem>>, vector<1x1xf32>,
      %cst_46 = arith.constant 0.000000e+00 : f32
      %84 = vector.broadcast %cst_46 : f32 to vector<1x1xf32>
      %c0_47 = arith.constant 0 : index
      %c0_48 = arith.constant 0 : index
      %85 = vector.load %arg12[%c0_47, %c0_48] : memref<1x1xf32, #tpu.memory_space<vmem>>, vector<1x1xf32>
      tpu.vector_store %arg12[%c0_47, %c0_48], %84 {strides = array<i32>} : memref<1x1xf32, #tpu.memory_space<vmem>>, vector<1x1xf32>,
      %cst_49 = arith.constant 0.000000e+00 : f32
      %86 = vector.broadcast %cst_49 : f32 to vector<1x256xf32>
      %c0_50 = arith.constant 0 : index
      %c0_51 = arith.constant 0 : index
      %87 = vector.load %arg13[%c0_50, %c0_51] : memref<1x256xf32, #tpu.memory_space<vmem>>, vector<1x256xf32>
      tpu.vector_store %arg13[%c0_50, %c0_51], %86 {strides = array<i32>} : memref<1x256xf32, #tpu.memory_space<vmem>>, vector<1x256xf32>,
    } else {
    }
    %c0 = arith.constant 0 : index
    %c0_1 = arith.constant 0 : index
    %c0_2 = arith.constant 0 : index
    %3 = vector.load %arg3[%c0, %c0_1, %c0_2] : memref<1x16x512xbf16, #tpu.memory_space<vmem>>, vector<1x16x512xbf16>
    %4 = vector.shape_cast %3 : vector<1x16x512xbf16> to vector<16x512xbf16>
    %c0_3 = arith.constant 0 : index
    %c0_4 = arith.constant 0 : index
    %c0_5 = arith.constant 0 : index
    %5 = vector.load %arg4[%c0_3, %c0_4, %c0_5] : memref<1x512x256xbf16, #tpu.memory_space<vmem>>, vector<1x512x256xbf16>
    %6 = vector.shape_cast %5 : vector<1x512x256xbf16> to vector<512x256xbf16>
    %cst = arith.constant dense<0.000000e+00> : vector<16x256xf32>
    %7 = tpu.matmul %4, %6, %cst {dimension_numbers = #tpu.dot_dimension_numbers<[1], [0], [0], [1], [0, 0, 1, 1], [], []>} : vector<16x512xbf16>, vector<512x256xbf16>, vector<16x256xf32> -> vector<16x256xf32>
    %c0_6 = arith.constant 0 : index
    %c0_7 = arith.constant 0 : index
    %c0_8 = arith.constant 0 : index
    %8 = vector.load %arg5[%c0_6, %c0_7, %c0_8] : memref<1x1x256xf32, #tpu.memory_space<vmem>>, vector<1x1x256xf32>
    %9 = vector.shape_cast %8 : vector<1x1x256xf32> to vector<1x256xf32>
    %10 = vector.broadcast %9 : vector<1x256xf32> to vector<16x256xf32>
    %11 = arith.addf %7, %10 : vector<16x256xf32>
    %cst_9 = arith.constant 0.000000e+00 : f32
    %12 = vector.broadcast %cst_9 : f32 to vector<16x256xf32>
    %13 = arith.cmpf ogt, %11, %12 : vector<16x256xf32>
    %cst_10 = arith.constant 0.000000e+00 : f32
    %14 = vector.broadcast %cst_10 : f32 to vector<16x256xf32>
    %15 = arith.minimumf %11, %14 : vector<16x256xf32>
    %16 = math.exp %15 : vector<16x256xf32>
    %cst_11 = arith.constant 1.000000e+00 : f32
    %17 = vector.broadcast %cst_11 : f32 to vector<16x256xf32>
    %18 = arith.subf %16, %17 : vector<16x256xf32>
    %19 = arith.select %13, %11, %18 : vector<16x256xi1>, vector<16x256xf32>
    %c0_12 = arith.constant 0 : index
    %c0_13 = arith.constant 0 : index
    %20 = vector.load %arg6[%c0_12, %c0_13] : memref<256x256xf32, #tpu.memory_space<vmem>>, vector<256x256xf32>
    %cst_14 = arith.constant dense<0.000000e+00> : vector<16x256xf32>
    %21 = tpu.matmul %19, %20, %cst_14 {dimension_numbers = #tpu.dot_dimension_numbers<[1], [0], [0], [1], [0, 0, 1, 1], [], []>} : vector<16x256xf32>, vector<256x256xf32>, vector<16x256xf32> -> vector<16x256xf32>
    %c0_15 = arith.constant 0 : index
    %c0_16 = arith.constant 0 : index
    %22 = vector.load %arg7[%c0_15, %c0_16] : memref<1x256xf32, #tpu.memory_space<vmem>>, vector<1x256xf32>
    %23 = vector.broadcast %22 : vector<1x256xf32> to vector<16x256xf32>
    %24 = arith.addf %21, %23 : vector<16x256xf32>
    %25 = vector.extract_strided_slice %24 {offsets = [0, 0], sizes = [16, 128], strides = [1, 1]} : vector<16x256xf32> to vector<16x128xf32>
    %26 = math.tanh %25 : vector<16x128xf32>
    %27 = vector.extract_strided_slice %24 {offsets = [0, 128], sizes = [16, 128], strides = [1, 1]} : vector<16x256xf32> to vector<16x128xf32>
    %cst_17 = arith.constant 0.000000e+00 : f32
    %28 = vector.broadcast %cst_17 : f32 to vector<16x128xf32>
    %29 = arith.subf %28, %27 : vector<16x128xf32>
    %30 = math.exp %29 : vector<16x128xf32>
    %cst_18 = arith.constant 1.000000e+00 : f32
    %31 = vector.broadcast %cst_18 : f32 to vector<16x128xf32>
    %32 = arith.addf %31, %30 : vector<16x128xf32>
    %cst_19 = arith.constant 1.000000e+00 : f32
    %33 = vector.broadcast %cst_19 : f32 to vector<16x128xf32>
    %34 = arith.divf %33, %32 : vector<16x128xf32>
    %35 = arith.mulf %26, %34 : vector<16x128xf32>
    %c0_20 = arith.constant 0 : index
    %c0_21 = arith.constant 0 : index
    %36 = vector.load %arg8[%c0_20, %c0_21] : memref<1x128xf32, #tpu.memory_space<vmem>>, vector<1x128xf32>
    %37 = vector.broadcast %36 : vector<1x128xf32> to vector<16x128xf32>
    %38 = arith.mulf %35, %37 : vector<16x128xf32>
    %cst_22 = arith.constant dense<0.000000e+00> : vector<16xf32>
    %39 = vector.multi_reduction <add>, %38, %cst_22 [1] : vector<16x128xf32> to vector<16xf32>
    %40 = vector.shape_cast %39 : vector<16xf32> to vector<16x1xf32>
    %c0_23 = arith.constant 0 : index
    %c0_24 = arith.constant 0 : index
    %41 = vector.load %arg9[%c0_23, %c0_24] : memref<1x1xf32, #tpu.memory_space<vmem>>, vector<1x1xf32>
    %42 = vector.broadcast %41 : vector<1x1xf32> to vector<16x1xf32>
    %43 = arith.addf %40, %42 : vector<16x1xf32>
    %c16_i32 = arith.constant 16 : i32
    %44 = arith.muli %arg1, %c16_i32 : i32
    %45 = tpu.iota {dimensions = array<i32: 0>} : vector<16x1xi32>
    %46 = vector.broadcast %44 : i32 to vector<16x1xi32>
    %47 = arith.addi %46, %45 : vector<16x1xi32>
    %48 = arith.index_cast %arg0 : i32 to index
    %49 = memref.load %arg2[%48] : memref<2xi32, #tpu.memory_space<smem>>
    %50 = vector.broadcast %49 : i32 to vector<16x1xi32>
    %51 = arith.cmpi slt, %47, %50 : vector<16x1xi32>
    %cst_25 = arith.constant -1.000000e+30 : f32
    %52 = vector.broadcast %cst_25 : f32 to vector<16x1xf32>
    %53 = arith.select %51, %43, %52 : vector<16x1xi1>, vector<16x1xf32>
    %c0_26 = arith.constant 0 : index
    %c0_27 = arith.constant 0 : index
    %54 = vector.load %arg11[%c0_26, %c0_27] : memref<1x1xf32, #tpu.memory_space<vmem>>, vector<1x1xf32>
    %cst_28 = arith.constant dense<0xFF800000> : vector<1xf32>
    %55 = vector.multi_reduction <maximumf>, %53, %cst_28 [0] : vector<16x1xf32> to vector<1xf32>
    %56 = vector.shape_cast %55 : vector<1xf32> to vector<1x1xf32>
    %57 = arith.maximumf %54, %56 : vector<1x1xf32>
    %58 = arith.subf %54, %57 : vector<1x1xf32>
    %59 = math.exp %58 : vector<1x1xf32>
    %60 = vector.broadcast %57 : vector<1x1xf32> to vector<16x1xf32>
    %61 = arith.subf %53, %60 : vector<16x1xf32>
    %62 = math.exp %61 : vector<16x1xf32>
    %c0_29 = arith.constant 0 : index
    %c0_30 = arith.constant 0 : index
    %63 = vector.load %arg12[%c0_29, %c0_30] : memref<1x1xf32, #tpu.memory_space<vmem>>, vector<1x1xf32>
    %64 = arith.mulf %59, %63 : vector<1x1xf32>
    %cst_31 = arith.constant dense<0.000000e+00> : vector<1xf32>
    %65 = vector.multi_reduction <add>, %62, %cst_31 [0] : vector<16x1xf32> to vector<1xf32>
    %66 = vector.shape_cast %65 : vector<1xf32> to vector<1x1xf32>
    %67 = arith.addf %64, %66 : vector<1x1xf32>
    %c0_32 = arith.constant 0 : index
    %c0_33 = arith.constant 0 : index
    %68 = vector.load %arg12[%c0_32, %c0_33] : memref<1x1xf32, #tpu.memory_space<vmem>>, vector<1x1xf32>
    tpu.vector_store %arg12[%c0_32, %c0_33], %67 {strides = array<i32>} : memref<1x1xf32, #tpu.memory_space<vmem>>, vector<1x1xf32>,
    %c0_34 = arith.constant 0 : index
    %c0_35 = arith.constant 0 : index
    %69 = vector.load %arg13[%c0_34, %c0_35] : memref<1x256xf32, #tpu.memory_space<vmem>>, vector<1x256xf32>
    %70 = vector.broadcast %59 : vector<1x1xf32> to vector<1x256xf32>
    %71 = arith.mulf %70, %69 : vector<1x256xf32>
    %72 = vector.broadcast %62 : vector<16x1xf32> to vector<16x256xf32>
    %73 = arith.mulf %72, %19 : vector<16x256xf32>
    %cst_36 = arith.constant dense<0.000000e+00> : vector<256xf32>
    %74 = vector.multi_reduction <add>, %73, %cst_36 [0] : vector<16x256xf32> to vector<256xf32>
    %75 = vector.shape_cast %74 : vector<256xf32> to vector<1x256xf32>
    %76 = arith.addf %71, %75 : vector<1x256xf32>
    %c0_37 = arith.constant 0 : index
    %c0_38 = arith.constant 0 : index
    %77 = vector.load %arg13[%c0_37, %c0_38] : memref<1x256xf32, #tpu.memory_space<vmem>>, vector<1x256xf32>
    tpu.vector_store %arg13[%c0_37, %c0_38], %76 {strides = array<i32>} : memref<1x256xf32, #tpu.memory_space<vmem>>, vector<1x256xf32>,
    %c0_39 = arith.constant 0 : index
    %c0_40 = arith.constant 0 : index
    %78 = vector.load %arg11[%c0_39, %c0_40] : memref<1x1xf32, #tpu.memory_space<vmem>>, vector<1x1xf32>
    tpu.vector_store %arg11[%c0_39, %c0_40], %57 {strides = array<i32>} : memref<1x1xf32, #tpu.memory_space<vmem>>, vector<1x1xf32>,
    %c0_i32_41 = arith.constant 0 : i32
    %79 = arith.cmpi eq, %arg1, %c0_i32_41 : i32
    %80 = arith.extui %79 : i1 to i32
    %c0_i32_42 = arith.constant 0 : i32
    %81 = arith.cmpi ne, %80, %c0_i32_42 : i32
    scf.if %81 {
      %c0_43 = arith.constant 0 : index
      %c0_44 = arith.constant 0 : index
      %82 = vector.load %arg12[%c0_43, %c0_44] : memref<1x1xf32, #tpu.memory_space<vmem>>, vector<1x1xf32>
      %83 = tpu.reciprocal %82 {approx = true} : vector<1x1xf32> -> vector<1x1xf32>
      %c0_45 = arith.constant 0 : index
      %c0_46 = arith.constant 0 : index
      %84 = vector.load %arg13[%c0_45, %c0_46] : memref<1x256xf32, #tpu.memory_space<vmem>>, vector<1x256xf32>
      %85 = vector.broadcast %83 : vector<1x1xf32> to vector<1x256xf32>
      %86 = arith.mulf %84, %85 : vector<1x256xf32>
      %c0_47 = arith.constant 0 : index
      %c0_48 = arith.constant 0 : index
      %c0_49 = arith.constant 0 : index
      %87 = vector.load %arg10[%c0_47, %c0_48, %c0_49] : memref<1x1x256xf32, #tpu.memory_space<vmem>>, vector<1x1x256xf32>
      %88 = vector.shape_cast %87 : vector<1x1x256xf32> to vector<1x256xf32>
      %89 = vector.shape_cast %86 : vector<1x256xf32> to vector<1x1x256xf32>
      tpu.vector_store %arg10[%c0_47, %c0_48, %c0_49], %89 {strides = array<i32>} : memref<1x1x256xf32, #tpu.memory_space<vmem>>, vector<1x1x256xf32>,
    } else {
    }
    return
  }
  func.func @transform_0(%arg0: i32, %arg1: i32, %arg2: memref<2xi32, #tpu.memory_space<smem>>) -> (i32, i32, i32) {
    %c0_i32 = arith.constant 0 : i32
    %c0_i32_0 = arith.constant 0 : i32
    return %arg0, %arg1, %c0_i32 : i32, i32, i32
  }
  func.func @transform_1(%arg0: i32, %arg1: i32, %arg2: memref<2xi32, #tpu.memory_space<smem>>) -> (i32, i32, i32) {
    %c0_i32 = arith.constant 0 : i32
    %c0_i32_0 = arith.constant 0 : i32
    %c0_i32_1 = arith.constant 0 : i32
    return %arg0, %c0_i32, %c0_i32_0 : i32, i32, i32
  }
  func.func @transform_2(%arg0: i32, %arg1: i32, %arg2: memref<2xi32, #tpu.memory_space<smem>>) -> (i32, i32, i32) {
    %c0_i32 = arith.constant 0 : i32
    %c0_i32_0 = arith.constant 0 : i32
    %c0_i32_1 = arith.constant 0 : i32
    return %arg0, %c0_i32, %c0_i32_0 : i32, i32, i32
  }
  func.func @transform_3(%arg0: i32, %arg1: i32, %arg2: memref<2xi32, #tpu.memory_space<smem>>) -> (i32, i32) {
    %c0_i32 = arith.constant 0 : i32
    %c0_i32_0 = arith.constant 0 : i32
    %c0_i32_1 = arith.constant 0 : i32
    return %c0_i32, %c0_i32_0 : i32, i32
  }
  func.func @transform_4(%arg0: i32, %arg1: i32, %arg2: memref<2xi32, #tpu.memory_space<smem>>) -> (i32, i32) {
    %c0_i32 = arith.constant 0 : i32
    %c0_i32_0 = arith.constant 0 : i32
    %c0_i32_1 = arith.constant 0 : i32
    return %c0_i32, %c0_i32_0 : i32, i32
  }
  func.func @transform_5(%arg0: i32, %arg1: i32, %arg2: memref<2xi32, #tpu.memory_space<smem>>) -> (i32, i32) {
    %c0_i32 = arith.constant 0 : i32
    %c0_i32_0 = arith.constant 0 : i32
    %c0_i32_1 = arith.constant 0 : i32
    return %c0_i32, %c0_i32_0 : i32, i32
  }
  func.func @transform_6(%arg0: i32, %arg1: i32, %arg2: memref<2xi32, #tpu.memory_space<smem>>) -> (i32, i32) {
    %c0_i32 = arith.constant 0 : i32
    %c0_i32_0 = arith.constant 0 : i32
    %c0_i32_1 = arith.constant 0 : i32
    return %c0_i32, %c0_i32_0 : i32, i32
  }
  func.func @transform_7(%arg0: i32, %arg1: i32, %arg2: memref<2xi32, #tpu.memory_space<smem>>) -> (i32, i32, i32) {
    %c0_i32 = arith.constant 0 : i32
    %c0_i32_0 = arith.constant 0 : i32
    %c0_i32_1 = arith.constant 0 : i32
    return %arg0, %c0_i32, %c0_i32_0 : i32, i32, i32
  }
}

module attributes {stable_mosaic.version = 11 : i64} {
  func.func @_pool_kernel(%arg0: i32, %arg1: i32, %arg2: memref<1xi32, #tpu.memory_space<smem>>, %arg3: memref<1x16x1024xbf16, #tpu.memory_space<vmem>>, %arg4: memref<1x1024x256xbf16, #tpu.memory_space<vmem>>, %arg5: memref<1x1x256xf32, #tpu.memory_space<vmem>>, %arg6: memref<256x256xf32, #tpu.memory_space<vmem>>, %arg7: memref<1x256xf32, #tpu.memory_space<vmem>>, %arg8: memref<1x128xf32, #tpu.memory_space<vmem>>, %arg9: memref<1x1xf32, #tpu.memory_space<vmem>>, %arg10: memref<1x1x256xf32, #tpu.memory_space<vmem>>, %arg11: memref<1x1xf32, #tpu.memory_space<vmem>>, %arg12: memref<1x1xf32, #tpu.memory_space<vmem>>, %arg13: memref<1x256xf32, #tpu.memory_space<vmem>>) attributes {dimension_semantics = [#tpu.dimension_semantics<parallel>, #tpu.dimension_semantics<arbitrary>], iteration_bounds = array<i64: 1, 1>, scalar_prefetch = 1 : i64, scratch_operands = 3 : i64, tpu.core_type = #tpu.core_type<tc>, window_params = [{transform_indices = @transform_0, window_bounds = array<i64: 1, 16, 1024>}, {transform_indices = @transform_1, window_bounds = array<i64: 1, 1024, 256>}, {transform_indices = @transform_2, window_bounds = array<i64: 1, 1, 256>}, {pipeline_mode = #tpu.pipeline_mode<synchronous>, transform_indices = @transform_3, window_bounds = array<i64: 256, 256>}, {pipeline_mode = #tpu.pipeline_mode<synchronous>, transform_indices = @transform_4, window_bounds = array<i64: 1, 256>}, {pipeline_mode = #tpu.pipeline_mode<synchronous>, transform_indices = @transform_5, window_bounds = array<i64: 1, 128>}, {pipeline_mode = #tpu.pipeline_mode<synchronous>, transform_indices = @transform_6, window_bounds = array<i64: 1, 1>}, {transform_indices = @transform_7, window_bounds = array<i64: 1, 1, 256>}]} {
    %c0_i32 = arith.constant 0 : i32
    %0 = arith.cmpi eq, %arg1, %c0_i32 : i32
    %1 = arith.extui %0 : i1 to i32
    %c0_i32_0 = arith.constant 0 : i32
    %2 = arith.cmpi ne, %1, %c0_i32_0 : i32
    scf.if %2 {
      %cst_41 = arith.constant -1.000000e+30 : f32
      %76 = vector.broadcast %cst_41 : f32 to vector<1x1xf32>
      %c0_42 = arith.constant 0 : index
      %c0_43 = arith.constant 0 : index
      %77 = vector.load %arg11[%c0_42, %c0_43] : memref<1x1xf32, #tpu.memory_space<vmem>>, vector<1x1xf32>
      tpu.vector_store %arg11[%c0_42, %c0_43], %76 {strides = array<i32>} : memref<1x1xf32, #tpu.memory_space<vmem>>, vector<1x1xf32>,
      %cst_44 = arith.constant 0.000000e+00 : f32
      %78 = vector.broadcast %cst_44 : f32 to vector<1x1xf32>
      %c0_45 = arith.constant 0 : index
      %c0_46 = arith.constant 0 : index
      %79 = vector.load %arg12[%c0_45, %c0_46] : memref<1x1xf32, #tpu.memory_space<vmem>>, vector<1x1xf32>
      tpu.vector_store %arg12[%c0_45, %c0_46], %78 {strides = array<i32>} : memref<1x1xf32, #tpu.memory_space<vmem>>, vector<1x1xf32>,
      %cst_47 = arith.constant 0.000000e+00 : f32
      %80 = vector.broadcast %cst_47 : f32 to vector<1x256xf32>
      %c0_48 = arith.constant 0 : index
      %c0_49 = arith.constant 0 : index
      %81 = vector.load %arg13[%c0_48, %c0_49] : memref<1x256xf32, #tpu.memory_space<vmem>>, vector<1x256xf32>
      tpu.vector_store %arg13[%c0_48, %c0_49], %80 {strides = array<i32>} : memref<1x256xf32, #tpu.memory_space<vmem>>, vector<1x256xf32>,
    } else {
    }
    %c0 = arith.constant 0 : index
    %c0_1 = arith.constant 0 : index
    %c0_2 = arith.constant 0 : index
    %3 = vector.load %arg3[%c0, %c0_1, %c0_2] : memref<1x16x1024xbf16, #tpu.memory_space<vmem>>, vector<1x16x1024xbf16>
    %4 = vector.shape_cast %3 : vector<1x16x1024xbf16> to vector<16x1024xbf16>
    %c0_3 = arith.constant 0 : index
    %c0_4 = arith.constant 0 : index
    %c0_5 = arith.constant 0 : index
    %5 = vector.load %arg4[%c0_3, %c0_4, %c0_5] : memref<1x1024x256xbf16, #tpu.memory_space<vmem>>, vector<1x1024x256xbf16>
    %6 = vector.shape_cast %5 : vector<1x1024x256xbf16> to vector<1024x256xbf16>
    %cst = arith.constant dense<0.000000e+00> : vector<16x256xf32>
    %7 = tpu.matmul %4, %6, %cst {dimension_numbers = #tpu.dot_dimension_numbers<[1], [0], [0], [1], [0, 0, 1, 1], [], []>} : vector<16x1024xbf16>, vector<1024x256xbf16>, vector<16x256xf32> -> vector<16x256xf32>
    %c0_6 = arith.constant 0 : index
    %c0_7 = arith.constant 0 : index
    %c0_8 = arith.constant 0 : index
    %8 = vector.load %arg5[%c0_6, %c0_7, %c0_8] : memref<1x1x256xf32, #tpu.memory_space<vmem>>, vector<1x1x256xf32>
    %9 = vector.shape_cast %8 : vector<1x1x256xf32> to vector<1x256xf32>
    %10 = vector.broadcast %9 : vector<1x256xf32> to vector<16x256xf32>
    %11 = arith.addf %7, %10 : vector<16x256xf32>
    %cst_9 = arith.constant 0.000000e+00 : f32
    %12 = vector.broadcast %cst_9 : f32 to vector<16x256xf32>
    %13 = arith.maximumf %11, %12 : vector<16x256xf32>
    %c0_10 = arith.constant 0 : index
    %c0_11 = arith.constant 0 : index
    %14 = vector.load %arg6[%c0_10, %c0_11] : memref<256x256xf32, #tpu.memory_space<vmem>>, vector<256x256xf32>
    %cst_12 = arith.constant dense<0.000000e+00> : vector<16x256xf32>
    %15 = tpu.matmul %13, %14, %cst_12 {dimension_numbers = #tpu.dot_dimension_numbers<[1], [0], [0], [1], [0, 0, 1, 1], [], []>} : vector<16x256xf32>, vector<256x256xf32>, vector<16x256xf32> -> vector<16x256xf32>
    %c0_13 = arith.constant 0 : index
    %c0_14 = arith.constant 0 : index
    %16 = vector.load %arg7[%c0_13, %c0_14] : memref<1x256xf32, #tpu.memory_space<vmem>>, vector<1x256xf32>
    %17 = vector.broadcast %16 : vector<1x256xf32> to vector<16x256xf32>
    %18 = arith.addf %15, %17 : vector<16x256xf32>
    %19 = vector.extract_strided_slice %18 {offsets = [0, 0], sizes = [16, 128], strides = [1, 1]} : vector<16x256xf32> to vector<16x128xf32>
    %20 = math.tanh %19 : vector<16x128xf32>
    %21 = vector.extract_strided_slice %18 {offsets = [0, 128], sizes = [16, 128], strides = [1, 1]} : vector<16x256xf32> to vector<16x128xf32>
    %cst_15 = arith.constant 0.000000e+00 : f32
    %22 = vector.broadcast %cst_15 : f32 to vector<16x128xf32>
    %23 = arith.subf %22, %21 : vector<16x128xf32>
    %24 = math.exp %23 : vector<16x128xf32>
    %cst_16 = arith.constant 1.000000e+00 : f32
    %25 = vector.broadcast %cst_16 : f32 to vector<16x128xf32>
    %26 = arith.addf %25, %24 : vector<16x128xf32>
    %cst_17 = arith.constant 1.000000e+00 : f32
    %27 = vector.broadcast %cst_17 : f32 to vector<16x128xf32>
    %28 = arith.divf %27, %26 : vector<16x128xf32>
    %29 = arith.mulf %20, %28 : vector<16x128xf32>
    %c0_18 = arith.constant 0 : index
    %c0_19 = arith.constant 0 : index
    %30 = vector.load %arg8[%c0_18, %c0_19] : memref<1x128xf32, #tpu.memory_space<vmem>>, vector<1x128xf32>
    %31 = vector.broadcast %30 : vector<1x128xf32> to vector<16x128xf32>
    %32 = arith.mulf %29, %31 : vector<16x128xf32>
    %cst_20 = arith.constant dense<0.000000e+00> : vector<16xf32>
    %33 = vector.multi_reduction <add>, %32, %cst_20 [1] : vector<16x128xf32> to vector<16xf32>
    %34 = vector.shape_cast %33 : vector<16xf32> to vector<16x1xf32>
    %c0_21 = arith.constant 0 : index
    %c0_22 = arith.constant 0 : index
    %35 = vector.load %arg9[%c0_21, %c0_22] : memref<1x1xf32, #tpu.memory_space<vmem>>, vector<1x1xf32>
    %36 = vector.broadcast %35 : vector<1x1xf32> to vector<16x1xf32>
    %37 = arith.addf %34, %36 : vector<16x1xf32>
    %c16_i32 = arith.constant 16 : i32
    %38 = arith.muli %arg1, %c16_i32 : i32
    %39 = tpu.iota {dimensions = array<i32: 0>} : vector<16x1xi32>
    %40 = vector.broadcast %38 : i32 to vector<16x1xi32>
    %41 = arith.addi %40, %39 : vector<16x1xi32>
    %42 = arith.index_cast %arg0 : i32 to index
    %43 = memref.load %arg2[%42] : memref<1xi32, #tpu.memory_space<smem>>
    %44 = vector.broadcast %43 : i32 to vector<16x1xi32>
    %45 = arith.cmpi slt, %41, %44 : vector<16x1xi32>
    %cst_23 = arith.constant -1.000000e+30 : f32
    %46 = vector.broadcast %cst_23 : f32 to vector<16x1xf32>
    %47 = arith.select %45, %37, %46 : vector<16x1xi1>, vector<16x1xf32>
    %c0_24 = arith.constant 0 : index
    %c0_25 = arith.constant 0 : index
    %48 = vector.load %arg11[%c0_24, %c0_25] : memref<1x1xf32, #tpu.memory_space<vmem>>, vector<1x1xf32>
    %cst_26 = arith.constant dense<0xFF800000> : vector<1xf32>
    %49 = vector.multi_reduction <maximumf>, %47, %cst_26 [0] : vector<16x1xf32> to vector<1xf32>
    %50 = vector.shape_cast %49 : vector<1xf32> to vector<1x1xf32>
    %51 = arith.maximumf %48, %50 : vector<1x1xf32>
    %52 = arith.subf %48, %51 : vector<1x1xf32>
    %53 = math.exp %52 : vector<1x1xf32>
    %54 = vector.broadcast %51 : vector<1x1xf32> to vector<16x1xf32>
    %55 = arith.subf %47, %54 : vector<16x1xf32>
    %56 = math.exp %55 : vector<16x1xf32>
    %c0_27 = arith.constant 0 : index
    %c0_28 = arith.constant 0 : index
    %57 = vector.load %arg12[%c0_27, %c0_28] : memref<1x1xf32, #tpu.memory_space<vmem>>, vector<1x1xf32>
    %58 = arith.mulf %53, %57 : vector<1x1xf32>
    %cst_29 = arith.constant dense<0.000000e+00> : vector<1xf32>
    %59 = vector.multi_reduction <add>, %56, %cst_29 [0] : vector<16x1xf32> to vector<1xf32>
    %60 = vector.shape_cast %59 : vector<1xf32> to vector<1x1xf32>
    %61 = arith.addf %58, %60 : vector<1x1xf32>
    %c0_30 = arith.constant 0 : index
    %c0_31 = arith.constant 0 : index
    %62 = vector.load %arg12[%c0_30, %c0_31] : memref<1x1xf32, #tpu.memory_space<vmem>>, vector<1x1xf32>
    tpu.vector_store %arg12[%c0_30, %c0_31], %61 {strides = array<i32>} : memref<1x1xf32, #tpu.memory_space<vmem>>, vector<1x1xf32>,
    %c0_32 = arith.constant 0 : index
    %c0_33 = arith.constant 0 : index
    %63 = vector.load %arg13[%c0_32, %c0_33] : memref<1x256xf32, #tpu.memory_space<vmem>>, vector<1x256xf32>
    %64 = vector.broadcast %53 : vector<1x1xf32> to vector<1x256xf32>
    %65 = arith.mulf %64, %63 : vector<1x256xf32>
    %66 = vector.broadcast %56 : vector<16x1xf32> to vector<16x256xf32>
    %67 = arith.mulf %66, %13 : vector<16x256xf32>
    %cst_34 = arith.constant dense<0.000000e+00> : vector<256xf32>
    %68 = vector.multi_reduction <add>, %67, %cst_34 [0] : vector<16x256xf32> to vector<256xf32>
    %69 = vector.shape_cast %68 : vector<256xf32> to vector<1x256xf32>
    %70 = arith.addf %65, %69 : vector<1x256xf32>
    %c0_35 = arith.constant 0 : index
    %c0_36 = arith.constant 0 : index
    %71 = vector.load %arg13[%c0_35, %c0_36] : memref<1x256xf32, #tpu.memory_space<vmem>>, vector<1x256xf32>
    tpu.vector_store %arg13[%c0_35, %c0_36], %70 {strides = array<i32>} : memref<1x256xf32, #tpu.memory_space<vmem>>, vector<1x256xf32>,
    %c0_37 = arith.constant 0 : index
    %c0_38 = arith.constant 0 : index
    %72 = vector.load %arg11[%c0_37, %c0_38] : memref<1x1xf32, #tpu.memory_space<vmem>>, vector<1x1xf32>
    tpu.vector_store %arg11[%c0_37, %c0_38], %51 {strides = array<i32>} : memref<1x1xf32, #tpu.memory_space<vmem>>, vector<1x1xf32>,
    %c0_i32_39 = arith.constant 0 : i32
    %73 = arith.cmpi eq, %arg1, %c0_i32_39 : i32
    %74 = arith.extui %73 : i1 to i32
    %c0_i32_40 = arith.constant 0 : i32
    %75 = arith.cmpi ne, %74, %c0_i32_40 : i32
    scf.if %75 {
      %c0_41 = arith.constant 0 : index
      %c0_42 = arith.constant 0 : index
      %76 = vector.load %arg12[%c0_41, %c0_42] : memref<1x1xf32, #tpu.memory_space<vmem>>, vector<1x1xf32>
      %77 = tpu.reciprocal %76 {approx = true} : vector<1x1xf32> -> vector<1x1xf32>
      %c0_43 = arith.constant 0 : index
      %c0_44 = arith.constant 0 : index
      %78 = vector.load %arg13[%c0_43, %c0_44] : memref<1x256xf32, #tpu.memory_space<vmem>>, vector<1x256xf32>
      %79 = vector.broadcast %77 : vector<1x1xf32> to vector<1x256xf32>
      %80 = arith.mulf %78, %79 : vector<1x256xf32>
      %c0_45 = arith.constant 0 : index
      %c0_46 = arith.constant 0 : index
      %c0_47 = arith.constant 0 : index
      %81 = vector.load %arg10[%c0_45, %c0_46, %c0_47] : memref<1x1x256xf32, #tpu.memory_space<vmem>>, vector<1x1x256xf32>
      %82 = vector.shape_cast %81 : vector<1x1x256xf32> to vector<1x256xf32>
      %83 = vector.shape_cast %80 : vector<1x256xf32> to vector<1x1x256xf32>
      tpu.vector_store %arg10[%c0_45, %c0_46, %c0_47], %83 {strides = array<i32>} : memref<1x1x256xf32, #tpu.memory_space<vmem>>, vector<1x1x256xf32>,
    } else {
    }
    return
  }
  func.func @transform_0(%arg0: i32, %arg1: i32, %arg2: memref<1xi32, #tpu.memory_space<smem>>) -> (i32, i32, i32) {
    %c0_i32 = arith.constant 0 : i32
    %c0_i32_0 = arith.constant 0 : i32
    return %arg0, %arg1, %c0_i32 : i32, i32, i32
  }
  func.func @transform_1(%arg0: i32, %arg1: i32, %arg2: memref<1xi32, #tpu.memory_space<smem>>) -> (i32, i32, i32) {
    %c0_i32 = arith.constant 0 : i32
    %c0_i32_0 = arith.constant 0 : i32
    %c0_i32_1 = arith.constant 0 : i32
    return %arg0, %c0_i32, %c0_i32_0 : i32, i32, i32
  }
  func.func @transform_2(%arg0: i32, %arg1: i32, %arg2: memref<1xi32, #tpu.memory_space<smem>>) -> (i32, i32, i32) {
    %c0_i32 = arith.constant 0 : i32
    %c0_i32_0 = arith.constant 0 : i32
    %c0_i32_1 = arith.constant 0 : i32
    return %arg0, %c0_i32, %c0_i32_0 : i32, i32, i32
  }
  func.func @transform_3(%arg0: i32, %arg1: i32, %arg2: memref<1xi32, #tpu.memory_space<smem>>) -> (i32, i32) {
    %c0_i32 = arith.constant 0 : i32
    %c0_i32_0 = arith.constant 0 : i32
    %c0_i32_1 = arith.constant 0 : i32
    return %c0_i32, %c0_i32_0 : i32, i32
  }
  func.func @transform_4(%arg0: i32, %arg1: i32, %arg2: memref<1xi32, #tpu.memory_space<smem>>) -> (i32, i32) {
    %c0_i32 = arith.constant 0 : i32
    %c0_i32_0 = arith.constant 0 : i32
    %c0_i32_1 = arith.constant 0 : i32
    return %c0_i32, %c0_i32_0 : i32, i32
  }
  func.func @transform_5(%arg0: i32, %arg1: i32, %arg2: memref<1xi32, #tpu.memory_space<smem>>) -> (i32, i32) {
    %c0_i32 = arith.constant 0 : i32
    %c0_i32_0 = arith.constant 0 : i32
    %c0_i32_1 = arith.constant 0 : i32
    return %c0_i32, %c0_i32_0 : i32, i32
  }
  func.func @transform_6(%arg0: i32, %arg1: i32, %arg2: memref<1xi32, #tpu.memory_space<smem>>) -> (i32, i32) {
    %c0_i32 = arith.constant 0 : i32
    %c0_i32_0 = arith.constant 0 : i32
    %c0_i32_1 = arith.constant 0 : i32
    return %c0_i32, %c0_i32_0 : i32, i32
  }
  func.func @transform_7(%arg0: i32, %arg1: i32, %arg2: memref<1xi32, #tpu.memory_space<smem>>) -> (i32, i32, i32) {
    %c0_i32 = arith.constant 0 : i32
    %c0_i32_0 = arith.constant 0 : i32
    %c0_i32_1 = arith.constant 0 : i32
    return %arg0, %c0_i32, %c0_i32_0 : i32, i32, i32
  }
}

module attributes {stable_mosaic.version = 11 : i64} {
  func.func @_tail_kernel(%arg0: memref<1x256xf32, #tpu.memory_space<vmem>>, %arg1: memref<1x256xf32, #tpu.memory_space<vmem>>, %arg2: memref<1x256xf32, #tpu.memory_space<vmem>>, %arg3: memref<33x1152xf32, #tpu.memory_space<vmem>>, %arg4: memref<256x96xf32, #tpu.memory_space<vmem>>, %arg5: memref<1x96xf32, #tpu.memory_space<vmem>>, %arg6: memref<256x96xf32, #tpu.memory_space<vmem>>, %arg7: memref<1x96xf32, #tpu.memory_space<vmem>>, %arg8: memref<32x32xf32, #tpu.memory_space<vmem>>, %arg9: memref<1x32xf32, #tpu.memory_space<vmem>>, %arg10: memref<32x32xf32, #tpu.memory_space<vmem>>, %arg11: memref<1x32xf32, #tpu.memory_space<vmem>>, %arg12: memref<1152x256xf32, #tpu.memory_space<vmem>>, %arg13: memref<1x256xf32, #tpu.memory_space<vmem>>, %arg14: memref<256x256xf32, #tpu.memory_space<vmem>>, %arg15: memref<1x256xf32, #tpu.memory_space<vmem>>, %arg16: memref<256x96xf32, #tpu.memory_space<vmem>>, %arg17: memref<1x96xf32, #tpu.memory_space<vmem>>, %arg18: memref<256x96xf32, #tpu.memory_space<vmem>>, %arg19: memref<1x96xf32, #tpu.memory_space<vmem>>, %arg20: memref<32x32xf32, #tpu.memory_space<vmem>>, %arg21: memref<1x32xf32, #tpu.memory_space<vmem>>, %arg22: memref<32x32xf32, #tpu.memory_space<vmem>>, %arg23: memref<1x32xf32, #tpu.memory_space<vmem>>, %arg24: memref<1152x256xf32, #tpu.memory_space<vmem>>, %arg25: memref<1x256xf32, #tpu.memory_space<vmem>>, %arg26: memref<256x256xf32, #tpu.memory_space<vmem>>, %arg27: memref<1x256xf32, #tpu.memory_space<vmem>>, %arg28: memref<256x4xf32, #tpu.memory_space<vmem>>, %arg29: memref<1x4xf32, #tpu.memory_space<vmem>>, %arg30: memref<1x4xf32, #tpu.memory_space<vmem>>, %arg31: memref<1x4xf32, #tpu.memory_space<vmem>>, %arg32: memref<1x256xf32, #tpu.memory_space<vmem>>) attributes {dimension_semantics = [], scalar_prefetch = 0 : i64, scratch_operands = 0 : i64, tpu.core_type = #tpu.core_type<tc>} {
    %c0 = arith.constant 0 : index
    %c0_0 = arith.constant 0 : index
    %0 = vector.load %arg4[%c0, %c0_0] : memref<256x96xf32, #tpu.memory_space<vmem>>, vector<256x96xf32>
    %c0_1 = arith.constant 0 : index
    %c0_2 = arith.constant 0 : index
    %1 = vector.load %arg5[%c0_1, %c0_2] : memref<1x96xf32, #tpu.memory_space<vmem>>, vector<1x96xf32>
    %c0_3 = arith.constant 0 : index
    %c0_4 = arith.constant 0 : index
    %2 = vector.load %arg6[%c0_3, %c0_4] : memref<256x96xf32, #tpu.memory_space<vmem>>, vector<256x96xf32>
    %c0_5 = arith.constant 0 : index
    %c0_6 = arith.constant 0 : index
    %3 = vector.load %arg7[%c0_5, %c0_6] : memref<1x96xf32, #tpu.memory_space<vmem>>, vector<1x96xf32>
    %c0_7 = arith.constant 0 : index
    %c0_8 = arith.constant 0 : index
    %4 = vector.load %arg8[%c0_7, %c0_8] : memref<32x32xf32, #tpu.memory_space<vmem>>, vector<32x32xf32>
    %c0_9 = arith.constant 0 : index
    %c0_10 = arith.constant 0 : index
    %5 = vector.load %arg9[%c0_9, %c0_10] : memref<1x32xf32, #tpu.memory_space<vmem>>, vector<1x32xf32>
    %c0_11 = arith.constant 0 : index
    %c0_12 = arith.constant 0 : index
    %6 = vector.load %arg10[%c0_11, %c0_12] : memref<32x32xf32, #tpu.memory_space<vmem>>, vector<32x32xf32>
    %c0_13 = arith.constant 0 : index
    %c0_14 = arith.constant 0 : index
    %7 = vector.load %arg11[%c0_13, %c0_14] : memref<1x32xf32, #tpu.memory_space<vmem>>, vector<1x32xf32>
    %c0_15 = arith.constant 0 : index
    %c0_16 = arith.constant 0 : index
    %8 = vector.load %arg12[%c0_15, %c0_16] : memref<1152x256xf32, #tpu.memory_space<vmem>>, vector<1152x256xf32>
    %c0_17 = arith.constant 0 : index
    %c0_18 = arith.constant 0 : index
    %9 = vector.load %arg13[%c0_17, %c0_18] : memref<1x256xf32, #tpu.memory_space<vmem>>, vector<1x256xf32>
    %c0_19 = arith.constant 0 : index
    %c0_20 = arith.constant 0 : index
    %10 = vector.load %arg14[%c0_19, %c0_20] : memref<256x256xf32, #tpu.memory_space<vmem>>, vector<256x256xf32>
    %c0_21 = arith.constant 0 : index
    %c0_22 = arith.constant 0 : index
    %11 = vector.load %arg15[%c0_21, %c0_22] : memref<1x256xf32, #tpu.memory_space<vmem>>, vector<1x256xf32>
    %c0_23 = arith.constant 0 : index
    %c0_24 = arith.constant 0 : index
    %12 = vector.load %arg16[%c0_23, %c0_24] : memref<256x96xf32, #tpu.memory_space<vmem>>, vector<256x96xf32>
    %c0_25 = arith.constant 0 : index
    %c0_26 = arith.constant 0 : index
    %13 = vector.load %arg17[%c0_25, %c0_26] : memref<1x96xf32, #tpu.memory_space<vmem>>, vector<1x96xf32>
    %c0_27 = arith.constant 0 : index
    %c0_28 = arith.constant 0 : index
    %14 = vector.load %arg18[%c0_27, %c0_28] : memref<256x96xf32, #tpu.memory_space<vmem>>, vector<256x96xf32>
    %c0_29 = arith.constant 0 : index
    %c0_30 = arith.constant 0 : index
    %15 = vector.load %arg19[%c0_29, %c0_30] : memref<1x96xf32, #tpu.memory_space<vmem>>, vector<1x96xf32>
    %c0_31 = arith.constant 0 : index
    %c0_32 = arith.constant 0 : index
    %16 = vector.load %arg20[%c0_31, %c0_32] : memref<32x32xf32, #tpu.memory_space<vmem>>, vector<32x32xf32>
    %c0_33 = arith.constant 0 : index
    %c0_34 = arith.constant 0 : index
    %17 = vector.load %arg21[%c0_33, %c0_34] : memref<1x32xf32, #tpu.memory_space<vmem>>, vector<1x32xf32>
    %c0_35 = arith.constant 0 : index
    %c0_36 = arith.constant 0 : index
    %18 = vector.load %arg22[%c0_35, %c0_36] : memref<32x32xf32, #tpu.memory_space<vmem>>, vector<32x32xf32>
    %c0_37 = arith.constant 0 : index
    %c0_38 = arith.constant 0 : index
    %19 = vector.load %arg23[%c0_37, %c0_38] : memref<1x32xf32, #tpu.memory_space<vmem>>, vector<1x32xf32>
    %c0_39 = arith.constant 0 : index
    %c0_40 = arith.constant 0 : index
    %20 = vector.load %arg24[%c0_39, %c0_40] : memref<1152x256xf32, #tpu.memory_space<vmem>>, vector<1152x256xf32>
    %c0_41 = arith.constant 0 : index
    %c0_42 = arith.constant 0 : index
    %21 = vector.load %arg25[%c0_41, %c0_42] : memref<1x256xf32, #tpu.memory_space<vmem>>, vector<1x256xf32>
    %c0_43 = arith.constant 0 : index
    %c0_44 = arith.constant 0 : index
    %22 = vector.load %arg26[%c0_43, %c0_44] : memref<256x256xf32, #tpu.memory_space<vmem>>, vector<256x256xf32>
    %c0_45 = arith.constant 0 : index
    %c0_46 = arith.constant 0 : index
    %23 = vector.load %arg27[%c0_45, %c0_46] : memref<1x256xf32, #tpu.memory_space<vmem>>, vector<1x256xf32>
    %c0_47 = arith.constant 0 : index
    %c0_48 = arith.constant 0 : index
    %24 = vector.load %arg3[%c0_47, %c0_48] : memref<33x1152xf32, #tpu.memory_space<vmem>>, vector<33x1152xf32>
    %c0_49 = arith.constant 0 : index
    %c0_50 = arith.constant 0 : index
    %25 = vector.load %arg0[%c0_49, %c0_50] : memref<1x256xf32, #tpu.memory_space<vmem>>, vector<1x256xf32>
    %c0_51 = arith.constant 0 : index
    %c0_52 = arith.constant 0 : index
    %26 = vector.load %arg1[%c0_51, %c0_52] : memref<1x256xf32, #tpu.memory_space<vmem>>, vector<1x256xf32>
    %cst = arith.constant dense<0.000000e+00> : vector<1x96xf32>
    %27 = tpu.matmul %25, %0, %cst {dimension_numbers = #tpu.dot_dimension_numbers<[1], [0], [0], [1], [0, 0, 1, 1], [], []>} : vector<1x256xf32>, vector<256x96xf32>, vector<1x96xf32> -> vector<1x96xf32>
    %28 = arith.addf %27, %1 : vector<1x96xf32>
    %cst_53 = arith.constant dense<0.000000e+00> : vector<1x96xf32>
    %29 = tpu.matmul %26, %2, %cst_53 {dimension_numbers = #tpu.dot_dimension_numbers<[1], [0], [0], [1], [0, 0, 1, 1], [], []>} : vector<1x256xf32>, vector<256x96xf32>, vector<1x96xf32> -> vector<1x96xf32>
    %30 = arith.addf %29, %3 : vector<1x96xf32>
    %31 = vector.extract_strided_slice %28 {offsets = [0, 0], sizes = [1, 32], strides = [1, 1]} : vector<1x96xf32> to vector<1x32xf32>
    %cst_54 = arith.constant 0.000000e+00 : f32
    %32 = vector.broadcast %cst_54 : f32 to vector<1x32xf32>
    %33 = arith.maximumf %31, %32 : vector<1x32xf32>
    %34 = vector.extract_strided_slice %30 {offsets = [0, 0], sizes = [1, 32], strides = [1, 1]} : vector<1x96xf32> to vector<1x32xf32>
    %cst_55 = arith.constant 0.000000e+00 : f32
    %35 = vector.broadcast %cst_55 : f32 to vector<1x32xf32>
    %36 = arith.maximumf %34, %35 : vector<1x32xf32>
    %37 = vector.extract_strided_slice %28 {offsets = [0, 32], sizes = [1, 32], strides = [1, 1]} : vector<1x96xf32> to vector<1x32xf32>
    %38 = vector.extract_strided_slice %30 {offsets = [0, 32], sizes = [1, 32], strides = [1, 1]} : vector<1x96xf32> to vector<1x32xf32>
    %39 = arith.addf %37, %38 : vector<1x32xf32>
    %40 = vector.extract_strided_slice %28 {offsets = [0, 64], sizes = [1, 32], strides = [1, 1]} : vector<1x96xf32> to vector<1x32xf32>
    %41 = vector.extract_strided_slice %30 {offsets = [0, 64], sizes = [1, 32], strides = [1, 1]} : vector<1x96xf32> to vector<1x32xf32>
    %42 = arith.addf %40, %41 : vector<1x32xf32>
    %cst_56 = arith.constant 0.000000e+00 : f32
    %43 = vector.broadcast %cst_56 : f32 to vector<1x32xf32>
    %44 = arith.subf %43, %39 : vector<1x32xf32>
    %45 = math.exp %44 : vector<1x32xf32>
    %cst_57 = arith.constant 1.000000e+00 : f32
    %46 = vector.broadcast %cst_57 : f32 to vector<1x32xf32>
    %47 = arith.addf %46, %45 : vector<1x32xf32>
    %cst_58 = arith.constant 1.000000e+00 : f32
    %48 = vector.broadcast %cst_58 : f32 to vector<1x32xf32>
    %49 = arith.divf %48, %47 : vector<1x32xf32>
    %50 = arith.mulf %49, %33 : vector<1x32xf32>
    %cst_59 = arith.constant dense<0.000000e+00> : vector<1x32xf32>
    %51 = tpu.matmul %50, %4, %cst_59 {dimension_numbers = #tpu.dot_dimension_numbers<[1], [0], [0], [1], [0, 0, 1, 1], [], []>} : vector<1x32xf32>, vector<32x32xf32>, vector<1x32xf32> -> vector<1x32xf32>
    %52 = arith.addf %51, %5 : vector<1x32xf32>
    %cst_60 = arith.constant 0.000000e+00 : f32
    %53 = vector.broadcast %cst_60 : f32 to vector<1x32xf32>
    %54 = arith.maximumf %52, %53 : vector<1x32xf32>
    %cst_61 = arith.constant 0.000000e+00 : f32
    %55 = vector.broadcast %cst_61 : f32 to vector<1x32xf32>
    %56 = arith.subf %55, %42 : vector<1x32xf32>
    %57 = math.exp %56 : vector<1x32xf32>
    %cst_62 = arith.constant 1.000000e+00 : f32
    %58 = vector.broadcast %cst_62 : f32 to vector<1x32xf32>
    %59 = arith.addf %58, %57 : vector<1x32xf32>
    %cst_63 = arith.constant 1.000000e+00 : f32
    %60 = vector.broadcast %cst_63 : f32 to vector<1x32xf32>
    %61 = arith.divf %60, %59 : vector<1x32xf32>
    %62 = arith.mulf %61, %36 : vector<1x32xf32>
    %cst_64 = arith.constant dense<0.000000e+00> : vector<1x32xf32>
    %63 = tpu.matmul %62, %6, %cst_64 {dimension_numbers = #tpu.dot_dimension_numbers<[1], [0], [0], [1], [0, 0, 1, 1], [], []>} : vector<1x32xf32>, vector<32x32xf32>, vector<1x32xf32> -> vector<1x32xf32>
    %64 = arith.addf %63, %7 : vector<1x32xf32>
    %cst_65 = arith.constant 0.000000e+00 : f32
    %65 = vector.broadcast %cst_65 : f32 to vector<1x32xf32>
    %66 = arith.maximumf %64, %65 : vector<1x32xf32>
    %cst_66 = arith.constant 1.000000e+00 : f32
    %67 = vector.broadcast %cst_66 : f32 to vector<1x1xf32>
    %68 = tpu.concatenate %54, %67 in 1 : vector<1x32xf32>, vector<1x1xf32> -> vector<1x33xf32>
    %69 = tpu.concatenate %66, %67 in 1 : vector<1x32xf32>, vector<1x1xf32> -> vector<1x33xf32>
    %cst_67 = arith.constant dense<0.000000e+00> : vector<1x1152xf32>
    %70 = tpu.matmul %69, %24, %cst_67 {dimension_numbers = #tpu.dot_dimension_numbers<[1], [0], [0], [1], [0, 0, 1, 1], [], []>} : vector<1x33xf32>, vector<33x1152xf32>, vector<1x1152xf32> -> vector<1x1152xf32>
    %71 = tpu.iota {dimensions = array<i32: 0>} : vector<33x1152xi32>
    %72 = tpu.iota {dimensions = array<i32: 1>} : vector<33x1152xi32>
    %c33_i32 = arith.constant 33 : i32
    %73 = vector.broadcast %c33_i32 : i32 to vector<33x1152xi32>
    %74 = arith.muli %71, %73 : vector<33x1152xi32>
    %75 = arith.cmpi sge, %72, %74 : vector<33x1152xi32>
    %c33_i32_68 = arith.constant 33 : i32
    %76 = vector.broadcast %c33_i32_68 : i32 to vector<33x1152xi32>
    %77 = arith.muli %71, %76 : vector<33x1152xi32>
    %c33_i32_69 = arith.constant 33 : i32
    %78 = vector.broadcast %c33_i32_69 : i32 to vector<33x1152xi32>
    %79 = arith.addi %77, %78 : vector<33x1152xi32>
    %80 = arith.cmpi slt, %72, %79 : vector<33x1152xi32>
    %81 = arith.andi %75, %80 : vector<33x1152xi1>
    %cst_70 = arith.constant 0.000000e+00 : f32
    %82 = vector.shape_cast %70 : vector<1x1152xf32> to vector<1x1152xf32>
    %83 = vector.broadcast %82 : vector<1x1152xf32> to vector<33x1152xf32>
    %84 = vector.broadcast %cst_70 : f32 to vector<33x1152xf32>
    %85 = arith.select %81, %83, %84 : vector<33x1152xi1>, vector<33x1152xf32>
    %cst_71 = arith.constant dense<0.000000e+00> : vector<33x256xf32>
    %86 = tpu.matmul %85, %8, %cst_71 {dimension_numbers = #tpu.dot_dimension_numbers<[1], [0], [0], [1], [0, 0, 1, 1], [], []>} : vector<33x1152xf32>, vector<1152x256xf32>, vector<33x256xf32> -> vector<33x256xf32>
    %cst_72 = arith.constant dense<0.000000e+00> : vector<1x256xf32>
    %87 = tpu.matmul %68, %86, %cst_72 {dimension_numbers = #tpu.dot_dimension_numbers<[1], [0], [0], [1], [0, 0, 1, 1], [], []>} : vector<1x33xf32>, vector<33x256xf32>, vector<1x256xf32> -> vector<1x256xf32>
    %88 = arith.addf %87, %9 : vector<1x256xf32>
    %cst_73 = arith.constant 0.000000e+00 : f32
    %89 = vector.broadcast %cst_73 : f32 to vector<1x256xf32>
    %90 = arith.maximumf %88, %89 : vector<1x256xf32>
    %cst_74 = arith.constant dense<0.000000e+00> : vector<1x256xf32>
    %91 = tpu.matmul %90, %10, %cst_74 {dimension_numbers = #tpu.dot_dimension_numbers<[1], [0], [0], [1], [0, 0, 1, 1], [], []>} : vector<1x256xf32>, vector<256x256xf32>, vector<1x256xf32> -> vector<1x256xf32>
    %92 = arith.addf %91, %11 : vector<1x256xf32>
    %cst_75 = arith.constant 0.000000e+00 : f32
    %93 = vector.broadcast %cst_75 : f32 to vector<1x256xf32>
    %94 = arith.maximumf %92, %93 : vector<1x256xf32>
    %c0_76 = arith.constant 0 : index
    %c0_77 = arith.constant 0 : index
    %95 = vector.load %arg2[%c0_76, %c0_77] : memref<1x256xf32, #tpu.memory_space<vmem>>, vector<1x256xf32>
    %cst_78 = arith.constant dense<0.000000e+00> : vector<1x96xf32>
    %96 = tpu.matmul %94, %12, %cst_78 {dimension_numbers = #tpu.dot_dimension_numbers<[1], [0], [0], [1], [0, 0, 1, 1], [], []>} : vector<1x256xf32>, vector<256x96xf32>, vector<1x96xf32> -> vector<1x96xf32>
    %97 = arith.addf %96, %13 : vector<1x96xf32>
    %cst_79 = arith.constant dense<0.000000e+00> : vector<1x96xf32>
    %98 = tpu.matmul %95, %14, %cst_79 {dimension_numbers = #tpu.dot_dimension_numbers<[1], [0], [0], [1], [0, 0, 1, 1], [], []>} : vector<1x256xf32>, vector<256x96xf32>, vector<1x96xf32> -> vector<1x96xf32>
    %99 = arith.addf %98, %15 : vector<1x96xf32>
    %100 = vector.extract_strided_slice %97 {offsets = [0, 0], sizes = [1, 32], strides = [1, 1]} : vector<1x96xf32> to vector<1x32xf32>
    %cst_80 = arith.constant 0.000000e+00 : f32
    %101 = vector.broadcast %cst_80 : f32 to vector<1x32xf32>
    %102 = arith.maximumf %100, %101 : vector<1x32xf32>
    %103 = vector.extract_strided_slice %99 {offsets = [0, 0], sizes = [1, 32], strides = [1, 1]} : vector<1x96xf32> to vector<1x32xf32>
    %cst_81 = arith.constant 0.000000e+00 : f32
    %104 = vector.broadcast %cst_81 : f32 to vector<1x32xf32>
    %105 = arith.maximumf %103, %104 : vector<1x32xf32>
    %106 = vector.extract_strided_slice %97 {offsets = [0, 32], sizes = [1, 32], strides = [1, 1]} : vector<1x96xf32> to vector<1x32xf32>
    %107 = vector.extract_strided_slice %99 {offsets = [0, 32], sizes = [1, 32], strides = [1, 1]} : vector<1x96xf32> to vector<1x32xf32>
    %108 = arith.addf %106, %107 : vector<1x32xf32>
    %109 = vector.extract_strided_slice %97 {offsets = [0, 64], sizes = [1, 32], strides = [1, 1]} : vector<1x96xf32> to vector<1x32xf32>
    %110 = vector.extract_strided_slice %99 {offsets = [0, 64], sizes = [1, 32], strides = [1, 1]} : vector<1x96xf32> to vector<1x32xf32>
    %111 = arith.addf %109, %110 : vector<1x32xf32>
    %cst_82 = arith.constant 0.000000e+00 : f32
    %112 = vector.broadcast %cst_82 : f32 to vector<1x32xf32>
    %113 = arith.subf %112, %108 : vector<1x32xf32>
    %114 = math.exp %113 : vector<1x32xf32>
    %cst_83 = arith.constant 1.000000e+00 : f32
    %115 = vector.broadcast %cst_83 : f32 to vector<1x32xf32>
    %116 = arith.addf %115, %114 : vector<1x32xf32>
    %cst_84 = arith.constant 1.000000e+00 : f32
    %117 = vector.broadcast %cst_84 : f32 to vector<1x32xf32>
    %118 = arith.divf %117, %116 : vector<1x32xf32>
    %119 = arith.mulf %118, %102 : vector<1x32xf32>
    %cst_85 = arith.constant dense<0.000000e+00> : vector<1x32xf32>
    %120 = tpu.matmul %119, %16, %cst_85 {dimension_numbers = #tpu.dot_dimension_numbers<[1], [0], [0], [1], [0, 0, 1, 1], [], []>} : vector<1x32xf32>, vector<32x32xf32>, vector<1x32xf32> -> vector<1x32xf32>
    %121 = arith.addf %120, %17 : vector<1x32xf32>
    %cst_86 = arith.constant 0.000000e+00 : f32
    %122 = vector.broadcast %cst_86 : f32 to vector<1x32xf32>
    %123 = arith.maximumf %121, %122 : vector<1x32xf32>
    %cst_87 = arith.constant 0.000000e+00 : f32
    %124 = vector.broadcast %cst_87 : f32 to vector<1x32xf32>
    %125 = arith.subf %124, %111 : vector<1x32xf32>
    %126 = math.exp %125 : vector<1x32xf32>
    %cst_88 = arith.constant 1.000000e+00 : f32
    %127 = vector.broadcast %cst_88 : f32 to vector<1x32xf32>
    %128 = arith.addf %127, %126 : vector<1x32xf32>
    %cst_89 = arith.constant 1.000000e+00 : f32
    %129 = vector.broadcast %cst_89 : f32 to vector<1x32xf32>
    %130 = arith.divf %129, %128 : vector<1x32xf32>
    %131 = arith.mulf %130, %105 : vector<1x32xf32>
    %cst_90 = arith.constant dense<0.000000e+00> : vector<1x32xf32>
    %132 = tpu.matmul %131, %18, %cst_90 {dimension_numbers = #tpu.dot_dimension_numbers<[1], [0], [0], [1], [0, 0, 1, 1], [], []>} : vector<1x32xf32>, vector<32x32xf32>, vector<1x32xf32> -> vector<1x32xf32>
    %133 = arith.addf %132, %19 : vector<1x32xf32>
    %cst_91 = arith.constant 0.000000e+00 : f32
    %134 = vector.broadcast %cst_91 : f32 to vector<1x32xf32>
    %135 = arith.maximumf %133, %134 : vector<1x32xf32>
    %cst_92 = arith.constant 1.000000e+00 : f32
    %136 = vector.broadcast %cst_92 : f32 to vector<1x1xf32>
    %137 = tpu.concatenate %123, %136 in 1 : vector<1x32xf32>, vector<1x1xf32> -> vector<1x33xf32>
    %138 = tpu.concatenate %135, %136 in 1 : vector<1x32xf32>, vector<1x1xf32> -> vector<1x33xf32>
    %cst_93 = arith.constant dense<0.000000e+00> : vector<1x1152xf32>
    %139 = tpu.matmul %138, %24, %cst_93 {dimension_numbers = #tpu.dot_dimension_numbers<[1], [0], [0], [1], [0, 0, 1, 1], [], []>} : vector<1x33xf32>, vector<33x1152xf32>, vector<1x1152xf32> -> vector<1x1152xf32>
    %140 = tpu.iota {dimensions = array<i32: 0>} : vector<33x1152xi32>
    %141 = tpu.iota {dimensions = array<i32: 1>} : vector<33x1152xi32>
    %c33_i32_94 = arith.constant 33 : i32
    %142 = vector.broadcast %c33_i32_94 : i32 to vector<33x1152xi32>
    %143 = arith.muli %140, %142 : vector<33x1152xi32>
    %144 = arith.cmpi sge, %141, %143 : vector<33x1152xi32>
    %c33_i32_95 = arith.constant 33 : i32
    %145 = vector.broadcast %c33_i32_95 : i32 to vector<33x1152xi32>
    %146 = arith.muli %140, %145 : vector<33x1152xi32>
    %c33_i32_96 = arith.constant 33 : i32
    %147 = vector.broadcast %c33_i32_96 : i32 to vector<33x1152xi32>
    %148 = arith.addi %146, %147 : vector<33x1152xi32>
    %149 = arith.cmpi slt, %141, %148 : vector<33x1152xi32>
    %150 = arith.andi %144, %149 : vector<33x1152xi1>
    %cst_97 = arith.constant 0.000000e+00 : f32
    %151 = vector.shape_cast %139 : vector<1x1152xf32> to vector<1x1152xf32>
    %152 = vector.broadcast %151 : vector<1x1152xf32> to vector<33x1152xf32>
    %153 = vector.broadcast %cst_97 : f32 to vector<33x1152xf32>
    %154 = arith.select %150, %152, %153 : vector<33x1152xi1>, vector<33x1152xf32>
    %cst_98 = arith.constant dense<0.000000e+00> : vector<33x256xf32>
    %155 = tpu.matmul %154, %20, %cst_98 {dimension_numbers = #tpu.dot_dimension_numbers<[1], [0], [0], [1], [0, 0, 1, 1], [], []>} : vector<33x1152xf32>, vector<1152x256xf32>, vector<33x256xf32> -> vector<33x256xf32>
    %cst_99 = arith.constant dense<0.000000e+00> : vector<1x256xf32>
    %156 = tpu.matmul %137, %155, %cst_99 {dimension_numbers = #tpu.dot_dimension_numbers<[1], [0], [0], [1], [0, 0, 1, 1], [], []>} : vector<1x33xf32>, vector<33x256xf32>, vector<1x256xf32> -> vector<1x256xf32>
    %157 = arith.addf %156, %21 : vector<1x256xf32>
    %cst_100 = arith.constant 0.000000e+00 : f32
    %158 = vector.broadcast %cst_100 : f32 to vector<1x256xf32>
    %159 = arith.maximumf %157, %158 : vector<1x256xf32>
    %cst_101 = arith.constant dense<0.000000e+00> : vector<1x256xf32>
    %160 = tpu.matmul %159, %22, %cst_101 {dimension_numbers = #tpu.dot_dimension_numbers<[1], [0], [0], [1], [0, 0, 1, 1], [], []>} : vector<1x256xf32>, vector<256x256xf32>, vector<1x256xf32> -> vector<1x256xf32>
    %161 = arith.addf %160, %23 : vector<1x256xf32>
    %cst_102 = arith.constant 0.000000e+00 : f32
    %162 = vector.broadcast %cst_102 : f32 to vector<1x256xf32>
    %163 = arith.maximumf %161, %162 : vector<1x256xf32>
    %c0_103 = arith.constant 0 : index
    %c0_104 = arith.constant 0 : index
    %164 = vector.load %arg32[%c0_103, %c0_104] : memref<1x256xf32, #tpu.memory_space<vmem>>, vector<1x256xf32>
    tpu.vector_store %arg32[%c0_103, %c0_104], %163 {strides = array<i32>} : memref<1x256xf32, #tpu.memory_space<vmem>>, vector<1x256xf32>,
    %c0_105 = arith.constant 0 : index
    %c0_106 = arith.constant 0 : index
    %165 = vector.load %arg28[%c0_105, %c0_106] : memref<256x4xf32, #tpu.memory_space<vmem>>, vector<256x4xf32>
    %cst_107 = arith.constant dense<0.000000e+00> : vector<1x4xf32>
    %166 = tpu.matmul %163, %165, %cst_107 {dimension_numbers = #tpu.dot_dimension_numbers<[1], [0], [0], [1], [0, 0, 1, 1], [], []>} : vector<1x256xf32>, vector<256x4xf32>, vector<1x4xf32> -> vector<1x4xf32>
    %c0_108 = arith.constant 0 : index
    %c0_109 = arith.constant 0 : index
    %167 = vector.load %arg29[%c0_108, %c0_109] : memref<1x4xf32, #tpu.memory_space<vmem>>, vector<1x4xf32>
    %168 = arith.addf %166, %167 : vector<1x4xf32>
    %c0_110 = arith.constant 0 : index
    %c0_111 = arith.constant 0 : index
    %169 = vector.load %arg30[%c0_110, %c0_111] : memref<1x4xf32, #tpu.memory_space<vmem>>, vector<1x4xf32>
    tpu.vector_store %arg30[%c0_110, %c0_111], %168 {strides = array<i32>} : memref<1x4xf32, #tpu.memory_space<vmem>>, vector<1x4xf32>,
    %cst_112 = arith.constant dense<0xFF800000> : vector<1xf32>
    %170 = vector.multi_reduction <maximumf>, %168, %cst_112 [1] : vector<1x4xf32> to vector<1xf32>
    %171 = vector.shape_cast %170 : vector<1xf32> to vector<1x1xf32>
    %172 = vector.broadcast %171 : vector<1x1xf32> to vector<1x4xf32>
    %173 = arith.subf %168, %172 : vector<1x4xf32>
    %174 = math.exp %173 : vector<1x4xf32>
    %cst_113 = arith.constant dense<0.000000e+00> : vector<1xf32>
    %175 = vector.multi_reduction <add>, %174, %cst_113 [1] : vector<1x4xf32> to vector<1xf32>
    %176 = vector.shape_cast %175 : vector<1xf32> to vector<1x1xf32>
    %177 = tpu.reciprocal %176 {approx = true} : vector<1x1xf32> -> vector<1x1xf32>
    %178 = vector.broadcast %177 : vector<1x1xf32> to vector<1x4xf32>
    %179 = arith.mulf %174, %178 : vector<1x4xf32>
    %c0_114 = arith.constant 0 : index
    %c0_115 = arith.constant 0 : index
    %180 = vector.load %arg31[%c0_114, %c0_115] : memref<1x4xf32, #tpu.memory_space<vmem>>, vector<1x4xf32>
    tpu.vector_store %arg31[%c0_114, %c0_115], %179 {strides = array<i32>} : memref<1x4xf32, #tpu.memory_space<vmem>>, vector<1x4xf32>,
    return
  }
}

</mosaic_0001>

<llo_original>
// kernel: abmil_snn_forward.4
$region0: #{abmil_snn_forward.4}
  #allocation0 [shape = 'u32[]', space=smem, size = 0x4, offset = 0x4, fixed_abs, tag = 'smem constant byte address 0x4 - core index']
  #allocation1 [shape = 'u32[144,128]{1,0:T(1,128)}', space=vmem, size = 0x12000, scoped, tag = 'internal scratch']
  #allocation2 [shape = 'f32[1,1]{1,0:T(1,128)}', space=vmem, size = 0x200, scoped, tag = 'scratch operand']
  #allocation3 [shape = 'f32[1,1]{1,0:T(1,128)}', space=vmem, size = 0x200, scoped, tag = 'scratch operand']
  #allocation4 [shape = 'f32[1,256]{1,0:T(1,128)}', space=vmem, size = 0x400, scoped, tag = 'scratch operand']
  #allocation5 [shape = 's32[1]{0}', space=sflag, size = 0x4, scoped, tag = 'scoped memory for abmil_snn_forward.4']
  #allocation6 [shape = 'u8[512]{0}', space=smem, size = 0x200, scoped, tag = 'prefetched SMEM operand 0']
  #allocation7 [shape = 'f32[1,1]{1,0:T(1,128)S(1)}', space=vmem, size = 0x200, scoped, tag = 'scoped memory for abmil_snn_forward.4']
  %s0 = inlined_call_operand.vmem [shape: s32[2], index: 0, kind: input, shape index: {}]
  %s1 = inlined_call_operand.vmem [shape: bf16[2,16,512], index: 1, kind: input, shape index: {}]
  %s2 = inlined_call_operand.hbm [shape: bf16[2,512,256], index: 2, kind: input, shape index: {}]
  %s3 = inlined_call_operand.hbm [shape: f32[2,1,256], index: 3, kind: input, shape index: {}]
  %s4 = inlined_call_operand.hbm [shape: f32[256,256], index: 4, kind: input, shape index: {}]
  %s5 = inlined_call_operand.hbm [shape: f32[1,256], index: 5, kind: input, shape index: {}]
  %s6 = inlined_call_operand.hbm [shape: f32[1,128], index: 6, kind: input, shape index: {}]
  %s7 = inlined_call_operand.<no memory space> [shape: f32[1,1], index: 7, kind: input, shape index: {}]
  %s8 = inlined_call_operand.vmem [shape: f32[2,1,256], index: 8, kind: output, shape index: {}]
  %s9 = sld [smem:[#allocation0]]
  $region89: #{abmil_snn_forward.4} parent=0
    _
  %s11 = ssub.s32 1, %s9
  %s12 = scalar_select 0, %s11, %s9
  %s13 = sshll.u32 %s0, 4
  %s14 = int_to_ptr.vmem [resolvable:$true] %s13
  %16 = dma.vmem_to_smem %s14, 16, [#allocation6], [#allocation5]
  %v17 = vstv %s7
  %18 = vst [vmem:[#allocation7] sm:$0x1] %v17
  %19 = dma.done [#allocation5], 16
  %20 = sfence
  $region1: #{abmil_snn_forward.4} parent=0
    #allocation8 [shape = 'u8[524288]{0}', space=vmem, size = 0x80000, scoped, tag = 'input window, operand 2']
    #allocation9 [shape = 's32[2]{0}', space=sflag, size = 0x8, scoped, tag = 'scoped memory for abmil_snn_forward.4']
    #allocation10 [shape = 'u8[2048]{0}', space=vmem, size = 0x800, scoped, tag = 'input window, operand 3']
    #allocation11 [shape = 's32[2]{0}', space=sflag, size = 0x8, scoped, tag = 'scoped memory for abmil_snn_forward.4']
    #allocation12 [shape = 'u8[262144]{0}', space=vmem, size = 0x40000, scoped, tag = 'input window, operand 4, single buffered']
    #allocation13 [shape = 'u8[1024]{0}', space=vmem, size = 0x400, scoped, tag = 'input window, operand 5, single buffered']
    #allocation14 [shape = 's32[1]{0}', space=sflag, size = 0x4, scoped, tag = 'scoped memory for abmil_snn_forward.4']
    #allocation15 [shape = 'u8[512]{0}', space=vmem, size = 0x400, scoped, tag = 'input window, operand 6, single buffered']
    %21 = vsyncpa [#allocation9], 0
    %s22 = scalar_lea.sflag [#allocation9], 1
    %23 = vsyncpa %s22, 0
    %24 = vsyncpa [#allocation11], 0
    %s25 = scalar_lea.sflag [#allocation11], 1
    %26 = vsyncpa %s25, 0
    %27 = vsyncpa [#allocation14], 0
    loop: start=0, step=1, limit=4
    $region2: #{abmil_snn_forward.4} parent=1 // loop_pre_header
      _
    $region3: #{abmil_snn_forward.4} parent=1 // loop_header
      %s29 = sphi 0, %s33
      %p30 = scmp.ge.s32.totalorder %s29, 4
      %s36 = sphi 0, %s48
      %s37 = sphi 0, %s44
      %s38 = sphi 0, %s36
      %s39 = sphi 0, %s37
      %s40 = sphi 0, %s38
      %s41 = sphi 0, %s39
      %s53 = sphi 0, %s55
      %s56 = sphi 0, %s53
      %s57 = sphi 0, %s56
      %s73 = sphi 0, %s57
      %s79 = sphi 0, %s81
      %s82 = sphi 0, %s79
      %s83 = sphi 0, %s82
      %s99 = sphi 0, %s83
      %s105 = sphi 0, %s107
      %s108 = sphi 0, %s105
      %s109 = sphi 0, %s108
      %s125 = sphi 0, %s109
      %s129 = sphi 0, %s129
      %s131 = sphi 0, %s129
      %s132 = sphi 0, %s131
      %s146 = sphi 0, %s132
      %s150 = sphi 0, %s150
      %s152 = sphi 0, %s150
      %s153 = sphi 0, %s152
      %s167 = sphi 0, %s153
      %s171 = sphi 0, %s171
      %s173 = sphi 0, %s171
      %s174 = sphi 0, %s173
      %s188 = sphi 0, %s174
      %s192 = sphi 0, %s192
      %s194 = sphi 0, %s192
      %s195 = sphi 0, %s194
      %s209 = sphi 0, %s195
      %s215 = sphi 0, %s217
      %s218 = sphi 0, %s215
      %s219 = sphi 0, %s218
      %s235 = sphi 0, %s219
    $region4: #{abmil_snn_forward.4} parent=1 // loop_header_branch
      %32 = sbr.rel (%p30) target = $region8
    $region5: #{abmil_snn_forward.4} parent=1 // loop_body
      %s34 = ssub.s32 %s29, 1
      %s35 = ssub.s32 %s29, 2
      %s42 = sadd.s32 1, %s37
      %p43 = scmp.ge.s32.totalorder %s42, 1
      %s44 = scalar_select %p43, 0, %s42
      %s45 = sadd.s32 1, %s36
      %s46 = scalar_select %p43, %s45, %s36
      %p47 = scmp.ge.s32.totalorder %s46, 2
      %s48 = scalar_select %p47, 0, %s46
      %s49 = ssub.s32 %s36, %s48
      %s50 = ssub.s32 %s37, %s44
      %s51 = sor.u32 %s49, %s50
      %p52 = scmp.eq.s32.totalorder %s51, 0
      %s54 = sadd.s32 %s53, 1
      %s55 = scalar_select %p52, %s53, %s54
      %p58 = pneg %p52
      %p59 = scmp.eq.s32.totalorder %s29, 1
      %p60 = por %p58, %p59
      %p61 = scmp.ne.s32.totalorder %s53, %s56
      %p62 = scmp.eq.s32.totalorder %s29, 0
      %p63 = por %p61, %p62
      %p64 = scmp.ne.s32.totalorder %s53, %s56
      %p65 = scmp.eq.s32.totalorder %s34, 1
      %p66 = por %p64, %p65
      %p67 = scmp.ne.s32.totalorder %s56, %s57
      %p68 = scmp.eq.s32.totalorder %s34, 0
      %p69 = por %p67, %p68
      %p70 = scmp.ne.s32.totalorder %s56, %s57
      %p71 = scmp.eq.s32.totalorder %s35, 1
      %p72 = por %p70, %p71
      %p74 = scmp.ne.s32.totalorder %s57, %s73
      %p75 = scmp.eq.s32.totalorder %s35, 0
      %p76 = por %p74, %p75
      %s77 = ssub.s32 %s36, %s48
      %p78 = scmp.eq.s32.totalorder %s77, 0
      %s80 = sadd.s32 %s79, 1
      %s81 = scalar_select %p78, %s79, %s80
      %p84 = pneg %p78
      %p85 = scmp.eq.s32.totalorder %s29, 1
      %p86 = por %p84, %p85
      %p87 = scmp.ne.s32.totalorder %s79, %s82
      %p88 = scmp.eq.s32.totalorder %s29, 0
      %p89 = por %p87, %p88
      %p90 = scmp.ne.s32.totalorder %s79, %s82
      %p91 = scmp.eq.s32.totalorder %s34, 1
      %p92 = por %p90, %p91
      %p93 = scmp.ne.s32.totalorder %s82, %s83
      %p94 = scmp.eq.s32.totalorder %s34, 0
      %p95 = por %p93, %p94
      %p96 = scmp.ne.s32.totalorder %s82, %s83
      %p97 = scmp.eq.s32.totalorder %s35, 1
      %p98 = por %p96, %p97
      %p100 = scmp.ne.s32.totalorder %s83, %s99
      %p101 = scmp.eq.s32.totalorder %s35, 0
      %p102 = por %p100, %p101
      %s103 = ssub.s32 %s36, %s48
      %p104 = scmp.eq.s32.totalorder %s103, 0
      %s106 = sadd.s32 %s105, 1
      %s107 = scalar_select %p104, %s105, %s106
      %p110 = pneg %p104
      %p111 = scmp.eq.s32.totalorder %s29, 1
      %p112 = por %p110, %p111
      %p113 = scmp.ne.s32.totalorder %s105, %s108
      %p114 = scmp.eq.s32.totalorder %s29, 0
      %p115 = por %p113, %p114
      %p116 = scmp.ne.s32.totalorder %s105, %s108
      %p117 = scmp.eq.s32.totalorder %s34, 1
      %p118 = por %p116, %p117
      %p119 = scmp.ne.s32.totalorder %s108, %s109
      %p120 = scmp.eq.s32.totalorder %s34, 0
      %p121 = por %p119, %p120
      %p122 = scmp.ne.s32.totalorder %s108, %s109
      %p123 = scmp.eq.s32.totalorder %s35, 1
      %p124 = por %p122, %p123
      %p126 = scmp.ne.s32.totalorder %s109, %s125
      %p127 = scmp.eq.s32.totalorder %s35, 0
      %p128 = por %p126, %p127
      %s130 = sadd.s32 %s129, 1
      %p133 = scmp.eq.s32.totalorder %s29, 1
      %p134 = scmp.ne.s32.totalorder %s129, %s131
      %p135 = scmp.eq.s32.totalorder %s29, 0
      %p136 = por %p134, %p135
      %p137 = scmp.ne.s32.totalorder %s129, %s131
      %p138 = scmp.eq.s32.totalorder %s34, 1
      %p139 = por %p137, %p138
      %p140 = scmp.ne.s32.totalorder %s131, %s132
      %p141 = scmp.eq.s32.totalorder %s34, 0
      %p142 = por %p140, %p141
      %p143 = scmp.ne.s32.totalorder %s131, %s132
      %p144 = scmp.eq.s32.totalorder %s35, 1
      %p145 = por %p143, %p144
      %p147 = scmp.ne.s32.totalorder %s132, %s146
      %p148 = scmp.eq.s32.totalorder %s35, 0
      %p149 = por %p147, %p148
      %s151 = sadd.s32 %s150, 1
      %p154 = scmp.eq.s32.totalorder %s29, 1
      %p155 = scmp.ne.s32.totalorder %s150, %s152
      %p156 = scmp.eq.s32.totalorder %s29, 0
      %p157 = por %p155, %p156
      %p158 = scmp.ne.s32.totalorder %s150, %s152
      %p159 = scmp.eq.s32.totalorder %s34, 1
      %p160 = por %p158, %p159
      %p161 = scmp.ne.s32.totalorder %s152, %s153
      %p162 = scmp.eq.s32.totalorder %s34, 0
      %p163 = por %p161, %p162
      %p164 = scmp.ne.s32.totalorder %s152, %s153
      %p165 = scmp.eq.s32.totalorder %s35, 1
      %p166 = por %p164, %p165
      %p168 = scmp.ne.s32.totalorder %s153, %s167
      %p169 = scmp.eq.s32.totalorder %s35, 0
      %p170 = por %p168, %p169
      %s172 = sadd.s32 %s171, 1
      %p175 = scmp.eq.s32.totalorder %s29, 1
      %p176 = scmp.ne.s32.totalorder %s171, %s173
      %p177 = scmp.eq.s32.totalorder %s29, 0
      %p178 = por %p176, %p177
      %p179 = scmp.ne.s32.totalorder %s171, %s173
      %p180 = scmp.eq.s32.totalorder %s34, 1
      %p181 = por %p179, %p180
      %p182 = scmp.ne.s32.totalorder %s173, %s174
      %p183 = scmp.eq.s32.totalorder %s34, 0
      %p184 = por %p182, %p183
      %p185 = scmp.ne.s32.totalorder %s173, %s174
      %p186 = scmp.eq.s32.totalorder %s35, 1
      %p187 = por %p185, %p186
      %p189 = scmp.ne.s32.totalorder %s174, %s188
      %p190 = scmp.eq.s32.totalorder %s35, 0
      %p191 = por %p189, %p190
      %s193 = sadd.s32 %s192, 1
      %p196 = scmp.eq.s32.totalorder %s29, 1
      %p197 = scmp.ne.s32.totalorder %s192, %s194
      %p198 = scmp.eq.s32.totalorder %s29, 0
      %p199 = por %p197, %p198
      %p200 = scmp.ne.s32.totalorder %s192, %s194
      %p201 = scmp.eq.s32.totalorder %s34, 1
      %p202 = por %p200, %p201
      %p203 = scmp.ne.s32.totalorder %s194, %s195
      %p204 = scmp.eq.s32.totalorder %s34, 0
      %p205 = por %p203, %p204
      %p206 = scmp.ne.s32.totalorder %s194, %s195
      %p207 = scmp.eq.s32.totalorder %s35, 1
      %p208 = por %p206, %p207
      %p210 = scmp.ne.s32.totalorder %s195, %s209
      %p211 = scmp.eq.s32.totalorder %s35, 0
      %p212 = por %p210, %p211
      %s213 = ssub.s32 %s36, %s48
      %p214 = scmp.eq.s32.totalorder %s213, 0
      %s216 = sadd.s32 %s215, 1
      %s217 = scalar_select %p214, %s215, %s216
      %p220 = pneg %p214
      %p221 = scmp.eq.s32.totalorder %s29, 1
      %p222 = por %p220, %p221
      %p223 = scmp.ne.s32.totalorder %s215, %s218
      %p224 = scmp.eq.s32.totalorder %s29, 0
      %p225 = por %p223, %p224
      %p226 = scmp.ne.s32.totalorder %s215, %s218
      %p227 = scmp.eq.s32.totalorder %s34, 1
      %p228 = por %p226, %p227
      %p229 = scmp.ne.s32.totalorder %s218, %s219
      %p230 = scmp.eq.s32.totalorder %s34, 0
      %p231 = por %p229, %p230
      %p232 = scmp.ne.s32.totalorder %s218, %s219
      %p233 = scmp.eq.s32.totalorder %s35, 1
      %p234 = por %p232, %p233
      %p236 = scmp.ne.s32.totalorder %s219, %s235
      %p237 = scmp.eq.s32.totalorder %s35, 0
      %p238 = por %p236, %p237
      %p239 = scmp.le.s32.totalorder 1, %s29
      %p240 = scmp.lt.s32.totalorder %s29, 3
      %p241 = pnand %p239, %p240
      %p242 = pneg %p241
      // Predicated region
      $region9: #{abmil_snn_forward.4} parent=5 // pred_check
        _
      $region10: #{abmil_snn_forward.4} parent=5 // pred_check_branch
        %244 = sbr.rel (%p241) target = $region12
      $region11: #{abmil_snn_forward.4} parent=5 // pred_region
        %s245 = ssub.s32 %s29, 1
        // Predicated region
        $region13: #{abmil_snn_forward.4} parent=11 // pred_check
          %p246 = pneg %p142
        $region14: #{abmil_snn_forward.4} parent=11 // pred_check_branch
          %248 = sbr.rel (%p246) target = $region16
        $region15: #{abmil_snn_forward.4} parent=11 // pred_region
          %s250 = ssub.s32 8192, 8192
          %251 = vsyncadd [#allocation11], %s250
          %s252 = sshll.u32 [#allocation12], 4
          %s253 = int_to_ptr.vmem [resolvable:$true] %s252
          %258 = dma.hbm_to_vmem [thread:$0]  %s4, 8192, %s253, [#allocation11], 256, 256, 16
        $region16: #{abmil_snn_forward.4} parent=11 // pred_fallthru
          _
        // Predicated region
        $region17: #{abmil_snn_forward.4} parent=11 // pred_check
          %p259 = pneg %p163
        $region18: #{abmil_snn_forward.4} parent=11 // pred_check_branch
          %261 = sbr.rel (%p259) target = $region20
        $region19: #{abmil_snn_forward.4} parent=11 // pred_region
          %s263 = ssub.s32 32, 32
          %264 = vsyncadd [#allocation14], %s263
          %s266 = sshll.u32 [#allocation13], 4
          %s267 = int_to_ptr.vmem [resolvable:$true] %s266
          %269 = dma.hbm_to_vmem [thread:$0]  %s5, 32, %s267, [#allocation14]
        $region20: #{abmil_snn_forward.4} parent=11 // pred_fallthru
          _
        // Predicated region
        $region21: #{abmil_snn_forward.4} parent=11 // pred_check
          %p270 = pneg %p184
        $region22: #{abmil_snn_forward.4} parent=11 // pred_check_branch
          %272 = sbr.rel (%p270) target = $region24
        $region23: #{abmil_snn_forward.4} parent=11 // pred_region
          %s274 = ssub.s32 16, 16
          %275 = vsyncadd [#allocation14], %s274
          %s277 = sshll.u32 [#allocation15], 4
          %s278 = int_to_ptr.vmem [resolvable:$true] %s277
          %280 = dma.hbm_to_vmem [thread:$0]  %s6, 16, %s278, [#allocation14]
        $region24: #{abmil_snn_forward.4} parent=11 // pred_fallthru
          _
        // Predicated region
        $region25: #{abmil_snn_forward.4} parent=11 // pred_check
          %p281 = pneg %p205
        $region26: #{abmil_snn_forward.4} parent=11 // pred_check_branch
          %283 = sbr.rel (%p281) target = $region28
        $region27: #{abmil_snn_forward.4} parent=11 // pred_region
          _
        $region28: #{abmil_snn_forward.4} parent=11 // pred_fallthru
          _
      $region12: #{abmil_snn_forward.4} parent=5 // pred_fallthru
        _
      %p284 = scmp.lt.s32.totalorder %s29, 2
      // Predicated region
      $region29: #{abmil_snn_forward.4} parent=5 // pred_check
        %p285 = pneg %p284
      $region30: #{abmil_snn_forward.4} parent=5 // pred_check_branch
        %287 = sbr.rel (%p285) target = $region32
      $region31: #{abmil_snn_forward.4} parent=5 // pred_region
        // Predicated region
        $region33: #{abmil_snn_forward.4} parent=31 // pred_check
          %p288 = pneg %p63
        $region34: #{abmil_snn_forward.4} parent=31 // pred_check_branch
          %290 = sbr.rel (%p288) target = $region36
        $region35: #{abmil_snn_forward.4} parent=31 // pred_region
          %s291 = smul.u32 2, %s37
          %p292 = scmp.lt.s32.totalorder %s36, 1
          %s293 = scalar_select %p292, %s36, 1
          %p294 = scmp.lt.s32.totalorder %s291, 1
          %s295 = scalar_select %p294, %s291, 1
          %s296 = smul.addr %s295, 4
          %s297 = smul.addr %s293, 8
          %s298 = sadd.s32 %s296, %s297
          %s299 = smul.addr %s298, 4
          %s300 = scalar_lea.vmem %s1, %s299
          %s301 = smul.u32 2, %s37
        $region36: #{abmil_snn_forward.4} parent=31 // pred_fallthru
          _
        // Predicated region
        $region37: #{abmil_snn_forward.4} parent=31 // pred_check
          %p302 = pneg %p89
        $region38: #{abmil_snn_forward.4} parent=31 // pred_check_branch
          %304 = sbr.rel (%p302) target = $region40
        $region39: #{abmil_snn_forward.4} parent=31 // pred_region
          %s305 = sand.u32 %s79, 1
          %s306 = scalar_lea.sflag [#allocation9], %s305
          %s307 = sand.u32 %s79, 1
          %s308 = smul.addr %s307, 512
          %s309 = scalar_lea.vmem [#allocation8], %s308
          %s311 = ssub.s32 8192, 8192
          %312 = vsyncadd %s306, %s311
          %s313 = smul.addr %s36, 128
          %s314 = smul.addr %s313, 64
          %s315 = scalar_lea.hbm %s2, %s314
          %s316 = sshll.u32 %s309, 4
          %s317 = int_to_ptr.vmem [resolvable:$true] %s316
          %322 = dma.hbm_to_vmem [thread:$0]  %s315, 8192, %s317, %s306, 128, 128, 8
        $region40: #{abmil_snn_forward.4} parent=31 // pred_fallthru
          _
        // Predicated region
        $region41: #{abmil_snn_forward.4} parent=31 // pred_check
          %p323 = pneg %p115
        $region42: #{abmil_snn_forward.4} parent=31 // pred_check_branch
          %325 = sbr.rel (%p323) target = $region44
        $region43: #{abmil_snn_forward.4} parent=31 // pred_region
          %s326 = sand.u32 %s29, 1
          %s327 = scalar_lea.sflag [#allocation11], %s326
          %s328 = sand.u32 %s105, 1
          %s329 = smul.addr %s328, 2
          %s330 = scalar_lea.vmem [#allocation10], %s329
          %s332 = ssub.s32 32, 32
          %333 = vsyncadd %s327, %s332
          %s334 = smul.addr %s36, 2
          %s335 = smul.addr %s334, 16
          %s336 = scalar_lea.hbm %s3, %s335
          %s338 = sshll.u32 %s330, 4
          %s339 = int_to_ptr.vmem [resolvable:$true] %s338
          %341 = dma.hbm_to_vmem [thread:$0]  %s336, 32, %s339, %s327
        $region44: #{abmil_snn_forward.4} parent=31 // pred_fallthru
          _
      $region32: #{abmil_snn_forward.4} parent=5 // pred_fallthru
        _
      %p342 = scmp.le.s32.totalorder 1, %s29
      %p343 = scmp.lt.s32.totalorder %s29, 3
      %p344 = pnand %p342, %p343
      %p345 = pneg %p344
      // Predicated region
      $region45: #{abmil_snn_forward.4} parent=5 // pred_check
        _
      $region46: #{abmil_snn_forward.4} parent=5 // pred_check_branch
        %347 = sbr.rel (%p344) target = $region48
      $region47: #{abmil_snn_forward.4} parent=5 // pred_region
        %s348 = ssub.s32 %s29, 1
        %s349 = sand.u32 %s82, 1
        %s350 = scalar_lea.sflag [#allocation9], %s349
        %s351 = sand.u32 %s82, 1
        %s352 = smul.addr %s351, 512
        %s353 = scalar_lea.vmem [#allocation8], %s352
        // Predicated region
        $region49: #{abmil_snn_forward.4} parent=47 // pred_check
          %p354 = pneg %p95
        $region50: #{abmil_snn_forward.4} parent=47 // pred_check_branch
          %356 = sbr.rel (%p354) target = $region52
        $region51: #{abmil_snn_forward.4} parent=47 // pred_region
          %357 = dma.done %s350, 8192
        $region52: #{abmil_snn_forward.4} parent=47 // pred_fallthru
          _
        %s358 = sand.u32 %s34, 1
        %s359 = scalar_lea.sflag [#allocation11], %s358
        %s360 = sand.u32 %s108, 1
        %s361 = smul.addr %s360, 2
        %s362 = scalar_lea.vmem [#allocation10], %s361
        // Predicated region
        $region53: #{abmil_snn_forward.4} parent=47 // pred_check
          %p363 = pneg %p121
        $region54: #{abmil_snn_forward.4} parent=47 // pred_check_branch
          %365 = sbr.rel (%p363) target = $region56
        $region55: #{abmil_snn_forward.4} parent=47 // pred_region
          %366 = dma.done %s359, 32
        $region56: #{abmil_snn_forward.4} parent=47 // pred_fallthru
          _
        // Predicated region
        $region57: #{abmil_snn_forward.4} parent=47 // pred_check
          %p367 = pneg %p142
        $region58: #{abmil_snn_forward.4} parent=47 // pred_check_branch
          %369 = sbr.rel (%p367) target = $region60
        $region59: #{abmil_snn_forward.4} parent=47 // pred_region
          %370 = dma.done [#allocation11], 8192
        $region60: #{abmil_snn_forward.4} parent=47 // pred_fallthru
          _
        // Predicated region
        $region61: #{abmil_snn_forward.4} parent=47 // pred_check
          %p371 = pneg %p163
        $region62: #{abmil_snn_forward.4} parent=47 // pred_check_branch
          %373 = sbr.rel (%p371) target = $region64
        $region63: #{abmil_snn_forward.4} parent=47 // pred_region
          %374 = dma.done [#allocation14], 32
        $region64: #{abmil_snn_forward.4} parent=47 // pred_fallthru
          _
        // Predicated region
        $region65: #{abmil_snn_forward.4} parent=47 // pred_check
          %p375 = pneg %p184
        $region66: #{abmil_snn_forward.4} parent=47 // pred_check_branch
          %377 = sbr.rel (%p375) target = $region68
        $region67: #{abmil_snn_forward.4} parent=47 // pred_region
          %378 = dma.done [#allocation14], 16
        $region68: #{abmil_snn_forward.4} parent=47 // pred_fallthru
          _
        %s379 = smul.u32 2, %s39
        %p380 = scmp.lt.s32.totalorder %s38, 1
        %s381 = scalar_select %p380, %s38, 1
        %p382 = scmp.lt.s32.totalorder %s379, 1
        %s383 = scalar_select %p382, %s379, 1
        %s384 = smul.addr %s383, 4
        %s385 = smul.addr %s381, 8
        %s386 = sadd.s32 %s384, %s385
        %s387 = smul.addr %s386, 4
        %s388 = scalar_lea.vmem %s1, %s387
        %p389 = pneg %p69
        %p390 = pneg %p66
        %s391 = sand.u32 %s82, 1
        %s392 = scalar_lea.sflag [#allocation9], %s391
        %s393 = sand.u32 %s82, 1
        %s394 = smul.addr %s393, 512
        %s395 = scalar_lea.vmem [#allocation8], %s394
        %p396 = pneg %p95
        %p397 = pneg %p92
        %s398 = sand.u32 %s34, 1
        %s399 = scalar_lea.sflag [#allocation11], %s398
        %s400 = sand.u32 %s108, 1
        %s401 = smul.addr %s400, 2
        %s402 = scalar_lea.vmem [#allocation10], %s401
        %p403 = pneg %p121
        %p404 = pneg %p118
        %p405 = pneg %p142
        %p406 = pneg %p139
        %p407 = pneg %p163
        %p408 = pneg %p160
        %p409 = pneg %p184
        %p410 = pneg %p181
        %p411 = pneg %p205
        %p412 = pneg %p202
        %p413 = pneg %p231
        %p414 = pneg %p228
        %p415 = scmp.lt.s32.totalorder %s38, 1
        %s416 = scalar_select %p415, %s38, 1
        %s417 = smul.addr %s416, 2
        %s418 = scalar_lea.vmem %s8, %s417
        %s419 = smul.u32 2, %s39
        %p420 = scmp.lt.s32.totalorder %s38, 1
        %s421 = scalar_select %p420, %s38, 1
        %p422 = scmp.lt.s32.totalorder %s419, 1
        %s423 = scalar_select %p422, %s419, 1
        %s424 = smul.addr %s423, 4
        %s425 = smul.addr %s421, 8
        %s426 = sadd.s32 %s424, %s425
        %s427 = smul.addr %s426, 4
        %s428 = scalar_lea.vmem %s1, %s427
        %s429 = smul.u32 2, %s39
        %p430 = scmp.lt.s32.totalorder %s38, 1
        %s431 = scalar_select %p430, %s38, 1
        %s432 = smul.addr %s431, 2
        %s433 = scalar_lea.vmem %s8, %s432
        %p434 = scmp.eq.s32.totalorder %s39, 0
        // Predicated region
        $region69: #{abmil_snn_forward.4} parent=47 // pred_check
          %p435 = pneg %p434
        $region70: #{abmil_snn_forward.4} parent=47 // pred_check_branch
          %437 = sbr.rel (%p435) target = $region72
        $region71: #{abmil_snn_forward.4} parent=47 // pred_region
          %vm438 = vcmask 0
          %439 = vst.msk [vmem:[#allocation2] sm:$0x1] %vm438, -1e+30
          %440 = vst.msk [vmem:[#allocation3] sm:$0x1] %vm438, 0.0
          %v441 = vlaneseq
          %vm442 = vcmp.ge.s32.totalorder %v441, 0
          %vm443 = vcmp.lt.s32.totalorder %v441, 256
          %vm444 = vmand %vm442, %vm443
          %445 = vst.msk [vmem:[#allocation4] sm:$0x3] %vm444, 0.0
        $region72: #{abmil_snn_forward.4} parent=47 // pred_fallthru
          _
        %v446 = vld [vmem:[%s428] sm:$0xff]
        %v447 = vld [vmem:[%s428 + $0x8] sm:$0xff]
        %v448 = vld [vmem:[%s428 + $0x10] sm:$0xff]
        %v449 = vld [vmem:[%s428 + $0x18] sm:$0xff]
        %v450 = vld [vmem:[%s353] sm:$0xff]
        %v451 = vld [vmem:[%s353 + $0x8] sm:$0xff]
        %v452 = vld [vmem:[%s353 + $0x10] sm:$0xff]
        %v453 = vld [vmem:[%s353 + $0x18] sm:$0xff]
        %v454 = vld [vmem:[%s353 + $0x20] sm:$0xff]
        %v455 = vld [vmem:[%s353 + $0x28] sm:$0xff]
        %v456 = vld [vmem:[%s353 + $0x30] sm:$0xff]
        %v457 = vld [vmem:[%s353 + $0x38] sm:$0xff]
        %v458 = vld [vmem:[%s353 + $0x40] sm:$0xff]
        %v459 = vld [vmem:[%s353 + $0x48] sm:$0xff]
        %v460 = vld [vmem:[%s353 + $0x50] sm:$0xff]
        %v461 = vld [vmem:[%s353 + $0x58] sm:$0xff]
        %v462 = vld [vmem:[%s353 + $0x60] sm:$0xff]
        %v463 = vld [vmem:[%s353 + $0x68] sm:$0xff]
        %v464 = vld [vmem:[%s353 + $0x70] sm:$0xff]
        %v465 = vld [vmem:[%s353 + $0x78] sm:$0xff]
        %v466 = vld [vmem:[%s353 + $0x80] sm:$0xff]
        %v467 = vld [vmem:[%s353 + $0x88] sm:$0xff]
        %v468 = vld [vmem:[%s353 + $0x90] sm:$0xff]
        %v469 = vld [vmem:[%s353 + $0x98] sm:$0xff]
        %v470 = vld [vmem:[%s353 + $0xa0] sm:$0xff]
        %v471 = vld [vmem:[%s353 + $0xa8] sm:$0xff]
        %v472 = vld [vmem:[%s353 + $0xb0] sm:$0xff]
        %v473 = vld [vmem:[%s353 + $0xb8] sm:$0xff]
        %v474 = vld [vmem:[%s353 + $0xc0] sm:$0xff]
        %v475 = vld [vmem:[%s353 + $0xc8] sm:$0xff]
        %v476 = vld [vmem:[%s353 + $0xd0] sm:$0xff]
        %v477 = vld [vmem:[%s353 + $0xd8] sm:$0xff]
        %v478 = vld [vmem:[%s353 + $0xe0] sm:$0xff]
        %v479 = vld [vmem:[%s353 + $0xe8] sm:$0xff]
        %v480 = vld [vmem:[%s353 + $0xf0] sm:$0xff]
        %v481 = vld [vmem:[%s353 + $0xf8] sm:$0xff]
        %v482 = vld [vmem:[%s353 + $0x100] sm:$0xff]
        %v483 = vld [vmem:[%s353 + $0x108] sm:$0xff]
        %v484 = vld [vmem:[%s353 + $0x110] sm:$0xff]
        %v485 = vld [vmem:[%s353 + $0x118] sm:$0xff]
        %v486 = vld [vmem:[%s353 + $0x120] sm:$0xff]
        %v487 = vld [vmem:[%s353 + $0x128] sm:$0xff]
        %v488 = vld [vmem:[%s353 + $0x130] sm:$0xff]
        %v489 = vld [vmem:[%s353 + $0x138] sm:$0xff]
        %v490 = vld [vmem:[%s353 + $0x140] sm:$0xff]
        %v491 = vld [vmem:[%s353 + $0x148] sm:$0xff]
        %v492 = vld [vmem:[%s353 + $0x150] sm:$0xff]
        %v493 = vld [vmem:[%s353 + $0x158] sm:$0xff]
        %v494 = vld [vmem:[%s353 + $0x160] sm:$0xff]
        %v495 = vld [vmem:[%s353 + $0x168] sm:$0xff]
        %v496 = vld [vmem:[%s353 + $0x170] sm:$0xff]
        %v497 = vld [vmem:[%s353 + $0x178] sm:$0xff]
        %v498 = vld [vmem:[%s353 + $0x180] sm:$0xff]
        %v499 = vld [vmem:[%s353 + $0x188] sm:$0xff]
        %v500 = vld [vmem:[%s353 + $0x190] sm:$0xff]
        %v501 = vld [vmem:[%s353 + $0x198] sm:$0xff]
        %v502 = vld [vmem:[%s353 + $0x1a0] sm:$0xff]
        %v503 = vld [vmem:[%s353 + $0x1a8] sm:$0xff]
        %v504 = vld [vmem:[%s353 + $0x1b0] sm:$0xff]
        %v505 = vld [vmem:[%s353 + $0x1b8] sm:$0xff]
        %v506 = vld [vmem:[%s353 + $0x1c0] sm:$0xff]
        %v507 = vld [vmem:[%s353 + $0x1c8] sm:$0xff]
        %v508 = vld [vmem:[%s353 + $0x1d0] sm:$0xff]
        %v509 = vld [vmem:[%s353 + $0x1d8] sm:$0xff]
        %v510 = vld [vmem:[%s353 + $0x1e0] sm:$0xff]
        %v511 = vld [vmem:[%s353 + $0x1e8] sm:$0xff]
        %v512 = vld [vmem:[%s353 + $0x1f0] sm:$0xff]
        %v513 = vld [vmem:[%s353 + $0x1f8] sm:$0xff]
        %v514 = vld [vmem:[%s362] sm:$0x3]
        %v516 = vlaneseq
        %v517 = vshrl.u32 %v516, 7
        %v518 = vsub.s32 0, %v517
        %v519 = vrot.slane %v514, %v518
        %v520 = vlaneseq
        %v521 = vshrl.u32 %v520, 7
        %v522 = vsub.s32 1, %v521
        %v523 = vrot.slane %v514, %v522
        %v530 = vunpack.c.l.b16 %v446
        %v531 = vunpack.c.h.b16 %v446
        %v532 = vunpack.c.l.b16 %v447
        %v533 = vunpack.c.h.b16 %v447
        %v534 = vunpack.c.l.b16 %v448
        %v535 = vunpack.c.h.b16 %v448
        %v536 = vunpack.c.l.b16 %v449
        %v537 = vunpack.c.h.b16 %v449
        %v538 = vpack.c.b16 %v534, %v530
        %v539 = vpack.c.b16 %v535, %v531
        %v540 = vpack.c.b16 %v536, %v532
        %v541 = vpack.c.b16 %v537, %v533
        %v610 = vunpack.c.l.b16 %v450
        %v611 = vunpack.c.h.b16 %v450
        %v612 = vunpack.c.l.b16 %v451
        %v613 = vunpack.c.h.b16 %v451
        %v614 = vunpack.c.l.b16 %v452
        %v615 = vunpack.c.h.b16 %v452
        %v616 = vunpack.c.l.b16 %v453
        %v617 = vunpack.c.h.b16 %v453
        %v618 = vunpack.c.l.b16 %v454
        %v619 = vunpack.c.h.b16 %v454
        %v620 = vunpack.c.l.b16 %v455
        %v621 = vunpack.c.h.b16 %v455
        %v622 = vunpack.c.l.b16 %v456
        %v623 = vunpack.c.h.b16 %v456
        %v624 = vunpack.c.l.b16 %v457
        %v625 = vunpack.c.h.b16 %v457
        %v626 = vunpack.c.l.b16 %v458
        %v627 = vunpack.c.h.b16 %v458
        %v628 = vunpack.c.l.b16 %v459
        %v629 = vunpack.c.h.b16 %v459
        %v630 = vunpack.c.l.b16 %v460
        %v631 = vunpack.c.h.b16 %v460
        %v632 = vunpack.c.l.b16 %v461
        %v633 = vunpack.c.h.b16 %v461
        %v634 = vunpack.c.l.b16 %v462
        %v635 = vunpack.c.h.b16 %v462
        %v636 = vunpack.c.l.b16 %v463
        %v637 = vunpack.c.h.b16 %v463
        %v638 = vunpack.c.l.b16 %v464
        %v639 = vunpack.c.h.b16 %v464
        %v640 = vunpack.c.l.b16 %v465
        %v641 = vunpack.c.h.b16 %v465
        %v642 = vunpack.c.l.b16 %v466
        %v643 = vunpack.c.h.b16 %v466
        %v644 = vunpack.c.l.b16 %v467
        %v645 = vunpack.c.h.b16 %v467
        %v646 = vunpack.c.l.b16 %v468
        %v647 = vunpack.c.h.b16 %v468
        %v648 = vunpack.c.l.b16 %v469
        %v649 = vunpack.c.h.b16 %v469
        %v650 = vunpack.c.l.b16 %v470
        %v651 = vunpack.c.h.b16 %v470
        %v652 = vunpack.c.l.b16 %v471
        %v653 = vunpack.c.h.b16 %v471
        %v654 = vunpack.c.l.b16 %v472
        %v655 = vunpack.c.h.b16 %v472
        %v656 = vunpack.c.l.b16 %v473
        %v657 = vunpack.c.h.b16 %v473
        %v658 = vunpack.c.l.b16 %v474
        %v659 = vunpack.c.h.b16 %v474
        %v660 = vunpack.c.l.b16 %v475
        %v661 = vunpack.c.h.b16 %v475
        %v662 = vunpack.c.l.b16 %v476
        %v663 = vunpack.c.h.b16 %v476
        %v664 = vunpack.c.l.b16 %v477
        %v665 = vunpack.c.h.b16 %v477
        %v666 = vunpack.c.l.b16 %v478
        %v667 = vunpack.c.h.b16 %v478
        %v668 = vunpack.c.l.b16 %v479
        %v669 = vunpack.c.h.b16 %v479
        %v670 = vunpack.c.l.b16 %v480
        %v671 = vunpack.c.h.b16 %v480
        %v672 = vunpack.c.l.b16 %v481
        %v673 = vunpack.c.h.b16 %v481
        %v674 = vunpack.c.l.b16 %v482
        %v675 = vunpack.c.h.b16 %v482
        %v676 = vunpack.c.l.b16 %v483
        %v677 = vunpack.c.h.b16 %v483
        %v678 = vunpack.c.l.b16 %v484
        %v679 = vunpack.c.h.b16 %v484
        %v680 = vunpack.c.l.b16 %v485
        %v681 = vunpack.c.h.b16 %v485
        %v682 = vunpack.c.l.b16 %v486
        %v683 = vunpack.c.h.b16 %v486
        %v684 = vunpack.c.l.b16 %v487
        %v685 = vunpack.c.h.b16 %v487
        %v686 = vunpack.c.l.b16 %v488
        %v687 = vunpack.c.h.b16 %v488
        %v688 = vunpack.c.l.b16 %v489
        %v689 = vunpack.c.h.b16 %v489
        %v690 = vunpack.c.l.b16 %v490
        %v691 = vunpack.c.h.b16 %v490
        %v692 = vunpack.c.l.b16 %v491
        %v693 = vunpack.c.h.b16 %v491
        %v694 = vunpack.c.l.b16 %v492
        %v695 = vunpack.c.h.b16 %v492
        %v696 = vunpack.c.l.b16 %v493
        %v697 = vunpack.c.h.b16 %v493
        %v698 = vunpack.c.l.b16 %v494
        %v699 = vunpack.c.h.b16 %v494
        %v700 = vunpack.c.l.b16 %v495
        %v701 = vunpack.c.h.b16 %v495
        %v702 = vunpack.c.l.b16 %v496
        %v703 = vunpack.c.h.b16 %v496
        %v704 = vunpack.c.l.b16 %v497
        %v705 = vunpack.c.h.b16 %v497
        %v706 = vunpack.c.l.b16 %v498
        %v707 = vunpack.c.h.b16 %v498
        %v708 = vunpack.c.l.b16 %v499
        %v709 = vunpack.c.h.b16 %v499
        %v710 = vunpack.c.l.b16 %v500
        %v711 = vunpack.c.h.b16 %v500
        %v712 = vunpack.c.l.b16 %v501
        %v713 = vunpack.c.h.b16 %v501
        %v714 = vunpack.c.l.b16 %v502
        %v715 = vunpack.c.h.b16 %v502
        %v716 = vunpack.c.l.b16 %v503
        %v717 = vunpack.c.h.b16 %v503
        %v718 = vunpack.c.l.b16 %v504
        %v719 = vunpack.c.h.b16 %v504
        %v720 = vunpack.c.l.b16 %v505
        %v721 = vunpack.c.h.b16 %v505
        %v722 = vunpack.c.l.b16 %v506
        %v723 = vunpack.c.h.b16 %v506
        %v724 = vunpack.c.l.b16 %v507
        %v725 = vunpack.c.h.b16 %v507
        %v726 = vunpack.c.l.b16 %v508
        %v727 = vunpack.c.h.b16 %v508
        %v728 = vunpack.c.l.b16 %v509
        %v729 = vunpack.c.h.b16 %v509
        %v730 = vunpack.c.l.b16 %v510
        %v731 = vunpack.c.h.b16 %v510
        %v732 = vunpack.c.l.b16 %v511
        %v733 = vunpack.c.h.b16 %v511
        %v734 = vunpack.c.l.b16 %v512
        %v735 = vunpack.c.h.b16 %v512
        %v736 = vunpack.c.l.b16 %v513
        %v737 = vunpack.c.h.b16 %v513
        %v738 = vpack.c.b16 %v612, %v610
        %v739 = vpack.c.b16 %v613, %v611
        %v740 = vpack.c.b16 %v616, %v614
        %v741 = vpack.c.b16 %v617, %v615
        %v742 = vpack.c.b16 %v620, %v618
        %v743 = vpack.c.b16 %v621, %v619
        %v744 = vpack.c.b16 %v624, %v622
        %v745 = vpack.c.b16 %v625, %v623
        %v746 = vpack.c.b16 %v628, %v626
        %v747 = vpack.c.b16 %v629, %v627
        %v748 = vpack.c.b16 %v632, %v630
        %v749 = vpack.c.b16 %v633, %v631
        %v750 = vpack.c.b16 %v636, %v634
        %v751 = vpack.c.b16 %v637, %v635
        %v752 = vpack.c.b16 %v640, %v638
        %v753 = vpack.c.b16 %v641, %v639
        %v754 = vpack.c.b16 %v644, %v642
        %v755 = vpack.c.b16 %v645, %v643
        %v756 = vpack.c.b16 %v648, %v646
        %v757 = vpack.c.b16 %v649, %v647
        %v758 = vpack.c.b16 %v652, %v650
        %v759 = vpack.c.b16 %v653, %v651
        %v760 = vpack.c.b16 %v656, %v654
        %v761 = vpack.c.b16 %v657, %v655
        %v762 = vpack.c.b16 %v660, %v658
        %v763 = vpack.c.b16 %v661, %v659
        %v764 = vpack.c.b16 %v664, %v662
        %v765 = vpack.c.b16 %v665, %v663
        %v766 = vpack.c.b16 %v668, %v666
        %v767 = vpack.c.b16 %v669, %v667
        %v768 = vpack.c.b16 %v672, %v670
        %v769 = vpack.c.b16 %v673, %v671
        %v770 = vpack.c.b16 %v676, %v674
        %v771 = vpack.c.b16 %v677, %v675
        %v772 = vpack.c.b16 %v680, %v678
        %v773 = vpack.c.b16 %v681, %v679
        %v774 = vpack.c.b16 %v684, %v682
        %v775 = vpack.c.b16 %v685, %v683
        %v776 = vpack.c.b16 %v688, %v686
        %v777 = vpack.c.b16 %v689, %v687
        %v778 = vpack.c.b16 %v692, %v690
        %v779 = vpack.c.b16 %v693, %v691
        %v780 = vpack.c.b16 %v696, %v694
        %v781 = vpack.c.b16 %v697, %v695
        %v782 = vpack.c.b16 %v700, %v698
        %v783 = vpack.c.b16 %v701, %v699
        %v784 = vpack.c.b16 %v704, %v702
        %v785 = vpack.c.b16 %v705, %v703
        %v786 = vpack.c.b16 %v708, %v706
        %v787 = vpack.c.b16 %v709, %v707
        %v788 = vpack.c.b16 %v712, %v710
        %v789 = vpack.c.b16 %v713, %v711
        %v790 = vpack.c.b16 %v716, %v714
        %v791 = vpack.c.b16 %v717, %v715
        %v792 = vpack.c.b16 %v720, %v718
        %v793 = vpack.c.b16 %v721, %v719
        %v794 = vpack.c.b16 %v724, %v722
        %v795 = vpack.c.b16 %v725, %v723
        %v796 = vpack.c.b16 %v728, %v726
        %v797 = vpack.c.b16 %v729, %v727
        %v798 = vpack.c.b16 %v732, %v730
        %v799 = vpack.c.b16 %v733, %v731
        %v800 = vpack.c.b16 %v736, %v734
        %v801 = vpack.c.b16 %v737, %v735
        %866 = vmatprep.subr.bf16.mxu0 %v739
        %867 = vmatpush1.bf16.msra.mxu0 %v738
        %868 = vmatprep.subr.bf16.mxu0 %v741
        %869 = vmatpush1.bf16.msra.mxu0 %v740
        %870 = vmatprep.subr.bf16.mxu0 %v743
        %871 = vmatpush1.bf16.msra.mxu0 %v742
        %872 = vmatprep.subr.bf16.mxu0 %v745
        %873 = vmatpush1.bf16.msra.mxu0 %v744
        %874 = vmatprep.subr.bf16.mxu0 %v747
        %875 = vmatpush1.bf16.msra.mxu0 %v746
        %876 = vmatprep.subr.bf16.mxu0 %v749
        %877 = vmatpush1.bf16.msra.mxu0 %v748
        %878 = vmatprep.subr.bf16.mxu0 %v751
        %879 = vmatpush1.bf16.msra.mxu0 %v750
        %880 = vmatprep.subr.bf16.mxu0 %v753
        %881 = vmatpush1.bf16.msra.mxu0 %v752
        %882 = vmatprep.subr.bf16.mxu0 %v755
        %883 = vmatpush1.bf16.msra.mxu0 %v754
        %884 = vmatprep.subr.bf16.mxu0 %v757
        %885 = vmatpush1.bf16.msra.mxu0 %v756
        %886 = vmatprep.subr.bf16.mxu0 %v759
        %887 = vmatpush1.bf16.msra.mxu0 %v758
        %888 = vmatprep.subr.bf16.mxu0 %v761
        %889 = vmatpush1.bf16.msra.mxu0 %v760
        %890 = vmatprep.subr.bf16.mxu0 %v763
        %891 = vmatpush1.bf16.msra.mxu0 %v762
        %892 = vmatprep.subr.bf16.mxu0 %v765
        %893 = vmatpush1.bf16.msra.mxu0 %v764
        %894 = vmatprep.subr.bf16.mxu0 %v767
        %895 = vmatpush1.bf16.msra.mxu0 %v766
        %896 = vmatprep.subr.bf16.mxu0 %v769
        %897 = vmatpush1.bf16.msra.mxu0 %v768
        %898 = vmatprep.mubr.bf16.mxu0 %v539
        %899 = vmatmul.mubr.bf16.gmra.mrb[0].mxu0 %v538
        %v900 = vpop.f32.mrb[0].mxu0
        %v901 = vadd.f32 %v519, %v900
        %v902 = vpop.f32.mrb[0].mxu0
        %v903 = vadd.f32 %v523, %v902
        %v904 = vpop.f32.mrb[0].mxu0
        %v905 = vadd.f32 %v519, %v904
        %v906 = vpop.f32.mrb[0].mxu0
        %v907 = vadd.f32 %v523, %v906
        %908 = vdwg.mxu0
        %909 = vmatprep.subr.bf16.mxu0 %v771
        %910 = vmatpush1.bf16.msra.mxu0 %v770
        %911 = vmatprep.subr.bf16.mxu0 %v773
        %912 = vmatpush1.bf16.msra.mxu0 %v772
        %913 = vmatprep.subr.bf16.mxu0 %v775
        %914 = vmatpush1.bf16.msra.mxu0 %v774
        %915 = vmatprep.subr.bf16.mxu0 %v777
        %916 = vmatpush1.bf16.msra.mxu0 %v776
        %917 = vmatprep.subr.bf16.mxu0 %v779
        %918 = vmatpush1.bf16.msra.mxu0 %v778
        %919 = vmatprep.subr.bf16.mxu0 %v781
        %920 = vmatpush1.bf16.msra.mxu0 %v780
        %921 = vmatprep.subr.bf16.mxu0 %v783
        %922 = vmatpush1.bf16.msra.mxu0 %v782
        %923 = vmatprep.subr.bf16.mxu0 %v785
        %924 = vmatpush1.bf16.msra.mxu0 %v784
        %925 = vmatprep.subr.bf16.mxu0 %v787
        %926 = vmatpush1.bf16.msra.mxu0 %v786
        %927 = vmatprep.subr.bf16.mxu0 %v789
        %928 = vmatpush1.bf16.msra.mxu0 %v788
        %929 = vmatprep.subr.bf16.mxu0 %v791
        %930 = vmatpush1.bf16.msra.mxu0 %v790
        %931 = vmatprep.subr.bf16.mxu0 %v793
        %932 = vmatpush1.bf16.msra.mxu0 %v792
        %933 = vmatprep.subr.bf16.mxu0 %v795
        %934 = vmatpush1.bf16.msra.mxu0 %v794
        %935 = vmatprep.subr.bf16.mxu0 %v797
        %936 = vmatpush1.bf16.msra.mxu0 %v796
        %937 = vmatprep.subr.bf16.mxu0 %v799
        %938 = vmatpush1.bf16.msra.mxu0 %v798
        %939 = vmatprep.subr.bf16.mxu0 %v801
        %940 = vmatpush1.bf16.msra.mxu0 %v800
        %941 = vmatprep.mubr.bf16.mxu0 %v541
        %942 = vmatmul.mubr.bf16.gmra.mrb[0].mxu0 %v540
        %v943 = vpop.f32.mrb[0].mxu0
        %v944 = vadd.f32 %v901, %v943
        %v945 = vpop.f32.mrb[0].mxu0
        %v946 = vadd.f32 %v903, %v945
        %v947 = vpop.f32.mrb[0].mxu0
        %v948 = vadd.f32 %v905, %v947
        %v949 = vpop.f32.mrb[0].mxu0
        %v950 = vadd.f32 %v907, %v949
        %951 = vdwg.mxu0
        %vm952 = vcmp.gt.f32.partialorder %v944, 0.0
        %vm953 = vcmp.gt.f32.partialorder %v946, 0.0
        %vm954 = vcmp.gt.f32.partialorder %v948, 0.0
        %vm955 = vcmp.gt.f32.partialorder %v950, 0.0
        %v956 = vmin.f32 %v944, 0.0
        %v957 = vmin.f32 %v946, 0.0
        %v958 = vmin.f32 %v948, 0.0
        %v959 = vmin.f32 %v950, 0.0
        %v960 = vmul.f32 %v956, 1.442695
        %v961 = vpow.pop %v960
        %v962 = vmul.f32 %v957, 1.442695
        %v963 = vpow.pop %v962
        %v964 = vmul.f32 %v958, 1.442695
        %v965 = vpow.pop %v964
        %v966 = vmul.f32 %v959, 1.442695
        %v967 = vpow.pop %v966
        %v968 = vsub.f32 %v961, 1.0
        %v969 = vsub.f32 %v963, 1.0
        %v970 = vsub.f32 %v965, 1.0
        %v971 = vsub.f32 %v967, 1.0
        %v972 = vsel %vm952, %v944, %v968
        %v973 = vsel %vm953, %v946, %v969
        %v974 = vsel %vm954, %v948, %v970
        %v975 = vsel %vm955, %v950, %v971
        %v976 = vld [vmem:[#allocation12] sm:$0xff]
        %v977 = vld [vmem:[#allocation12 + $0x8] sm:$0xff]
        %v978 = vld [vmem:[#allocation12 + $0x10] sm:$0xff]
        %v979 = vld [vmem:[#allocation12 + $0x18] sm:$0xff]
        %v980 = vld [vmem:[#allocation12 + $0x20] sm:$0xff]
        %v981 = vld [vmem:[#allocation12 + $0x28] sm:$0xff]
        %v982 = vld [vmem:[#allocation12 + $0x30] sm:$0xff]
        %v983 = vld [vmem:[#allocation12 + $0x38] sm:$0xff]
        %v984 = vld [vmem:[#allocation12 + $0x40] sm:$0xff]
        %v985 = vld [vmem:[#allocation12 + $0x48] sm:$0xff]
        %v986 = vld [vmem:[#allocation12 + $0x50] sm:$0xff]
        %v987 = vld [vmem:[#allocation12 + $0x58] sm:$0xff]
        %v988 = vld [vmem:[#allocation12 + $0x60] sm:$0xff]
        %v989 = vld [vmem:[#allocation12 + $0x68] sm:$0xff]
        %v990 = vld [vmem:[#allocation12 + $0x70] sm:$0xff]
        %v991 = vld [vmem:[#allocation12 + $0x78] sm:$0xff]
        %v992 = vld [vmem:[#allocation12 + $0x80] sm:$0xff]
        %v993 = vld [vmem:[#allocation12 + $0x88] sm:$0xff]
        %v994 = vld [vmem:[#allocation12 + $0x90] sm:$0xff]
        %v995 = vld [vmem:[#allocation12 + $0x98] sm:$0xff]
        %v996 = vld [vmem:[#allocation12 + $0xa0] sm:$0xff]
        %v997 = vld [vmem:[#allocation12 + $0xa8] sm:$0xff]
        %v998 = vld [vmem:[#allocation12 + $0xb0] sm:$0xff]
        %v999 = vld [vmem:[#allocation12 + $0xb8] sm:$0xff]
        %v1000 = vld [vmem:[#allocation12 + $0xc0] sm:$0xff]
        %v1001 = vld [vmem:[#allocation12 + $0xc8] sm:$0xff]
        %v1002 = vld [vmem:[#allocation12 + $0xd0] sm:$0xff]
        %v1003 = vld [vmem:[#allocation12 + $0xd8] sm:$0xff]
        %v1004 = vld [vmem:[#allocation12 + $0xe0] sm:$0xff]
        %v1005 = vld [vmem:[#allocation12 + $0xe8] sm:$0xff]
        %v1006 = vld [vmem:[#allocation12 + $0xf0] sm:$0xff]
        %v1007 = vld [vmem:[#allocation12 + $0xf8] sm:$0xff]
        %v1008 = vld [vmem:[#allocation12 + $0x100] sm:$0xff]
        %v1009 = vld [vmem:[#allocation12 + $0x108] sm:$0xff]
        %v1010 = vld [vmem:[#allocation12 + $0x110] sm:$0xff]
        %v1011 = vld [vmem:[#allocation12 + $0x118] sm:$0xff]
        %v1012 = vld [vmem:[#allocation12 + $0x120] sm:$0xff]
        %v1013 = vld [vmem:[#allocation12 + $0x128] sm:$0xff]
        %v1014 = vld [vmem:[#allocation12 + $0x130] sm:$0xff]
        %v1015 = vld [vmem:[#allocation12 + $0x138] sm:$0xff]
        %v1016 = vld [vmem:[#allocation12 + $0x140] sm:$0xff]
        %v1017 = vld [vmem:[#allocation12 + $0x148] sm:$0xff]
        %v1018 = vld [vmem:[#allocation12 + $0x150] sm:$0xff]
        %v1019 = vld [vmem:[#allocation12 + $0x158] sm:$0xff]
        %v1020 = vld [vmem:[#allocation12 + $0x160] sm:$0xff]
        %v1021 = vld [vmem:[#allocation12 + $0x168] sm:$0xff]
        %v1022 = vld [vmem:[#allocation12 + $0x170] sm:$0xff]
        %v1023 = vld [vmem:[#allocation12 + $0x178] sm:$0xff]
        %v1024 = vld [vmem:[#allocation12 + $0x180] sm:$0xff]
        %v1025 = vld [vmem:[#allocation12 + $0x188] sm:$0xff]
        %v1026 = vld [vmem:[#allocation12 + $0x190] sm:$0xff]
        %v1027 = vld [vmem:[#allocation12 + $0x198] sm:$0xff]
        %v1028 = vld [vmem:[#allocation12 + $0x1a0] sm:$0xff]
        %v1029 = vld [vmem:[#allocation12 + $0x1a8] sm:$0xff]
        %v1030 = vld [vmem:[#allocation12 + $0x1b0] sm:$0xff]
        %v1031 = vld [vmem:[#allocation12 + $0x1b8] sm:$0xff]
        %v1032 = vld [vmem:[#allocation12 + $0x1c0] sm:$0xff]
        %v1033 = vld [vmem:[#allocation12 + $0x1c8] sm:$0xff]
        %v1034 = vld [vmem:[#allocation12 + $0x1d0] sm:$0xff]
        %v1035 = vld [vmem:[#allocation12 + $0x1d8] sm:$0xff]
        %v1036 = vld [vmem:[#allocation12 + $0x1e0] sm:$0xff]
        %v1037 = vld [vmem:[#allocation12 + $0x1e8] sm:$0xff]
        %v1038 = vld [vmem:[#allocation12 + $0x1f0] sm:$0xff]
        %v1039 = vld [vmem:[#allocation12 + $0x1f8] sm:$0xff]
        %v1040 = vld [vmem:[#allocation13] sm:$0x3]
        %v1042 = vlaneseq
        %v1043 = vshrl.u32 %v1042, 7
        %v1044 = vsub.s32 0, %v1043
        %v1045 = vrot.slane %v1040, %v1044
        %v1046 = vlaneseq
        %v1047 = vshrl.u32 %v1046, 7
        %v1048 = vsub.s32 1, %v1047
        %v1049 = vrot.slane %v1040, %v1048
        %1052 = vmatprep.subr.mxu0 %v977
        %1053 = vmatpush1.msra.mxu0 %v976
        %1054 = vmatprep.subr.mxu0 %v979
        %1055 = vmatpush1.msra.mxu0 %v978
        %1056 = vmatprep.subr.mxu0 %v981
        %1057 = vmatpush1.msra.mxu0 %v980
        %1058 = vmatprep.subr.mxu0 %v983
        %1059 = vmatpush1.msra.mxu0 %v982
        %1060 = vmatprep.subr.mxu0 %v985
        %1061 = vmatpush1.msra.mxu0 %v984
        %1062 = vmatprep.subr.mxu0 %v987
        %1063 = vmatpush1.msra.mxu0 %v986
        %1064 = vmatprep.subr.mxu0 %v989
        %1065 = vmatpush1.msra.mxu0 %v988
        %1066 = vmatprep.subr.mxu0 %v991
        %1067 = vmatpush1.msra.mxu0 %v990
        %1068 = vmatprep.subr.mxu0 %v993
        %1069 = vmatpush1.msra.mxu0 %v992
        %1070 = vmatprep.subr.mxu0 %v995
        %1071 = vmatpush1.msra.mxu0 %v994
        %1072 = vmatprep.subr.mxu0 %v997
        %1073 = vmatpush1.msra.mxu0 %v996
        %1074 = vmatprep.subr.mxu0 %v999
        %1075 = vmatpush1.msra.mxu0 %v998
        %1076 = vmatprep.subr.mxu0 %v1001
        %1077 = vmatpush1.msra.mxu0 %v1000
        %1078 = vmatprep.subr.mxu0 %v1003
        %1079 = vmatpush1.msra.mxu0 %v1002
        %1080 = vmatprep.subr.mxu0 %v1005
        %1081 = vmatpush1.msra.mxu0 %v1004
        %1082 = vmatprep.subr.mxu0 %v1007
        %1083 = vmatpush1.msra.mxu0 %v1006
        %1084 = vmatprep.subr.mxu0 %v1009
        %1085 = vmatpush1.msra.mxu0 %v1008
        %1086 = vmatprep.subr.mxu0 %v1011
        %1087 = vmatpush1.msra.mxu0 %v1010
        %1088 = vmatprep.subr.mxu0 %v1013
        %1089 = vmatpush1.msra.mxu0 %v1012
        %1090 = vmatprep.subr.mxu0 %v1015
        %1091 = vmatpush1.msra.mxu0 %v1014
        %1092 = vmatprep.subr.mxu0 %v1017
        %1093 = vmatpush1.msra.mxu0 %v1016
        %1094 = vmatprep.subr.mxu0 %v1019
        %1095 = vmatpush1.msra.mxu0 %v1018
        %1096 = vmatprep.subr.mxu0 %v1021
        %1097 = vmatpush1.msra.mxu0 %v1020
        %1098 = vmatprep.subr.mxu0 %v1023
        %1099 = vmatpush1.msra.mxu0 %v1022
        %1100 = vmatprep.subr.mxu0 %v1025
        %1101 = vmatpush1.msra.mxu0 %v1024
        %1102 = vmatprep.subr.mxu0 %v1027
        %1103 = vmatpush1.msra.mxu0 %v1026
        %1104 = vmatprep.subr.mxu0 %v1029
        %1105 = vmatpush1.msra.mxu0 %v1028
        %1106 = vmatprep.subr.mxu0 %v1031
        %1107 = vmatpush1.msra.mxu0 %v1030
        %1108 = vmatprep.subr.mxu0 %v1033
        %1109 = vmatpush1.msra.mxu0 %v1032
        %1110 = vmatprep.subr.mxu0 %v1035
        %1111 = vmatpush1.msra.mxu0 %v1034
        %1112 = vmatprep.subr.mxu0 %v1037
        %1113 = vmatpush1.msra.mxu0 %v1036
        %1114 = vmatprep.subr.mxu0 %v1039
        %1115 = vmatpush1.msra.mxu0 %v1038
        %1116 = vmatprep.mubr.f32.mxu0 %v973
        %1117 = vmatmul.mubr.f32.gmra.mrb[0].mxu0 %v972
        %v1118 = vpop.f32.mrb[0].mxu0
        %v1119 = vadd.f32 %v1045, %v1118
        %v1120 = vpop.f32.mrb[0].mxu0
        %v1121 = vadd.f32 %v1049, %v1120
        %1122 = vmatprep.mubr.f32.mxu0 %v975
        %1123 = vmatmul.mubr.f32.gmra.mrb[0].mxu0 %v974
        %v1124 = vpop.f32.mrb[0].mxu0
        %v1125 = vadd.f32 %v1045, %v1124
        %v1126 = vpop.f32.mrb[0].mxu0
        %v1127 = vadd.f32 %v1049, %v1126
        %1128 = vdwg.mxu0
        %v1129 = vtanh.pop %v1119
        %v1130 = vtanh.pop %v1125
        %v1131 = vsub.f32 0.0, %v1121
        %v1132 = vsub.f32 0.0, %v1127
        %v1133 = vmul.f32 %v1131, 1.442695
        %v1134 = vpow.pop %v1133
        %v1135 = vmul.f32 %v1132, 1.442695
        %v1136 = vpow.pop %v1135
        %v1137 = vadd.f32 %v1134, 1.0
        %v1138 = vadd.f32 %v1136, 1.0
        %v1139 = vrcp.pop %v1137
        %v1140 = vmul.f32 1.0, %v1139
        %v1141 = vrcp.pop %v1138
        %v1142 = vmul.f32 1.0, %v1141
        %v1143 = vmul.f32 %v1129, %v1140
        %v1144 = vmul.f32 %v1130, %v1142
        %v1145 = vld [vmem:[#allocation15] sm:$0x1]
        %v1147 = vlaneseq
        %v1148 = vshrl.u32 %v1147, 7
        %v1149 = vsub.s32 0, %v1148
        %v1150 = vrot.slane %v1145, %v1149
        %v1152 = vmul.f32 %v1143, %v1150
        %v1153 = vmul.f32 %v1144, %v1150
        %1154 = vadd.xlane.f32.xlu0 %v1152
        %v1155 = vpop.xlane.xlu0 %1154
        %1156 = vadd.xlane.f32.xlu0 %v1153
        %v1157 = vpop.xlane.xlu0 %1156
        %v1158 = vld [vmem:[#allocation7] sm:$0x1]
        %v1160 = vlaneseq
        %v1161 = vshrl.u32 %v1160, 7
        %v1162 = vsub.s32 0, %v1161
        %v1163 = vrot.slane %v1158, %v1162
        %v1165 = vadd.f32 %v1155, %v1163
        %v1166 = vadd.f32 %v1157, %v1163
        %s1167 = smul.u32 %s39, 16
        %v1168 = vlaneseq
        %v1169 = vshrl.u32 %v1168, 7
        %v1170 = vadd.s32 %v1169, 8
        %v1171 = vstv %s1167
        %v1172 = vadd.s32 %v1171, %v1169
        %v1173 = vadd.s32 %v1171, %v1170
        %s1174 = sld [smem:[#allocation6 + %s38]]
        %v1175 = vstv %s1174
        %vm1176 = vcmp.lt.s32.totalorder %v1172, %v1175
        %vm1177 = vcmp.lt.s32.totalorder %v1173, %v1175
        %v1178 = vsel %vm1176, %v1165, -1e+30
        %v1179 = vsel %vm1177, %v1166, -1e+30
        %v1180 = vld [vmem:[#allocation2] sm:$0x1]
        %vm1181 = vcmask 7168
        %v1182 = vsel %vm1181, %v1178, -inf
        %v1183 = vsel %vm1181, %v1179, -inf
        %v1184 = vmax.f32 %v1182, %v1183
        %v1185 = vrot.slane %v1184, 4
        %v1186 = vmax.f32 %v1184, %v1185
        %v1187 = vrot.slane %v1186, 2
        %v1188 = vmax.f32 %v1186, %v1187
        %v1189 = vrot.slane %v1188, 1
        %v1190 = vmax.f32 %v1188, %v1189
        %v1191 = vmax.f32 %v1180, %v1190
        %v1192 = vsub.f32 %v1180, %v1191
        %v1193 = vmul.f32 %v1192, 1.442695
        %v1194 = vpow.pop %v1193
        %v1196 = vlaneseq
        %v1197 = vshrl.u32 %v1196, 7
        %v1198 = vsub.s32 0, %v1197
        %v1199 = vrot.slane %v1191, %v1198
        %v1201 = vsub.f32 %v1178, %v1199
        %v1202 = vsub.f32 %v1179, %v1199
        %v1203 = vmul.f32 %v1201, 1.442695
        %v1204 = vpow.pop %v1203
        %v1205 = vmul.f32 %v1202, 1.442695
        %v1206 = vpow.pop %v1205
        %v1207 = vld [vmem:[#allocation3] sm:$0x1]
        %v1208 = vmul.f32 %v1194, %v1207
        %v1209 = vsel %vm1181, %v1204, 0.0
        %v1210 = vsel %vm1181, %v1206, 0.0
        %v1211 = vadd.f32 %v1209, %v1210
        %v1212 = vrot.slane %v1211, 4
        %v1213 = vadd.f32 %v1211, %v1212
        %v1214 = vrot.slane %v1213, 2
        %v1215 = vadd.f32 %v1213, %v1214
        %v1216 = vrot.slane %v1215, 1
        %v1217 = vadd.f32 %v1215, %v1216
        %v1218 = vadd.f32 %v1208, %v1217
        %vm1219 = vcmask 0
        %1220 = vst.msk [vmem:[#allocation3] sm:$0x1] %vm1219, %v1218
        %v1221 = vld [vmem:[#allocation4] sm:$0x3]
        %1223 = vset.pattern.permute.xlu0 0
        %1224 = vperm.xlu0 %1223, %v1194
        %v1225 = vpop.permute.xlu0 %1224
        %v1227 = vlaneseq
        %v1228 = vshrl.u32 %v1227, 7
        %v1229 = vsub.s32 0, %v1228
        %v1230 = vrot.slane %v1225, %v1229
        %v1231 = vmul.f32 %v1230, %v1221
        %1233 = vset.pattern.permute.xlu0 0
        %1234 = vperm.xlu0 %1233, %v1204
        %v1235 = vpop.permute.xlu0 %1234
        %1238 = vset.pattern.permute.xlu0 0
        %1239 = vperm.xlu0 %1238, %v1206
        %v1240 = vpop.permute.xlu0 %1239
        %v1242 = vmul.f32 %v1235, %v972
        %v1243 = vmul.f32 %v1235, %v973
        %v1244 = vmul.f32 %v1240, %v974
        %v1245 = vmul.f32 %v1240, %v975
        %v1246 = vadd.f32 %v1242, %v1244
        %v1247 = vrot.slane %v1246, 4
        %v1248 = vadd.f32 %v1246, %v1247
        %v1249 = vrot.slane %v1248, 2
        %v1250 = vadd.f32 %v1248, %v1249
        %v1251 = vrot.slane %v1250, 1
        %v1252 = vadd.f32 %v1250, %v1251
        %v1253 = vadd.f32 %v1243, %v1245
        %v1254 = vrot.slane %v1253, 4
        %v1255 = vadd.f32 %v1253, %v1254
        %v1256 = vrot.slane %v1255, 2
        %v1257 = vadd.f32 %v1255, %v1256
        %v1258 = vrot.slane %v1257, 1
        %v1259 = vadd.f32 %v1257, %v1258
        %v1262 = vcombine.low %v1252, %v1259
        %v1264 = vunpack.c.l.s4 1966171168
        %v1265 = vunpack.c.0.s8 %v1264
        %v1266 = vlaneseq
        %v1267 = vshrl.u32 %v1266, 7
        %v1268 = vsub.s32 %v1265, %v1267
        %v1269 = vrot.slane %v1262, %v1268
        %v1271 = vunpack.c.l.s4 1966171168
        %v1272 = vunpack.c.0.s8 %v1271
        %v1273 = vlaneseq
        %v1274 = vshrl.u32 %v1273, 7
        %v1275 = vsub.s32 %v1272, %v1274
        %v1276 = vrot.slane %v1269, %v1275
        %v1278 = vadd.f32 %v1231, %v1276
        %v1279 = vlaneseq
        %vm1280 = vcmp.ge.s32.totalorder %v1279, 0
        %vm1281 = vcmp.lt.s32.totalorder %v1279, 256
        %vm1282 = vmand %vm1280, %vm1281
        %1283 = vst.msk [vmem:[#allocation4] sm:$0x3] %vm1282, %v1278
        %1284 = vst.msk [vmem:[#allocation2] sm:$0x1] %vm1219, %v1191
        // Predicated region
        $region73: #{abmil_snn_forward.4} parent=47 // pred_check
          %p1285 = pneg %p434
        $region74: #{abmil_snn_forward.4} parent=47 // pred_check_branch
          %1287 = sbr.rel (%p1285) target = $region76
        $region75: #{abmil_snn_forward.4} parent=47 // pred_region
          %v1288 = vld [vmem:[#allocation3] sm:$0x1]
          %v1289 = vrcp.pop %v1288
          %v1290 = vld [vmem:[#allocation4] sm:$0x3]
          %1292 = vset.pattern.permute.xlu0 0
          %1293 = vperm.xlu0 %1292, %v1289
          %v1294 = vpop.permute.xlu0 %1293
          %v1296 = vlaneseq
          %v1297 = vshrl.u32 %v1296, 7
          %v1298 = vsub.s32 0, %v1297
          %v1299 = vrot.slane %v1294, %v1298
          %v1300 = vmul.f32 %v1290, %v1299
          %1301 = vst.msk [vmem:[%s433] sm:$0x3] %vm1282, %v1300
        $region76: #{abmil_snn_forward.4} parent=47 // pred_fallthru
          _
        %p1302 = scmp.lt.s32.totalorder %s38, 1
        %s1303 = scalar_select %p1302, %s38, 1
        %s1304 = smul.addr %s1303, 2
        %s1305 = scalar_lea.vmem %s8, %s1304
        // Predicated region
        $region77: #{abmil_snn_forward.4} parent=47 // pred_check
          %p1306 = pneg %p228
        $region78: #{abmil_snn_forward.4} parent=47 // pred_check_branch
          %1308 = sbr.rel (%p1306) target = $region80
        $region79: #{abmil_snn_forward.4} parent=47 // pred_region
          _
        $region80: #{abmil_snn_forward.4} parent=47 // pred_fallthru
          _
      $region48: #{abmil_snn_forward.4} parent=5 // pred_fallthru
        _
      %p1309 = scmp.le.s32.totalorder 2, %s29
      // Predicated region
      $region81: #{abmil_snn_forward.4} parent=5 // pred_check
        %p1310 = pneg %p1309
      $region82: #{abmil_snn_forward.4} parent=5 // pred_check_branch
        %1312 = sbr.rel (%p1310) target = $region84
      $region83: #{abmil_snn_forward.4} parent=5 // pred_region
        %s1313 = ssub.s32 %s29, 2
        // Predicated region
        $region85: #{abmil_snn_forward.4} parent=83 // pred_check
          %p1314 = pneg %p234
        $region86: #{abmil_snn_forward.4} parent=83 // pred_check_branch
          %1316 = sbr.rel (%p1314) target = $region88
        $region87: #{abmil_snn_forward.4} parent=83 // pred_region
          %p1317 = scmp.lt.s32.totalorder %s40, 1
          %s1318 = scalar_select %p1317, %s40, 1
          %s1319 = smul.addr %s1318, 2
          %s1320 = scalar_lea.vmem %s8, %s1319
        $region88: #{abmil_snn_forward.4} parent=83 // pred_fallthru
          _
      $region84: #{abmil_snn_forward.4} parent=5 // pred_fallthru
        _
    $region6: #{abmil_snn_forward.4} parent=1 // loop_footer
      %s33 = sadd.s32 1, %s29
    $region7: #{abmil_snn_forward.4} parent=1 // loop_footer_branch
      %28 = sbr.rel target = $region3
    $region8: #{abmil_snn_forward.4} parent=1 // loop_exit
      _
    %1321 = vsyncpa [#allocation9], 1
    %s1322 = scalar_lea.sflag [#allocation9], 1
    %1323 = vsyncpa %s1322, 1
    %1324 = vsyncpa [#allocation11], 1
    %s1325 = scalar_lea.sflag [#allocation11], 1
    %1326 = vsyncpa %s1325, 1
    %1327 = vsyncpa [#allocation14], 1

// kernel: abmil_snn_forward.3
$region0: #{abmil_snn_forward.3}
  #allocation0 [shape = 'u32[]', space=smem, size = 0x4, offset = 0x4, fixed_abs, tag = 'smem constant byte address 0x4 - core index']
  #allocation1 [shape = 'u32[144,128]{1,0:T(1,128)}', space=vmem, size = 0x12000, scoped, tag = 'internal scratch']
  #allocation2 [shape = 'f32[1,1]{1,0:T(1,128)}', space=vmem, size = 0x200, scoped, tag = 'scratch operand']
  #allocation3 [shape = 'f32[1,1]{1,0:T(1,128)}', space=vmem, size = 0x200, scoped, tag = 'scratch operand']
  #allocation4 [shape = 'f32[1,256]{1,0:T(1,128)}', space=vmem, size = 0x400, scoped, tag = 'scratch operand']
  #allocation5 [shape = 's32[1]{0}', space=sflag, size = 0x4, scoped, tag = 'scoped memory for abmil_snn_forward.3']
  #allocation6 [shape = 's32[1]{0:T(128)S(6)}', space=smem, size = 0x200, scoped, tag = 'prefetched SMEM operand 0']
  #allocation7 [shape = 'f32[1,1]{1,0:T(1,128)S(1)}', space=vmem, size = 0x200, scoped, tag = 'scoped memory for abmil_snn_forward.3']
  %s0 = inlined_call_operand.<no memory space> [shape: s32[1], index: 0, kind: input, shape index: {}]
  %s1 = inlined_call_operand.vmem [shape: bf16[1,16,1024], index: 1, kind: input, shape index: {}]
  %s2 = inlined_call_operand.vmem [shape: bf16[1,1024,256], index: 2, kind: input, shape index: {}]
  %s3 = inlined_call_operand.vmem [shape: f32[1,1,256], index: 3, kind: input, shape index: {}]
  %s4 = inlined_call_operand.hbm [shape: f32[256,256], index: 4, kind: input, shape index: {}]
  %s5 = inlined_call_operand.hbm [shape: f32[1,256], index: 5, kind: input, shape index: {}]
  %s6 = inlined_call_operand.vmem [shape: f32[1,128], index: 6, kind: input, shape index: {}]
  %s7 = inlined_call_operand.<no memory space> [shape: f32[1,1], index: 7, kind: input, shape index: {}]
  %s8 = inlined_call_operand.vmem [shape: f32[1,1,256], index: 8, kind: output, shape index: {}]
  %s9 = sld [smem:[#allocation0]]
  $region54: #{abmil_snn_forward.3} parent=0
    _
  %s11 = ssub.s32 1, %s9
  %s12 = scalar_select 0, %s11, %s9
  %13 = sst [smem:[#allocation6]] %s0
  %v14 = vstv %s7
  %15 = vst [vmem:[#allocation7] sm:$0x1] %v14
  $region1: #{abmil_snn_forward.3} parent=0
    #allocation8 [shape = 'u8[262144]{0}', space=vmem, size = 0x40000, scoped, tag = 'input window, operand 4, single buffered']
    #allocation9 [shape = 's32[1]{0}', space=sflag, size = 0x4, scoped, tag = 'scoped memory for abmil_snn_forward.3']
    #allocation10 [shape = 'u8[1024]{0}', space=vmem, size = 0x400, scoped, tag = 'input window, operand 5, single buffered']
    #allocation11 [shape = 's32[1]{0}', space=sflag, size = 0x4, scoped, tag = 'scoped memory for abmil_snn_forward.3']
    %16 = vsyncpa [#allocation9], 0
    %17 = vsyncpa [#allocation11], 0
    // Predicated region
    $region2: #{abmil_snn_forward.3} parent=1 // pred_check
      _
    $region3: #{abmil_snn_forward.3} parent=1 // pred_check_branch
      %19 = sbr.rel (0) target = $region5
    $region4: #{abmil_snn_forward.3} parent=1 // pred_region
      _
    $region5: #{abmil_snn_forward.3} parent=1 // pred_fallthru
      _
    // Predicated region
    $region6: #{abmil_snn_forward.3} parent=1 // pred_check
      _
    $region7: #{abmil_snn_forward.3} parent=1 // pred_check_branch
      %21 = sbr.rel (0) target = $region9
    $region8: #{abmil_snn_forward.3} parent=1 // pred_region
      _
    $region9: #{abmil_snn_forward.3} parent=1 // pred_fallthru
      _
    // Predicated region
    $region10: #{abmil_snn_forward.3} parent=1 // pred_check
      _
    $region11: #{abmil_snn_forward.3} parent=1 // pred_check_branch
      %23 = sbr.rel (0) target = $region13
    $region12: #{abmil_snn_forward.3} parent=1 // pred_region
      _
    $region13: #{abmil_snn_forward.3} parent=1 // pred_fallthru
      _
    // Predicated region
    $region14: #{abmil_snn_forward.3} parent=1 // pred_check
      _
    $region15: #{abmil_snn_forward.3} parent=1 // pred_check_branch
      %25 = sbr.rel (0) target = $region17
    $region16: #{abmil_snn_forward.3} parent=1 // pred_region
      %s27 = ssub.s32 8192, 8192
      %28 = vsyncadd [#allocation9], %s27
      %s29 = sshll.u32 [#allocation8], 4
      %s30 = int_to_ptr.vmem [resolvable:$true] %s29
      %35 = dma.hbm_to_vmem [thread:$0]  %s4, 8192, %s30, [#allocation9], 256, 256, 16
    $region17: #{abmil_snn_forward.3} parent=1 // pred_fallthru
      _
    // Predicated region
    $region18: #{abmil_snn_forward.3} parent=1 // pred_check
      _
    $region19: #{abmil_snn_forward.3} parent=1 // pred_check_branch
      %37 = sbr.rel (0) target = $region21
    $region20: #{abmil_snn_forward.3} parent=1 // pred_region
      %s39 = ssub.s32 32, 32
      %40 = vsyncadd [#allocation11], %s39
      %s42 = sshll.u32 [#allocation10], 4
      %s43 = int_to_ptr.vmem [resolvable:$true] %s42
      %45 = dma.hbm_to_vmem [thread:$0]  %s5, 32, %s43, [#allocation11]
    $region21: #{abmil_snn_forward.3} parent=1 // pred_fallthru
      _
    // Predicated region
    $region22: #{abmil_snn_forward.3} parent=1 // pred_check
      _
    $region23: #{abmil_snn_forward.3} parent=1 // pred_check_branch
      %47 = sbr.rel (0) target = $region25
    $region24: #{abmil_snn_forward.3} parent=1 // pred_region
      _
    $region25: #{abmil_snn_forward.3} parent=1 // pred_fallthru
      _
    // Predicated region
    $region26: #{abmil_snn_forward.3} parent=1 // pred_check
      _
    $region27: #{abmil_snn_forward.3} parent=1 // pred_check_branch
      %49 = sbr.rel (0) target = $region29
    $region28: #{abmil_snn_forward.3} parent=1 // pred_region
      _
    $region29: #{abmil_snn_forward.3} parent=1 // pred_fallthru
      _
    // Predicated region
    $region30: #{abmil_snn_forward.3} parent=1 // pred_check
      _
    $region31: #{abmil_snn_forward.3} parent=1 // pred_check_branch
      %51 = sbr.rel (0) target = $region33
    $region32: #{abmil_snn_forward.3} parent=1 // pred_region
      %52 = dma.done [#allocation9], 8192
    $region33: #{abmil_snn_forward.3} parent=1 // pred_fallthru
      _
    // Predicated region
    $region34: #{abmil_snn_forward.3} parent=1 // pred_check
      _
    $region35: #{abmil_snn_forward.3} parent=1 // pred_check_branch
      %54 = sbr.rel (0) target = $region37
    $region36: #{abmil_snn_forward.3} parent=1 // pred_region
      %55 = dma.done [#allocation11], 32
    $region37: #{abmil_snn_forward.3} parent=1 // pred_fallthru
      _
    %p56 = scmp.eq.s32.totalorder 0, 0
    // Predicated region
    $region38: #{abmil_snn_forward.3} parent=1 // pred_check
      %p57 = pneg %p56
    $region39: #{abmil_snn_forward.3} parent=1 // pred_check_branch
      %59 = sbr.rel (%p57) target = $region41
    $region40: #{abmil_snn_forward.3} parent=1 // pred_region
      %vm60 = vcmask 0
      %61 = vst.msk [vmem:[#allocation2] sm:$0x1] %vm60, -1e+30
      %62 = vst.msk [vmem:[#allocation3] sm:$0x1] %vm60, 0.0
      %v63 = vlaneseq
      %vm64 = vcmp.ge.s32.totalorder %v63, 0
      %vm65 = vcmp.lt.s32.totalorder %v63, 256
      %vm66 = vmand %vm64, %vm65
      %67 = vst.msk [vmem:[#allocation4] sm:$0x3] %vm66, 0.0
    $region41: #{abmil_snn_forward.3} parent=1 // pred_fallthru
      _
    %v68 = vld [vmem:[%s1] sm:$0xff]
    %v69 = vld [vmem:[%s1 + $0x8] sm:$0xff]
    %v70 = vld [vmem:[%s1 + $0x10] sm:$0xff]
    %v71 = vld [vmem:[%s1 + $0x18] sm:$0xff]
    %v72 = vld [vmem:[%s1 + $0x20] sm:$0xff]
    %v73 = vld [vmem:[%s1 + $0x28] sm:$0xff]
    %v74 = vld [vmem:[%s1 + $0x30] sm:$0xff]
    %v75 = vld [vmem:[%s1 + $0x38] sm:$0xff]
    %v76 = vld [vmem:[%s2] sm:$0xff]
    %v77 = vld [vmem:[%s2 + $0x8] sm:$0xff]
    %v78 = vld [vmem:[%s2 + $0x10] sm:$0xff]
    %v79 = vld [vmem:[%s2 + $0x18] sm:$0xff]
    %v80 = vld [vmem:[%s2 + $0x20] sm:$0xff]
    %v81 = vld [vmem:[%s2 + $0x28] sm:$0xff]
    %v82 = vld [vmem:[%s2 + $0x30] sm:$0xff]
    %v83 = vld [vmem:[%s2 + $0x38] sm:$0xff]
    %v84 = vld [vmem:[%s2 + $0x40] sm:$0xff]
    %v85 = vld [vmem:[%s2 + $0x48] sm:$0xff]
    %v86 = vld [vmem:[%s2 + $0x50] sm:$0xff]
    %v87 = vld [vmem:[%s2 + $0x58] sm:$0xff]
    %v88 = vld [vmem:[%s2 + $0x60] sm:$0xff]
    %v89 = vld [vmem:[%s2 + $0x68] sm:$0xff]
    %v90 = vld [vmem:[%s2 + $0x70] sm:$0xff]
    %v91 = vld [vmem:[%s2 + $0x78] sm:$0xff]
    %v92 = vld [vmem:[%s2 + $0x80] sm:$0xff]
    %v93 = vld [vmem:[%s2 + $0x88] sm:$0xff]
    %v94 = vld [vmem:[%s2 + $0x90] sm:$0xff]
    %v95 = vld [vmem:[%s2 + $0x98] sm:$0xff]
    %v96 = vld [vmem:[%s2 + $0xa0] sm:$0xff]
    %v97 = vld [vmem:[%s2 + $0xa8] sm:$0xff]
    %v98 = vld [vmem:[%s2 + $0xb0] sm:$0xff]
    %v99 = vld [vmem:[%s2 + $0xb8] sm:$0xff]
    %v100 = vld [vmem:[%s2 + $0xc0] sm:$0xff]
    %v101 = vld [vmem:[%s2 + $0xc8] sm:$0xff]
    %v102 = vld [vmem:[%s2 + $0xd0] sm:$0xff]
    %v103 = vld [vmem:[%s2 + $0xd8] sm:$0xff]
    %v104 = vld [vmem:[%s2 + $0xe0] sm:$0xff]
    %v105 = vld [vmem:[%s2 + $0xe8] sm:$0xff]
    %v106 = vld [vmem:[%s2 + $0xf0] sm:$0xff]
    %v107 = vld [vmem:[%s2 + $0xf8] sm:$0xff]
    %v108 = vld [vmem:[%s2 + $0x100] sm:$0xff]
    %v109 = vld [vmem:[%s2 + $0x108] sm:$0xff]
    %v110 = vld [vmem:[%s2 + $0x110] sm:$0xff]
    %v111 = vld [vmem:[%s2 + $0x118] sm:$0xff]
    %v112 = vld [vmem:[%s2 + $0x120] sm:$0xff]
    %v113 = vld [vmem:[%s2 + $0x128] sm:$0xff]
    %v114 = vld [vmem:[%s2 + $0x130] sm:$0xff]
    %v115 = vld [vmem:[%s2 + $0x138] sm:$0xff]
    %v116 = vld [vmem:[%s2 + $0x140] sm:$0xff]
    %v117 = vld [vmem:[%s2 + $0x148] sm:$0xff]
    %v118 = vld [vmem:[%s2 + $0x150] sm:$0xff]
    %v119 = vld [vmem:[%s2 + $0x158] sm:$0xff]
    %v120 = vld [vmem:[%s2 + $0x160] sm:$0xff]
    %v121 = vld [vmem:[%s2 + $0x168] sm:$0xff]
    %v122 = vld [vmem:[%s2 + $0x170] sm:$0xff]
    %v123 = vld [vmem:[%s2 + $0x178] sm:$0xff]
    %v124 = vld [vmem:[%s2 + $0x180] sm:$0xff]
    %v125 = vld [vmem:[%s2 + $0x188] sm:$0xff]
    %v126 = vld [vmem:[%s2 + $0x190] sm:$0xff]
    %v127 = vld [vmem:[%s2 + $0x198] sm:$0xff]
    %v128 = vld [vmem:[%s2 + $0x1a0] sm:$0xff]
    %v129 = vld [vmem:[%s2 + $0x1a8] sm:$0xff]
    %v130 = vld [vmem:[%s2 + $0x1b0] sm:$0xff]
    %v131 = vld [vmem:[%s2 + $0x1b8] sm:$0xff]
    %v132 = vld [vmem:[%s2 + $0x1c0] sm:$0xff]
    %v133 = vld [vmem:[%s2 + $0x1c8] sm:$0xff]
    %v134 = vld [vmem:[%s2 + $0x1d0] sm:$0xff]
    %v135 = vld [vmem:[%s2 + $0x1d8] sm:$0xff]
    %v136 = vld [vmem:[%s2 + $0x1e0] sm:$0xff]
    %v137 = vld [vmem:[%s2 + $0x1e8] sm:$0xff]
    %v138 = vld [vmem:[%s2 + $0x1f0] sm:$0xff]
    %v139 = vld [vmem:[%s2 + $0x1f8] sm:$0xff]
    %v140 = vld [vmem:[%s2 + $0x200] sm:$0xff]
    %v141 = vld [vmem:[%s2 + $0x208] sm:$0xff]
    %v142 = vld [vmem:[%s2 + $0x210] sm:$0xff]
    %v143 = vld [vmem:[%s2 + $0x218] sm:$0xff]
    %v144 = vld [vmem:[%s2 + $0x220] sm:$0xff]
    %v145 = vld [vmem:[%s2 + $0x228] sm:$0xff]
    %v146 = vld [vmem:[%s2 + $0x230] sm:$0xff]
    %v147 = vld [vmem:[%s2 + $0x238] sm:$0xff]
    %v148 = vld [vmem:[%s2 + $0x240] sm:$0xff]
    %v149 = vld [vmem:[%s2 + $0x248] sm:$0xff]
    %v150 = vld [vmem:[%s2 + $0x250] sm:$0xff]
    %v151 = vld [vmem:[%s2 + $0x258] sm:$0xff]
    %v152 = vld [vmem:[%s2 + $0x260] sm:$0xff]
    %v153 = vld [vmem:[%s2 + $0x268] sm:$0xff]
    %v154 = vld [vmem:[%s2 + $0x270] sm:$0xff]
    %v155 = vld [vmem:[%s2 + $0x278] sm:$0xff]
    %v156 = vld [vmem:[%s2 + $0x280] sm:$0xff]
    %v157 = vld [vmem:[%s2 + $0x288] sm:$0xff]
    %v158 = vld [vmem:[%s2 + $0x290] sm:$0xff]
    %v159 = vld [vmem:[%s2 + $0x298] sm:$0xff]
    %v160 = vld [vmem:[%s2 + $0x2a0] sm:$0xff]
    %v161 = vld [vmem:[%s2 + $0x2a8] sm:$0xff]
    %v162 = vld [vmem:[%s2 + $0x2b0] sm:$0xff]
    %v163 = vld [vmem:[%s2 + $0x2b8] sm:$0xff]
    %v164 = vld [vmem:[%s2 + $0x2c0] sm:$0xff]
    %v165 = vld [vmem:[%s2 + $0x2c8] sm:$0xff]
    %v166 = vld [vmem:[%s2 + $0x2d0] sm:$0xff]
    %v167 = vld [vmem:[%s2 + $0x2d8] sm:$0xff]
    %v168 = vld [vmem:[%s2 + $0x2e0] sm:$0xff]
    %v169 = vld [vmem:[%s2 + $0x2e8] sm:$0xff]
    %v170 = vld [vmem:[%s2 + $0x2f0] sm:$0xff]
    %v171 = vld [vmem:[%s2 + $0x2f8] sm:$0xff]
    %v172 = vld [vmem:[%s2 + $0x300] sm:$0xff]
    %v173 = vld [vmem:[%s2 + $0x308] sm:$0xff]
    %v174 = vld [vmem:[%s2 + $0x310] sm:$0xff]
    %v175 = vld [vmem:[%s2 + $0x318] sm:$0xff]
    %v176 = vld [vmem:[%s2 + $0x320] sm:$0xff]
    %v177 = vld [vmem:[%s2 + $0x328] sm:$0xff]
    %v178 = vld [vmem:[%s2 + $0x330] sm:$0xff]
    %v179 = vld [vmem:[%s2 + $0x338] sm:$0xff]
    %v180 = vld [vmem:[%s2 + $0x340] sm:$0xff]
    %v181 = vld [vmem:[%s2 + $0x348] sm:$0xff]
    %v182 = vld [vmem:[%s2 + $0x350] sm:$0xff]
    %v183 = vld [vmem:[%s2 + $0x358] sm:$0xff]
    %v184 = vld [vmem:[%s2 + $0x360] sm:$0xff]
    %v185 = vld [vmem:[%s2 + $0x368] sm:$0xff]
    %v186 = vld [vmem:[%s2 + $0x370] sm:$0xff]
    %v187 = vld [vmem:[%s2 + $0x378] sm:$0xff]
    %v188 = vld [vmem:[%s2 + $0x380] sm:$0xff]
    %v189 = vld [vmem:[%s2 + $0x388] sm:$0xff]
    %v190 = vld [vmem:[%s2 + $0x390] sm:$0xff]
    %v191 = vld [vmem:[%s2 + $0x398] sm:$0xff]
    %v192 = vld [vmem:[%s2 + $0x3a0] sm:$0xff]
    %v193 = vld [vmem:[%s2 + $0x3a8] sm:$0xff]
    %v194 = vld [vmem:[%s2 + $0x3b0] sm:$0xff]
    %v195 = vld [vmem:[%s2 + $0x3b8] sm:$0xff]
    %v196 = vld [vmem:[%s2 + $0x3c0] sm:$0xff]
    %v197 = vld [vmem:[%s2 + $0x3c8] sm:$0xff]
    %v198 = vld [vmem:[%s2 + $0x3d0] sm:$0xff]
    %v199 = vld [vmem:[%s2 + $0x3d8] sm:$0xff]
    %v200 = vld [vmem:[%s2 + $0x3e0] sm:$0xff]
    %v201 = vld [vmem:[%s2 + $0x3e8] sm:$0xff]
    %v202 = vld [vmem:[%s2 + $0x3f0] sm:$0xff]
    %v203 = vld [vmem:[%s2 + $0x3f8] sm:$0xff]
    %v204 = vld [vmem:[%s3] sm:$0x3]
    %v206 = vlaneseq
    %v207 = vshrl.u32 %v206, 7
    %v208 = vsub.s32 0, %v207
    %v209 = vrot.slane %v204, %v208
    %v210 = vlaneseq
    %v211 = vshrl.u32 %v210, 7
    %v212 = vsub.s32 1, %v211
    %v213 = vrot.slane %v204, %v212
    %v224 = vunpack.c.l.b16 %v68
    %v225 = vunpack.c.h.b16 %v68
    %v226 = vunpack.c.l.b16 %v69
    %v227 = vunpack.c.h.b16 %v69
    %v228 = vunpack.c.l.b16 %v70
    %v229 = vunpack.c.h.b16 %v70
    %v230 = vunpack.c.l.b16 %v71
    %v231 = vunpack.c.h.b16 %v71
    %v232 = vunpack.c.l.b16 %v72
    %v233 = vunpack.c.h.b16 %v72
    %v234 = vunpack.c.l.b16 %v73
    %v235 = vunpack.c.h.b16 %v73
    %v236 = vunpack.c.l.b16 %v74
    %v237 = vunpack.c.h.b16 %v74
    %v238 = vunpack.c.l.b16 %v75
    %v239 = vunpack.c.h.b16 %v75
    %v240 = vpack.c.b16 %v232, %v224
    %v241 = vpack.c.b16 %v233, %v225
    %v242 = vpack.c.b16 %v234, %v226
    %v243 = vpack.c.b16 %v235, %v227
    %v244 = vpack.c.b16 %v236, %v228
    %v245 = vpack.c.b16 %v237, %v229
    %v246 = vpack.c.b16 %v238, %v230
    %v247 = vpack.c.b16 %v239, %v231
    %v384 = vunpack.c.l.b16 %v76
    %v385 = vunpack.c.h.b16 %v76
    %v386 = vunpack.c.l.b16 %v77
    %v387 = vunpack.c.h.b16 %v77
    %v388 = vunpack.c.l.b16 %v78
    %v389 = vunpack.c.h.b16 %v78
    %v390 = vunpack.c.l.b16 %v79
    %v391 = vunpack.c.h.b16 %v79
    %v392 = vunpack.c.l.b16 %v80
    %v393 = vunpack.c.h.b16 %v80
    %v394 = vunpack.c.l.b16 %v81
    %v395 = vunpack.c.h.b16 %v81
    %v396 = vunpack.c.l.b16 %v82
    %v397 = vunpack.c.h.b16 %v82
    %v398 = vunpack.c.l.b16 %v83
    %v399 = vunpack.c.h.b16 %v83
    %v400 = vunpack.c.l.b16 %v84
    %v401 = vunpack.c.h.b16 %v84
    %v402 = vunpack.c.l.b16 %v85
    %v403 = vunpack.c.h.b16 %v85
    %v404 = vunpack.c.l.b16 %v86
    %v405 = vunpack.c.h.b16 %v86
    %v406 = vunpack.c.l.b16 %v87
    %v407 = vunpack.c.h.b16 %v87
    %v408 = vunpack.c.l.b16 %v88
    %v409 = vunpack.c.h.b16 %v88
    %v410 = vunpack.c.l.b16 %v89
    %v411 = vunpack.c.h.b16 %v89
    %v412 = vunpack.c.l.b16 %v90
    %v413 = vunpack.c.h.b16 %v90
    %v414 = vunpack.c.l.b16 %v91
    %v415 = vunpack.c.h.b16 %v91
    %v416 = vunpack.c.l.b16 %v92
    %v417 = vunpack.c.h.b16 %v92
    %v418 = vunpack.c.l.b16 %v93
    %v419 = vunpack.c.h.b16 %v93
    %v420 = vunpack.c.l.b16 %v94
    %v421 = vunpack.c.h.b16 %v94
    %v422 = vunpack.c.l.b16 %v95
    %v423 = vunpack.c.h.b16 %v95
    %v424 = vunpack.c.l.b16 %v96
    %v425 = vunpack.c.h.b16 %v96
    %v426 = vunpack.c.l.b16 %v97
    %v427 = vunpack.c.h.b16 %v97
    %v428 = vunpack.c.l.b16 %v98
    %v429 = vunpack.c.h.b16 %v98
    %v430 = vunpack.c.l.b16 %v99
    %v431 = vunpack.c.h.b16 %v99
    %v432 = vunpack.c.l.b16 %v100
    %v433 = vunpack.c.h.b16 %v100
    %v434 = vunpack.c.l.b16 %v101
    %v435 = vunpack.c.h.b16 %v101
    %v436 = vunpack.c.l.b16 %v102
    %v437 = vunpack.c.h.b16 %v102
    %v438 = vunpack.c.l.b16 %v103
    %v439 = vunpack.c.h.b16 %v103
    %v440 = vunpack.c.l.b16 %v104
    %v441 = vunpack.c.h.b16 %v104
    %v442 = vunpack.c.l.b16 %v105
    %v443 = vunpack.c.h.b16 %v105
    %v444 = vunpack.c.l.b16 %v106
    %v445 = vunpack.c.h.b16 %v106
    %v446 = vunpack.c.l.b16 %v107
    %v447 = vunpack.c.h.b16 %v107
    %v448 = vunpack.c.l.b16 %v108
    %v449 = vunpack.c.h.b16 %v108
    %v450 = vunpack.c.l.b16 %v109
    %v451 = vunpack.c.h.b16 %v109
    %v452 = vunpack.c.l.b16 %v110
    %v453 = vunpack.c.h.b16 %v110
    %v454 = vunpack.c.l.b16 %v111
    %v455 = vunpack.c.h.b16 %v111
    %v456 = vunpack.c.l.b16 %v112
    %v457 = vunpack.c.h.b16 %v112
    %v458 = vunpack.c.l.b16 %v113
    %v459 = vunpack.c.h.b16 %v113
    %v460 = vunpack.c.l.b16 %v114
    %v461 = vunpack.c.h.b16 %v114
    %v462 = vunpack.c.l.b16 %v115
    %v463 = vunpack.c.h.b16 %v115
    %v464 = vunpack.c.l.b16 %v116
    %v465 = vunpack.c.h.b16 %v116
    %v466 = vunpack.c.l.b16 %v117
    %v467 = vunpack.c.h.b16 %v117
    %v468 = vunpack.c.l.b16 %v118
    %v469 = vunpack.c.h.b16 %v118
    %v470 = vunpack.c.l.b16 %v119
    %v471 = vunpack.c.h.b16 %v119
    %v472 = vunpack.c.l.b16 %v120
    %v473 = vunpack.c.h.b16 %v120
    %v474 = vunpack.c.l.b16 %v121
    %v475 = vunpack.c.h.b16 %v121
    %v476 = vunpack.c.l.b16 %v122
    %v477 = vunpack.c.h.b16 %v122
    %v478 = vunpack.c.l.b16 %v123
    %v479 = vunpack.c.h.b16 %v123
    %v480 = vunpack.c.l.b16 %v124
    %v481 = vunpack.c.h.b16 %v124
    %v482 = vunpack.c.l.b16 %v125
    %v483 = vunpack.c.h.b16 %v125
    %v484 = vunpack.c.l.b16 %v126
    %v485 = vunpack.c.h.b16 %v126
    %v486 = vunpack.c.l.b16 %v127
    %v487 = vunpack.c.h.b16 %v127
    %v488 = vunpack.c.l.b16 %v128
    %v489 = vunpack.c.h.b16 %v128
    %v490 = vunpack.c.l.b16 %v129
    %v491 = vunpack.c.h.b16 %v129
    %v492 = vunpack.c.l.b16 %v130
    %v493 = vunpack.c.h.b16 %v130
    %v494 = vunpack.c.l.b16 %v131
    %v495 = vunpack.c.h.b16 %v131
    %v496 = vunpack.c.l.b16 %v132
    %v497 = vunpack.c.h.b16 %v132
    %v498 = vunpack.c.l.b16 %v133
    %v499 = vunpack.c.h.b16 %v133
    %v500 = vunpack.c.l.b16 %v134
    %v501 = vunpack.c.h.b16 %v134
    %v502 = vunpack.c.l.b16 %v135
    %v503 = vunpack.c.h.b16 %v135
    %v504 = vunpack.c.l.b16 %v136
    %v505 = vunpack.c.h.b16 %v136
    %v506 = vunpack.c.l.b16 %v137
    %v507 = vunpack.c.h.b16 %v137
    %v508 = vunpack.c.l.b16 %v138
    %v509 = vunpack.c.h.b16 %v138
    %v510 = vunpack.c.l.b16 %v139
    %v511 = vunpack.c.h.b16 %v139
    %v512 = vunpack.c.l.b16 %v140
    %v513 = vunpack.c.h.b16 %v140
    %v514 = vunpack.c.l.b16 %v141
    %v515 = vunpack.c.h.b16 %v141
    %v516 = vunpack.c.l.b16 %v142
    %v517 = vunpack.c.h.b16 %v142
    %v518 = vunpack.c.l.b16 %v143
    %v519 = vunpack.c.h.b16 %v143
    %v520 = vunpack.c.l.b16 %v144
    %v521 = vunpack.c.h.b16 %v144
    %v522 = vunpack.c.l.b16 %v145
    %v523 = vunpack.c.h.b16 %v145
    %v524 = vunpack.c.l.b16 %v146
    %v525 = vunpack.c.h.b16 %v146
    %v526 = vunpack.c.l.b16 %v147
    %v527 = vunpack.c.h.b16 %v147
    %v528 = vunpack.c.l.b16 %v148
    %v529 = vunpack.c.h.b16 %v148
    %v530 = vunpack.c.l.b16 %v149
    %v531 = vunpack.c.h.b16 %v149
    %v532 = vunpack.c.l.b16 %v150
    %v533 = vunpack.c.h.b16 %v150
    %v534 = vunpack.c.l.b16 %v151
    %v535 = vunpack.c.h.b16 %v151
    %v536 = vunpack.c.l.b16 %v152
    %v537 = vunpack.c.h.b16 %v152
    %v538 = vunpack.c.l.b16 %v153
    %v539 = vunpack.c.h.b16 %v153
    %v540 = vunpack.c.l.b16 %v154
    %v541 = vunpack.c.h.b16 %v154
    %v542 = vunpack.c.l.b16 %v155
    %v543 = vunpack.c.h.b16 %v155
    %v544 = vunpack.c.l.b16 %v156
    %v545 = vunpack.c.h.b16 %v156
    %v546 = vunpack.c.l.b16 %v157
    %v547 = vunpack.c.h.b16 %v157
    %v548 = vunpack.c.l.b16 %v158
    %v549 = vunpack.c.h.b16 %v158
    %v550 = vunpack.c.l.b16 %v159
    %v551 = vunpack.c.h.b16 %v159
    %v552 = vunpack.c.l.b16 %v160
    %v553 = vunpack.c.h.b16 %v160
    %v554 = vunpack.c.l.b16 %v161
    %v555 = vunpack.c.h.b16 %v161
    %v556 = vunpack.c.l.b16 %v162
    %v557 = vunpack.c.h.b16 %v162
    %v558 = vunpack.c.l.b16 %v163
    %v559 = vunpack.c.h.b16 %v163
    %v560 = vunpack.c.l.b16 %v164
    %v561 = vunpack.c.h.b16 %v164
    %v562 = vunpack.c.l.b16 %v165
    %v563 = vunpack.c.h.b16 %v165
    %v564 = vunpack.c.l.b16 %v166
    %v565 = vunpack.c.h.b16 %v166
    %v566 = vunpack.c.l.b16 %v167
    %v567 = vunpack.c.h.b16 %v167
    %v568 = vunpack.c.l.b16 %v168
    %v569 = vunpack.c.h.b16 %v168
    %v570 = vunpack.c.l.b16 %v169
    %v571 = vunpack.c.h.b16 %v169
    %v572 = vunpack.c.l.b16 %v170
    %v573 = vunpack.c.h.b16 %v170
    %v574 = vunpack.c.l.b16 %v171
    %v575 = vunpack.c.h.b16 %v171
    %v576 = vunpack.c.l.b16 %v172
    %v577 = vunpack.c.h.b16 %v172
    %v578 = vunpack.c.l.b16 %v173
    %v579 = vunpack.c.h.b16 %v173
    %v580 = vunpack.c.l.b16 %v174
    %v581 = vunpack.c.h.b16 %v174
    %v582 = vunpack.c.l.b16 %v175
    %v583 = vunpack.c.h.b16 %v175
    %v584 = vunpack.c.l.b16 %v176
    %v585 = vunpack.c.h.b16 %v176
    %v586 = vunpack.c.l.b16 %v177
    %v587 = vunpack.c.h.b16 %v177
    %v588 = vunpack.c.l.b16 %v178
    %v589 = vunpack.c.h.b16 %v178
    %v590 = vunpack.c.l.b16 %v179
    %v591 = vunpack.c.h.b16 %v179
    %v592 = vunpack.c.l.b16 %v180
    %v593 = vunpack.c.h.b16 %v180
    %v594 = vunpack.c.l.b16 %v181
    %v595 = vunpack.c.h.b16 %v181
    %v596 = vunpack.c.l.b16 %v182
    %v597 = vunpack.c.h.b16 %v182
    %v598 = vunpack.c.l.b16 %v183
    %v599 = vunpack.c.h.b16 %v183
    %v600 = vunpack.c.l.b16 %v184
    %v601 = vunpack.c.h.b16 %v184
    %v602 = vunpack.c.l.b16 %v185
    %v603 = vunpack.c.h.b16 %v185
    %v604 = vunpack.c.l.b16 %v186
    %v605 = vunpack.c.h.b16 %v186
    %v606 = vunpack.c.l.b16 %v187
    %v607 = vunpack.c.h.b16 %v187
    %v608 = vunpack.c.l.b16 %v188
    %v609 = vunpack.c.h.b16 %v188
    %v610 = vunpack.c.l.b16 %v189
    %v611 = vunpack.c.h.b16 %v189
    %v612 = vunpack.c.l.b16 %v190
    %v613 = vunpack.c.h.b16 %v190
    %v614 = vunpack.c.l.b16 %v191
    %v615 = vunpack.c.h.b16 %v191
    %v616 = vunpack.c.l.b16 %v192
    %v617 = vunpack.c.h.b16 %v192
    %v618 = vunpack.c.l.b16 %v193
    %v619 = vunpack.c.h.b16 %v193
    %v620 = vunpack.c.l.b16 %v194
    %v621 = vunpack.c.h.b16 %v194
    %v622 = vunpack.c.l.b16 %v195
    %v623 = vunpack.c.h.b16 %v195
    %v624 = vunpack.c.l.b16 %v196
    %v625 = vunpack.c.h.b16 %v196
    %v626 = vunpack.c.l.b16 %v197
    %v627 = vunpack.c.h.b16 %v197
    %v628 = vunpack.c.l.b16 %v198
    %v629 = vunpack.c.h.b16 %v198
    %v630 = vunpack.c.l.b16 %v199
    %v631 = vunpack.c.h.b16 %v199
    %v632 = vunpack.c.l.b16 %v200
    %v633 = vunpack.c.h.b16 %v200
    %v634 = vunpack.c.l.b16 %v201
    %v635 = vunpack.c.h.b16 %v201
    %v636 = vunpack.c.l.b16 %v202
    %v637 = vunpack.c.h.b16 %v202
    %v638 = vunpack.c.l.b16 %v203
    %v639 = vunpack.c.h.b16 %v203
    %v640 = vpack.c.b16 %v386, %v384
    %v641 = vpack.c.b16 %v387, %v385
    %v642 = vpack.c.b16 %v390, %v388
    %v643 = vpack.c.b16 %v391, %v389
    %v644 = vpack.c.b16 %v394, %v392
    %v645 = vpack.c.b16 %v395, %v393
    %v646 = vpack.c.b16 %v398, %v396
    %v647 = vpack.c.b16 %v399, %v397
    %v648 = vpack.c.b16 %v402, %v400
    %v649 = vpack.c.b16 %v403, %v401
    %v650 = vpack.c.b16 %v406, %v404
    %v651 = vpack.c.b16 %v407, %v405
    %v652 = vpack.c.b16 %v410, %v408
    %v653 = vpack.c.b16 %v411, %v409
    %v654 = vpack.c.b16 %v414, %v412
    %v655 = vpack.c.b16 %v415, %v413
    %v656 = vpack.c.b16 %v418, %v416
    %v657 = vpack.c.b16 %v419, %v417
    %v658 = vpack.c.b16 %v422, %v420
    %v659 = vpack.c.b16 %v423, %v421
    %v660 = vpack.c.b16 %v426, %v424
    %v661 = vpack.c.b16 %v427, %v425
    %v662 = vpack.c.b16 %v430, %v428
    %v663 = vpack.c.b16 %v431, %v429
    %v664 = vpack.c.b16 %v434, %v432
    %v665 = vpack.c.b16 %v435, %v433
    %v666 = vpack.c.b16 %v438, %v436
    %v667 = vpack.c.b16 %v439, %v437
    %v668 = vpack.c.b16 %v442, %v440
    %v669 = vpack.c.b16 %v443, %v441
    %v670 = vpack.c.b16 %v446, %v444
    %v671 = vpack.c.b16 %v447, %v445
    %v672 = vpack.c.b16 %v450, %v448
    %v673 = vpack.c.b16 %v451, %v449
    %v674 = vpack.c.b16 %v454, %v452
    %v675 = vpack.c.b16 %v455, %v453
    %v676 = vpack.c.b16 %v458, %v456
    %v677 = vpack.c.b16 %v459, %v457
    %v678 = vpack.c.b16 %v462, %v460
    %v679 = vpack.c.b16 %v463, %v461
    %v680 = vpack.c.b16 %v466, %v464
    %v681 = vpack.c.b16 %v467, %v465
    %v682 = vpack.c.b16 %v470, %v468
    %v683 = vpack.c.b16 %v471, %v469
    %v684 = vpack.c.b16 %v474, %v472
    %v685 = vpack.c.b16 %v475, %v473
    %v686 = vpack.c.b16 %v478, %v476
    %v687 = vpack.c.b16 %v479, %v477
    %v688 = vpack.c.b16 %v482, %v480
    %v689 = vpack.c.b16 %v483, %v481
    %v690 = vpack.c.b16 %v486, %v484
    %v691 = vpack.c.b16 %v487, %v485
    %v692 = vpack.c.b16 %v490, %v488
    %v693 = vpack.c.b16 %v491, %v489
    %v694 = vpack.c.b16 %v494, %v492
    %v695 = vpack.c.b16 %v495, %v493
    %v696 = vpack.c.b16 %v498, %v496
    %v697 = vpack.c.b16 %v499, %v497
    %v698 = vpack.c.b16 %v502, %v500
    %v699 = vpack.c.b16 %v503, %v501
    %v700 = vpack.c.b16 %v506, %v504
    %v701 = vpack.c.b16 %v507, %v505
    %v702 = vpack.c.b16 %v510, %v508
    %v703 = vpack.c.b16 %v511, %v509
    %v704 = vpack.c.b16 %v514, %v512
    %v705 = vpack.c.b16 %v515, %v513
    %v706 = vpack.c.b16 %v518, %v516
    %v707 = vpack.c.b16 %v519, %v517
    %v708 = vpack.c.b16 %v522, %v520
    %v709 = vpack.c.b16 %v523, %v521
    %v710 = vpack.c.b16 %v526, %v524
    %v711 = vpack.c.b16 %v527, %v525
    %v712 = vpack.c.b16 %v530, %v528
    %v713 = vpack.c.b16 %v531, %v529
    %v714 = vpack.c.b16 %v534, %v532
    %v715 = vpack.c.b16 %v535, %v533
    %v716 = vpack.c.b16 %v538, %v536
    %v717 = vpack.c.b16 %v539, %v537
    %v718 = vpack.c.b16 %v542, %v540
    %v719 = vpack.c.b16 %v543, %v541
    %v720 = vpack.c.b16 %v546, %v544
    %v721 = vpack.c.b16 %v547, %v545
    %v722 = vpack.c.b16 %v550, %v548
    %v723 = vpack.c.b16 %v551, %v549
    %v724 = vpack.c.b16 %v554, %v552
    %v725 = vpack.c.b16 %v555, %v553
    %v726 = vpack.c.b16 %v558, %v556
    %v727 = vpack.c.b16 %v559, %v557
    %v728 = vpack.c.b16 %v562, %v560
    %v729 = vpack.c.b16 %v563, %v561
    %v730 = vpack.c.b16 %v566, %v564
    %v731 = vpack.c.b16 %v567, %v565
    %v732 = vpack.c.b16 %v570, %v568
    %v733 = vpack.c.b16 %v571, %v569
    %v734 = vpack.c.b16 %v574, %v572
    %v735 = vpack.c.b16 %v575, %v573
    %v736 = vpack.c.b16 %v578, %v576
    %v737 = vpack.c.b16 %v579, %v577
    %v738 = vpack.c.b16 %v582, %v580
    %v739 = vpack.c.b16 %v583, %v581
    %v740 = vpack.c.b16 %v586, %v584
    %v741 = vpack.c.b16 %v587, %v585
    %v742 = vpack.c.b16 %v590, %v588
    %v743 = vpack.c.b16 %v591, %v589
    %v744 = vpack.c.b16 %v594, %v592
    %v745 = vpack.c.b16 %v595, %v593
    %v746 = vpack.c.b16 %v598, %v596
    %v747 = vpack.c.b16 %v599, %v597
    %v748 = vpack.c.b16 %v602, %v600
    %v749 = vpack.c.b16 %v603, %v601
    %v750 = vpack.c.b16 %v606, %v604
    %v751 = vpack.c.b16 %v607, %v605
    %v752 = vpack.c.b16 %v610, %v608
    %v753 = vpack.c.b16 %v611, %v609
    %v754 = vpack.c.b16 %v614, %v612
    %v755 = vpack.c.b16 %v615, %v613
    %v756 = vpack.c.b16 %v618, %v616
    %v757 = vpack.c.b16 %v619, %v617
    %v758 = vpack.c.b16 %v622, %v620
    %v759 = vpack.c.b16 %v623, %v621
    %v760 = vpack.c.b16 %v626, %v624
    %v761 = vpack.c.b16 %v627, %v625
    %v762 = vpack.c.b16 %v630, %v628
    %v763 = vpack.c.b16 %v631, %v629
    %v764 = vpack.c.b16 %v634, %v632
    %v765 = vpack.c.b16 %v635, %v633
    %v766 = vpack.c.b16 %v638, %v636
    %v767 = vpack.c.b16 %v639, %v637
    %896 = vmatprep.subr.bf16.mxu0 %v641
    %897 = vmatpush1.bf16.msra.mxu0 %v640
    %898 = vmatprep.subr.bf16.mxu0 %v643
    %899 = vmatpush1.bf16.msra.mxu0 %v642
    %900 = vmatprep.subr.bf16.mxu0 %v645
    %901 = vmatpush1.bf16.msra.mxu0 %v644
    %902 = vmatprep.subr.bf16.mxu0 %v647
    %903 = vmatpush1.bf16.msra.mxu0 %v646
    %904 = vmatprep.subr.bf16.mxu0 %v649
    %905 = vmatpush1.bf16.msra.mxu0 %v648
    %906 = vmatprep.subr.bf16.mxu0 %v651
    %907 = vmatpush1.bf16.msra.mxu0 %v650
    %908 = vmatprep.subr.bf16.mxu0 %v653
    %909 = vmatpush1.bf16.msra.mxu0 %v652
    %910 = vmatprep.subr.bf16.mxu0 %v655
    %911 = vmatpush1.bf16.msra.mxu0 %v654
    %912 = vmatprep.subr.bf16.mxu0 %v657
    %913 = vmatpush1.bf16.msra.mxu0 %v656
    %914 = vmatprep.subr.bf16.mxu0 %v659
    %915 = vmatpush1.bf16.msra.mxu0 %v658
    %916 = vmatprep.subr.bf16.mxu0 %v661
    %917 = vmatpush1.bf16.msra.mxu0 %v660
    %918 = vmatprep.subr.bf16.mxu0 %v663
    %919 = vmatpush1.bf16.msra.mxu0 %v662
    %920 = vmatprep.subr.bf16.mxu0 %v665
    %921 = vmatpush1.bf16.msra.mxu0 %v664
    %922 = vmatprep.subr.bf16.mxu0 %v667
    %923 = vmatpush1.bf16.msra.mxu0 %v666
    %924 = vmatprep.subr.bf16.mxu0 %v669
    %925 = vmatpush1.bf16.msra.mxu0 %v668
    %926 = vmatprep.subr.bf16.mxu0 %v671
    %927 = vmatpush1.bf16.msra.mxu0 %v670
    %928 = vmatprep.mubr.bf16.mxu0 %v241
    %929 = vmatmul.mubr.bf16.gmra.mrb[0].mxu0 %v240
    %v930 = vpop.f32.mrb[0].mxu0
    %v931 = vadd.f32 %v209, %v930
    %v932 = vpop.f32.mrb[0].mxu0
    %v933 = vadd.f32 %v213, %v932
    %v934 = vpop.f32.mrb[0].mxu0
    %v935 = vadd.f32 %v209, %v934
    %v936 = vpop.f32.mrb[0].mxu0
    %v937 = vadd.f32 %v213, %v936
    %938 = vdwg.mxu0
    %939 = vmatprep.subr.bf16.mxu0 %v673
    %940 = vmatpush1.bf16.msra.mxu0 %v672
    %941 = vmatprep.subr.bf16.mxu0 %v675
    %942 = vmatpush1.bf16.msra.mxu0 %v674
    %943 = vmatprep.subr.bf16.mxu0 %v677
    %944 = vmatpush1.bf16.msra.mxu0 %v676
    %945 = vmatprep.subr.bf16.mxu0 %v679
    %946 = vmatpush1.bf16.msra.mxu0 %v678
    %947 = vmatprep.subr.bf16.mxu0 %v681
    %948 = vmatpush1.bf16.msra.mxu0 %v680
    %949 = vmatprep.subr.bf16.mxu0 %v683
    %950 = vmatpush1.bf16.msra.mxu0 %v682
    %951 = vmatprep.subr.bf16.mxu0 %v685
    %952 = vmatpush1.bf16.msra.mxu0 %v684
    %953 = vmatprep.subr.bf16.mxu0 %v687
    %954 = vmatpush1.bf16.msra.mxu0 %v686
    %955 = vmatprep.subr.bf16.mxu0 %v689
    %956 = vmatpush1.bf16.msra.mxu0 %v688
    %957 = vmatprep.subr.bf16.mxu0 %v691
    %958 = vmatpush1.bf16.msra.mxu0 %v690
    %959 = vmatprep.subr.bf16.mxu0 %v693
    %960 = vmatpush1.bf16.msra.mxu0 %v692
    %961 = vmatprep.subr.bf16.mxu0 %v695
    %962 = vmatpush1.bf16.msra.mxu0 %v694
    %963 = vmatprep.subr.bf16.mxu0 %v697
    %964 = vmatpush1.bf16.msra.mxu0 %v696
    %965 = vmatprep.subr.bf16.mxu0 %v699
    %966 = vmatpush1.bf16.msra.mxu0 %v698
    %967 = vmatprep.subr.bf16.mxu0 %v701
    %968 = vmatpush1.bf16.msra.mxu0 %v700
    %969 = vmatprep.subr.bf16.mxu0 %v703
    %970 = vmatpush1.bf16.msra.mxu0 %v702
    %971 = vmatprep.mubr.bf16.mxu0 %v243
    %972 = vmatmul.mubr.bf16.gmra.mrb[0].mxu0 %v242
    %v973 = vpop.f32.mrb[0].mxu0
    %v974 = vadd.f32 %v931, %v973
    %v975 = vpop.f32.mrb[0].mxu0
    %v976 = vadd.f32 %v933, %v975
    %v977 = vpop.f32.mrb[0].mxu0
    %v978 = vadd.f32 %v935, %v977
    %v979 = vpop.f32.mrb[0].mxu0
    %v980 = vadd.f32 %v937, %v979
    %981 = vdwg.mxu0
    %982 = vmatprep.subr.bf16.mxu0 %v705
    %983 = vmatpush1.bf16.msra.mxu0 %v704
    %984 = vmatprep.subr.bf16.mxu0 %v707
    %985 = vmatpush1.bf16.msra.mxu0 %v706
    %986 = vmatprep.subr.bf16.mxu0 %v709
    %987 = vmatpush1.bf16.msra.mxu0 %v708
    %988 = vmatprep.subr.bf16.mxu0 %v711
    %989 = vmatpush1.bf16.msra.mxu0 %v710
    %990 = vmatprep.subr.bf16.mxu0 %v713
    %991 = vmatpush1.bf16.msra.mxu0 %v712
    %992 = vmatprep.subr.bf16.mxu0 %v715
    %993 = vmatpush1.bf16.msra.mxu0 %v714
    %994 = vmatprep.subr.bf16.mxu0 %v717
    %995 = vmatpush1.bf16.msra.mxu0 %v716
    %996 = vmatprep.subr.bf16.mxu0 %v719
    %997 = vmatpush1.bf16.msra.mxu0 %v718
    %998 = vmatprep.subr.bf16.mxu0 %v721
    %999 = vmatpush1.bf16.msra.mxu0 %v720
    %1000 = vmatprep.subr.bf16.mxu0 %v723
    %1001 = vmatpush1.bf16.msra.mxu0 %v722
    %1002 = vmatprep.subr.bf16.mxu0 %v725
    %1003 = vmatpush1.bf16.msra.mxu0 %v724
    %1004 = vmatprep.subr.bf16.mxu0 %v727
    %1005 = vmatpush1.bf16.msra.mxu0 %v726
    %1006 = vmatprep.subr.bf16.mxu0 %v729
    %1007 = vmatpush1.bf16.msra.mxu0 %v728
    %1008 = vmatprep.subr.bf16.mxu0 %v731
    %1009 = vmatpush1.bf16.msra.mxu0 %v730
    %1010 = vmatprep.subr.bf16.mxu0 %v733
    %1011 = vmatpush1.bf16.msra.mxu0 %v732
    %1012 = vmatprep.subr.bf16.mxu0 %v735
    %1013 = vmatpush1.bf16.msra.mxu0 %v734
    %1014 = vmatprep.mubr.bf16.mxu0 %v245
    %1015 = vmatmul.mubr.bf16.gmra.mrb[0].mxu0 %v244
    %v1016 = vpop.f32.mrb[0].mxu0
    %v1017 = vadd.f32 %v974, %v1016
    %v1018 = vpop.f32.mrb[0].mxu0
    %v1019 = vadd.f32 %v976, %v1018
    %v1020 = vpop.f32.mrb[0].mxu0
    %v1021 = vadd.f32 %v978, %v1020
    %v1022 = vpop.f32.mrb[0].mxu0
    %v1023 = vadd.f32 %v980, %v1022
    %1024 = vdwg.mxu0
    %1025 = vmatprep.subr.bf16.mxu0 %v737
    %1026 = vmatpush1.bf16.msra.mxu0 %v736
    %1027 = vmatprep.subr.bf16.mxu0 %v739
    %1028 = vmatpush1.bf16.msra.mxu0 %v738
    %1029 = vmatprep.subr.bf16.mxu0 %v741
    %1030 = vmatpush1.bf16.msra.mxu0 %v740
    %1031 = vmatprep.subr.bf16.mxu0 %v743
    %1032 = vmatpush1.bf16.msra.mxu0 %v742
    %1033 = vmatprep.subr.bf16.mxu0 %v745
    %1034 = vmatpush1.bf16.msra.mxu0 %v744
    %1035 = vmatprep.subr.bf16.mxu0 %v747
    %1036 = vmatpush1.bf16.msra.mxu0 %v746
    %1037 = vmatprep.subr.bf16.mxu0 %v749
    %1038 = vmatpush1.bf16.msra.mxu0 %v748
    %1039 = vmatprep.subr.bf16.mxu0 %v751
    %1040 = vmatpush1.bf16.msra.mxu0 %v750
    %1041 = vmatprep.subr.bf16.mxu0 %v753
    %1042 = vmatpush1.bf16.msra.mxu0 %v752
    %1043 = vmatprep.subr.bf16.mxu0 %v755
    %1044 = vmatpush1.bf16.msra.mxu0 %v754
    %1045 = vmatprep.subr.bf16.mxu0 %v757
    %1046 = vmatpush1.bf16.msra.mxu0 %v756
    %1047 = vmatprep.subr.bf16.mxu0 %v759
    %1048 = vmatpush1.bf16.msra.mxu0 %v758
    %1049 = vmatprep.subr.bf16.mxu0 %v761
    %1050 = vmatpush1.bf16.msra.mxu0 %v760
    %1051 = vmatprep.subr.bf16.mxu0 %v763
    %1052 = vmatpush1.bf16.msra.mxu0 %v762
    %1053 = vmatprep.subr.bf16.mxu0 %v765
    %1054 = vmatpush1.bf16.msra.mxu0 %v764
    %1055 = vmatprep.subr.bf16.mxu0 %v767
    %1056 = vmatpush1.bf16.msra.mxu0 %v766
    %1057 = vmatprep.mubr.bf16.mxu0 %v247
    %1058 = vmatmul.mubr.bf16.gmra.mrb[0].mxu0 %v246
    %v1059 = vpop.f32.mrb[0].mxu0
    %v1060 = vadd.f32 %v1017, %v1059
    %v1061 = vpop.f32.mrb[0].mxu0
    %v1062 = vadd.f32 %v1019, %v1061
    %v1063 = vpop.f32.mrb[0].mxu0
    %v1064 = vadd.f32 %v1021, %v1063
    %v1065 = vpop.f32.mrb[0].mxu0
    %v1066 = vadd.f32 %v1023, %v1065
    %1067 = vdwg.mxu0
    %v1068 = vmax.f32 %v1060, 0.0
    %v1069 = vmax.f32 %v1062, 0.0
    %v1070 = vmax.f32 %v1064, 0.0
    %v1071 = vmax.f32 %v1066, 0.0
    %v1072 = vld [vmem:[#allocation8] sm:$0xff]
    %v1073 = vld [vmem:[#allocation8 + $0x8] sm:$0xff]
    %v1074 = vld [vmem:[#allocation8 + $0x10] sm:$0xff]
    %v1075 = vld [vmem:[#allocation8 + $0x18] sm:$0xff]
    %v1076 = vld [vmem:[#allocation8 + $0x20] sm:$0xff]
    %v1077 = vld [vmem:[#allocation8 + $0x28] sm:$0xff]
    %v1078 = vld [vmem:[#allocation8 + $0x30] sm:$0xff]
    %v1079 = vld [vmem:[#allocation8 + $0x38] sm:$0xff]
    %v1080 = vld [vmem:[#allocation8 + $0x40] sm:$0xff]
    %v1081 = vld [vmem:[#allocation8 + $0x48] sm:$0xff]
    %v1082 = vld [vmem:[#allocation8 + $0x50] sm:$0xff]
    %v1083 = vld [vmem:[#allocation8 + $0x58] sm:$0xff]
    %v1084 = vld [vmem:[#allocation8 + $0x60] sm:$0xff]
    %v1085 = vld [vmem:[#allocation8 + $0x68] sm:$0xff]
    %v1086 = vld [vmem:[#allocation8 + $0x70] sm:$0xff]
    %v1087 = vld [vmem:[#allocation8 + $0x78] sm:$0xff]
    %v1088 = vld [vmem:[#allocation8 + $0x80] sm:$0xff]
    %v1089 = vld [vmem:[#allocation8 + $0x88] sm:$0xff]
    %v1090 = vld [vmem:[#allocation8 + $0x90] sm:$0xff]
    %v1091 = vld [vmem:[#allocation8 + $0x98] sm:$0xff]
    %v1092 = vld [vmem:[#allocation8 + $0xa0] sm:$0xff]
    %v1093 = vld [vmem:[#allocation8 + $0xa8] sm:$0xff]
    %v1094 = vld [vmem:[#allocation8 + $0xb0] sm:$0xff]
    %v1095 = vld [vmem:[#allocation8 + $0xb8] sm:$0xff]
    %v1096 = vld [vmem:[#allocation8 + $0xc0] sm:$0xff]
    %v1097 = vld [vmem:[#allocation8 + $0xc8] sm:$0xff]
    %v1098 = vld [vmem:[#allocation8 + $0xd0] sm:$0xff]
    %v1099 = vld [vmem:[#allocation8 + $0xd8] sm:$0xff]
    %v1100 = vld [vmem:[#allocation8 + $0xe0] sm:$0xff]
    %v1101 = vld [vmem:[#allocation8 + $0xe8] sm:$0xff]
    %v1102 = vld [vmem:[#allocation8 + $0xf0] sm:$0xff]
    %v1103 = vld [vmem:[#allocation8 + $0xf8] sm:$0xff]
    %v1104 = vld [vmem:[#allocation8 + $0x100] sm:$0xff]
    %v1105 = vld [vmem:[#allocation8 + $0x108] sm:$0xff]
    %v1106 = vld [vmem:[#allocation8 + $0x110] sm:$0xff]
    %v1107 = vld [vmem:[#allocation8 + $0x118] sm:$0xff]
    %v1108 = vld [vmem:[#allocation8 + $0x120] sm:$0xff]
    %v1109 = vld [vmem:[#allocation8 + $0x128] sm:$0xff]
    %v1110 = vld [vmem:[#allocation8 + $0x130] sm:$0xff]
    %v1111 = vld [vmem:[#allocation8 + $0x138] sm:$0xff]
    %v1112 = vld [vmem:[#allocation8 + $0x140] sm:$0xff]
    %v1113 = vld [vmem:[#allocation8 + $0x148] sm:$0xff]
    %v1114 = vld [vmem:[#allocation8 + $0x150] sm:$0xff]
    %v1115 = vld [vmem:[#allocation8 + $0x158] sm:$0xff]
    %v1116 = vld [vmem:[#allocation8 + $0x160] sm:$0xff]
    %v1117 = vld [vmem:[#allocation8 + $0x168] sm:$0xff]
    %v1118 = vld [vmem:[#allocation8 + $0x170] sm:$0xff]
    %v1119 = vld [vmem:[#allocation8 + $0x178] sm:$0xff]
    %v1120 = vld [vmem:[#allocation8 + $0x180] sm:$0xff]
    %v1121 = vld [vmem:[#allocation8 + $0x188] sm:$0xff]
    %v1122 = vld [vmem:[#allocation8 + $0x190] sm:$0xff]
    %v1123 = vld [vmem:[#allocation8 + $0x198] sm:$0xff]
    %v1124 = vld [vmem:[#allocation8 + $0x1a0] sm:$0xff]
    %v1125 = vld [vmem:[#allocation8 + $0x1a8] sm:$0xff]
    %v1126 = vld [vmem:[#allocation8 + $0x1b0] sm:$0xff]
    %v1127 = vld [vmem:[#allocation8 + $0x1b8] sm:$0xff]
    %v1128 = vld [vmem:[#allocation8 + $0x1c0] sm:$0xff]
    %v1129 = vld [vmem:[#allocation8 + $0x1c8] sm:$0xff]
    %v1130 = vld [vmem:[#allocation8 + $0x1d0] sm:$0xff]
    %v1131 = vld [vmem:[#allocation8 + $0x1d8] sm:$0xff]
    %v1132 = vld [vmem:[#allocation8 + $0x1e0] sm:$0xff]
    %v1133 = vld [vmem:[#allocation8 + $0x1e8] sm:$0xff]
    %v1134 = vld [vmem:[#allocation8 + $0x1f0] sm:$0xff]
    %v1135 = vld [vmem:[#allocation8 + $0x1f8] sm:$0xff]
    %v1136 = vld [vmem:[#allocation10] sm:$0x3]
    %v1138 = vlaneseq
    %v1139 = vshrl.u32 %v1138, 7
    %v1140 = vsub.s32 0, %v1139
    %v1141 = vrot.slane %v1136, %v1140
    %v1142 = vlaneseq
    %v1143 = vshrl.u32 %v1142, 7
    %v1144 = vsub.s32 1, %v1143
    %v1145 = vrot.slane %v1136, %v1144
    %1148 = vmatprep.subr.mxu0 %v1073
    %1149 = vmatpush1.msra.mxu0 %v1072
    %1150 = vmatprep.subr.mxu0 %v1075
    %1151 = vmatpush1.msra.mxu0 %v1074
    %1152 = vmatprep.subr.mxu0 %v1077
    %1153 = vmatpush1.msra.mxu0 %v1076
    %1154 = vmatprep.subr.mxu0 %v1079
    %1155 = vmatpush1.msra.mxu0 %v1078
    %1156 = vmatprep.subr.mxu0 %v1081
    %1157 = vmatpush1.msra.mxu0 %v1080
    %1158 = vmatprep.subr.mxu0 %v1083
    %1159 = vmatpush1.msra.mxu0 %v1082
    %1160 = vmatprep.subr.mxu0 %v1085
    %1161 = vmatpush1.msra.mxu0 %v1084
    %1162 = vmatprep.subr.mxu0 %v1087
    %1163 = vmatpush1.msra.mxu0 %v1086
    %1164 = vmatprep.subr.mxu0 %v1089
    %1165 = vmatpush1.msra.mxu0 %v1088
    %1166 = vmatprep.subr.mxu0 %v1091
    %1167 = vmatpush1.msra.mxu0 %v1090
    %1168 = vmatprep.subr.mxu0 %v1093
    %1169 = vmatpush1.msra.mxu0 %v1092
    %1170 = vmatprep.subr.mxu0 %v1095
    %1171 = vmatpush1.msra.mxu0 %v1094
    %1172 = vmatprep.subr.mxu0 %v1097
    %1173 = vmatpush1.msra.mxu0 %v1096
    %1174 = vmatprep.subr.mxu0 %v1099
    %1175 = vmatpush1.msra.mxu0 %v1098
    %1176 = vmatprep.subr.mxu0 %v1101
    %1177 = vmatpush1.msra.mxu0 %v1100
    %1178 = vmatprep.subr.mxu0 %v1103
    %1179 = vmatpush1.msra.mxu0 %v1102
    %1180 = vmatprep.subr.mxu0 %v1105
    %1181 = vmatpush1.msra.mxu0 %v1104
    %1182 = vmatprep.subr.mxu0 %v1107
    %1183 = vmatpush1.msra.mxu0 %v1106
    %1184 = vmatprep.subr.mxu0 %v1109
    %1185 = vmatpush1.msra.mxu0 %v1108
    %1186 = vmatprep.subr.mxu0 %v1111
    %1187 = vmatpush1.msra.mxu0 %v1110
    %1188 = vmatprep.subr.mxu0 %v1113
    %1189 = vmatpush1.msra.mxu0 %v1112
    %1190 = vmatprep.subr.mxu0 %v1115
    %1191 = vmatpush1.msra.mxu0 %v1114
    %1192 = vmatprep.subr.mxu0 %v1117
    %1193 = vmatpush1.msra.mxu0 %v1116
    %1194 = vmatprep.subr.mxu0 %v1119
    %1195 = vmatpush1.msra.mxu0 %v1118
    %1196 = vmatprep.subr.mxu0 %v1121
    %1197 = vmatpush1.msra.mxu0 %v1120
    %1198 = vmatprep.subr.mxu0 %v1123
    %1199 = vmatpush1.msra.mxu0 %v1122
    %1200 = vmatprep.subr.mxu0 %v1125
    %1201 = vmatpush1.msra.mxu0 %v1124
    %1202 = vmatprep.subr.mxu0 %v1127
    %1203 = vmatpush1.msra.mxu0 %v1126
    %1204 = vmatprep.subr.mxu0 %v1129
    %1205 = vmatpush1.msra.mxu0 %v1128
    %1206 = vmatprep.subr.mxu0 %v1131
    %1207 = vmatpush1.msra.mxu0 %v1130
    %1208 = vmatprep.subr.mxu0 %v1133
    %1209 = vmatpush1.msra.mxu0 %v1132
    %1210 = vmatprep.subr.mxu0 %v1135
    %1211 = vmatpush1.msra.mxu0 %v1134
    %1212 = vmatprep.mubr.f32.mxu0 %v1069
    %1213 = vmatmul.mubr.f32.gmra.mrb[0].mxu0 %v1068
    %v1214 = vpop.f32.mrb[0].mxu0
    %v1215 = vadd.f32 %v1141, %v1214
    %v1216 = vpop.f32.mrb[0].mxu0
    %v1217 = vadd.f32 %v1145, %v1216
    %1218 = vmatprep.mubr.f32.mxu0 %v1071
    %1219 = vmatmul.mubr.f32.gmra.mrb[0].mxu0 %v1070
    %v1220 = vpop.f32.mrb[0].mxu0
    %v1221 = vadd.f32 %v1141, %v1220
    %v1222 = vpop.f32.mrb[0].mxu0
    %v1223 = vadd.f32 %v1145, %v1222
    %1224 = vdwg.mxu0
    %v1225 = vtanh.pop %v1215
    %v1226 = vtanh.pop %v1221
    %v1227 = vsub.f32 0.0, %v1217
    %v1228 = vsub.f32 0.0, %v1223
    %v1229 = vmul.f32 %v1227, 1.442695
    %v1230 = vpow.pop %v1229
    %v1231 = vmul.f32 %v1228, 1.442695
    %v1232 = vpow.pop %v1231
    %v1233 = vadd.f32 %v1230, 1.0
    %v1234 = vadd.f32 %v1232, 1.0
    %v1235 = vrcp.pop %v1233
    %v1236 = vmul.f32 1.0, %v1235
    %v1237 = vrcp.pop %v1234
    %v1238 = vmul.f32 1.0, %v1237
    %v1239 = vmul.f32 %v1225, %v1236
    %v1240 = vmul.f32 %v1226, %v1238
    %v1241 = vld [vmem:[%s6] sm:$0x1]
    %v1243 = vlaneseq
    %v1244 = vshrl.u32 %v1243, 7
    %v1245 = vsub.s32 0, %v1244
    %v1246 = vrot.slane %v1241, %v1245
    %v1248 = vmul.f32 %v1239, %v1246
    %v1249 = vmul.f32 %v1240, %v1246
    %1250 = vadd.xlane.f32.xlu0 %v1248
    %v1251 = vpop.xlane.xlu0 %1250
    %1252 = vadd.xlane.f32.xlu0 %v1249
    %v1253 = vpop.xlane.xlu0 %1252
    %v1254 = vld [vmem:[#allocation7] sm:$0x1]
    %v1256 = vlaneseq
    %v1257 = vshrl.u32 %v1256, 7
    %v1258 = vsub.s32 0, %v1257
    %v1259 = vrot.slane %v1254, %v1258
    %v1261 = vadd.f32 %v1251, %v1259
    %v1262 = vadd.f32 %v1253, %v1259
    %s1263 = smul.u32 0, 16
    %v1264 = vlaneseq
    %v1265 = vshrl.u32 %v1264, 7
    %v1266 = vadd.s32 %v1265, 8
    %v1267 = vstv %s1263
    %v1268 = vadd.s32 %v1267, %v1265
    %v1269 = vadd.s32 %v1267, %v1266
    %s1270 = sld [smem:[#allocation6]]
    %v1271 = vstv %s1270
    %vm1272 = vcmp.lt.s32.totalorder %v1268, %v1271
    %vm1273 = vcmp.lt.s32.totalorder %v1269, %v1271
    %v1274 = vsel %vm1272, %v1261, -1e+30
    %v1275 = vsel %vm1273, %v1262, -1e+30
    %v1276 = vld [vmem:[#allocation2] sm:$0x1]
    %vm1277 = vcmask 7168
    %v1278 = vsel %vm1277, %v1274, -inf
    %v1279 = vsel %vm1277, %v1275, -inf
    %v1280 = vmax.f32 %v1278, %v1279
    %v1281 = vrot.slane %v1280, 4
    %v1282 = vmax.f32 %v1280, %v1281
    %v1283 = vrot.slane %v1282, 2
    %v1284 = vmax.f32 %v1282, %v1283
    %v1285 = vrot.slane %v1284, 1
    %v1286 = vmax.f32 %v1284, %v1285
    %v1287 = vmax.f32 %v1276, %v1286
    %v1288 = vsub.f32 %v1276, %v1287
    %v1289 = vmul.f32 %v1288, 1.442695
    %v1290 = vpow.pop %v1289
    %v1292 = vlaneseq
    %v1293 = vshrl.u32 %v1292, 7
    %v1294 = vsub.s32 0, %v1293
    %v1295 = vrot.slane %v1287, %v1294
    %v1297 = vsub.f32 %v1274, %v1295
    %v1298 = vsub.f32 %v1275, %v1295
    %v1299 = vmul.f32 %v1297, 1.442695
    %v1300 = vpow.pop %v1299
    %v1301 = vmul.f32 %v1298, 1.442695
    %v1302 = vpow.pop %v1301
    %v1303 = vld [vmem:[#allocation3] sm:$0x1]
    %v1304 = vmul.f32 %v1290, %v1303
    %v1305 = vsel %vm1277, %v1300, 0.0
    %v1306 = vsel %vm1277, %v1302, 0.0
    %v1307 = vadd.f32 %v1305, %v1306
    %v1308 = vrot.slane %v1307, 4
    %v1309 = vadd.f32 %v1307, %v1308
    %v1310 = vrot.slane %v1309, 2
    %v1311 = vadd.f32 %v1309, %v1310
    %v1312 = vrot.slane %v1311, 1
    %v1313 = vadd.f32 %v1311, %v1312
    %v1314 = vadd.f32 %v1304, %v1313
    %vm1315 = vcmask 0
    %1316 = vst.msk [vmem:[#allocation3] sm:$0x1] %vm1315, %v1314
    %v1317 = vld [vmem:[#allocation4] sm:$0x3]
    %1319 = vset.pattern.permute.xlu0 0
    %1320 = vperm.xlu0 %1319, %v1290
    %v1321 = vpop.permute.xlu0 %1320
    %v1323 = vlaneseq
    %v1324 = vshrl.u32 %v1323, 7
    %v1325 = vsub.s32 0, %v1324
    %v1326 = vrot.slane %v1321, %v1325
    %v1327 = vmul.f32 %v1326, %v1317
    %1329 = vset.pattern.permute.xlu0 0
    %1330 = vperm.xlu0 %1329, %v1300
    %v1331 = vpop.permute.xlu0 %1330
    %1334 = vset.pattern.permute.xlu0 0
    %1335 = vperm.xlu0 %1334, %v1302
    %v1336 = vpop.permute.xlu0 %1335
    %v1338 = vmul.f32 %v1331, %v1068
    %v1339 = vmul.f32 %v1331, %v1069
    %v1340 = vmul.f32 %v1336, %v1070
    %v1341 = vmul.f32 %v1336, %v1071
    %v1342 = vadd.f32 %v1338, %v1340
    %v1343 = vrot.slane %v1342, 4
    %v1344 = vadd.f32 %v1342, %v1343
    %v1345 = vrot.slane %v1344, 2
    %v1346 = vadd.f32 %v1344, %v1345
    %v1347 = vrot.slane %v1346, 1
    %v1348 = vadd.f32 %v1346, %v1347
    %v1349 = vadd.f32 %v1339, %v1341
    %v1350 = vrot.slane %v1349, 4
    %v1351 = vadd.f32 %v1349, %v1350
    %v1352 = vrot.slane %v1351, 2
    %v1353 = vadd.f32 %v1351, %v1352
    %v1354 = vrot.slane %v1353, 1
    %v1355 = vadd.f32 %v1353, %v1354
    %v1358 = vcombine.low %v1348, %v1355
    %v1360 = vunpack.c.l.s4 1966171168
    %v1361 = vunpack.c.0.s8 %v1360
    %v1362 = vlaneseq
    %v1363 = vshrl.u32 %v1362, 7
    %v1364 = vsub.s32 %v1361, %v1363
    %v1365 = vrot.slane %v1358, %v1364
    %v1367 = vunpack.c.l.s4 1966171168
    %v1368 = vunpack.c.0.s8 %v1367
    %v1369 = vlaneseq
    %v1370 = vshrl.u32 %v1369, 7
    %v1371 = vsub.s32 %v1368, %v1370
    %v1372 = vrot.slane %v1365, %v1371
    %v1374 = vadd.f32 %v1327, %v1372
    %v1375 = vlaneseq
    %vm1376 = vcmp.ge.s32.totalorder %v1375, 0
    %vm1377 = vcmp.lt.s32.totalorder %v1375, 256
    %vm1378 = vmand %vm1376, %vm1377
    %1379 = vst.msk [vmem:[#allocation4] sm:$0x3] %vm1378, %v1374
    %1380 = vst.msk [vmem:[#allocation2] sm:$0x1] %vm1315, %v1287
    // Predicated region
    $region42: #{abmil_snn_forward.3} parent=1 // pred_check
      %p1381 = pneg %p56
    $region43: #{abmil_snn_forward.3} parent=1 // pred_check_branch
      %1383 = sbr.rel (%p1381) target = $region45
    $region44: #{abmil_snn_forward.3} parent=1 // pred_region
      %v1384 = vld [vmem:[#allocation3] sm:$0x1]
      %v1385 = vrcp.pop %v1384
      %v1386 = vld [vmem:[#allocation4] sm:$0x3]
      %1388 = vset.pattern.permute.xlu0 0
      %1389 = vperm.xlu0 %1388, %v1385
      %v1390 = vpop.permute.xlu0 %1389
      %v1392 = vlaneseq
      %v1393 = vshrl.u32 %v1392, 7
      %v1394 = vsub.s32 0, %v1393
      %v1395 = vrot.slane %v1390, %v1394
      %v1396 = vmul.f32 %v1386, %v1395
      %1397 = vst.msk [vmem:[%s8] sm:$0x3] %vm1378, %v1396
    $region45: #{abmil_snn_forward.3} parent=1 // pred_fallthru
      _
    // Predicated region
    $region46: #{abmil_snn_forward.3} parent=1 // pred_check
      _
    $region47: #{abmil_snn_forward.3} parent=1 // pred_check_branch
      %1399 = sbr.rel (0) target = $region49
    $region48: #{abmil_snn_forward.3} parent=1 // pred_region
      _
    $region49: #{abmil_snn_forward.3} parent=1 // pred_fallthru
      _
    // Predicated region
    $region50: #{abmil_snn_forward.3} parent=1 // pred_check
      _
    $region51: #{abmil_snn_forward.3} parent=1 // pred_check_branch
      %1401 = sbr.rel (0) target = $region53
    $region52: #{abmil_snn_forward.3} parent=1 // pred_region
      _
    $region53: #{abmil_snn_forward.3} parent=1 // pred_fallthru
      _
    %1402 = vsyncpa [#allocation9], 1
    %1403 = vsyncpa [#allocation11], 1

// kernel: abmil_snn_forward.5
$region0: #{abmil_snn_forward.5}
  #allocation0 [shape = 'u32[]', space=smem, size = 0x4, offset = 0x4, fixed_abs, tag = 'smem constant byte address 0x4 - core index']
  #allocation1 [shape = 'u32[144,128]{1,0:T(1,128)}', space=vmem, size = 0x12000, scoped, tag = 'internal scratch']
  %s0 = inlined_call_operand.smem [shape: u32[33], index: -1, kind: input, shape index: {}]
  %s1 = sld [smem:[%s0]]
  %s2 = scalar_lea.smem %s0, 1
  %s3 = sld [smem:[%s2]]
  %s4 = scalar_lea.smem %s0, 2
  %s5 = sld [smem:[%s4]]
  %s6 = scalar_lea.smem %s0, 3
  %s7 = sld [smem:[%s6]]
  %s8 = scalar_lea.smem %s0, 4
  %s9 = sld [smem:[%s8]]
  %s10 = scalar_lea.smem %s0, 5
  %s11 = sld [smem:[%s10]]
  %s12 = scalar_lea.smem %s0, 6
  %s13 = sld [smem:[%s12]]
  %s14 = scalar_lea.smem %s0, 7
  %s15 = sld [smem:[%s14]]
  %s16 = scalar_lea.smem %s0, 8
  %s17 = sld [smem:[%s16]]
  %s18 = scalar_lea.smem %s0, 9
  %s19 = sld [smem:[%s18]]
  %s20 = scalar_lea.smem %s0, 10
  %s21 = sld [smem:[%s20]]
  %s22 = scalar_lea.smem %s0, 11
  %s23 = sld [smem:[%s22]]
  %s24 = scalar_lea.smem %s0, 12
  %s25 = sld [smem:[%s24]]
  %s26 = scalar_lea.smem %s0, 13
  %s27 = sld [smem:[%s26]]
  %s28 = scalar_lea.smem %s0, 14
  %s29 = sld [smem:[%s28]]
  %s30 = scalar_lea.smem %s0, 15
  %s31 = sld [smem:[%s30]]
  %s32 = scalar_lea.smem %s0, 16
  %s33 = sld [smem:[%s32]]
  %s34 = scalar_lea.smem %s0, 17
  %s35 = sld [smem:[%s34]]
  %s36 = scalar_lea.smem %s0, 18
  %s37 = sld [smem:[%s36]]
  %s38 = scalar_lea.smem %s0, 19
  %s39 = sld [smem:[%s38]]
  %s40 = scalar_lea.smem %s0, 20
  %s41 = sld [smem:[%s40]]
  %s42 = scalar_lea.smem %s0, 21
  %s43 = sld [smem:[%s42]]
  %s44 = scalar_lea.smem %s0, 22
  %s45 = sld [smem:[%s44]]
  %s46 = scalar_lea.smem %s0, 23
  %s47 = sld [smem:[%s46]]
  %s48 = scalar_lea.smem %s0, 24
  %s49 = sld [smem:[%s48]]
  %s50 = scalar_lea.smem %s0, 25
  %s51 = sld [smem:[%s50]]
  %s52 = scalar_lea.smem %s0, 26
  %s53 = sld [smem:[%s52]]
  %s54 = scalar_lea.smem %s0, 27
  %s55 = sld [smem:[%s54]]
  %s56 = scalar_lea.smem %s0, 28
  %s57 = sld [smem:[%s56]]
  %s58 = scalar_lea.smem %s0, 29
  %s59 = sld [smem:[%s58]]
  %s60 = scalar_lea.smem %s0, 30
  %s61 = sld [smem:[%s60]]
  %s62 = scalar_lea.smem %s0, 31
  %s63 = sld [smem:[%s62]]
  %s64 = scalar_lea.smem %s0, 32
  %s65 = sld [smem:[%s64]]
  %66 = xla_tuple %s61, %s63, %s65
  %s67 = sld [smem:[#allocation0]]
  $region206: #{abmil_snn_forward.5} parent=0
    _
  %s69 = ssub.s32 1, %s67
  %s70 = scalar_select 0, %s69, %s67
  $region1: #{abmil_snn_forward.5} parent=0
    #allocation2 [shape = 'u8[184320]{0}', space=vmem, size = 0x2d000, scoped, tag = 'input window, operand 3, single buffered']
    #allocation3 [shape = 's32[1]{0}', space=sflag, size = 0x4, scoped, tag = 'scoped memory for abmil_snn_forward.5']
    #allocation4 [shape = 's32[1]{0}', space=sflag, size = 0x4, scoped, tag = 'scoped memory for abmil_snn_forward.5']
    #allocation5 [shape = 'u8[512]{0}', space=vmem, size = 0x400, scoped, tag = 'input window, operand 7, single buffered']
    #allocation6 [shape = 's32[1]{0}', space=sflag, size = 0x4, scoped, tag = 'scoped memory for abmil_snn_forward.5']
    #allocation7 [shape = 'u8[512]{0}', space=vmem, size = 0x400, scoped, tag = 'input window, operand 9, single buffered']
    #allocation8 [shape = 'u8[512]{0}', space=vmem, size = 0x400, scoped, tag = 'input window, operand 11, single buffered']
    #allocation9 [shape = 's32[1]{0}', space=sflag, size = 0x4, scoped, tag = 'scoped memory for abmil_snn_forward.5']
    #allocation10 [shape = 'u8[1024]{0}', space=vmem, size = 0x400, scoped, tag = 'input window, operand 13, single buffered']
    #allocation11 [shape = 'u8[262144]{0}', space=vmem, size = 0x40000, scoped, tag = 'input window, operand 14, single buffered']
    #allocation12 [shape = 's32[1]{0}', space=sflag, size = 0x4, scoped, tag = 'scoped memory for abmil_snn_forward.5']
    #allocation13 [shape = 'u8[1024]{0}', space=vmem, size = 0x400, scoped, tag = 'input window, operand 15, single buffered']
    #allocation14 [shape = 'u8[512]{0}', space=vmem, size = 0x400, scoped, tag = 'input window, operand 17, single buffered']
    #allocation15 [shape = 's32[1]{0}', space=sflag, size = 0x4, scoped, tag = 'scoped memory for abmil_snn_forward.5']
    #allocation16 [shape = 'u8[512]{0}', space=vmem, size = 0x400, scoped, tag = 'input window, operand 19, single buffered']
    #allocation17 [shape = 'u8[512]{0}', space=vmem, size = 0x400, scoped, tag = 'input window, operand 21, single buffered']
    #allocation18 [shape = 's32[1]{0}', space=sflag, size = 0x4, scoped, tag = 'scoped memory for abmil_snn_forward.5']
    #allocation19 [shape = 'u8[512]{0}', space=vmem, size = 0x400, scoped, tag = 'input window, operand 23, single buffered']
    #allocation20 [shape = 'u8[1024]{0}', space=vmem, size = 0x400, scoped, tag = 'input window, operand 25, single buffered']
    #allocation21 [shape = 's32[1]{0}', space=sflag, size = 0x4, scoped, tag = 'scoped memory for abmil_snn_forward.5']
    #allocation22 [shape = 'u8[262144]{0}', space=vmem, size = 0x40000, scoped, tag = 'input window, operand 26, single buffered']
    #allocation23 [shape = 'u8[1024]{0}', space=vmem, size = 0x400, scoped, tag = 'input window, operand 27, single buffered']
    #allocation24 [shape = 's32[1]{0}', space=sflag, size = 0x4, scoped, tag = 'scoped memory for abmil_snn_forward.5']
    #allocation25 [shape = 'u8[512]{0}', space=vmem, size = 0x400, scoped, tag = 'input window, operand 29, single buffered']
    #allocation26 [shape = 'u8[512]{0}', space=vmem, size = 0x400, scoped, tag = 'output window, operand 1, single buffered']
    #allocation27 [shape = 'u8[1024]{0}', space=vmem, size = 0x400, scoped, tag = 'output window, operand 2, single buffered']
    #allocation28 [shape = 's32[1]{0}', space=sflag, size = 0x4, scoped, tag = 'scoped memory for abmil_snn_forward.5']
    %71 = vsyncpa [#allocation3], 0
    %72 = vsyncpa [#allocation6], 0
    %73 = vsyncpa [#allocation9], 0
    %74 = vsyncpa [#allocation12], 0
    %75 = vsyncpa [#allocation15], 0
    %76 = vsyncpa [#allocation18], 0
    %77 = vsyncpa [#allocation21], 0
    %78 = vsyncpa [#allocation24], 0
    %79 = vsyncpa [#allocation4], 0
    %80 = vsyncpa [#allocation28], 0
    // Predicated region
    $region2: #{abmil_snn_forward.5} parent=1 // pred_check
      _
    $region3: #{abmil_snn_forward.5} parent=1 // pred_check_branch
      %82 = sbr.rel (0) target = $region5
    $region4: #{abmil_snn_forward.5} parent=1 // pred_region
      _
    $region5: #{abmil_snn_forward.5} parent=1 // pred_fallthru
      _
    // Predicated region
    $region6: #{abmil_snn_forward.5} parent=1 // pred_check
      _
    $region7: #{abmil_snn_forward.5} parent=1 // pred_check_branch
      %84 = sbr.rel (0) target = $region9
    $region8: #{abmil_snn_forward.5} parent=1 // pred_region
      _
    $region9: #{abmil_snn_forward.5} parent=1 // pred_fallthru
      _
    // Predicated region
    $region10: #{abmil_snn_forward.5} parent=1 // pred_check
      _
    $region11: #{abmil_snn_forward.5} parent=1 // pred_check_branch
      %86 = sbr.rel (0) target = $region13
    $region12: #{abmil_snn_forward.5} parent=1 // pred_region
      _
    $region13: #{abmil_snn_forward.5} parent=1 // pred_fallthru
      _
    // Predicated region
    $region14: #{abmil_snn_forward.5} parent=1 // pred_check
      _
    $region15: #{abmil_snn_forward.5} parent=1 // pred_check_branch
      %88 = sbr.rel (0) target = $region17
    $region16: #{abmil_snn_forward.5} parent=1 // pred_region
      %s90 = ssub.s32 5760, 5760
      %91 = vsyncadd [#allocation3], %s90
      %s92 = sshll.u32 [#allocation2], 4
      %s93 = int_to_ptr.vmem [resolvable:$true] %s92
      %98 = dma.hbm_to_vmem [thread:$0]  %s7, 5760, %s93, [#allocation3], 1152, 1152, 72
    $region17: #{abmil_snn_forward.5} parent=1 // pred_fallthru
      _
    // Predicated region
    $region18: #{abmil_snn_forward.5} parent=1 // pred_check
      _
    $region19: #{abmil_snn_forward.5} parent=1 // pred_check_branch
      %100 = sbr.rel (0) target = $region21
    $region20: #{abmil_snn_forward.5} parent=1 // pred_region
      _
    $region21: #{abmil_snn_forward.5} parent=1 // pred_fallthru
      _
    // Predicated region
    $region22: #{abmil_snn_forward.5} parent=1 // pred_check
      _
    $region23: #{abmil_snn_forward.5} parent=1 // pred_check_branch
      %102 = sbr.rel (0) target = $region25
    $region24: #{abmil_snn_forward.5} parent=1 // pred_region
      _
    $region25: #{abmil_snn_forward.5} parent=1 // pred_fallthru
      _
    // Predicated region
    $region26: #{abmil_snn_forward.5} parent=1 // pred_check
      _
    $region27: #{abmil_snn_forward.5} parent=1 // pred_check_branch
      %104 = sbr.rel (0) target = $region29
    $region28: #{abmil_snn_forward.5} parent=1 // pred_region
      _
    $region29: #{abmil_snn_forward.5} parent=1 // pred_fallthru
      _
    // Predicated region
    $region30: #{abmil_snn_forward.5} parent=1 // pred_check
      _
    $region31: #{abmil_snn_forward.5} parent=1 // pred_check_branch
      %106 = sbr.rel (0) target = $region33
    $region32: #{abmil_snn_forward.5} parent=1 // pred_region
      %s108 = ssub.s32 16, 16
      %109 = vsyncadd [#allocation6], %s108
      %s111 = sshll.u32 [#allocation5], 4
      %s112 = int_to_ptr.vmem [resolvable:$true] %s111
      %114 = dma.hbm_to_vmem [thread:$0]  %s15, 16, %s112, [#allocation6]
    $region33: #{abmil_snn_forward.5} parent=1 // pred_fallthru
      _
    // Predicated region
    $region34: #{abmil_snn_forward.5} parent=1 // pred_check
      _
    $region35: #{abmil_snn_forward.5} parent=1 // pred_check_branch
      %116 = sbr.rel (0) target = $region37
    $region36: #{abmil_snn_forward.5} parent=1 // pred_region
      _
    $region37: #{abmil_snn_forward.5} parent=1 // pred_fallthru
      _
    // Predicated region
    $region38: #{abmil_snn_forward.5} parent=1 // pred_check
      _
    $region39: #{abmil_snn_forward.5} parent=1 // pred_check_branch
      %118 = sbr.rel (0) target = $region41
    $region40: #{abmil_snn_forward.5} parent=1 // pred_region
      %s120 = ssub.s32 16, 16
      %121 = vsyncadd [#allocation6], %s120
      %s123 = sshll.u32 [#allocation7], 4
      %s124 = int_to_ptr.vmem [resolvable:$true] %s123
      %126 = dma.hbm_to_vmem [thread:$0]  %s19, 16, %s124, [#allocation6]
    $region41: #{abmil_snn_forward.5} parent=1 // pred_fallthru
      _
    // Predicated region
    $region42: #{abmil_snn_forward.5} parent=1 // pred_check
      _
    $region43: #{abmil_snn_forward.5} parent=1 // pred_check_branch
      %128 = sbr.rel (0) target = $region45
    $region44: #{abmil_snn_forward.5} parent=1 // pred_region
      _
    $region45: #{abmil_snn_forward.5} parent=1 // pred_fallthru
      _
    // Predicated region
    $region46: #{abmil_snn_forward.5} parent=1 // pred_check
      _
    $region47: #{abmil_snn_forward.5} parent=1 // pred_check_branch
      %130 = sbr.rel (0) target = $region49
    $region48: #{abmil_snn_forward.5} parent=1 // pred_region
      %s132 = ssub.s32 16, 16
      %133 = vsyncadd [#allocation9], %s132
      %s135 = sshll.u32 [#allocation8], 4
      %s136 = int_to_ptr.vmem [resolvable:$true] %s135
      %138 = dma.hbm_to_vmem [thread:$0]  %s23, 16, %s136, [#allocation9]
    $region49: #{abmil_snn_forward.5} parent=1 // pred_fallthru
      _
    // Predicated region
    $region50: #{abmil_snn_forward.5} parent=1 // pred_check
      _
    $region51: #{abmil_snn_forward.5} parent=1 // pred_check_branch
      %140 = sbr.rel (0) target = $region53
    $region52: #{abmil_snn_forward.5} parent=1 // pred_region
      _
    $region53: #{abmil_snn_forward.5} parent=1 // pred_fallthru
      _
    // Predicated region
    $region54: #{abmil_snn_forward.5} parent=1 // pred_check
      _
    $region55: #{abmil_snn_forward.5} parent=1 // pred_check_branch
      %142 = sbr.rel (0) target = $region57
    $region56: #{abmil_snn_forward.5} parent=1 // pred_region
      %s144 = ssub.s32 32, 32
      %145 = vsyncadd [#allocation9], %s144
      %s147 = sshll.u32 [#allocation10], 4
      %s148 = int_to_ptr.vmem [resolvable:$true] %s147
      %150 = dma.hbm_to_vmem [thread:$0]  %s27, 32, %s148, [#allocation9]
    $region57: #{abmil_snn_forward.5} parent=1 // pred_fallthru
      _
    // Predicated region
    $region58: #{abmil_snn_forward.5} parent=1 // pred_check
      _
    $region59: #{abmil_snn_forward.5} parent=1 // pred_check_branch
      %152 = sbr.rel (0) target = $region61
    $region60: #{abmil_snn_forward.5} parent=1 // pred_region
      %s154 = ssub.s32 8192, 8192
      %155 = vsyncadd [#allocation12], %s154
      %s156 = sshll.u32 [#allocation11], 4
      %s157 = int_to_ptr.vmem [resolvable:$true] %s156
      %162 = dma.hbm_to_vmem [thread:$0]  %s29, 8192, %s157, [#allocation12], 256, 256, 16
    $region61: #{abmil_snn_forward.5} parent=1 // pred_fallthru
      _
    // Predicated region
    $region62: #{abmil_snn_forward.5} parent=1 // pred_check
      _
    $region63: #{abmil_snn_forward.5} parent=1 // pred_check_branch
      %164 = sbr.rel (0) target = $region65
    $region64: #{abmil_snn_forward.5} parent=1 // pred_region
      %s166 = ssub.s32 32, 32
      %167 = vsyncadd [#allocation12], %s166
      %s169 = sshll.u32 [#allocation13], 4
      %s170 = int_to_ptr.vmem [resolvable:$true] %s169
      %172 = dma.hbm_to_vmem [thread:$0]  %s31, 32, %s170, [#allocation12]
    $region65: #{abmil_snn_forward.5} parent=1 // pred_fallthru
      _
    // Predicated region
    $region66: #{abmil_snn_forward.5} parent=1 // pred_check
      _
    $region67: #{abmil_snn_forward.5} parent=1 // pred_check_branch
      %174 = sbr.rel (0) target = $region69
    $region68: #{abmil_snn_forward.5} parent=1 // pred_region
      _
    $region69: #{abmil_snn_forward.5} parent=1 // pred_fallthru
      _
    // Predicated region
    $region70: #{abmil_snn_forward.5} parent=1 // pred_check
      _
    $region71: #{abmil_snn_forward.5} parent=1 // pred_check_branch
      %176 = sbr.rel (0) target = $region73
    $region72: #{abmil_snn_forward.5} parent=1 // pred_region
      %s178 = ssub.s32 16, 16
      %179 = vsyncadd [#allocation15], %s178
      %s181 = sshll.u32 [#allocation14], 4
      %s182 = int_to_ptr.vmem [resolvable:$true] %s181
      %184 = dma.hbm_to_vmem [thread:$0]  %s35, 16, %s182, [#allocation15]
    $region73: #{abmil_snn_forward.5} parent=1 // pred_fallthru
      _
    // Predicated region
    $region74: #{abmil_snn_forward.5} parent=1 // pred_check
      _
    $region75: #{abmil_snn_forward.5} parent=1 // pred_check_branch
      %186 = sbr.rel (0) target = $region77
    $region76: #{abmil_snn_forward.5} parent=1 // pred_region
      _
    $region77: #{abmil_snn_forward.5} parent=1 // pred_fallthru
      _
    // Predicated region
    $region78: #{abmil_snn_forward.5} parent=1 // pred_check
      _
    $region79: #{abmil_snn_forward.5} parent=1 // pred_check_branch
      %188 = sbr.rel (0) target = $region81
    $region80: #{abmil_snn_forward.5} parent=1 // pred_region
      %s190 = ssub.s32 16, 16
      %191 = vsyncadd [#allocation15], %s190
      %s193 = sshll.u32 [#allocation16], 4
      %s194 = int_to_ptr.vmem [resolvable:$true] %s193
      %196 = dma.hbm_to_vmem [thread:$0]  %s39, 16, %s194, [#allocation15]
    $region81: #{abmil_snn_forward.5} parent=1 // pred_fallthru
      _
    // Predicated region
    $region82: #{abmil_snn_forward.5} parent=1 // pred_check
      _
    $region83: #{abmil_snn_forward.5} parent=1 // pred_check_branch
      %198 = sbr.rel (0) target = $region85
    $region84: #{abmil_snn_forward.5} parent=1 // pred_region
      _
    $region85: #{abmil_snn_forward.5} parent=1 // pred_fallthru
      _
    // Predicated region
    $region86: #{abmil_snn_forward.5} parent=1 // pred_check
      _
    $region87: #{abmil_snn_forward.5} parent=1 // pred_check_branch
      %200 = sbr.rel (0) target = $region89
    $region88: #{abmil_snn_forward.5} parent=1 // pred_region
      %s202 = ssub.s32 16, 16
      %203 = vsyncadd [#allocation18], %s202
      %s205 = sshll.u32 [#allocation17], 4
      %s206 = int_to_ptr.vmem [resolvable:$true] %s205
      %208 = dma.hbm_to_vmem [thread:$0]  %s43, 16, %s206, [#allocation18]
    $region89: #{abmil_snn_forward.5} parent=1 // pred_fallthru
      _
    // Predicated region
    $region90: #{abmil_snn_forward.5} parent=1 // pred_check
      _
    $region91: #{abmil_snn_forward.5} parent=1 // pred_check_branch
      %210 = sbr.rel (0) target = $region93
    $region92: #{abmil_snn_forward.5} parent=1 // pred_region
      _
    $region93: #{abmil_snn_forward.5} parent=1 // pred_fallthru
      _
    // Predicated region
    $region94: #{abmil_snn_forward.5} parent=1 // pred_check
      _
    $region95: #{abmil_snn_forward.5} parent=1 // pred_check_branch
      %212 = sbr.rel (0) target = $region97
    $region96: #{abmil_snn_forward.5} parent=1 // pred_region
      %s214 = ssub.s32 16, 16
      %215 = vsyncadd [#allocation18], %s214
      %s217 = sshll.u32 [#allocation19], 4
      %s218 = int_to_ptr.vmem [resolvable:$true] %s217
      %220 = dma.hbm_to_vmem [thread:$0]  %s47, 16, %s218, [#allocation18]
    $region97: #{abmil_snn_forward.5} parent=1 // pred_fallthru
      _
    // Predicated region
    $region98: #{abmil_snn_forward.5} parent=1 // pred_check
      _
    $region99: #{abmil_snn_forward.5} parent=1 // pred_check_branch
      %222 = sbr.rel (0) target = $region101
    $region100: #{abmil_snn_forward.5} parent=1 // pred_region
      _
    $region101: #{abmil_snn_forward.5} parent=1 // pred_fallthru
      _
    // Predicated region
    $region102: #{abmil_snn_forward.5} parent=1 // pred_check
      _
    $region103: #{abmil_snn_forward.5} parent=1 // pred_check_branch
      %224 = sbr.rel (0) target = $region105
    $region104: #{abmil_snn_forward.5} parent=1 // pred_region
      %s226 = ssub.s32 32, 32
      %227 = vsyncadd [#allocation21], %s226
      %s229 = sshll.u32 [#allocation20], 4
      %s230 = int_to_ptr.vmem [resolvable:$true] %s229
      %232 = dma.hbm_to_vmem [thread:$0]  %s51, 32, %s230, [#allocation21]
    $region105: #{abmil_snn_forward.5} parent=1 // pred_fallthru
      _
    // Predicated region
    $region106: #{abmil_snn_forward.5} parent=1 // pred_check
      _
    $region107: #{abmil_snn_forward.5} parent=1 // pred_check_branch
      %234 = sbr.rel (0) target = $region109
    $region108: #{abmil_snn_forward.5} parent=1 // pred_region
      %s236 = ssub.s32 8192, 8192
      %237 = vsyncadd [#allocation21], %s236
      %s238 = sshll.u32 [#allocation22], 4
      %s239 = int_to_ptr.vmem [resolvable:$true] %s238
      %244 = dma.hbm_to_vmem [thread:$0]  %s53, 8192, %s239, [#allocation21], 256, 256, 16
    $region109: #{abmil_snn_forward.5} parent=1 // pred_fallthru
      _
    // Predicated region
    $region110: #{abmil_snn_forward.5} parent=1 // pred_check
      _
    $region111: #{abmil_snn_forward.5} parent=1 // pred_check_branch
      %246 = sbr.rel (0) target = $region113
    $region112: #{abmil_snn_forward.5} parent=1 // pred_region
      %s248 = ssub.s32 32, 32
      %249 = vsyncadd [#allocation24], %s248
      %s251 = sshll.u32 [#allocation23], 4
      %s252 = int_to_ptr.vmem [resolvable:$true] %s251
      %254 = dma.hbm_to_vmem [thread:$0]  %s55, 32, %s252, [#allocation24]
    $region113: #{abmil_snn_forward.5} parent=1 // pred_fallthru
      _
    // Predicated region
    $region114: #{abmil_snn_forward.5} parent=1 // pred_check
      _
    $region115: #{abmil_snn_forward.5} parent=1 // pred_check_branch
      %256 = sbr.rel (0) target = $region117
    $region116: #{abmil_snn_forward.5} parent=1 // pred_region
      _
    $region117: #{abmil_snn_forward.5} parent=1 // pred_fallthru
      _
    // Predicated region
    $region118: #{abmil_snn_forward.5} parent=1 // pred_check
      _
    $region119: #{abmil_snn_forward.5} parent=1 // pred_check_branch
      %258 = sbr.rel (0) target = $region121
    $region120: #{abmil_snn_forward.5} parent=1 // pred_region
      %s260 = ssub.s32 16, 16
      %261 = vsyncadd [#allocation24], %s260
      %s263 = sshll.u32 [#allocation25], 4
      %s264 = int_to_ptr.vmem [resolvable:$true] %s263
      %266 = dma.hbm_to_vmem [thread:$0]  %s59, 16, %s264, [#allocation24]
    $region121: #{abmil_snn_forward.5} parent=1 // pred_fallthru
      _
    // Predicated region
    $region122: #{abmil_snn_forward.5} parent=1 // pred_check
      _
    $region123: #{abmil_snn_forward.5} parent=1 // pred_check_branch
      %268 = sbr.rel (0) target = $region125
    $region124: #{abmil_snn_forward.5} parent=1 // pred_region
      %269 = dma.done [#allocation3], 5760
    $region125: #{abmil_snn_forward.5} parent=1 // pred_fallthru
      _
    // Predicated region
    $region126: #{abmil_snn_forward.5} parent=1 // pred_check
      _
    $region127: #{abmil_snn_forward.5} parent=1 // pred_check_branch
      %271 = sbr.rel (0) target = $region129
    $region128: #{abmil_snn_forward.5} parent=1 // pred_region
      %272 = dma.done [#allocation6], 16
    $region129: #{abmil_snn_forward.5} parent=1 // pred_fallthru
      _
    // Predicated region
    $region130: #{abmil_snn_forward.5} parent=1 // pred_check
      _
    $region131: #{abmil_snn_forward.5} parent=1 // pred_check_branch
      %274 = sbr.rel (0) target = $region133
    $region132: #{abmil_snn_forward.5} parent=1 // pred_region
      %275 = dma.done [#allocation6], 16
    $region133: #{abmil_snn_forward.5} parent=1 // pred_fallthru
      _
    // Predicated region
    $region134: #{abmil_snn_forward.5} parent=1 // pred_check
      _
    $region135: #{abmil_snn_forward.5} parent=1 // pred_check_branch
      %277 = sbr.rel (0) target = $region137
    $region136: #{abmil_snn_forward.5} parent=1 // pred_region
      %278 = dma.done [#allocation9], 16
    $region137: #{abmil_snn_forward.5} parent=1 // pred_fallthru
      _
    // Predicated region
    $region138: #{abmil_snn_forward.5} parent=1 // pred_check
      _
    $region139: #{abmil_snn_forward.5} parent=1 // pred_check_branch
      %280 = sbr.rel (0) target = $region141
    $region140: #{abmil_snn_forward.5} parent=1 // pred_region
      %281 = dma.done [#allocation9], 32
    $region141: #{abmil_snn_forward.5} parent=1 // pred_fallthru
      _
    // Predicated region
    $region142: #{abmil_snn_forward.5} parent=1 // pred_check
      _
    $region143: #{abmil_snn_forward.5} parent=1 // pred_check_branch
      %283 = sbr.rel (0) target = $region145
    $region144: #{abmil_snn_forward.5} parent=1 // pred_region
      %284 = dma.done [#allocation12], 8192
    $region145: #{abmil_snn_forward.5} parent=1 // pred_fallthru
      _
    // Predicated region
    $region146: #{abmil_snn_forward.5} parent=1 // pred_check
      _
    $region147: #{abmil_snn_forward.5} parent=1 // pred_check_branch
      %286 = sbr.rel (0) target = $region149
    $region148: #{abmil_snn_forward.5} parent=1 // pred_region
      %287 = dma.done [#allocation12], 32
    $region149: #{abmil_snn_forward.5} parent=1 // pred_fallthru
      _
    // Predicated region
    $region150: #{abmil_snn_forward.5} parent=1 // pred_check
      _
    $region151: #{abmil_snn_forward.5} parent=1 // pred_check_branch
      %289 = sbr.rel (0) target = $region153
    $region152: #{abmil_snn_forward.5} parent=1 // pred_region
      %290 = dma.done [#allocation15], 16
    $region153: #{abmil_snn_forward.5} parent=1 // pred_fallthru
      _
    // Predicated region
    $region154: #{abmil_snn_forward.5} parent=1 // pred_check
      _
    $region155: #{abmil_snn_forward.5} parent=1 // pred_check_branch
      %292 = sbr.rel (0) target = $region157
    $region156: #{abmil_snn_forward.5} parent=1 // pred_region
      %293 = dma.done [#allocation15], 16
    $region157: #{abmil_snn_forward.5} parent=1 // pred_fallthru
      _
    // Predicated region
    $region158: #{abmil_snn_forward.5} parent=1 // pred_check
      _
    $region159: #{abmil_snn_forward.5} parent=1 // pred_check_branch
      %295 = sbr.rel (0) target = $region161
    $region160: #{abmil_snn_forward.5} parent=1 // pred_region
      %296 = dma.done [#allocation18], 16
    $region161: #{abmil_snn_forward.5} parent=1 // pred_fallthru
      _
    // Predicated region
    $region162: #{abmil_snn_forward.5} parent=1 // pred_check
      _
    $region163: #{abmil_snn_forward.5} parent=1 // pred_check_branch
      %298 = sbr.rel (0) target = $region165
    $region164: #{abmil_snn_forward.5} parent=1 // pred_region
      %299 = dma.done [#allocation18], 16
    $region165: #{abmil_snn_forward.5} parent=1 // pred_fallthru
      _
    // Predicated region
    $region166: #{abmil_snn_forward.5} parent=1 // pred_check
      _
    $region167: #{abmil_snn_forward.5} parent=1 // pred_check_branch
      %301 = sbr.rel (0) target = $region169
    $region168: #{abmil_snn_forward.5} parent=1 // pred_region
      %302 = dma.done [#allocation21], 32
    $region169: #{abmil_snn_forward.5} parent=1 // pred_fallthru
      _
    // Predicated region
    $region170: #{abmil_snn_forward.5} parent=1 // pred_check
      _
    $region171: #{abmil_snn_forward.5} parent=1 // pred_check_branch
      %304 = sbr.rel (0) target = $region173
    $region172: #{abmil_snn_forward.5} parent=1 // pred_region
      %305 = dma.done [#allocation21], 8192
    $region173: #{abmil_snn_forward.5} parent=1 // pred_fallthru
      _
    // Predicated region
    $region174: #{abmil_snn_forward.5} parent=1 // pred_check
      _
    $region175: #{abmil_snn_forward.5} parent=1 // pred_check_branch
      %307 = sbr.rel (0) target = $region177
    $region176: #{abmil_snn_forward.5} parent=1 // pred_region
      %308 = dma.done [#allocation24], 32
    $region177: #{abmil_snn_forward.5} parent=1 // pred_fallthru
      _
    // Predicated region
    $region178: #{abmil_snn_forward.5} parent=1 // pred_check
      _
    $region179: #{abmil_snn_forward.5} parent=1 // pred_check_branch
      %310 = sbr.rel (0) target = $region181
    $region180: #{abmil_snn_forward.5} parent=1 // pred_region
      %311 = dma.done [#allocation24], 16
    $region181: #{abmil_snn_forward.5} parent=1 // pred_fallthru
      _
    %v312 = vld [vmem:[%s9] sm:$0xff]
    %v313 = vld [vmem:[%s9 + $0x8] sm:$0xff]
    %v314 = vld [vmem:[%s9 + $0x10] sm:$0xff]
    %v315 = vld [vmem:[%s9 + $0x18] sm:$0xff]
    %v316 = vld [vmem:[%s9 + $0x20] sm:$0xff]
    %v317 = vld [vmem:[%s9 + $0x28] sm:$0xff]
    %v318 = vld [vmem:[%s9 + $0x30] sm:$0xff]
    %v319 = vld [vmem:[%s9 + $0x38] sm:$0xff]
    %v320 = vld [vmem:[%s9 + $0x40] sm:$0xff]
    %v321 = vld [vmem:[%s9 + $0x48] sm:$0xff]
    %v322 = vld [vmem:[%s9 + $0x50] sm:$0xff]
    %v323 = vld [vmem:[%s9 + $0x58] sm:$0xff]
    %v324 = vld [vmem:[%s9 + $0x60] sm:$0xff]
    %v325 = vld [vmem:[%s9 + $0x68] sm:$0xff]
    %v326 = vld [vmem:[%s9 + $0x70] sm:$0xff]
    %v327 = vld [vmem:[%s9 + $0x78] sm:$0xff]
    %v328 = vld [vmem:[%s9 + $0x80] sm:$0xff]
    %v329 = vld [vmem:[%s9 + $0x88] sm:$0xff]
    %v330 = vld [vmem:[%s9 + $0x90] sm:$0xff]
    %v331 = vld [vmem:[%s9 + $0x98] sm:$0xff]
    %v332 = vld [vmem:[%s9 + $0xa0] sm:$0xff]
    %v333 = vld [vmem:[%s9 + $0xa8] sm:$0xff]
    %v334 = vld [vmem:[%s9 + $0xb0] sm:$0xff]
    %v335 = vld [vmem:[%s9 + $0xb8] sm:$0xff]
    %v336 = vld [vmem:[%s9 + $0xc0] sm:$0xff]
    %v337 = vld [vmem:[%s9 + $0xc8] sm:$0xff]
    %v338 = vld [vmem:[%s9 + $0xd0] sm:$0xff]
    %v339 = vld [vmem:[%s9 + $0xd8] sm:$0xff]
    %v340 = vld [vmem:[%s9 + $0xe0] sm:$0xff]
    %v341 = vld [vmem:[%s9 + $0xe8] sm:$0xff]
    %v342 = vld [vmem:[%s9 + $0xf0] sm:$0xff]
    %v343 = vld [vmem:[%s9 + $0xf8] sm:$0xff]
    %v344 = vld [vmem:[%s11] sm:$0x1]
    %v345 = vld [vmem:[%s13] sm:$0xff]
    %v346 = vld [vmem:[%s13 + $0x8] sm:$0xff]
    %v347 = vld [vmem:[%s13 + $0x10] sm:$0xff]
    %v348 = vld [vmem:[%s13 + $0x18] sm:$0xff]
    %v349 = vld [vmem:[%s13 + $0x20] sm:$0xff]
    %v350 = vld [vmem:[%s13 + $0x28] sm:$0xff]
    %v351 = vld [vmem:[%s13 + $0x30] sm:$0xff]
    %v352 = vld [vmem:[%s13 + $0x38] sm:$0xff]
    %v353 = vld [vmem:[%s13 + $0x40] sm:$0xff]
    %v354 = vld [vmem:[%s13 + $0x48] sm:$0xff]
    %v355 = vld [vmem:[%s13 + $0x50] sm:$0xff]
    %v356 = vld [vmem:[%s13 + $0x58] sm:$0xff]
    %v357 = vld [vmem:[%s13 + $0x60] sm:$0xff]
    %v358 = vld [vmem:[%s13 + $0x68] sm:$0xff]
    %v359 = vld [vmem:[%s13 + $0x70] sm:$0xff]
    %v360 = vld [vmem:[%s13 + $0x78] sm:$0xff]
    %v361 = vld [vmem:[%s13 + $0x80] sm:$0xff]
    %v362 = vld [vmem:[%s13 + $0x88] sm:$0xff]
    %v363 = vld [vmem:[%s13 + $0x90] sm:$0xff]
    %v364 = vld [vmem:[%s13 + $0x98] sm:$0xff]
    %v365 = vld [vmem:[%s13 + $0xa0] sm:$0xff]
    %v366 = vld [vmem:[%s13 + $0xa8] sm:$0xff]
    %v367 = vld [vmem:[%s13 + $0xb0] sm:$0xff]
    %v368 = vld [vmem:[%s13 + $0xb8] sm:$0xff]
    %v369 = vld [vmem:[%s13 + $0xc0] sm:$0xff]
    %v370 = vld [vmem:[%s13 + $0xc8] sm:$0xff]
    %v371 = vld [vmem:[%s13 + $0xd0] sm:$0xff]
    %v372 = vld [vmem:[%s13 + $0xd8] sm:$0xff]
    %v373 = vld [vmem:[%s13 + $0xe0] sm:$0xff]
    %v374 = vld [vmem:[%s13 + $0xe8] sm:$0xff]
    %v375 = vld [vmem:[%s13 + $0xf0] sm:$0xff]
    %v376 = vld [vmem:[%s13 + $0xf8] sm:$0xff]
    %v377 = vld [vmem:[#allocation5] sm:$0x1]
    %v378 = vld [vmem:[%s17] sm:$0xff]
    %v379 = vld [vmem:[%s17 + $0x8] sm:$0xff]
    %v380 = vld [vmem:[%s17 + $0x10] sm:$0xff]
    %v381 = vld [vmem:[%s17 + $0x18] sm:$0xff]
    %v382 = vld [vmem:[#allocation7] sm:$0x1]
    %v383 = vld [vmem:[%s21] sm:$0xff]
    %v384 = vld [vmem:[%s21 + $0x8] sm:$0xff]
    %v385 = vld [vmem:[%s21 + $0x10] sm:$0xff]
    %v386 = vld [vmem:[%s21 + $0x18] sm:$0xff]
    %v387 = vld [vmem:[#allocation8] sm:$0x1]
    %v388 = vld [vmem:[%s25] sm:$0xff]
    %v389 = vld [vmem:[%s25 + $0x8] sm:$0xff]
    %v390 = vld [vmem:[%s25 + $0x10] sm:$0xff]
    %v391 = vld [vmem:[%s25 + $0x18] sm:$0xff]
    %v392 = vld [vmem:[%s25 + $0x20] sm:$0xff]
    %v393 = vld [vmem:[%s25 + $0x28] sm:$0xff]
    %v394 = vld [vmem:[%s25 + $0x30] sm:$0xff]
    %v395 = vld [vmem:[%s25 + $0x38] sm:$0xff]
    %v396 = vld [vmem:[%s25 + $0x40] sm:$0xff]
    %v397 = vld [vmem:[%s25 + $0x48] sm:$0xff]
    %v398 = vld [vmem:[%s25 + $0x50] sm:$0xff]
    %v399 = vld [vmem:[%s25 + $0x58] sm:$0xff]
    %v400 = vld [vmem:[%s25 + $0x60] sm:$0xff]
    %v401 = vld [vmem:[%s25 + $0x68] sm:$0xff]
    %v402 = vld [vmem:[%s25 + $0x70] sm:$0xff]
    %v403 = vld [vmem:[%s25 + $0x78] sm:$0xff]
    %v404 = vld [vmem:[%s25 + $0x80] sm:$0xff]
    %v405 = vld [vmem:[%s25 + $0x88] sm:$0xff]
    %v406 = vld [vmem:[%s25 + $0x90] sm:$0xff]
    %v407 = vld [vmem:[%s25 + $0x98] sm:$0xff]
    %v408 = vld [vmem:[%s25 + $0xa0] sm:$0xff]
    %v409 = vld [vmem:[%s25 + $0xa8] sm:$0xff]
    %v410 = vld [vmem:[%s25 + $0xb0] sm:$0xff]
    %v411 = vld [vmem:[%s25 + $0xb8] sm:$0xff]
    %v412 = vld [vmem:[%s25 + $0xc0] sm:$0xff]
    %v413 = vld [vmem:[%s25 + $0xc8] sm:$0xff]
    %v414 = vld [vmem:[%s25 + $0xd0] sm:$0xff]
    %v415 = vld [vmem:[%s25 + $0xd8] sm:$0xff]
    %v416 = vld [vmem:[%s25 + $0xe0] sm:$0xff]
    %v417 = vld [vmem:[%s25 + $0xe8] sm:$0xff]
    %v418 = vld [vmem:[%s25 + $0xf0] sm:$0xff]
    %v419 = vld [vmem:[%s25 + $0xf8] sm:$0xff]
    %v420 = vld [vmem:[%s25 + $0x100] sm:$0xff]
    %v421 = vld [vmem:[%s25 + $0x108] sm:$0xff]
    %v422 = vld [vmem:[%s25 + $0x110] sm:$0xff]
    %v423 = vld [vmem:[%s25 + $0x118] sm:$0xff]
    %v424 = vld [vmem:[%s25 + $0x120] sm:$0xff]
    %v425 = vld [vmem:[%s25 + $0x128] sm:$0xff]
    %v426 = vld [vmem:[%s25 + $0x130] sm:$0xff]
    %v427 = vld [vmem:[%s25 + $0x138] sm:$0xff]
    %v428 = vld [vmem:[%s25 + $0x140] sm:$0xff]
    %v429 = vld [vmem:[%s25 + $0x148] sm:$0xff]
    %v430 = vld [vmem:[%s25 + $0x150] sm:$0xff]
    %v431 = vld [vmem:[%s25 + $0x158] sm:$0xff]
    %v432 = vld [vmem:[%s25 + $0x160] sm:$0xff]
    %v433 = vld [vmem:[%s25 + $0x168] sm:$0xff]
    %v434 = vld [vmem:[%s25 + $0x170] sm:$0xff]
    %v435 = vld [vmem:[%s25 + $0x178] sm:$0xff]
    %v436 = vld [vmem:[%s25 + $0x180] sm:$0xff]
    %v437 = vld [vmem:[%s25 + $0x188] sm:$0xff]
    %v438 = vld [vmem:[%s25 + $0x190] sm:$0xff]
    %v439 = vld [vmem:[%s25 + $0x198] sm:$0xff]
    %v440 = vld [vmem:[%s25 + $0x1a0] sm:$0xff]
    %v441 = vld [vmem:[%s25 + $0x1a8] sm:$0xff]
    %v442 = vld [vmem:[%s25 + $0x1b0] sm:$0xff]
    %v443 = vld [vmem:[%s25 + $0x1b8] sm:$0xff]
    %v444 = vld [vmem:[%s25 + $0x1c0] sm:$0xff]
    %v445 = vld [vmem:[%s25 + $0x1c8] sm:$0xff]
    %v446 = vld [vmem:[%s25 + $0x1d0] sm:$0xff]
    %v447 = vld [vmem:[%s25 + $0x1d8] sm:$0xff]
    %v448 = vld [vmem:[%s25 + $0x1e0] sm:$0xff]
    %v449 = vld [vmem:[%s25 + $0x1e8] sm:$0xff]
    %v450 = vld [vmem:[%s25 + $0x1f0] sm:$0xff]
    %v451 = vld [vmem:[%s25 + $0x1f8] sm:$0xff]
    %v452 = vld [vmem:[%s25 + $0x200] sm:$0xff]
    %v453 = vld [vmem:[%s25 + $0x208] sm:$0xff]
    %v454 = vld [vmem:[%s25 + $0x210] sm:$0xff]
    %v455 = vld [vmem:[%s25 + $0x218] sm:$0xff]
    %v456 = vld [vmem:[%s25 + $0x220] sm:$0xff]
    %v457 = vld [vmem:[%s25 + $0x228] sm:$0xff]
    %v458 = vld [vmem:[%s25 + $0x230] sm:$0xff]
    %v459 = vld [vmem:[%s25 + $0x238] sm:$0xff]
    %v460 = vld [vmem:[%s25 + $0x240] sm:$0xff]
    %v461 = vld [vmem:[%s25 + $0x248] sm:$0xff]
    %v462 = vld [vmem:[%s25 + $0x250] sm:$0xff]
    %v463 = vld [vmem:[%s25 + $0x258] sm:$0xff]
    %v464 = vld [vmem:[%s25 + $0x260] sm:$0xff]
    %v465 = vld [vmem:[%s25 + $0x268] sm:$0xff]
    %v466 = vld [vmem:[%s25 + $0x270] sm:$0xff]
    %v467 = vld [vmem:[%s25 + $0x278] sm:$0xff]
    %v468 = vld [vmem:[%s25 + $0x280] sm:$0xff]
    %v469 = vld [vmem:[%s25 + $0x288] sm:$0xff]
    %v470 = vld [vmem:[%s25 + $0x290] sm:$0xff]
    %v471 = vld [vmem:[%s25 + $0x298] sm:$0xff]
    %v472 = vld [vmem:[%s25 + $0x2a0] sm:$0xff]
    %v473 = vld [vmem:[%s25 + $0x2a8] sm:$0xff]
    %v474 = vld [vmem:[%s25 + $0x2b0] sm:$0xff]
    %v475 = vld [vmem:[%s25 + $0x2b8] sm:$0xff]
    %v476 = vld [vmem:[%s25 + $0x2c0] sm:$0xff]
    %v477 = vld [vmem:[%s25 + $0x2c8] sm:$0xff]
    %v478 = vld [vmem:[%s25 + $0x2d0] sm:$0xff]
    %v479 = vld [vmem:[%s25 + $0x2d8] sm:$0xff]
    %v480 = vld [vmem:[%s25 + $0x2e0] sm:$0xff]
    %v481 = vld [vmem:[%s25 + $0x2e8] sm:$0xff]
    %v482 = vld [vmem:[%s25 + $0x2f0] sm:$0xff]
    %v483 = vld [vmem:[%s25 + $0x2f8] sm:$0xff]
    %v484 = vld [vmem:[%s25 + $0x300] sm:$0xff]
    %v485 = vld [vmem:[%s25 + $0x308] sm:$0xff]
    %v486 = vld [vmem:[%s25 + $0x310] sm:$0xff]
    %v487 = vld [vmem:[%s25 + $0x318] sm:$0xff]
    %v488 = vld [vmem:[%s25 + $0x320] sm:$0xff]
    %v489 = vld [vmem:[%s25 + $0x328] sm:$0xff]
    %v490 = vld [vmem:[%s25 + $0x330] sm:$0xff]
    %v491 = vld [vmem:[%s25 + $0x338] sm:$0xff]
    %v492 = vld [vmem:[%s25 + $0x340] sm:$0xff]
    %v493 = vld [vmem:[%s25 + $0x348] sm:$0xff]
    %v494 = vld [vmem:[%s25 + $0x350] sm:$0xff]
    %v495 = vld [vmem:[%s25 + $0x358] sm:$0xff]
    %v496 = vld [vmem:[%s25 + $0x360] sm:$0xff]
    %v497 = vld [vmem:[%s25 + $0x368] sm:$0xff]
    %v498 = vld [vmem:[%s25 + $0x370] sm:$0xff]
    %v499 = vld [vmem:[%s25 + $0x378] sm:$0xff]
    %v500 = vld [vmem:[%s25 + $0x380] sm:$0xff]
    %v501 = vld [vmem:[%s25 + $0x388] sm:$0xff]
    %v502 = vld [vmem:[%s25 + $0x390] sm:$0xff]
    %v503 = vld [vmem:[%s25 + $0x398] sm:$0xff]
    %v504 = vld [vmem:[%s25 + $0x3a0] sm:$0xff]
    %v505 = vld [vmem:[%s25 + $0x3a8] sm:$0xff]
    %v506 = vld [vmem:[%s25 + $0x3b0] sm:$0xff]
    %v507 = vld [vmem:[%s25 + $0x3b8] sm:$0xff]
    %v508 = vld [vmem:[%s25 + $0x3c0] sm:$0xff]
    %v509 = vld [vmem:[%s25 + $0x3c8] sm:$0xff]
    %v510 = vld [vmem:[%s25 + $0x3d0] sm:$0xff]
    %v511 = vld [vmem:[%s25 + $0x3d8] sm:$0xff]
    %v512 = vld [vmem:[%s25 + $0x3e0] sm:$0xff]
    %v513 = vld [vmem:[%s25 + $0x3e8] sm:$0xff]
    %v514 = vld [vmem:[%s25 + $0x3f0] sm:$0xff]
    %v515 = vld [vmem:[%s25 + $0x3f8] sm:$0xff]
    %v516 = vld [vmem:[%s25 + $0x400] sm:$0xff]
    %v517 = vld [vmem:[%s25 + $0x408] sm:$0xff]
    %v518 = vld [vmem:[%s25 + $0x410] sm:$0xff]
    %v519 = vld [vmem:[%s25 + $0x418] sm:$0xff]
    %v520 = vld [vmem:[%s25 + $0x420] sm:$0xff]
    %v521 = vld [vmem:[%s25 + $0x428] sm:$0xff]
    %v522 = vld [vmem:[%s25 + $0x430] sm:$0xff]
    %v523 = vld [vmem:[%s25 + $0x438] sm:$0xff]
    %v524 = vld [vmem:[%s25 + $0x440] sm:$0xff]
    %v525 = vld [vmem:[%s25 + $0x448] sm:$0xff]
    %v526 = vld [vmem:[%s25 + $0x450] sm:$0xff]
    %v527 = vld [vmem:[%s25 + $0x458] sm:$0xff]
    %v528 = vld [vmem:[%s25 + $0x460] sm:$0xff]
    %v529 = vld [vmem:[%s25 + $0x468] sm:$0xff]
    %v530 = vld [vmem:[%s25 + $0x470] sm:$0xff]
    %v531 = vld [vmem:[%s25 + $0x478] sm:$0xff]
    %v532 = vld [vmem:[%s25 + $0x480] sm:$0xff]
    %v533 = vld [vmem:[%s25 + $0x488] sm:$0xff]
    %v534 = vld [vmem:[%s25 + $0x490] sm:$0xff]
    %v535 = vld [vmem:[%s25 + $0x498] sm:$0xff]
    %v536 = vld [vmem:[%s25 + $0x4a0] sm:$0xff]
    %v537 = vld [vmem:[%s25 + $0x4a8] sm:$0xff]
    %v538 = vld [vmem:[%s25 + $0x4b0] sm:$0xff]
    %v539 = vld [vmem:[%s25 + $0x4b8] sm:$0xff]
    %v540 = vld [vmem:[%s25 + $0x4c0] sm:$0xff]
    %v541 = vld [vmem:[%s25 + $0x4c8] sm:$0xff]
    %v542 = vld [vmem:[%s25 + $0x4d0] sm:$0xff]
    %v543 = vld [vmem:[%s25 + $0x4d8] sm:$0xff]
    %v544 = vld [vmem:[%s25 + $0x4e0] sm:$0xff]
    %v545 = vld [vmem:[%s25 + $0x4e8] sm:$0xff]
    %v546 = vld [vmem:[%s25 + $0x4f0] sm:$0xff]
    %v547 = vld [vmem:[%s25 + $0x4f8] sm:$0xff]
    %v548 = vld [vmem:[%s25 + $0x500] sm:$0xff]
    %v549 = vld [vmem:[%s25 + $0x508] sm:$0xff]
    %v550 = vld [vmem:[%s25 + $0x510] sm:$0xff]
    %v551 = vld [vmem:[%s25 + $0x518] sm:$0xff]
    %v552 = vld [vmem:[%s25 + $0x520] sm:$0xff]
    %v553 = vld [vmem:[%s25 + $0x528] sm:$0xff]
    %v554 = vld [vmem:[%s25 + $0x530] sm:$0xff]
    %v555 = vld [vmem:[%s25 + $0x538] sm:$0xff]
    %v556 = vld [vmem:[%s25 + $0x540] sm:$0xff]
    %v557 = vld [vmem:[%s25 + $0x548] sm:$0xff]
    %v558 = vld [vmem:[%s25 + $0x550] sm:$0xff]
    %v559 = vld [vmem:[%s25 + $0x558] sm:$0xff]
    %v560 = vld [vmem:[%s25 + $0x560] sm:$0xff]
    %v561 = vld [vmem:[%s25 + $0x568] sm:$0xff]
    %v562 = vld [vmem:[%s25 + $0x570] sm:$0xff]
    %v563 = vld [vmem:[%s25 + $0x578] sm:$0xff]
    %v564 = vld [vmem:[%s25 + $0x580] sm:$0xff]
    %v565 = vld [vmem:[%s25 + $0x588] sm:$0xff]
    %v566 = vld [vmem:[%s25 + $0x590] sm:$0xff]
    %v567 = vld [vmem:[%s25 + $0x598] sm:$0xff]
    %v568 = vld [vmem:[%s25 + $0x5a0] sm:$0xff]
    %v569 = vld [vmem:[%s25 + $0x5a8] sm:$0xff]
    %v570 = vld [vmem:[%s25 + $0x5b0] sm:$0xff]
    %v571 = vld [vmem:[%s25 + $0x5b8] sm:$0xff]
    %v572 = vld [vmem:[%s25 + $0x5c0] sm:$0xff]
    %v573 = vld [vmem:[%s25 + $0x5c8] sm:$0xff]
    %v574 = vld [vmem:[%s25 + $0x5d0] sm:$0xff]
    %v575 = vld [vmem:[%s25 + $0x5d8] sm:$0xff]
    %v576 = vld [vmem:[%s25 + $0x5e0] sm:$0xff]
    %v577 = vld [vmem:[%s25 + $0x5e8] sm:$0xff]
    %v578 = vld [vmem:[%s25 + $0x5f0] sm:$0xff]
    %v579 = vld [vmem:[%s25 + $0x5f8] sm:$0xff]
    %v580 = vld [vmem:[%s25 + $0x600] sm:$0xff]
    %v581 = vld [vmem:[%s25 + $0x608] sm:$0xff]
    %v582 = vld [vmem:[%s25 + $0x610] sm:$0xff]
    %v583 = vld [vmem:[%s25 + $0x618] sm:$0xff]
    %v584 = vld [vmem:[%s25 + $0x620] sm:$0xff]
    %v585 = vld [vmem:[%s25 + $0x628] sm:$0xff]
    %v586 = vld [vmem:[%s25 + $0x630] sm:$0xff]
    %v587 = vld [vmem:[%s25 + $0x638] sm:$0xff]
    %v588 = vld [vmem:[%s25 + $0x640] sm:$0xff]
    %v589 = vld [vmem:[%s25 + $0x648] sm:$0xff]
    %v590 = vld [vmem:[%s25 + $0x650] sm:$0xff]
    %v591 = vld [vmem:[%s25 + $0x658] sm:$0xff]
    %v592 = vld [vmem:[%s25 + $0x660] sm:$0xff]
    %v593 = vld [vmem:[%s25 + $0x668] sm:$0xff]
    %v594 = vld [vmem:[%s25 + $0x670] sm:$0xff]
    %v595 = vld [vmem:[%s25 + $0x678] sm:$0xff]
    %v596 = vld [vmem:[%s25 + $0x680] sm:$0xff]
    %v597 = vld [vmem:[%s25 + $0x688] sm:$0xff]
    %v598 = vld [vmem:[%s25 + $0x690] sm:$0xff]
    %v599 = vld [vmem:[%s25 + $0x698] sm:$0xff]
    %v600 = vld [vmem:[%s25 + $0x6a0] sm:$0xff]
    %v601 = vld [vmem:[%s25 + $0x6a8] sm:$0xff]
    %v602 = vld [vmem:[%s25 + $0x6b0] sm:$0xff]
    %v603 = vld [vmem:[%s25 + $0x6b8] sm:$0xff]
    %v604 = vld [vmem:[%s25 + $0x6c0] sm:$0xff]
    %v605 = vld [vmem:[%s25 + $0x6c8] sm:$0xff]
    %v606 = vld [vmem:[%s25 + $0x6d0] sm:$0xff]
    %v607 = vld [vmem:[%s25 + $0x6d8] sm:$0xff]
    %v608 = vld [vmem:[%s25 + $0x6e0] sm:$0xff]
    %v609 = vld [vmem:[%s25 + $0x6e8] sm:$0xff]
    %v610 = vld [vmem:[%s25 + $0x6f0] sm:$0xff]
    %v611 = vld [vmem:[%s25 + $0x6f8] sm:$0xff]
    %v612 = vld [vmem:[%s25 + $0x700] sm:$0xff]
    %v613 = vld [vmem:[%s25 + $0x708] sm:$0xff]
    %v614 = vld [vmem:[%s25 + $0x710] sm:$0xff]
    %v615 = vld [vmem:[%s25 + $0x718] sm:$0xff]
    %v616 = vld [vmem:[%s25 + $0x720] sm:$0xff]
    %v617 = vld [vmem:[%s25 + $0x728] sm:$0xff]
    %v618 = vld [vmem:[%s25 + $0x730] sm:$0xff]
    %v619 = vld [vmem:[%s25 + $0x738] sm:$0xff]
    %v620 = vld [vmem:[%s25 + $0x740] sm:$0xff]
    %v621 = vld [vmem:[%s25 + $0x748] sm:$0xff]
    %v622 = vld [vmem:[%s25 + $0x750] sm:$0xff]
    %v623 = vld [vmem:[%s25 + $0x758] sm:$0xff]
    %v624 = vld [vmem:[%s25 + $0x760] sm:$0xff]
    %v625 = vld [vmem:[%s25 + $0x768] sm:$0xff]
    %v626 = vld [vmem:[%s25 + $0x770] sm:$0xff]
    %v627 = vld [vmem:[%s25 + $0x778] sm:$0xff]
    %v628 = vld [vmem:[%s25 + $0x780] sm:$0xff]
    %v629 = vld [vmem:[%s25 + $0x788] sm:$0xff]
    %v630 = vld [vmem:[%s25 + $0x790] sm:$0xff]
    %v631 = vld [vmem:[%s25 + $0x798] sm:$0xff]
    %v632 = vld [vmem:[%s25 + $0x7a0] sm:$0xff]
    %v633 = vld [vmem:[%s25 + $0x7a8] sm:$0xff]
    %v634 = vld [vmem:[%s25 + $0x7b0] sm:$0xff]
    %v635 = vld [vmem:[%s25 + $0x7b8] sm:$0xff]
    %v636 = vld [vmem:[%s25 + $0x7c0] sm:$0xff]
    %v637 = vld [vmem:[%s25 + $0x7c8] sm:$0xff]
    %v638 = vld [vmem:[%s25 + $0x7d0] sm:$0xff]
    %v639 = vld [vmem:[%s25 + $0x7d8] sm:$0xff]
    %v640 = vld [vmem:[%s25 + $0x7e0] sm:$0xff]
    %v641 = vld [vmem:[%s25 + $0x7e8] sm:$0xff]
    %v642 = vld [vmem:[%s25 + $0x7f0] sm:$0xff]
    %v643 = vld [vmem:[%s25 + $0x7f8] sm:$0xff]
    %v644 = vld [vmem:[%s25 + $0x800] sm:$0xff]
    %v645 = vld [vmem:[%s25 + $0x808] sm:$0xff]
    %v646 = vld [vmem:[%s25 + $0x810] sm:$0xff]
    %v647 = vld [vmem:[%s25 + $0x818] sm:$0xff]
    %v648 = vld [vmem:[%s25 + $0x820] sm:$0xff]
    %v649 = vld [vmem:[%s25 + $0x828] sm:$0xff]
    %v650 = vld [vmem:[%s25 + $0x830] sm:$0xff]
    %v651 = vld [vmem:[%s25 + $0x838] sm:$0xff]
    %v652 = vld [vmem:[%s25 + $0x840] sm:$0xff]
    %v653 = vld [vmem:[%s25 + $0x848] sm:$0xff]
    %v654 = vld [vmem:[%s25 + $0x850] sm:$0xff]
    %v655 = vld [vmem:[%s25 + $0x858] sm:$0xff]
    %v656 = vld [vmem:[%s25 + $0x860] sm:$0xff]
    %v657 = vld [vmem:[%s25 + $0x868] sm:$0xff]
    %v658 = vld [vmem:[%s25 + $0x870] sm:$0xff]
    %v659 = vld [vmem:[%s25 + $0x878] sm:$0xff]
    %v660 = vld [vmem:[%s25 + $0x880] sm:$0xff]
    %v661 = vld [vmem:[%s25 + $0x888] sm:$0xff]
    %v662 = vld [vmem:[%s25 + $0x890] sm:$0xff]
    %v663 = vld [vmem:[%s25 + $0x898] sm:$0xff]
    %v664 = vld [vmem:[%s25 + $0x8a0] sm:$0xff]
    %v665 = vld [vmem:[%s25 + $0x8a8] sm:$0xff]
    %v666 = vld [vmem:[%s25 + $0x8b0] sm:$0xff]
    %v667 = vld [vmem:[%s25 + $0x8b8] sm:$0xff]
    %v668 = vld [vmem:[%s25 + $0x8c0] sm:$0xff]
    %v669 = vld [vmem:[%s25 + $0x8c8] sm:$0xff]
    %v670 = vld [vmem:[%s25 + $0x8d0] sm:$0xff]
    %v671 = vld [vmem:[%s25 + $0x8d8] sm:$0xff]
    %v672 = vld [vmem:[%s25 + $0x8e0] sm:$0xff]
    %v673 = vld [vmem:[%s25 + $0x8e8] sm:$0xff]
    %v674 = vld [vmem:[%s25 + $0x8f0] sm:$0xff]
    %v675 = vld [vmem:[%s25 + $0x8f8] sm:$0xff]
    %v676 = vld [vmem:[#allocation10] sm:$0x3]
    %v677 = vld [vmem:[#allocation11] sm:$0xff]
    %v678 = vld [vmem:[#allocation11 + $0x8] sm:$0xff]
    %v679 = vld [vmem:[#allocation11 + $0x10] sm:$0xff]
    %v680 = vld [vmem:[#allocation11 + $0x18] sm:$0xff]
    %v681 = vld [vmem:[#allocation11 + $0x20] sm:$0xff]
    %v682 = vld [vmem:[#allocation11 + $0x28] sm:$0xff]
    %v683 = vld [vmem:[#allocation11 + $0x30] sm:$0xff]
    %v684 = vld [vmem:[#allocation11 + $0x38] sm:$0xff]
    %v685 = vld [vmem:[#allocation11 + $0x40] sm:$0xff]
    %v686 = vld [vmem:[#allocation11 + $0x48] sm:$0xff]
    %v687 = vld [vmem:[#allocation11 + $0x50] sm:$0xff]
    %v688 = vld [vmem:[#allocation11 + $0x58] sm:$0xff]
    %v689 = vld [vmem:[#allocation11 + $0x60] sm:$0xff]
    %v690 = vld [vmem:[#allocation11 + $0x68] sm:$0xff]
    %v691 = vld [vmem:[#allocation11 + $0x70] sm:$0xff]
    %v692 = vld [vmem:[#allocation11 + $0x78] sm:$0xff]
    %v693 = vld [vmem:[#allocation11 + $0x80] sm:$0xff]
    %v694 = vld [vmem:[#allocation11 + $0x88] sm:$0xff]
    %v695 = vld [vmem:[#allocation11 + $0x90] sm:$0xff]
    %v696 = vld [vmem:[#allocation11 + $0x98] sm:$0xff]
    %v697 = vld [vmem:[#allocation11 + $0xa0] sm:$0xff]
    %v698 = vld [vmem:[#allocation11 + $0xa8] sm:$0xff]
    %v699 = vld [vmem:[#allocation11 + $0xb0] sm:$0xff]
    %v700 = vld [vmem:[#allocation11 + $0xb8] sm:$0xff]
    %v701 = vld [vmem:[#allocation11 + $0xc0] sm:$0xff]
    %v702 = vld [vmem:[#allocation11 + $0xc8] sm:$0xff]
    %v703 = vld [vmem:[#allocation11 + $0xd0] sm:$0xff]
    %v704 = vld [vmem:[#allocation11 + $0xd8] sm:$0xff]
    %v705 = vld [vmem:[#allocation11 + $0xe0] sm:$0xff]
    %v706 = vld [vmem:[#allocation11 + $0xe8] sm:$0xff]
    %v707 = vld [vmem:[#allocation11 + $0xf0] sm:$0xff]
    %v708 = vld [vmem:[#allocation11 + $0xf8] sm:$0xff]
    %v709 = vld [vmem:[#allocation11 + $0x100] sm:$0xff]
    %v710 = vld [vmem:[#allocation11 + $0x108] sm:$0xff]
    %v711 = vld [vmem:[#allocation11 + $0x110] sm:$0xff]
    %v712 = vld [vmem:[#allocation11 + $0x118] sm:$0xff]
    %v713 = vld [vmem:[#allocation11 + $0x120] sm:$0xff]
    %v714 = vld [vmem:[#allocation11 + $0x128] sm:$0xff]
    %v715 = vld [vmem:[#allocation11 + $0x130] sm:$0xff]
    %v716 = vld [vmem:[#allocation11 + $0x138] sm:$0xff]
    %v717 = vld [vmem:[#allocation11 + $0x140] sm:$0xff]
    %v718 = vld [vmem:[#allocation11 + $0x148] sm:$0xff]
    %v719 = vld [vmem:[#allocation11 + $0x150] sm:$0xff]
    %v720 = vld [vmem:[#allocation11 + $0x158] sm:$0xff]
    %v721 = vld [vmem:[#allocation11 + $0x160] sm:$0xff]
    %v722 = vld [vmem:[#allocation11 + $0x168] sm:$0xff]
    %v723 = vld [vmem:[#allocation11 + $0x170] sm:$0xff]
    %v724 = vld [vmem:[#allocation11 + $0x178] sm:$0xff]
    %v725 = vld [vmem:[#allocation11 + $0x180] sm:$0xff]
    %v726 = vld [vmem:[#allocation11 + $0x188] sm:$0xff]
    %v727 = vld [vmem:[#allocation11 + $0x190] sm:$0xff]
    %v728 = vld [vmem:[#allocation11 + $0x198] sm:$0xff]
    %v729 = vld [vmem:[#allocation11 + $0x1a0] sm:$0xff]
    %v730 = vld [vmem:[#allocation11 + $0x1a8] sm:$0xff]
    %v731 = vld [vmem:[#allocation11 + $0x1b0] sm:$0xff]
    %v732 = vld [vmem:[#allocation11 + $0x1b8] sm:$0xff]
    %v733 = vld [vmem:[#allocation11 + $0x1c0] sm:$0xff]
    %v734 = vld [vmem:[#allocation11 + $0x1c8] sm:$0xff]
    %v735 = vld [vmem:[#allocation11 + $0x1d0] sm:$0xff]
    %v736 = vld [vmem:[#allocation11 + $0x1d8] sm:$0xff]
    %v737 = vld [vmem:[#allocation11 + $0x1e0] sm:$0xff]
    %v738 = vld [vmem:[#allocation11 + $0x1e8] sm:$0xff]
    %v739 = vld [vmem:[#allocation11 + $0x1f0] sm:$0xff]
    %v740 = vld [vmem:[#allocation11 + $0x1f8] sm:$0xff]
    %v741 = vld [vmem:[#allocation13] sm:$0x3]
    %v742 = vld [vmem:[%s33] sm:$0xff]
    %v743 = vld [vmem:[%s33 + $0x8] sm:$0xff]
    %v744 = vld [vmem:[%s33 + $0x10] sm:$0xff]
    %v745 = vld [vmem:[%s33 + $0x18] sm:$0xff]
    %v746 = vld [vmem:[%s33 + $0x20] sm:$0xff]
    %v747 = vld [vmem:[%s33 + $0x28] sm:$0xff]
    %v748 = vld [vmem:[%s33 + $0x30] sm:$0xff]
    %v749 = vld [vmem:[%s33 + $0x38] sm:$0xff]
    %v750 = vld [vmem:[%s33 + $0x40] sm:$0xff]
    %v751 = vld [vmem:[%s33 + $0x48] sm:$0xff]
    %v752 = vld [vmem:[%s33 + $0x50] sm:$0xff]
    %v753 = vld [vmem:[%s33 + $0x58] sm:$0xff]
    %v754 = vld [vmem:[%s33 + $0x60] sm:$0xff]
    %v755 = vld [vmem:[%s33 + $0x68] sm:$0xff]
    %v756 = vld [vmem:[%s33 + $0x70] sm:$0xff]
    %v757 = vld [vmem:[%s33 + $0x78] sm:$0xff]
    %v758 = vld [vmem:[%s33 + $0x80] sm:$0xff]
    %v759 = vld [vmem:[%s33 + $0x88] sm:$0xff]
    %v760 = vld [vmem:[%s33 + $0x90] sm:$0xff]
    %v761 = vld [vmem:[%s33 + $0x98] sm:$0xff]
    %v762 = vld [vmem:[%s33 + $0xa0] sm:$0xff]
    %v763 = vld [vmem:[%s33 + $0xa8] sm:$0xff]
    %v764 = vld [vmem:[%s33 + $0xb0] sm:$0xff]
    %v765 = vld [vmem:[%s33 + $0xb8] sm:$0xff]
    %v766 = vld [vmem:[%s33 + $0xc0] sm:$0xff]
    %v767 = vld [vmem:[%s33 + $0xc8] sm:$0xff]
    %v768 = vld [vmem:[%s33 + $0xd0] sm:$0xff]
    %v769 = vld [vmem:[%s33 + $0xd8] sm:$0xff]
    %v770 = vld [vmem:[%s33 + $0xe0] sm:$0xff]
    %v771 = vld [vmem:[%s33 + $0xe8] sm:$0xff]
    %v772 = vld [vmem:[%s33 + $0xf0] sm:$0xff]
    %v773 = vld [vmem:[%s33 + $0xf8] sm:$0xff]
    %v774 = vld [vmem:[#allocation14] sm:$0x1]
    %v775 = vld [vmem:[%s37] sm:$0xff]
    %v776 = vld [vmem:[%s37 + $0x8] sm:$0xff]
    %v777 = vld [vmem:[%s37 + $0x10] sm:$0xff]
    %v778 = vld [vmem:[%s37 + $0x18] sm:$0xff]
    %v779 = vld [vmem:[%s37 + $0x20] sm:$0xff]
    %v780 = vld [vmem:[%s37 + $0x28] sm:$0xff]
    %v781 = vld [vmem:[%s37 + $0x30] sm:$0xff]
    %v782 = vld [vmem:[%s37 + $0x38] sm:$0xff]
    %v783 = vld [vmem:[%s37 + $0x40] sm:$0xff]
    %v784 = vld [vmem:[%s37 + $0x48] sm:$0xff]
    %v785 = vld [vmem:[%s37 + $0x50] sm:$0xff]
    %v786 = vld [vmem:[%s37 + $0x58] sm:$0xff]
    %v787 = vld [vmem:[%s37 + $0x60] sm:$0xff]
    %v788 = vld [vmem:[%s37 + $0x68] sm:$0xff]
    %v789 = vld [vmem:[%s37 + $0x70] sm:$0xff]
    %v790 = vld [vmem:[%s37 + $0x78] sm:$0xff]
    %v791 = vld [vmem:[%s37 + $0x80] sm:$0xff]
    %v792 = vld [vmem:[%s37 + $0x88] sm:$0xff]
    %v793 = vld [vmem:[%s37 + $0x90] sm:$0xff]
    %v794 = vld [vmem:[%s37 + $0x98] sm:$0xff]
    %v795 = vld [vmem:[%s37 + $0xa0] sm:$0xff]
    %v796 = vld [vmem:[%s37 + $0xa8] sm:$0xff]
    %v797 = vld [vmem:[%s37 + $0xb0] sm:$0xff]
    %v798 = vld [vmem:[%s37 + $0xb8] sm:$0xff]
    %v799 = vld [vmem:[%s37 + $0xc0] sm:$0xff]
    %v800 = vld [vmem:[%s37 + $0xc8] sm:$0xff]
    %v801 = vld [vmem:[%s37 + $0xd0] sm:$0xff]
    %v802 = vld [vmem:[%s37 + $0xd8] sm:$0xff]
    %v803 = vld [vmem:[%s37 + $0xe0] sm:$0xff]
    %v804 = vld [vmem:[%s37 + $0xe8] sm:$0xff]
    %v805 = vld [vmem:[%s37 + $0xf0] sm:$0xff]
    %v806 = vld [vmem:[%s37 + $0xf8] sm:$0xff]
    %v807 = vld [vmem:[#allocation16] sm:$0x1]
    %v808 = vld [vmem:[%s41] sm:$0xff]
    %v809 = vld [vmem:[%s41 + $0x8] sm:$0xff]
    %v810 = vld [vmem:[%s41 + $0x10] sm:$0xff]
    %v811 = vld [vmem:[%s41 + $0x18] sm:$0xff]
    %v812 = vld [vmem:[#allocation17] sm:$0x1]
    %v813 = vld [vmem:[%s45] sm:$0xff]
    %v814 = vld [vmem:[%s45 + $0x8] sm:$0xff]
    %v815 = vld [vmem:[%s45 + $0x10] sm:$0xff]
    %v816 = vld [vmem:[%s45 + $0x18] sm:$0xff]
    %v817 = vld [vmem:[#allocation19] sm:$0x1]
    %v818 = vld [vmem:[%s49] sm:$0xff]
    %v819 = vld [vmem:[%s49 + $0x8] sm:$0xff]
    %v820 = vld [vmem:[%s49 + $0x10] sm:$0xff]
    %v821 = vld [vmem:[%s49 + $0x18] sm:$0xff]
    %v822 = vld [vmem:[%s49 + $0x20] sm:$0xff]
    %v823 = vld [vmem:[%s49 + $0x28] sm:$0xff]
    %v824 = vld [vmem:[%s49 + $0x30] sm:$0xff]
    %v825 = vld [vmem:[%s49 + $0x38] sm:$0xff]
    %v826 = vld [vmem:[%s49 + $0x40] sm:$0xff]
    %v827 = vld [vmem:[%s49 + $0x48] sm:$0xff]
    %v828 = vld [vmem:[%s49 + $0x50] sm:$0xff]
    %v829 = vld [vmem:[%s49 + $0x58] sm:$0xff]
    %v830 = vld [vmem:[%s49 + $0x60] sm:$0xff]
    %v831 = vld [vmem:[%s49 + $0x68] sm:$0xff]
    %v832 = vld [vmem:[%s49 + $0x70] sm:$0xff]
    %v833 = vld [vmem:[%s49 + $0x78] sm:$0xff]
    %v834 = vld [vmem:[%s49 + $0x80] sm:$0xff]
    %v835 = vld [vmem:[%s49 + $0x88] sm:$0xff]
    %v836 = vld [vmem:[%s49 + $0x90] sm:$0xff]
    %v837 = vld [vmem:[%s49 + $0x98] sm:$0xff]
    %v838 = vld [vmem:[%s49 + $0xa0] sm:$0xff]
    %v839 = vld [vmem:[%s49 + $0xa8] sm:$0xff]
    %v840 = vld [vmem:[%s49 + $0xb0] sm:$0xff]
    %v841 = vld [vmem:[%s49 + $0xb8] sm:$0xff]
    %v842 = vld [vmem:[%s49 + $0xc0] sm:$0xff]
    %v843 = vld [vmem:[%s49 + $0xc8] sm:$0xff]
    %v844 = vld [vmem:[%s49 + $0xd0] sm:$0xff]
    %v845 = vld [vmem:[%s49 + $0xd8] sm:$0xff]
    %v846 = vld [vmem:[%s49 + $0xe0] sm:$0xff]
    %v847 = vld [vmem:[%s49 + $0xe8] sm:$0xff]
    %v848 = vld [vmem:[%s49 + $0xf0] sm:$0xff]
    %v849 = vld [vmem:[%s49 + $0xf8] sm:$0xff]
    %v850 = vld [vmem:[%s49 + $0x100] sm:$0xff]
    %v851 = vld [vmem:[%s49 + $0x108] sm:$0xff]
    %v852 = vld [vmem:[%s49 + $0x110] sm:$0xff]
    %v853 = vld [vmem:[%s49 + $0x118] sm:$0xff]
    %v854 = vld [vmem:[%s49 + $0x120] sm:$0xff]
    %v855 = vld [vmem:[%s49 + $0x128] sm:$0xff]
    %v856 = vld [vmem:[%s49 + $0x130] sm:$0xff]
    %v857 = vld [vmem:[%s49 + $0x138] sm:$0xff]
    %v858 = vld [vmem:[%s49 + $0x140] sm:$0xff]
    %v859 = vld [vmem:[%s49 + $0x148] sm:$0xff]
    %v860 = vld [vmem:[%s49 + $0x150] sm:$0xff]
    %v861 = vld [vmem:[%s49 + $0x158] sm:$0xff]
    %v862 = vld [vmem:[%s49 + $0x160] sm:$0xff]
    %v863 = vld [vmem:[%s49 + $0x168] sm:$0xff]
    %v864 = vld [vmem:[%s49 + $0x170] sm:$0xff]
    %v865 = vld [vmem:[%s49 + $0x178] sm:$0xff]
    %v866 = vld [vmem:[%s49 + $0x180] sm:$0xff]
    %v867 = vld [vmem:[%s49 + $0x188] sm:$0xff]
    %v868 = vld [vmem:[%s49 + $0x190] sm:$0xff]
    %v869 = vld [vmem:[%s49 + $0x198] sm:$0xff]
    %v870 = vld [vmem:[%s49 + $0x1a0] sm:$0xff]
    %v871 = vld [vmem:[%s49 + $0x1a8] sm:$0xff]
    %v872 = vld [vmem:[%s49 + $0x1b0] sm:$0xff]
    %v873 = vld [vmem:[%s49 + $0x1b8] sm:$0xff]
    %v874 = vld [vmem:[%s49 + $0x1c0] sm:$0xff]
    %v875 = vld [vmem:[%s49 + $0x1c8] sm:$0xff]
    %v876 = vld [vmem:[%s49 + $0x1d0] sm:$0xff]
    %v877 = vld [vmem:[%s49 + $0x1d8] sm:$0xff]
    %v878 = vld [vmem:[%s49 + $0x1e0] sm:$0xff]
    %v879 = vld [vmem:[%s49 + $0x1e8] sm:$0xff]
    %v880 = vld [vmem:[%s49 + $0x1f0] sm:$0xff]
    %v881 = vld [vmem:[%s49 + $0x1f8] sm:$0xff]
    %v882 = vld [vmem:[%s49 + $0x200] sm:$0xff]
    %v883 = vld [vmem:[%s49 + $0x208] sm:$0xff]
    %v884 = vld [vmem:[%s49 + $0x210] sm:$0xff]
    %v885 = vld [vmem:[%s49 + $0x218] sm:$0xff]
    %v886 = vld [vmem:[%s49 + $0x220] sm:$0xff]
    %v887 = vld [vmem:[%s49 + $0x228] sm:$0xff]
    %v888 = vld [vmem:[%s49 + $0x230] sm:$0xff]
    %v889 = vld [vmem:[%s49 + $0x238] sm:$0xff]
    %v890 = vld [vmem:[%s49 + $0x240] sm:$0xff]
    %v891 = vld [vmem:[%s49 + $0x248] sm:$0xff]
    %v892 = vld [vmem:[%s49 + $0x250] sm:$0xff]
    %v893 = vld [vmem:[%s49 + $0x258] sm:$0xff]
    %v894 = vld [vmem:[%s49 + $0x260] sm:$0xff]
    %v895 = vld [vmem:[%s49 + $0x268] sm:$0xff]
    %v896 = vld [vmem:[%s49 + $0x270] sm:$0xff]
    %v897 = vld [vmem:[%s49 + $0x278] sm:$0xff]
    %v898 = vld [vmem:[%s49 + $0x280] sm:$0xff]
    %v899 = vld [vmem:[%s49 + $0x288] sm:$0xff]
    %v900 = vld [vmem:[%s49 + $0x290] sm:$0xff]
    %v901 = vld [vmem:[%s49 + $0x298] sm:$0xff]
    %v902 = vld [vmem:[%s49 + $0x2a0] sm:$0xff]
    %v903 = vld [vmem:[%s49 + $0x2a8] sm:$0xff]
    %v904 = vld [vmem:[%s49 + $0x2b0] sm:$0xff]
    %v905 = vld [vmem:[%s49 + $0x2b8] sm:$0xff]
    %v906 = vld [vmem:[%s49 + $0x2c0] sm:$0xff]
    %v907 = vld [vmem:[%s49 + $0x2c8] sm:$0xff]
    %v908 = vld [vmem:[%s49 + $0x2d0] sm:$0xff]
    %v909 = vld [vmem:[%s49 + $0x2d8] sm:$0xff]
    %v910 = vld [vmem:[%s49 + $0x2e0] sm:$0xff]
    %v911 = vld [vmem:[%s49 + $0x2e8] sm:$0xff]
    %v912 = vld [vmem:[%s49 + $0x2f0] sm:$0xff]
    %v913 = vld [vmem:[%s49 + $0x2f8] sm:$0xff]
    %v914 = vld [vmem:[%s49 + $0x300] sm:$0xff]
    %v915 = vld [vmem:[%s49 + $0x308] sm:$0xff]
    %v916 = vld [vmem:[%s49 + $0x310] sm:$0xff]
    %v917 = vld [vmem:[%s49 + $0x318] sm:$0xff]
    %v918 = vld [vmem:[%s49 + $0x320] sm:$0xff]
    %v919 = vld [vmem:[%s49 + $0x328] sm:$0xff]
    %v920 = vld [vmem:[%s49 + $0x330] sm:$0xff]
    %v921 = vld [vmem:[%s49 + $0x338] sm:$0xff]
    %v922 = vld [vmem:[%s49 + $0x340] sm:$0xff]
    %v923 = vld [vmem:[%s49 + $0x348] sm:$0xff]
    %v924 = vld [vmem:[%s49 + $0x350] sm:$0xff]
    %v925 = vld [vmem:[%s49 + $0x358] sm:$0xff]
    %v926 = vld [vmem:[%s49 + $0x360] sm:$0xff]
    %v927 = vld [vmem:[%s49 + $0x368] sm:$0xff]
    %v928 = vld [vmem:[%s49 + $0x370] sm:$0xff]
    %v929 = vld [vmem:[%s49 + $0x378] sm:$0xff]
    %v930 = vld [vmem:[%s49 + $0x380] sm:$0xff]
    %v931 = vld [vmem:[%s49 + $0x388] sm:$0xff]
    %v932 = vld [vmem:[%s49 + $0x390] sm:$0xff]
    %v933 = vld [vmem:[%s49 + $0x398] sm:$0xff]
    %v934 = vld [vmem:[%s49 + $0x3a0] sm:$0xff]
    %v935 = vld [vmem:[%s49 + $0x3a8] sm:$0xff]
    %v936 = vld [vmem:[%s49 + $0x3b0] sm:$0xff]
    %v937 = vld [vmem:[%s49 + $0x3b8] sm:$0xff]
    %v938 = vld [vmem:[%s49 + $0x3c0] sm:$0xff]
    %v939 = vld [vmem:[%s49 + $0x3c8] sm:$0xff]
    %v940 = vld [vmem:[%s49 + $0x3d0] sm:$0xff]
    %v941 = vld [vmem:[%s49 + $0x3d8] sm:$0xff]
    %v942 = vld [vmem:[%s49 + $0x3e0] sm:$0xff]
    %v943 = vld [vmem:[%s49 + $0x3e8] sm:$0xff]
    %v944 = vld [vmem:[%s49 + $0x3f0] sm:$0xff]
    %v945 = vld [vmem:[%s49 + $0x3f8] sm:$0xff]
    %v946 = vld [vmem:[%s49 + $0x400] sm:$0xff]
    %v947 = vld [vmem:[%s49 + $0x408] sm:$0xff]
    %v948 = vld [vmem:[%s49 + $0x410] sm:$0xff]
    %v949 = vld [vmem:[%s49 + $0x418] sm:$0xff]
    %v950 = vld [vmem:[%s49 + $0x420] sm:$0xff]
    %v951 = vld [vmem:[%s49 + $0x428] sm:$0xff]
    %v952 = vld [vmem:[%s49 + $0x430] sm:$0xff]
    %v953 = vld [vmem:[%s49 + $0x438] sm:$0xff]
    %v954 = vld [vmem:[%s49 + $0x440] sm:$0xff]
    %v955 = vld [vmem:[%s49 + $0x448] sm:$0xff]
    %v956 = vld [vmem:[%s49 + $0x450] sm:$0xff]
    %v957 = vld [vmem:[%s49 + $0x458] sm:$0xff]
    %v958 = vld [vmem:[%s49 + $0x460] sm:$0xff]
    %v959 = vld [vmem:[%s49 + $0x468] sm:$0xff]
    %v960 = vld [vmem:[%s49 + $0x470] sm:$0xff]
    %v961 = vld [vmem:[%s49 + $0x478] sm:$0xff]
    %v962 = vld [vmem:[%s49 + $0x480] sm:$0xff]
    %v963 = vld [vmem:[%s49 + $0x488] sm:$0xff]
    %v964 = vld [vmem:[%s49 + $0x490] sm:$0xff]
    %v965 = vld [vmem:[%s49 + $0x498] sm:$0xff]
    %v966 = vld [vmem:[%s49 + $0x4a0] sm:$0xff]
    %v967 = vld [vmem:[%s49 + $0x4a8] sm:$0xff]
    %v968 = vld [vmem:[%s49 + $0x4b0] sm:$0xff]
    %v969 = vld [vmem:[%s49 + $0x4b8] sm:$0xff]
    %v970 = vld [vmem:[%s49 + $0x4c0] sm:$0xff]
    %v971 = vld [vmem:[%s49 + $0x4c8] sm:$0xff]
    %v972 = vld [vmem:[%s49 + $0x4d0] sm:$0xff]
    %v973 = vld [vmem:[%s49 + $0x4d8] sm:$0xff]
    %v974 = vld [vmem:[%s49 + $0x4e0] sm:$0xff]
    %v975 = vld [vmem:[%s49 + $0x4e8] sm:$0xff]
    %v976 = vld [vmem:[%s49 + $0x4f0] sm:$0xff]
    %v977 = vld [vmem:[%s49 + $0x4f8] sm:$0xff]
    %v978 = vld [vmem:[%s49 + $0x500] sm:$0xff]
    %v979 = vld [vmem:[%s49 + $0x508] sm:$0xff]
    %v980 = vld [vmem:[%s49 + $0x510] sm:$0xff]
    %v981 = vld [vmem:[%s49 + $0x518] sm:$0xff]
    %v982 = vld [vmem:[%s49 + $0x520] sm:$0xff]
    %v983 = vld [vmem:[%s49 + $0x528] sm:$0xff]
    %v984 = vld [vmem:[%s49 + $0x530] sm:$0xff]
    %v985 = vld [vmem:[%s49 + $0x538] sm:$0xff]
    %v986 = vld [vmem:[%s49 + $0x540] sm:$0xff]
    %v987 = vld [vmem:[%s49 + $0x548] sm:$0xff]
    %v988 = vld [vmem:[%s49 + $0x550] sm:$0xff]
    %v989 = vld [vmem:[%s49 + $0x558] sm:$0xff]
    %v990 = vld [vmem:[%s49 + $0x560] sm:$0xff]
    %v991 = vld [vmem:[%s49 + $0x568] sm:$0xff]
    %v992 = vld [vmem:[%s49 + $0x570] sm:$0xff]
    %v993 = vld [vmem:[%s49 + $0x578] sm:$0xff]
    %v994 = vld [vmem:[%s49 + $0x580] sm:$0xff]
    %v995 = vld [vmem:[%s49 + $0x588] sm:$0xff]
    %v996 = vld [vmem:[%s49 + $0x590] sm:$0xff]
    %v997 = vld [vmem:[%s49 + $0x598] sm:$0xff]
    %v998 = vld [vmem:[%s49 + $0x5a0] sm:$0xff]
    %v999 = vld [vmem:[%s49 + $0x5a8] sm:$0xff]
    %v1000 = vld [vmem:[%s49 + $0x5b0] sm:$0xff]
    %v1001 = vld [vmem:[%s49 + $0x5b8] sm:$0xff]
    %v1002 = vld [vmem:[%s49 + $0x5c0] sm:$0xff]
    %v1003 = vld [vmem:[%s49 + $0x5c8] sm:$0xff]
    %v1004 = vld [vmem:[%s49 + $0x5d0] sm:$0xff]
    %v1005 = vld [vmem:[%s49 + $0x5d8] sm:$0xff]
    %v1006 = vld [vmem:[%s49 + $0x5e0] sm:$0xff]
    %v1007 = vld [vmem:[%s49 + $0x5e8] sm:$0xff]
    %v1008 = vld [vmem:[%s49 + $0x5f0] sm:$0xff]
    %v1009 = vld [vmem:[%s49 + $0x5f8] sm:$0xff]
    %v1010 = vld [vmem:[%s49 + $0x600] sm:$0xff]
    %v1011 = vld [vmem:[%s49 + $0x608] sm:$0xff]
    %v1012 = vld [vmem:[%s49 + $0x610] sm:$0xff]
    %v1013 = vld [vmem:[%s49 + $0x618] sm:$0xff]
    %v1014 = vld [vmem:[%s49 + $0x620] sm:$0xff]
    %v1015 = vld [vmem:[%s49 + $0x628] sm:$0xff]
    %v1016 = vld [vmem:[%s49 + $0x630] sm:$0xff]
    %v1017 = vld [vmem:[%s49 + $0x638] sm:$0xff]
    %v1018 = vld [vmem:[%s49 + $0x640] sm:$0xff]
    %v1019 = vld [vmem:[%s49 + $0x648] sm:$0xff]
    %v1020 = vld [vmem:[%s49 + $0x650] sm:$0xff]
    %v1021 = vld [vmem:[%s49 + $0x658] sm:$0xff]
    %v1022 = vld [vmem:[%s49 + $0x660] sm:$0xff]
    %v1023 = vld [vmem:[%s49 + $0x668] sm:$0xff]
    %v1024 = vld [vmem:[%s49 + $0x670] sm:$0xff]
    %v1025 = vld [vmem:[%s49 + $0x678] sm:$0xff]
    %v1026 = vld [vmem:[%s49 + $0x680] sm:$0xff]
    %v1027 = vld [vmem:[%s49 + $0x688] sm:$0xff]
    %v1028 = vld [vmem:[%s49 + $0x690] sm:$0xff]
    %v1029 = vld [vmem:[%s49 + $0x698] sm:$0xff]
    %v1030 = vld [vmem:[%s49 + $0x6a0] sm:$0xff]
    %v1031 = vld [vmem:[%s49 + $0x6a8] sm:$0xff]
    %v1032 = vld [vmem:[%s49 + $0x6b0] sm:$0xff]
    %v1033 = vld [vmem:[%s49 + $0x6b8] sm:$0xff]
    %v1034 = vld [vmem:[%s49 + $0x6c0] sm:$0xff]
    %v1035 = vld [vmem:[%s49 + $0x6c8] sm:$0xff]
    %v1036 = vld [vmem:[%s49 + $0x6d0] sm:$0xff]
    %v1037 = vld [vmem:[%s49 + $0x6d8] sm:$0xff]
    %v1038 = vld [vmem:[%s49 + $0x6e0] sm:$0xff]
    %v1039 = vld [vmem:[%s49 + $0x6e8] sm:$0xff]
    %v1040 = vld [vmem:[%s49 + $0x6f0] sm:$0xff]
    %v1041 = vld [vmem:[%s49 + $0x6f8] sm:$0xff]
    %v1042 = vld [vmem:[%s49 + $0x700] sm:$0xff]
    %v1043 = vld [vmem:[%s49 + $0x708] sm:$0xff]
    %v1044 = vld [vmem:[%s49 + $0x710] sm:$0xff]
    %v1045 = vld [vmem:[%s49 + $0x718] sm:$0xff]
    %v1046 = vld [vmem:[%s49 + $0x720] sm:$0xff]
    %v1047 = vld [vmem:[%s49 + $0x728] sm:$0xff]
    %v1048 = vld [vmem:[%s49 + $0x730] sm:$0xff]
    %v1049 = vld [vmem:[%s49 + $0x738] sm:$0xff]
    %v1050 = vld [vmem:[%s49 + $0x740] sm:$0xff]
    %v1051 = vld [vmem:[%s49 + $0x748] sm:$0xff]
    %v1052 = vld [vmem:[%s49 + $0x750] sm:$0xff]
    %v1053 = vld [vmem:[%s49 + $0x758] sm:$0xff]
    %v1054 = vld [vmem:[%s49 + $0x760] sm:$0xff]
    %v1055 = vld [vmem:[%s49 + $0x768] sm:$0xff]
    %v1056 = vld [vmem:[%s49 + $0x770] sm:$0xff]
    %v1057 = vld [vmem:[%s49 + $0x778] sm:$0xff]
    %v1058 = vld [vmem:[%s49 + $0x780] sm:$0xff]
    %v1059 = vld [vmem:[%s49 + $0x788] sm:$0xff]
    %v1060 = vld [vmem:[%s49 + $0x790] sm:$0xff]
    %v1061 = vld [vmem:[%s49 + $0x798] sm:$0xff]
    %v1062 = vld [vmem:[%s49 + $0x7a0] sm:$0xff]
    %v1063 = vld [vmem:[%s49 + $0x7a8] sm:$0xff]
    %v1064 = vld [vmem:[%s49 + $0x7b0] sm:$0xff]
    %v1065 = vld [vmem:[%s49 + $0x7b8] sm:$0xff]
    %v1066 = vld [vmem:[%s49 + $0x7c0] sm:$0xff]
    %v1067 = vld [vmem:[%s49 + $0x7c8] sm:$0xff]
    %v1068 = vld [vmem:[%s49 + $0x7d0] sm:$0xff]
    %v1069 = vld [vmem:[%s49 + $0x7d8] sm:$0xff]
    %v1070 = vld [vmem:[%s49 + $0x7e0] sm:$0xff]
    %v1071 = vld [vmem:[%s49 + $0x7e8] sm:$0xff]
    %v1072 = vld [vmem:[%s49 + $0x7f0] sm:$0xff]
    %v1073 = vld [vmem:[%s49 + $0x7f8] sm:$0xff]
    %v1074 = vld [vmem:[%s49 + $0x800] sm:$0xff]
    %v1075 = vld [vmem:[%s49 + $0x808] sm:$0xff]
    %v1076 = vld [vmem:[%s49 + $0x810] sm:$0xff]
    %v1077 = vld [vmem:[%s49 + $0x818] sm:$0xff]
    %v1078 = vld [vmem:[%s49 + $0x820] sm:$0xff]
    %v1079 = vld [vmem:[%s49 + $0x828] sm:$0xff]
    %v1080 = vld [vmem:[%s49 + $0x830] sm:$0xff]
    %v1081 = vld [vmem:[%s49 + $0x838] sm:$0xff]
    %v1082 = vld [vmem:[%s49 + $0x840] sm:$0xff]
    %v1083 = vld [vmem:[%s49 + $0x848] sm:$0xff]
    %v1084 = vld [vmem:[%s49 + $0x850] sm:$0xff]
    %v1085 = vld [vmem:[%s49 + $0x858] sm:$0xff]
    %v1086 = vld [vmem:[%s49 + $0x860] sm:$0xff]
    %v1087 = vld [vmem:[%s49 + $0x868] sm:$0xff]
    %v1088 = vld [vmem:[%s49 + $0x870] sm:$0xff]
    %v1089 = vld [vmem:[%s49 + $0x878] sm:$0xff]
    %v1090 = vld [vmem:[%s49 + $0x880] sm:$0xff]
    %v1091 = vld [vmem:[%s49 + $0x888] sm:$0xff]
    %v1092 = vld [vmem:[%s49 + $0x890] sm:$0xff]
    %v1093 = vld [vmem:[%s49 + $0x898] sm:$0xff]
    %v1094 = vld [vmem:[%s49 + $0x8a0] sm:$0xff]
    %v1095 = vld [vmem:[%s49 + $0x8a8] sm:$0xff]
    %v1096 = vld [vmem:[%s49 + $0x8b0] sm:$0xff]
    %v1097 = vld [vmem:[%s49 + $0x8b8] sm:$0xff]
    %v1098 = vld [vmem:[%s49 + $0x8c0] sm:$0xff]
    %v1099 = vld [vmem:[%s49 + $0x8c8] sm:$0xff]
    %v1100 = vld [vmem:[%s49 + $0x8d0] sm:$0xff]
    %v1101 = vld [vmem:[%s49 + $0x8d8] sm:$0xff]
    %v1102 = vld [vmem:[%s49 + $0x8e0] sm:$0xff]
    %v1103 = vld [vmem:[%s49 + $0x8e8] sm:$0xff]
    %v1104 = vld [vmem:[%s49 + $0x8f0] sm:$0xff]
    %v1105 = vld [vmem:[%s49 + $0x8f8] sm:$0xff]
    %v1106 = vld [vmem:[#allocation20] sm:$0x3]
    %v1107 = vld [vmem:[#allocation22] sm:$0xff]
    %v1108 = vld [vmem:[#allocation22 + $0x8] sm:$0xff]
    %v1109 = vld [vmem:[#allocation22 + $0x10] sm:$0xff]
    %v1110 = vld [vmem:[#allocation22 + $0x18] sm:$0xff]
    %v1111 = vld [vmem:[#allocation22 + $0x20] sm:$0xff]
    %v1112 = vld [vmem:[#allocation22 + $0x28] sm:$0xff]
    %v1113 = vld [vmem:[#allocation22 + $0x30] sm:$0xff]
    %v1114 = vld [vmem:[#allocation22 + $0x38] sm:$0xff]
    %v1115 = vld [vmem:[#allocation22 + $0x40] sm:$0xff]
    %v1116 = vld [vmem:[#allocation22 + $0x48] sm:$0xff]
    %v1117 = vld [vmem:[#allocation22 + $0x50] sm:$0xff]
    %v1118 = vld [vmem:[#allocation22 + $0x58] sm:$0xff]
    %v1119 = vld [vmem:[#allocation22 + $0x60] sm:$0xff]
    %v1120 = vld [vmem:[#allocation22 + $0x68] sm:$0xff]
    %v1121 = vld [vmem:[#allocation22 + $0x70] sm:$0xff]
    %v1122 = vld [vmem:[#allocation22 + $0x78] sm:$0xff]
    %v1123 = vld [vmem:[#allocation22 + $0x80] sm:$0xff]
    %v1124 = vld [vmem:[#allocation22 + $0x88] sm:$0xff]
    %v1125 = vld [vmem:[#allocation22 + $0x90] sm:$0xff]
    %v1126 = vld [vmem:[#allocation22 + $0x98] sm:$0xff]
    %v1127 = vld [vmem:[#allocation22 + $0xa0] sm:$0xff]
    %v1128 = vld [vmem:[#allocation22 + $0xa8] sm:$0xff]
    %v1129 = vld [vmem:[#allocation22 + $0xb0] sm:$0xff]
    %v1130 = vld [vmem:[#allocation22 + $0xb8] sm:$0xff]
    %v1131 = vld [vmem:[#allocation22 + $0xc0] sm:$0xff]
    %v1132 = vld [vmem:[#allocation22 + $0xc8] sm:$0xff]
    %v1133 = vld [vmem:[#allocation22 + $0xd0] sm:$0xff]
    %v1134 = vld [vmem:[#allocation22 + $0xd8] sm:$0xff]
    %v1135 = vld [vmem:[#allocation22 + $0xe0] sm:$0xff]
    %v1136 = vld [vmem:[#allocation22 + $0xe8] sm:$0xff]
    %v1137 = vld [vmem:[#allocation22 + $0xf0] sm:$0xff]
    %v1138 = vld [vmem:[#allocation22 + $0xf8] sm:$0xff]
    %v1139 = vld [vmem:[#allocation22 + $0x100] sm:$0xff]
    %v1140 = vld [vmem:[#allocation22 + $0x108] sm:$0xff]
    %v1141 = vld [vmem:[#allocation22 + $0x110] sm:$0xff]
    %v1142 = vld [vmem:[#allocation22 + $0x118] sm:$0xff]
    %v1143 = vld [vmem:[#allocation22 + $0x120] sm:$0xff]
    %v1144 = vld [vmem:[#allocation22 + $0x128] sm:$0xff]
    %v1145 = vld [vmem:[#allocation22 + $0x130] sm:$0xff]
    %v1146 = vld [vmem:[#allocation22 + $0x138] sm:$0xff]
    %v1147 = vld [vmem:[#allocation22 + $0x140] sm:$0xff]
    %v1148 = vld [vmem:[#allocation22 + $0x148] sm:$0xff]
    %v1149 = vld [vmem:[#allocation22 + $0x150] sm:$0xff]
    %v1150 = vld [vmem:[#allocation22 + $0x158] sm:$0xff]
    %v1151 = vld [vmem:[#allocation22 + $0x160] sm:$0xff]
    %v1152 = vld [vmem:[#allocation22 + $0x168] sm:$0xff]
    %v1153 = vld [vmem:[#allocation22 + $0x170] sm:$0xff]
    %v1154 = vld [vmem:[#allocation22 + $0x178] sm:$0xff]
    %v1155 = vld [vmem:[#allocation22 + $0x180] sm:$0xff]
    %v1156 = vld [vmem:[#allocation22 + $0x188] sm:$0xff]
    %v1157 = vld [vmem:[#allocation22 + $0x190] sm:$0xff]
    %v1158 = vld [vmem:[#allocation22 + $0x198] sm:$0xff]
    %v1159 = vld [vmem:[#allocation22 + $0x1a0] sm:$0xff]
    %v1160 = vld [vmem:[#allocation22 + $0x1a8] sm:$0xff]
    %v1161 = vld [vmem:[#allocation22 + $0x1b0] sm:$0xff]
    %v1162 = vld [vmem:[#allocation22 + $0x1b8] sm:$0xff]
    %v1163 = vld [vmem:[#allocation22 + $0x1c0] sm:$0xff]
    %v1164 = vld [vmem:[#allocation22 + $0x1c8] sm:$0xff]
    %v1165 = vld [vmem:[#allocation22 + $0x1d0] sm:$0xff]
    %v1166 = vld [vmem:[#allocation22 + $0x1d8] sm:$0xff]
    %v1167 = vld [vmem:[#allocation22 + $0x1e0] sm:$0xff]
    %v1168 = vld [vmem:[#allocation22 + $0x1e8] sm:$0xff]
    %v1169 = vld [vmem:[#allocation22 + $0x1f0] sm:$0xff]
    %v1170 = vld [vmem:[#allocation22 + $0x1f8] sm:$0xff]
    %v1171 = vld [vmem:[#allocation23] sm:$0x3]
    %v1172 = vld [vmem:[#allocation2] sm:$0xff]
    %v1173 = vld [vmem:[#allocation2 + $0x8] sm:$0xff]
    %v1174 = vld [vmem:[#allocation2 + $0x10] sm:$0xff]
    %v1175 = vld [vmem:[#allocation2 + $0x18] sm:$0xff]
    %v1176 = vld [vmem:[#allocation2 + $0x20] sm:$0xff]
    %v1177 = vld [vmem:[#allocation2 + $0x28] sm:$0xff]
    %v1178 = vld [vmem:[#allocation2 + $0x30] sm:$0xff]
    %v1179 = vld [vmem:[#allocation2 + $0x38] sm:$0xff]
    %v1180 = vld [vmem:[#allocation2 + $0x40] sm:$0xff]
    %v1181 = vld [vmem:[#allocation2 + $0x48] sm:$0xff]
    %v1182 = vld [vmem:[#allocation2 + $0x50] sm:$0xff]
    %v1183 = vld [vmem:[#allocation2 + $0x58] sm:$0xff]
    %v1184 = vld [vmem:[#allocation2 + $0x60] sm:$0xff]
    %v1185 = vld [vmem:[#allocation2 + $0x68] sm:$0xff]
    %v1186 = vld [vmem:[#allocation2 + $0x70] sm:$0xff]
    %v1187 = vld [vmem:[#allocation2 + $0x78] sm:$0xff]
    %v1188 = vld [vmem:[#allocation2 + $0x80] sm:$0xff]
    %v1189 = vld [vmem:[#allocation2 + $0x88] sm:$0xff]
    %v1190 = vld [vmem:[#allocation2 + $0x90] sm:$0xff]
    %v1191 = vld [vmem:[#allocation2 + $0x98] sm:$0xff]
    %v1192 = vld [vmem:[#allocation2 + $0xa0] sm:$0xff]
    %v1193 = vld [vmem:[#allocation2 + $0xa8] sm:$0xff]
    %v1194 = vld [vmem:[#allocation2 + $0xb0] sm:$0xff]
    %v1195 = vld [vmem:[#allocation2 + $0xb8] sm:$0xff]
    %v1196 = vld [vmem:[#allocation2 + $0xc0] sm:$0xff]
    %v1197 = vld [vmem:[#allocation2 + $0xc8] sm:$0xff]
    %v1198 = vld [vmem:[#allocation2 + $0xd0] sm:$0xff]
    %v1199 = vld [vmem:[#allocation2 + $0xd8] sm:$0xff]
    %v1200 = vld [vmem:[#allocation2 + $0xe0] sm:$0xff]
    %v1201 = vld [vmem:[#allocation2 + $0xe8] sm:$0xff]
    %v1202 = vld [vmem:[#allocation2 + $0xf0] sm:$0xff]
    %v1203 = vld [vmem:[#allocation2 + $0xf8] sm:$0xff]
    %v1204 = vld [vmem:[#allocation2 + $0x100] sm:$0xff]
    %v1205 = vld [vmem:[#allocation2 + $0x108] sm:$0xff]
    %v1206 = vld [vmem:[#allocation2 + $0x110] sm:$0xff]
    %v1207 = vld [vmem:[#allocation2 + $0x118] sm:$0xff]
    %v1208 = vld [vmem:[#allocation2 + $0x120] sm:$0x1]
    %v1209 = vld [vmem:[#allocation2 + $0x128] sm:$0x1]
    %v1210 = vld [vmem:[#allocation2 + $0x130] sm:$0x1]
    %v1211 = vld [vmem:[#allocation2 + $0x138] sm:$0x1]
    %v1212 = vld [vmem:[#allocation2 + $0x140] sm:$0x1]
    %v1213 = vld [vmem:[#allocation2 + $0x148] sm:$0x1]
    %v1214 = vld [vmem:[#allocation2 + $0x150] sm:$0x1]
    %v1215 = vld [vmem:[#allocation2 + $0x158] sm:$0x1]
    %v1216 = vld [vmem:[#allocation2 + $0x160] sm:$0x1]
    %v1217 = vld [vmem:[%s1] sm:$0x3]
    %v1218 = vld [vmem:[%s3] sm:$0x3]
    %v1220 = vlaneseq
    %v1221 = vshrl.u32 %v1220, 7
    %v1222 = vsub.s32 0, %v1221
    %v1223 = vrot.slane %v1217, %v1222
    %v1224 = vlaneseq
    %v1225 = vshrl.u32 %v1224, 7
    %v1226 = vsub.s32 1, %v1225
    %v1227 = vrot.slane %v1217, %v1226
    %1230 = vmatprep.subr.mxu0 0.0
    %1231 = vmatpush1.msra.mxu0 %v312
    %1232 = vmatprep.subr.mxu0 0.0
    %1233 = vmatpush1.msra.mxu0 %v313
    %1234 = vmatprep.subr.mxu0 0.0
    %1235 = vmatpush1.msra.mxu0 %v314
    %1236 = vmatprep.subr.mxu0 0.0
    %1237 = vmatpush1.msra.mxu0 %v315
    %1238 = vmatprep.subr.mxu0 0.0
    %1239 = vmatpush1.msra.mxu0 %v316
    %1240 = vmatprep.subr.mxu0 0.0
    %1241 = vmatpush1.msra.mxu0 %v317
    %1242 = vmatprep.subr.mxu0 0.0
    %1243 = vmatpush1.msra.mxu0 %v318
    %1244 = vmatprep.subr.mxu0 0.0
    %1245 = vmatpush1.msra.mxu0 %v319
    %1246 = vmatprep.subr.mxu0 0.0
    %1247 = vmatpush1.msra.mxu0 %v320
    %1248 = vmatprep.subr.mxu0 0.0
    %1249 = vmatpush1.msra.mxu0 %v321
    %1250 = vmatprep.subr.mxu0 0.0
    %1251 = vmatpush1.msra.mxu0 %v322
    %1252 = vmatprep.subr.mxu0 0.0
    %1253 = vmatpush1.msra.mxu0 %v323
    %1254 = vmatprep.subr.mxu0 0.0
    %1255 = vmatpush1.msra.mxu0 %v324
    %1256 = vmatprep.subr.mxu0 0.0
    %1257 = vmatpush1.msra.mxu0 %v325
    %1258 = vmatprep.subr.mxu0 0.0
    %1259 = vmatpush1.msra.mxu0 %v326
    %1260 = vmatprep.subr.mxu0 0.0
    %1261 = vmatpush1.msra.mxu0 %v327
    %1262 = vmatprep.subr.mxu0 0.0
    %1263 = vmatpush1.msra.mxu0 %v328
    %1264 = vmatprep.subr.mxu0 0.0
    %1265 = vmatpush1.msra.mxu0 %v329
    %1266 = vmatprep.subr.mxu0 0.0
    %1267 = vmatpush1.msra.mxu0 %v330
    %1268 = vmatprep.subr.mxu0 0.0
    %1269 = vmatpush1.msra.mxu0 %v331
    %1270 = vmatprep.subr.mxu0 0.0
    %1271 = vmatpush1.msra.mxu0 %v332
    %1272 = vmatprep.subr.mxu0 0.0
    %1273 = vmatpush1.msra.mxu0 %v333
    %1274 = vmatprep.subr.mxu0 0.0
    %1275 = vmatpush1.msra.mxu0 %v334
    %1276 = vmatprep.subr.mxu0 0.0
    %1277 = vmatpush1.msra.mxu0 %v335
    %1278 = vmatprep.subr.mxu0 0.0
    %1279 = vmatpush1.msra.mxu0 %v336
    %1280 = vmatprep.subr.mxu0 0.0
    %1281 = vmatpush1.msra.mxu0 %v337
    %1282 = vmatprep.subr.mxu0 0.0
    %1283 = vmatpush1.msra.mxu0 %v338
    %1284 = vmatprep.subr.mxu0 0.0
    %1285 = vmatpush1.msra.mxu0 %v339
    %1286 = vmatprep.subr.mxu0 0.0
    %1287 = vmatpush1.msra.mxu0 %v340
    %1288 = vmatprep.subr.mxu0 0.0
    %1289 = vmatpush1.msra.mxu0 %v341
    %1290 = vmatprep.subr.mxu0 0.0
    %1291 = vmatpush1.msra.mxu0 %v342
    %1292 = vmatprep.subr.mxu0 0.0
    %1293 = vmatpush1.msra.mxu0 %v343
    %1294 = vmatprep.mubr.f32.mxu0 %v1227
    %1295 = vmatmul.mubr.f32.gmra.mrb[0].mxu0 %v1223
    %v1296 = vpop.f32.mrb[0].mxu0
    %v1297 = vadd.f32 %v344, %v1296
    %v1298 = vpop.f32.mrb[0].mxu0
    %1299 = vdwg.mxu0
    %v1301 = vlaneseq
    %v1302 = vshrl.u32 %v1301, 7
    %v1303 = vsub.s32 0, %v1302
    %v1304 = vrot.slane %v1218, %v1303
    %v1305 = vlaneseq
    %v1306 = vshrl.u32 %v1305, 7
    %v1307 = vsub.s32 1, %v1306
    %v1308 = vrot.slane %v1218, %v1307
    %1311 = vmatprep.subr.mxu0 0.0
    %1312 = vmatpush1.msra.mxu0 %v345
    %1313 = vmatprep.subr.mxu0 0.0
    %1314 = vmatpush1.msra.mxu0 %v346
    %1315 = vmatprep.subr.mxu0 0.0
    %1316 = vmatpush1.msra.mxu0 %v347
    %1317 = vmatprep.subr.mxu0 0.0
    %1318 = vmatpush1.msra.mxu0 %v348
    %1319 = vmatprep.subr.mxu0 0.0
    %1320 = vmatpush1.msra.mxu0 %v349
    %1321 = vmatprep.subr.mxu0 0.0
    %1322 = vmatpush1.msra.mxu0 %v350
    %1323 = vmatprep.subr.mxu0 0.0
    %1324 = vmatpush1.msra.mxu0 %v351
    %1325 = vmatprep.subr.mxu0 0.0
    %1326 = vmatpush1.msra.mxu0 %v352
    %1327 = vmatprep.subr.mxu0 0.0
    %1328 = vmatpush1.msra.mxu0 %v353
    %1329 = vmatprep.subr.mxu0 0.0
    %1330 = vmatpush1.msra.mxu0 %v354
    %1331 = vmatprep.subr.mxu0 0.0
    %1332 = vmatpush1.msra.mxu0 %v355
    %1333 = vmatprep.subr.mxu0 0.0
    %1334 = vmatpush1.msra.mxu0 %v356
    %1335 = vmatprep.subr.mxu0 0.0
    %1336 = vmatpush1.msra.mxu0 %v357
    %1337 = vmatprep.subr.mxu0 0.0
    %1338 = vmatpush1.msra.mxu0 %v358
    %1339 = vmatprep.subr.mxu0 0.0
    %1340 = vmatpush1.msra.mxu0 %v359
    %1341 = vmatprep.subr.mxu0 0.0
    %1342 = vmatpush1.msra.mxu0 %v360
    %1343 = vmatprep.subr.mxu0 0.0
    %1344 = vmatpush1.msra.mxu0 %v361
    %1345 = vmatprep.subr.mxu0 0.0
    %1346 = vmatpush1.msra.mxu0 %v362
    %1347 = vmatprep.subr.mxu0 0.0
    %1348 = vmatpush1.msra.mxu0 %v363
    %1349 = vmatprep.subr.mxu0 0.0
    %1350 = vmatpush1.msra.mxu0 %v364
    %1351 = vmatprep.subr.mxu0 0.0
    %1352 = vmatpush1.msra.mxu0 %v365
    %1353 = vmatprep.subr.mxu0 0.0
    %1354 = vmatpush1.msra.mxu0 %v366
    %1355 = vmatprep.subr.mxu0 0.0
    %1356 = vmatpush1.msra.mxu0 %v367
    %1357 = vmatprep.subr.mxu0 0.0
    %1358 = vmatpush1.msra.mxu0 %v368
    %1359 = vmatprep.subr.mxu0 0.0
    %1360 = vmatpush1.msra.mxu0 %v369
    %1361 = vmatprep.subr.mxu0 0.0
    %1362 = vmatpush1.msra.mxu0 %v370
    %1363 = vmatprep.subr.mxu0 0.0
    %1364 = vmatpush1.msra.mxu0 %v371
    %1365 = vmatprep.subr.mxu0 0.0
    %1366 = vmatpush1.msra.mxu0 %v372
    %1367 = vmatprep.subr.mxu0 0.0
    %1368 = vmatpush1.msra.mxu0 %v373
    %1369 = vmatprep.subr.mxu0 0.0
    %1370 = vmatpush1.msra.mxu0 %v374
    %1371 = vmatprep.subr.mxu0 0.0
    %1372 = vmatpush1.msra.mxu0 %v375
    %1373 = vmatprep.subr.mxu0 0.0
    %1374 = vmatpush1.msra.mxu0 %v376
    %1375 = vmatprep.mubr.f32.mxu0 %v1308
    %1376 = vmatmul.mubr.f32.gmra.mrb[0].mxu0 %v1304
    %v1377 = vpop.f32.mrb[0].mxu0
    %v1378 = vadd.f32 %v377, %v1377
    %v1379 = vpop.f32.mrb[0].mxu0
    %1380 = vdwg.mxu0
    %v1381 = vmax.f32 %v1297, 0.0
    %v1382 = vmax.f32 %v1378, 0.0
    %v1383 = vadd.f32 %v1297, %v1378
    %v1384 = vsub.f32 0.0, %v1383
    %v1385 = vmul.f32 %v1384, 1.442695
    %v1386 = vpow.pop %v1385
    %v1387 = vadd.f32 %v1386, 1.0
    %v1388 = vrcp.pop %v1387
    %v1389 = vmul.f32 1.0, %v1388
    %1391 = vrot.lane.b32.xlu0 %v1381, 32
    %v1392 = vpop.permute.xlu0 %1391
    %v1394 = vmul.f32 %v1389, %v1392
    %1396 = vrot.lane.b32.xlu0 %v1394, 96
    %v1397 = vpop.permute.xlu0 %1396
    %vm1398 = vcmask 261120
    %v1399 = vsel %vm1398, %v1397, 0
    %1401 = vmatprep.subr.mxu0 0.0
    %1402 = vmatpush1.msra.mxu0 %v378
    %1403 = vmatprep.subr.mxu0 0.0
    %1404 = vmatpush1.msra.mxu0 %v379
    %1405 = vmatprep.subr.mxu0 0.0
    %1406 = vmatpush1.msra.mxu0 %v380
    %1407 = vmatprep.subr.mxu0 0.0
    %1408 = vmatpush1.msra.mxu0 %v381
    %1409 = vmatprep.subr.mxu0 0.0
    %1410 = vmatpush1.msra.mxu0 0.0
    %1411 = vmatprep.subr.mxu0 0.0
    %1412 = vmatpush1.msra.mxu0 0.0
    %1413 = vmatprep.subr.mxu0 0.0
    %1414 = vmatpush1.msra.mxu0 0.0
    %1415 = vmatprep.subr.mxu0 0.0
    %1416 = vmatpush1.msra.mxu0 0.0
    %1417 = vmatprep.subr.mxu0 0.0
    %1418 = vmatpush1.msra.mxu0 0.0
    %1419 = vmatprep.subr.mxu0 0.0
    %1420 = vmatpush1.msra.mxu0 0.0
    %1421 = vmatprep.subr.mxu0 0.0
    %1422 = vmatpush1.msra.mxu0 0.0
    %1423 = vmatprep.subr.mxu0 0.0
    %1424 = vmatpush1.msra.mxu0 0.0
    %1425 = vmatprep.subr.mxu0 0.0
    %1426 = vmatpush1.msra.mxu0 0.0
    %1427 = vmatprep.subr.mxu0 0.0
    %1428 = vmatpush1.msra.mxu0 0.0
    %1429 = vmatprep.subr.mxu0 0.0
    %1430 = vmatpush1.msra.mxu0 0.0
    %1431 = vmatprep.subr.mxu0 0.0
    %1432 = vmatpush1.msra.mxu0 0.0
    %1433 = vmatprep.subr.mxu0 0.0
    %1434 = vmatpush1.msra.mxu0 0.0
    %1435 = vmatprep.subr.mxu0 0.0
    %1436 = vmatpush1.msra.mxu0 0.0
    %1437 = vmatprep.subr.mxu0 0.0
    %1438 = vmatpush1.msra.mxu0 0.0
    %1439 = vmatprep.subr.mxu0 0.0
    %1440 = vmatpush1.msra.mxu0 0.0
    %1441 = vmatprep.subr.mxu0 0.0
    %1442 = vmatpush1.msra.mxu0 0.0
    %1443 = vmatprep.subr.mxu0 0.0
    %1444 = vmatpush1.msra.mxu0 0.0
    %1445 = vmatprep.subr.mxu0 0.0
    %1446 = vmatpush1.msra.mxu0 0.0
    %1447 = vmatprep.subr.mxu0 0.0
    %1448 = vmatpush1.msra.mxu0 0.0
    %1449 = vmatprep.subr.mxu0 0.0
    %1450 = vmatpush1.msra.mxu0 0.0
    %1451 = vmatprep.subr.mxu0 0.0
    %1452 = vmatpush1.msra.mxu0 0.0
    %1453 = vmatprep.subr.mxu0 0.0
    %1454 = vmatpush1.msra.mxu0 0.0
    %1455 = vmatprep.subr.mxu0 0.0
    %1456 = vmatpush1.msra.mxu0 0.0
    %1457 = vmatprep.subr.mxu0 0.0
    %1458 = vmatpush1.msra.mxu0 0.0
    %1459 = vmatprep.subr.mxu0 0.0
    %1460 = vmatpush1.msra.mxu0 0.0
    %1461 = vmatprep.subr.mxu0 0.0
    %1462 = vmatpush1.msra.mxu0 0.0
    %1463 = vmatprep.subr.mxu0 0.0
    %1464 = vmatpush1.msra.mxu0 0.0
    %1465 = vmatprep.mubr.f32.mxu0 0.0
    %1466 = vmatmul.mubr.f32.gmra.mrb[0].mxu0 %v1399
    %v1467 = vpop.f32.mrb[0].mxu0
    %v1468 = vadd.f32 %v382, %v1467
    %v1469 = vpop.f32.mrb[0].mxu0
    %1470 = vdwg.mxu0
    %v1471 = vmax.f32 %v1468, 0.0
    %1473 = vrot.lane.b32.xlu0 %v1382, 64
    %v1474 = vpop.permute.xlu0 %1473
    %v1476 = vmul.f32 %v1389, %v1474
    %1478 = vrot.lane.b32.xlu0 %v1476, 64
    %v1479 = vpop.permute.xlu0 %1478
    %v1480 = vsel %vm1398, %v1479, 0
    %1482 = vmatprep.subr.mxu0 0.0
    %1483 = vmatpush1.msra.mxu0 %v383
    %1484 = vmatprep.subr.mxu0 0.0
    %1485 = vmatpush1.msra.mxu0 %v384
    %1486 = vmatprep.subr.mxu0 0.0
    %1487 = vmatpush1.msra.mxu0 %v385
    %1488 = vmatprep.subr.mxu0 0.0
    %1489 = vmatpush1.msra.mxu0 %v386
    %1490 = vmatprep.subr.mxu0 0.0
    %1491 = vmatpush1.msra.mxu0 0.0
    %1492 = vmatprep.subr.mxu0 0.0
    %1493 = vmatpush1.msra.mxu0 0.0
    %1494 = vmatprep.subr.mxu0 0.0
    %1495 = vmatpush1.msra.mxu0 0.0
    %1496 = vmatprep.subr.mxu0 0.0
    %1497 = vmatpush1.msra.mxu0 0.0
    %1498 = vmatprep.subr.mxu0 0.0
    %1499 = vmatpush1.msra.mxu0 0.0
    %1500 = vmatprep.subr.mxu0 0.0
    %1501 = vmatpush1.msra.mxu0 0.0
    %1502 = vmatprep.subr.mxu0 0.0
    %1503 = vmatpush1.msra.mxu0 0.0
    %1504 = vmatprep.subr.mxu0 0.0
    %1505 = vmatpush1.msra.mxu0 0.0
    %1506 = vmatprep.subr.mxu0 0.0
    %1507 = vmatpush1.msra.mxu0 0.0
    %1508 = vmatprep.subr.mxu0 0.0
    %1509 = vmatpush1.msra.mxu0 0.0
    %1510 = vmatprep.subr.mxu0 0.0
    %1511 = vmatpush1.msra.mxu0 0.0
    %1512 = vmatprep.subr.mxu0 0.0
    %1513 = vmatpush1.msra.mxu0 0.0
    %1514 = vmatprep.subr.mxu0 0.0
    %1515 = vmatpush1.msra.mxu0 0.0
    %1516 = vmatprep.subr.mxu0 0.0
    %1517 = vmatpush1.msra.mxu0 0.0
    %1518 = vmatprep.subr.mxu0 0.0
    %1519 = vmatpush1.msra.mxu0 0.0
    %1520 = vmatprep.subr.mxu0 0.0
    %1521 = vmatpush1.msra.mxu0 0.0
    %1522 = vmatprep.subr.mxu0 0.0
    %1523 = vmatpush1.msra.mxu0 0.0
    %1524 = vmatprep.subr.mxu0 0.0
    %1525 = vmatpush1.msra.mxu0 0.0
    %1526 = vmatprep.subr.mxu0 0.0
    %1527 = vmatpush1.msra.mxu0 0.0
    %1528 = vmatprep.subr.mxu0 0.0
    %1529 = vmatpush1.msra.mxu0 0.0
    %1530 = vmatprep.subr.mxu0 0.0
    %1531 = vmatpush1.msra.mxu0 0.0
    %1532 = vmatprep.subr.mxu0 0.0
    %1533 = vmatpush1.msra.mxu0 0.0
    %1534 = vmatprep.subr.mxu0 0.0
    %1535 = vmatpush1.msra.mxu0 0.0
    %1536 = vmatprep.subr.mxu0 0.0
    %1537 = vmatpush1.msra.mxu0 0.0
    %1538 = vmatprep.subr.mxu0 0.0
    %1539 = vmatpush1.msra.mxu0 0.0
    %1540 = vmatprep.subr.mxu0 0.0
    %1541 = vmatpush1.msra.mxu0 0.0
    %1542 = vmatprep.subr.mxu0 0.0
    %1543 = vmatpush1.msra.mxu0 0.0
    %1544 = vmatprep.subr.mxu0 0.0
    %1545 = vmatpush1.msra.mxu0 0.0
    %1546 = vmatprep.mubr.f32.mxu0 0.0
    %1547 = vmatmul.mubr.f32.gmra.mrb[0].mxu0 %v1480
    %v1548 = vpop.f32.mrb[0].mxu0
    %v1549 = vadd.f32 %v387, %v1548
    %v1550 = vpop.f32.mrb[0].mxu0
    %1551 = vdwg.mxu0
    %v1552 = vmax.f32 %v1549, 0.0
    %v1553 = vsel %vm1398, %v1471, 1.0
    %v1554 = vsel %vm1398, %v1552, 1.0
    %vm1555 = vcmask 269312
    %v1557 = vsel %vm1555, %v1554, 0
    %vm1559 = vcmask 1040384
    %v1561 = vsel %vm1559, %v1208, 0
    %v1564 = vsel %vm1559, %v1209, 0
    %v1567 = vsel %vm1559, %v1210, 0
    %v1570 = vsel %vm1559, %v1211, 0
    %v1573 = vsel %vm1559, %v1212, 0
    %v1576 = vsel %vm1559, %v1213, 0
    %v1579 = vsel %vm1559, %v1214, 0
    %v1582 = vsel %vm1559, %v1215, 0
    %v1585 = vsel %vm1559, %v1216, 0
    %1587 = vmatprep.subr.mxu0 %v1173
    %1588 = vmatpush1.msra.mxu0 %v1172
    %1589 = vmatprep.subr.mxu0 %v1182
    %1590 = vmatpush1.msra.mxu0 %v1181
    %1591 = vmatprep.subr.mxu0 %v1191
    %1592 = vmatpush1.msra.mxu0 %v1190
    %1593 = vmatprep.subr.mxu0 %v1200
    %1594 = vmatpush1.msra.mxu0 %v1199
    %1595 = vmatprep.subr.mxu0 %v1564
    %1596 = vmatpush1.msra.mxu0 %v1561
    %1597 = vmatprep.subr.mxu0 0.0
    %1598 = vmatpush1.msra.mxu0 0.0
    %1599 = vmatprep.subr.mxu0 0.0
    %1600 = vmatpush1.msra.mxu0 0.0
    %1601 = vmatprep.subr.mxu0 0.0
    %1602 = vmatpush1.msra.mxu0 0.0
    %1603 = vmatprep.subr.mxu0 0.0
    %1604 = vmatpush1.msra.mxu0 0.0
    %1605 = vmatprep.subr.mxu0 0.0
    %1606 = vmatpush1.msra.mxu0 0.0
    %1607 = vmatprep.subr.mxu0 0.0
    %1608 = vmatpush1.msra.mxu0 0.0
    %1609 = vmatprep.subr.mxu0 0.0
    %1610 = vmatpush1.msra.mxu0 0.0
    %1611 = vmatprep.subr.mxu0 0.0
    %1612 = vmatpush1.msra.mxu0 0.0
    %1613 = vmatprep.subr.mxu0 0.0
    %1614 = vmatpush1.msra.mxu0 0.0
    %1615 = vmatprep.subr.mxu0 0.0
    %1616 = vmatpush1.msra.mxu0 0.0
    %1617 = vmatprep.subr.mxu0 0.0
    %1618 = vmatpush1.msra.mxu0 0.0
    %1619 = vmatprep.subr.mxu0 0.0
    %1620 = vmatpush1.msra.mxu0 0.0
    %1621 = vmatprep.subr.mxu0 0.0
    %1622 = vmatpush1.msra.mxu0 0.0
    %1623 = vmatprep.subr.mxu0 0.0
    %1624 = vmatpush1.msra.mxu0 0.0
    %1625 = vmatprep.subr.mxu0 0.0
    %1626 = vmatpush1.msra.mxu0 0.0
    %1627 = vmatprep.subr.mxu0 0.0
    %1628 = vmatpush1.msra.mxu0 0.0
    %1629 = vmatprep.subr.mxu0 0.0
    %1630 = vmatpush1.msra.mxu0 0.0
    %1631 = vmatprep.subr.mxu0 0.0
    %1632 = vmatpush1.msra.mxu0 0.0
    %1633 = vmatprep.subr.mxu0 0.0
    %1634 = vmatpush1.msra.mxu0 0.0
    %1635 = vmatprep.subr.mxu0 0.0
    %1636 = vmatpush1.msra.mxu0 0.0
    %1637 = vmatprep.subr.mxu0 0.0
    %1638 = vmatpush1.msra.mxu0 0.0
    %1639 = vmatprep.subr.mxu0 0.0
    %1640 = vmatpush1.msra.mxu0 0.0
    %1641 = vmatprep.subr.mxu0 0.0
    %1642 = vmatpush1.msra.mxu0 0.0
    %1643 = vmatprep.subr.mxu0 0.0
    %1644 = vmatpush1.msra.mxu0 0.0
    %1645 = vmatprep.subr.mxu0 0.0
    %1646 = vmatpush1.msra.mxu0 0.0
    %1647 = vmatprep.subr.mxu0 0.0
    %1648 = vmatpush1.msra.mxu0 0.0
    %1649 = vmatprep.subr.mxu0 0.0
    %1650 = vmatpush1.msra.mxu0 0.0
    %1651 = vmatprep.mubr.f32.mxu0 0.0
    %1652 = vmatmul.mubr.f32.gmra.mrb[0].mxu0 %v1557
    %v1653 = vpop.f32.mrb[0].mxu0
    %v1654 = vadd.f32 0.0, %v1653
    %v1655 = vpop.f32.mrb[0].mxu0
    %v1656 = vadd.f32 0.0, %v1655
    %1657 = vdwg.mxu0
    %1658 = vmatprep.subr.mxu0 %v1175
    %1659 = vmatpush1.msra.mxu0 %v1174
    %1660 = vmatprep.subr.mxu0 %v1184
    %1661 = vmatpush1.msra.mxu0 %v1183
    %1662 = vmatprep.subr.mxu0 %v1193
    %1663 = vmatpush1.msra.mxu0 %v1192
    %1664 = vmatprep.subr.mxu0 %v1202
    %1665 = vmatpush1.msra.mxu0 %v1201
    %1666 = vmatprep.subr.mxu0 %v1570
    %1667 = vmatpush1.msra.mxu0 %v1567
    %1668 = vmatprep.subr.mxu0 0.0
    %1669 = vmatpush1.msra.mxu0 0.0
    %1670 = vmatprep.subr.mxu0 0.0
    %1671 = vmatpush1.msra.mxu0 0.0
    %1672 = vmatprep.subr.mxu0 0.0
    %1673 = vmatpush1.msra.mxu0 0.0
    %1674 = vmatprep.subr.mxu0 0.0
    %1675 = vmatpush1.msra.mxu0 0.0
    %1676 = vmatprep.subr.mxu0 0.0
    %1677 = vmatpush1.msra.mxu0 0.0
    %1678 = vmatprep.subr.mxu0 0.0
    %1679 = vmatpush1.msra.mxu0 0.0
    %1680 = vmatprep.subr.mxu0 0.0
    %1681 = vmatpush1.msra.mxu0 0.0
    %1682 = vmatprep.subr.mxu0 0.0
    %1683 = vmatpush1.msra.mxu0 0.0
    %1684 = vmatprep.subr.mxu0 0.0
    %1685 = vmatpush1.msra.mxu0 0.0
    %1686 = vmatprep.subr.mxu0 0.0
    %1687 = vmatpush1.msra.mxu0 0.0
    %1688 = vmatprep.subr.mxu0 0.0
    %1689 = vmatpush1.msra.mxu0 0.0
    %1690 = vmatprep.subr.mxu0 0.0
    %1691 = vmatpush1.msra.mxu0 0.0
    %1692 = vmatprep.subr.mxu0 0.0
    %1693 = vmatpush1.msra.mxu0 0.0
    %1694 = vmatprep.subr.mxu0 0.0
    %1695 = vmatpush1.msra.mxu0 0.0
    %1696 = vmatprep.subr.mxu0 0.0
    %1697 = vmatpush1.msra.mxu0 0.0
    %1698 = vmatprep.subr.mxu0 0.0
    %1699 = vmatpush1.msra.mxu0 0.0
    %1700 = vmatprep.subr.mxu0 0.0
    %1701 = vmatpush1.msra.mxu0 0.0
    %1702 = vmatprep.subr.mxu0 0.0
    %1703 = vmatpush1.msra.mxu0 0.0
    %1704 = vmatprep.subr.mxu0 0.0
    %1705 = vmatpush1.msra.mxu0 0.0
    %1706 = vmatprep.subr.mxu0 0.0
    %1707 = vmatpush1.msra.mxu0 0.0
    %1708 = vmatprep.subr.mxu0 0.0
    %1709 = vmatpush1.msra.mxu0 0.0
    %1710 = vmatprep.subr.mxu0 0.0
    %1711 = vmatpush1.msra.mxu0 0.0
    %1712 = vmatprep.subr.mxu0 0.0
    %1713 = vmatpush1.msra.mxu0 0.0
    %1714 = vmatprep.subr.mxu0 0.0
    %1715 = vmatpush1.msra.mxu0 0.0
    %1716 = vmatprep.subr.mxu0 0.0
    %1717 = vmatpush1.msra.mxu0 0.0
    %1718 = vmatprep.subr.mxu0 0.0
    %1719 = vmatpush1.msra.mxu0 0.0
    %1720 = vmatprep.subr.mxu0 0.0
    %1721 = vmatpush1.msra.mxu0 0.0
    %1722 = vmatprep.mubr.f32.mxu0 0.0
    %1723 = vmatmul.mubr.f32.gmra.mrb[0].mxu0 %v1557
    %v1724 = vpop.f32.mrb[0].mxu0
    %v1725 = vadd.f32 0.0, %v1724
    %v1726 = vpop.f32.mrb[0].mxu0
    %v1727 = vadd.f32 0.0, %v1726
    %1728 = vdwg.mxu0
    %1729 = vmatprep.subr.mxu0 %v1177
    %1730 = vmatpush1.msra.mxu0 %v1176
    %1731 = vmatprep.subr.mxu0 %v1186
    %1732 = vmatpush1.msra.mxu0 %v1185
    %1733 = vmatprep.subr.mxu0 %v1195
    %1734 = vmatpush1.msra.mxu0 %v1194
    %1735 = vmatprep.subr.mxu0 %v1204
    %1736 = vmatpush1.msra.mxu0 %v1203
    %1737 = vmatprep.subr.mxu0 %v1576
    %1738 = vmatpush1.msra.mxu0 %v1573
    %1739 = vmatprep.subr.mxu0 0.0
    %1740 = vmatpush1.msra.mxu0 0.0
    %1741 = vmatprep.subr.mxu0 0.0
    %1742 = vmatpush1.msra.mxu0 0.0
    %1743 = vmatprep.subr.mxu0 0.0
    %1744 = vmatpush1.msra.mxu0 0.0
    %1745 = vmatprep.subr.mxu0 0.0
    %1746 = vmatpush1.msra.mxu0 0.0
    %1747 = vmatprep.subr.mxu0 0.0
    %1748 = vmatpush1.msra.mxu0 0.0
    %1749 = vmatprep.subr.mxu0 0.0
    %1750 = vmatpush1.msra.mxu0 0.0
    %1751 = vmatprep.subr.mxu0 0.0
    %1752 = vmatpush1.msra.mxu0 0.0
    %1753 = vmatprep.subr.mxu0 0.0
    %1754 = vmatpush1.msra.mxu0 0.0
    %1755 = vmatprep.subr.mxu0 0.0
    %1756 = vmatpush1.msra.mxu0 0.0
    %1757 = vmatprep.subr.mxu0 0.0
    %1758 = vmatpush1.msra.mxu0 0.0
    %1759 = vmatprep.subr.mxu0 0.0
    %1760 = vmatpush1.msra.mxu0 0.0
    %1761 = vmatprep.subr.mxu0 0.0
    %1762 = vmatpush1.msra.mxu0 0.0
    %1763 = vmatprep.subr.mxu0 0.0
    %1764 = vmatpush1.msra.mxu0 0.0
    %1765 = vmatprep.subr.mxu0 0.0
    %1766 = vmatpush1.msra.mxu0 0.0
    %1767 = vmatprep.subr.mxu0 0.0
    %1768 = vmatpush1.msra.mxu0 0.0
    %1769 = vmatprep.subr.mxu0 0.0
    %1770 = vmatpush1.msra.mxu0 0.0
    %1771 = vmatprep.subr.mxu0 0.0
    %1772 = vmatpush1.msra.mxu0 0.0
    %1773 = vmatprep.subr.mxu0 0.0
    %1774 = vmatpush1.msra.mxu0 0.0
    %1775 = vmatprep.subr.mxu0 0.0
    %1776 = vmatpush1.msra.mxu0 0.0
    %1777 = vmatprep.subr.mxu0 0.0
    %1778 = vmatpush1.msra.mxu0 0.0
    %1779 = vmatprep.subr.mxu0 0.0
    %1780 = vmatpush1.msra.mxu0 0.0
    %1781 = vmatprep.subr.mxu0 0.0
    %1782 = vmatpush1.msra.mxu0 0.0
    %1783 = vmatprep.subr.mxu0 0.0
    %1784 = vmatpush1.msra.mxu0 0.0
    %1785 = vmatprep.subr.mxu0 0.0
    %1786 = vmatpush1.msra.mxu0 0.0
    %1787 = vmatprep.subr.mxu0 0.0
    %1788 = vmatpush1.msra.mxu0 0.0
    %1789 = vmatprep.subr.mxu0 0.0
    %1790 = vmatpush1.msra.mxu0 0.0
    %1791 = vmatprep.subr.mxu0 0.0
    %1792 = vmatpush1.msra.mxu0 0.0
    %1793 = vmatprep.mubr.f32.mxu0 0.0
    %1794 = vmatmul.mubr.f32.gmra.mrb[0].mxu0 %v1557
    %v1795 = vpop.f32.mrb[0].mxu0
    %v1796 = vadd.f32 0.0, %v1795
    %v1797 = vpop.f32.mrb[0].mxu0
    %v1798 = vadd.f32 0.0, %v1797
    %1799 = vdwg.mxu0
    %1800 = vmatprep.subr.mxu0 %v1179
    %1801 = vmatpush1.msra.mxu0 %v1178
    %1802 = vmatprep.subr.mxu0 %v1188
    %1803 = vmatpush1.msra.mxu0 %v1187
    %1804 = vmatprep.subr.mxu0 %v1197
    %1805 = vmatpush1.msra.mxu0 %v1196
    %1806 = vmatprep.subr.mxu0 %v1206
    %1807 = vmatpush1.msra.mxu0 %v1205
    %1808 = vmatprep.subr.mxu0 %v1582
    %1809 = vmatpush1.msra.mxu0 %v1579
    %1810 = vmatprep.subr.mxu0 0.0
    %1811 = vmatpush1.msra.mxu0 0.0
    %1812 = vmatprep.subr.mxu0 0.0
    %1813 = vmatpush1.msra.mxu0 0.0
    %1814 = vmatprep.subr.mxu0 0.0
    %1815 = vmatpush1.msra.mxu0 0.0
    %1816 = vmatprep.subr.mxu0 0.0
    %1817 = vmatpush1.msra.mxu0 0.0
    %1818 = vmatprep.subr.mxu0 0.0
    %1819 = vmatpush1.msra.mxu0 0.0
    %1820 = vmatprep.subr.mxu0 0.0
    %1821 = vmatpush1.msra.mxu0 0.0
    %1822 = vmatprep.subr.mxu0 0.0
    %1823 = vmatpush1.msra.mxu0 0.0
    %1824 = vmatprep.subr.mxu0 0.0
    %1825 = vmatpush1.msra.mxu0 0.0
    %1826 = vmatprep.subr.mxu0 0.0
    %1827 = vmatpush1.msra.mxu0 0.0
    %1828 = vmatprep.subr.mxu0 0.0
    %1829 = vmatpush1.msra.mxu0 0.0
    %1830 = vmatprep.subr.mxu0 0.0
    %1831 = vmatpush1.msra.mxu0 0.0
    %1832 = vmatprep.subr.mxu0 0.0
    %1833 = vmatpush1.msra.mxu0 0.0
    %1834 = vmatprep.subr.mxu0 0.0
    %1835 = vmatpush1.msra.mxu0 0.0
    %1836 = vmatprep.subr.mxu0 0.0
    %1837 = vmatpush1.msra.mxu0 0.0
    %1838 = vmatprep.subr.mxu0 0.0
    %1839 = vmatpush1.msra.mxu0 0.0
    %1840 = vmatprep.subr.mxu0 0.0
    %1841 = vmatpush1.msra.mxu0 0.0
    %1842 = vmatprep.subr.mxu0 0.0
    %1843 = vmatpush1.msra.mxu0 0.0
    %1844 = vmatprep.subr.mxu0 0.0
    %1845 = vmatpush1.msra.mxu0 0.0
    %1846 = vmatprep.subr.mxu0 0.0
    %1847 = vmatpush1.msra.mxu0 0.0
    %1848 = vmatprep.subr.mxu0 0.0
    %1849 = vmatpush1.msra.mxu0 0.0
    %1850 = vmatprep.subr.mxu0 0.0
    %1851 = vmatpush1.msra.mxu0 0.0
    %1852 = vmatprep.subr.mxu0 0.0
    %1853 = vmatpush1.msra.mxu0 0.0
    %1854 = vmatprep.subr.mxu0 0.0
    %1855 = vmatpush1.msra.mxu0 0.0
    %1856 = vmatprep.subr.mxu0 0.0
    %1857 = vmatpush1.msra.mxu0 0.0
    %1858 = vmatprep.subr.mxu0 0.0
    %1859 = vmatpush1.msra.mxu0 0.0
    %1860 = vmatprep.subr.mxu0 0.0
    %1861 = vmatpush1.msra.mxu0 0.0
    %1862 = vmatprep.subr.mxu0 0.0
    %1863 = vmatpush1.msra.mxu0 0.0
    %1864 = vmatprep.mubr.f32.mxu0 0.0
    %1865 = vmatmul.mubr.f32.gmra.mrb[0].mxu0 %v1557
    %v1866 = vpop.f32.mrb[0].mxu0
    %v1867 = vadd.f32 0.0, %v1866
    %v1868 = vpop.f32.mrb[0].mxu0
    %v1869 = vadd.f32 0.0, %v1868
    %1870 = vdwg.mxu0
    %1871 = vmatprep.subr.mxu0 0.0
    %1872 = vmatpush1.msra.mxu0 %v1180
    %1873 = vmatprep.subr.mxu0 0.0
    %1874 = vmatpush1.msra.mxu0 %v1189
    %1875 = vmatprep.subr.mxu0 0.0
    %1876 = vmatpush1.msra.mxu0 %v1198
    %1877 = vmatprep.subr.mxu0 0.0
    %1878 = vmatpush1.msra.mxu0 %v1207
    %1879 = vmatprep.subr.mxu0 0.0
    %1880 = vmatpush1.msra.mxu0 %v1585
    %1881 = vmatprep.subr.mxu0 0.0
    %1882 = vmatpush1.msra.mxu0 0.0
    %1883 = vmatprep.subr.mxu0 0.0
    %1884 = vmatpush1.msra.mxu0 0.0
    %1885 = vmatprep.subr.mxu0 0.0
    %1886 = vmatpush1.msra.mxu0 0.0
    %1887 = vmatprep.subr.mxu0 0.0
    %1888 = vmatpush1.msra.mxu0 0.0
    %1889 = vmatprep.subr.mxu0 0.0
    %1890 = vmatpush1.msra.mxu0 0.0
    %1891 = vmatprep.subr.mxu0 0.0
    %1892 = vmatpush1.msra.mxu0 0.0
    %1893 = vmatprep.subr.mxu0 0.0
    %1894 = vmatpush1.msra.mxu0 0.0
    %1895 = vmatprep.subr.mxu0 0.0
    %1896 = vmatpush1.msra.mxu0 0.0
    %1897 = vmatprep.subr.mxu0 0.0
    %1898 = vmatpush1.msra.mxu0 0.0
    %1899 = vmatprep.subr.mxu0 0.0
    %1900 = vmatpush1.msra.mxu0 0.0
    %1901 = vmatprep.subr.mxu0 0.0
    %1902 = vmatpush1.msra.mxu0 0.0
    %1903 = vmatprep.subr.mxu0 0.0
    %1904 = vmatpush1.msra.mxu0 0.0
    %1905 = vmatprep.subr.mxu0 0.0
    %1906 = vmatpush1.msra.mxu0 0.0
    %1907 = vmatprep.subr.mxu0 0.0
    %1908 = vmatpush1.msra.mxu0 0.0
    %1909 = vmatprep.subr.mxu0 0.0
    %1910 = vmatpush1.msra.mxu0 0.0
    %1911 = vmatprep.subr.mxu0 0.0
    %1912 = vmatpush1.msra.mxu0 0.0
    %1913 = vmatprep.subr.mxu0 0.0
    %1914 = vmatpush1.msra.mxu0 0.0
    %1915 = vmatprep.subr.mxu0 0.0
    %1916 = vmatpush1.msra.mxu0 0.0
    %1917 = vmatprep.subr.mxu0 0.0
    %1918 = vmatpush1.msra.mxu0 0.0
    %1919 = vmatprep.subr.mxu0 0.0
    %1920 = vmatpush1.msra.mxu0 0.0
    %1921 = vmatprep.subr.mxu0 0.0
    %1922 = vmatpush1.msra.mxu0 0.0
    %1923 = vmatprep.subr.mxu0 0.0
    %1924 = vmatpush1.msra.mxu0 0.0
    %1925 = vmatprep.subr.mxu0 0.0
    %1926 = vmatpush1.msra.mxu0 0.0
    %1927 = vmatprep.subr.mxu0 0.0
    %1928 = vmatpush1.msra.mxu0 0.0
    %1929 = vmatprep.subr.mxu0 0.0
    %1930 = vmatpush1.msra.mxu0 0.0
    %1931 = vmatprep.subr.mxu0 0.0
    %1932 = vmatpush1.msra.mxu0 0.0
    %1933 = vmatprep.subr.mxu0 0.0
    %1934 = vmatpush1.msra.mxu0 0.0
    %1935 = vmatprep.mubr.f32.mxu0 0.0
    %1936 = vmatmul.mubr.f32.gmra.mrb[0].mxu0 %v1557
    %v1937 = vpop.f32.mrb[0].mxu0
    %v1938 = vadd.f32 0.0, %v1937
    %v1939 = vpop.f32.mrb[0].mxu0
    %1940 = vdwg.mxu0
    %v1941 = vlaneseq
    %v1942 = vshrl.u32 %v1941, 7
    %v1943 = vadd.s32 %v1942, 8
    %v1944 = vadd.s32 %v1942, 16
    %v1945 = vadd.s32 %v1942, 24
    %v1946 = vadd.s32 %v1942, 32
    %v1947 = vlaneseq
    %v1948 = vand.u32 %v1947, 127
    %v1949 = vadd.s32 %v1948, 128
    %v1950 = vadd.s32 %v1948, 256
    %v1951 = vadd.s32 %v1948, 384
    %v1952 = vadd.s32 %v1948, 512
    %v1953 = vadd.s32 %v1948, 640
    %v1954 = vadd.s32 %v1948, 768
    %v1955 = vadd.s32 %v1948, 896
    %v1956 = vadd.s32 %v1948, 1024
    %v1957 = vmul.u32 %v1942, 33
    %v1958 = vmul.u32 %v1943, 33
    %v1959 = vmul.u32 %v1944, 33
    %v1960 = vmul.u32 %v1945, 33
    %v1961 = vmul.u32 %v1946, 33
    %vm1962 = vcmp.ge.s32.totalorder %v1948, %v1957
    %vm1963 = vcmp.ge.s32.totalorder %v1949, %v1957
    %vm1964 = vcmp.ge.s32.totalorder %v1950, %v1957
    %vm1965 = vcmp.ge.s32.totalorder %v1951, %v1957
    %vm1966 = vcmp.ge.s32.totalorder %v1952, %v1957
    %vm1967 = vcmp.ge.s32.totalorder %v1953, %v1957
    %vm1968 = vcmp.ge.s32.totalorder %v1954, %v1957
    %vm1969 = vcmp.ge.s32.totalorder %v1955, %v1957
    %vm1970 = vcmp.ge.s32.totalorder %v1956, %v1957
    %vm1971 = vcmp.ge.s32.totalorder %v1948, %v1958
    %vm1972 = vcmp.ge.s32.totalorder %v1949, %v1958
    %vm1973 = vcmp.ge.s32.totalorder %v1950, %v1958
    %vm1974 = vcmp.ge.s32.totalorder %v1951, %v1958
    %vm1975 = vcmp.ge.s32.totalorder %v1952, %v1958
    %vm1976 = vcmp.ge.s32.totalorder %v1953, %v1958
    %vm1977 = vcmp.ge.s32.totalorder %v1954, %v1958
    %vm1978 = vcmp.ge.s32.totalorder %v1955, %v1958
    %vm1979 = vcmp.ge.s32.totalorder %v1956, %v1958
    %vm1980 = vcmp.ge.s32.totalorder %v1948, %v1959
    %vm1981 = vcmp.ge.s32.totalorder %v1949, %v1959
    %vm1982 = vcmp.ge.s32.totalorder %v1950, %v1959
    %vm1983 = vcmp.ge.s32.totalorder %v1951, %v1959
    %vm1984 = vcmp.ge.s32.totalorder %v1952, %v1959
    %vm1985 = vcmp.ge.s32.totalorder %v1953, %v1959
    %vm1986 = vcmp.ge.s32.totalorder %v1954, %v1959
    %vm1987 = vcmp.ge.s32.totalorder %v1955, %v1959
    %vm1988 = vcmp.ge.s32.totalorder %v1956, %v1959
    %vm1989 = vcmp.ge.s32.totalorder %v1948, %v1960
    %vm1990 = vcmp.ge.s32.totalorder %v1949, %v1960
    %vm1991 = vcmp.ge.s32.totalorder %v1950, %v1960
    %vm1992 = vcmp.ge.s32.totalorder %v1951, %v1960
    %vm1993 = vcmp.ge.s32.totalorder %v1952, %v1960
    %vm1994 = vcmp.ge.s32.totalorder %v1953, %v1960
    %vm1995 = vcmp.ge.s32.totalorder %v1954, %v1960
    %vm1996 = vcmp.ge.s32.totalorder %v1955, %v1960
    %vm1997 = vcmp.ge.s32.totalorder %v1956, %v1960
    %vm1998 = vcmp.ge.s32.totalorder %v1948, %v1961
    %vm1999 = vcmp.ge.s32.totalorder %v1949, %v1961
    %vm2000 = vcmp.ge.s32.totalorder %v1950, %v1961
    %vm2001 = vcmp.ge.s32.totalorder %v1951, %v1961
    %vm2002 = vcmp.ge.s32.totalorder %v1952, %v1961
    %vm2003 = vcmp.ge.s32.totalorder %v1953, %v1961
    %vm2004 = vcmp.ge.s32.totalorder %v1954, %v1961
    %vm2005 = vcmp.ge.s32.totalorder %v1955, %v1961
    %vm2006 = vcmp.ge.s32.totalorder %v1956, %v1961
    %v2007 = vadd.s32 %v1957, 33
    %v2008 = vadd.s32 %v1958, 33
    %v2009 = vadd.s32 %v1959, 33
    %v2010 = vadd.s32 %v1960, 33
    %v2011 = vadd.s32 %v1961, 33
    %vm2012 = vcmp.lt.s32.totalorder %v1948, %v2007
    %vm2013 = vcmp.lt.s32.totalorder %v1949, %v2007
    %vm2014 = vcmp.lt.s32.totalorder %v1950, %v2007
    %vm2015 = vcmp.lt.s32.totalorder %v1951, %v2007
    %vm2016 = vcmp.lt.s32.totalorder %v1952, %v2007
    %vm2017 = vcmp.lt.s32.totalorder %v1953, %v2007
    %vm2018 = vcmp.lt.s32.totalorder %v1954, %v2007
    %vm2019 = vcmp.lt.s32.totalorder %v1955, %v2007
    %vm2020 = vcmp.lt.s32.totalorder %v1956, %v2007
    %vm2021 = vcmp.lt.s32.totalorder %v1948, %v2008
    %vm2022 = vcmp.lt.s32.totalorder %v1949, %v2008
    %vm2023 = vcmp.lt.s32.totalorder %v1950, %v2008
    %vm2024 = vcmp.lt.s32.totalorder %v1951, %v2008
    %vm2025 = vcmp.lt.s32.totalorder %v1952, %v2008
    %vm2026 = vcmp.lt.s32.totalorder %v1953, %v2008
    %vm2027 = vcmp.lt.s32.totalorder %v1954, %v2008
    %vm2028 = vcmp.lt.s32.totalorder %v1955, %v2008
    %vm2029 = vcmp.lt.s32.totalorder %v1956, %v2008
    %vm2030 = vcmp.lt.s32.totalorder %v1948, %v2009
    %vm2031 = vcmp.lt.s32.totalorder %v1949, %v2009
    %vm2032 = vcmp.lt.s32.totalorder %v1950, %v2009
    %vm2033 = vcmp.lt.s32.totalorder %v1951, %v2009
    %vm2034 = vcmp.lt.s32.totalorder %v1952, %v2009
    %vm2035 = vcmp.lt.s32.totalorder %v1953, %v2009
    %vm2036 = vcmp.lt.s32.totalorder %v1954, %v2009
    %vm2037 = vcmp.lt.s32.totalorder %v1955, %v2009
    %vm2038 = vcmp.lt.s32.totalorder %v1956, %v2009
    %vm2039 = vcmp.lt.s32.totalorder %v1948, %v2010
    %vm2040 = vcmp.lt.s32.totalorder %v1949, %v2010
    %vm2041 = vcmp.lt.s32.totalorder %v1950, %v2010
    %vm2042 = vcmp.lt.s32.totalorder %v1951, %v2010
    %vm2043 = vcmp.lt.s32.totalorder %v1952, %v2010
    %vm2044 = vcmp.lt.s32.totalorder %v1953, %v2010
    %vm2045 = vcmp.lt.s32.totalorder %v1954, %v2010
    %vm2046 = vcmp.lt.s32.totalorder %v1955, %v2010
    %vm2047 = vcmp.lt.s32.totalorder %v1956, %v2010
    %vm2048 = vcmp.lt.s32.totalorder %v1948, %v2011
    %vm2049 = vcmp.lt.s32.totalorder %v1949, %v2011
    %vm2050 = vcmp.lt.s32.totalorder %v1950, %v2011
    %vm2051 = vcmp.lt.s32.totalorder %v1951, %v2011
    %vm2052 = vcmp.lt.s32.totalorder %v1952, %v2011
    %vm2053 = vcmp.lt.s32.totalorder %v1953, %v2011
    %vm2054 = vcmp.lt.s32.totalorder %v1954, %v2011
    %vm2055 = vcmp.lt.s32.totalorder %v1955, %v2011
    %vm2056 = vcmp.lt.s32.totalorder %v1956, %v2011
    %vm2057 = vmand %vm1962, %vm2012
    %vm2058 = vmand %vm1963, %vm2013
    %vm2059 = vmand %vm1964, %vm2014
    %vm2060 = vmand %vm1965, %vm2015
    %vm2061 = vmand %vm1966, %vm2016
    %vm2062 = vmand %vm1967, %vm2017
    %vm2063 = vmand %vm1968, %vm2018
    %vm2064 = vmand %vm1969, %vm2019
    %vm2065 = vmand %vm1970, %vm2020
    %vm2066 = vmand %vm1971, %vm2021
    %vm2067 = vmand %vm1972, %vm2022
    %vm2068 = vmand %vm1973, %vm2023
    %vm2069 = vmand %vm1974, %vm2024
    %vm2070 = vmand %vm1975, %vm2025
    %vm2071 = vmand %vm1976, %vm2026
    %vm2072 = vmand %vm1977, %vm2027
    %vm2073 = vmand %vm1978, %vm2028
    %vm2074 = vmand %vm1979, %vm2029
    %vm2075 = vmand %vm1980, %vm2030
    %vm2076 = vmand %vm1981, %vm2031
    %vm2077 = vmand %vm1982, %vm2032
    %vm2078 = vmand %vm1983, %vm2033
    %vm2079 = vmand %vm1984, %vm2034
    %vm2080 = vmand %vm1985, %vm2035
    %vm2081 = vmand %vm1986, %vm2036
    %vm2082 = vmand %vm1987, %vm2037
    %vm2083 = vmand %vm1988, %vm2038
    %vm2084 = vmand %vm1989, %vm2039
    %vm2085 = vmand %vm1990, %vm2040
    %vm2086 = vmand %vm1991, %vm2041
    %vm2087 = vmand %vm1992, %vm2042
    %vm2088 = vmand %vm1993, %vm2043
    %vm2089 = vmand %vm1994, %vm2044
    %vm2090 = vmand %vm1995, %vm2045
    %vm2091 = vmand %vm1996, %vm2046
    %vm2092 = vmand %vm1997, %vm2047
    %vm2093 = vmand %vm1998, %vm2048
    %vm2094 = vmand %vm1999, %vm2049
    %vm2095 = vmand %vm2000, %vm2050
    %vm2096 = vmand %vm2001, %vm2051
    %vm2097 = vmand %vm2002, %vm2052
    %vm2098 = vmand %vm2003, %vm2053
    %vm2099 = vmand %vm2004, %vm2054
    %vm2100 = vmand %vm2005, %vm2055
    %vm2101 = vmand %vm2006, %vm2056
    %v2102 = vlaneseq
    %v2103 = vshrl.u32 %v2102, 7
    %v2104 = vsub.s32 0, %v2103
    %v2105 = vrot.slane %v1654, %v2104
    %v2106 = vlaneseq
    %v2107 = vshrl.u32 %v2106, 7
    %v2108 = vsub.s32 0, %v2107
    %v2109 = vrot.slane %v1656, %v2108
    %v2110 = vlaneseq
    %v2111 = vshrl.u32 %v2110, 7
    %v2112 = vsub.s32 0, %v2111
    %v2113 = vrot.slane %v1725, %v2112
    %v2114 = vlaneseq
    %v2115 = vshrl.u32 %v2114, 7
    %v2116 = vsub.s32 0, %v2115
    %v2117 = vrot.slane %v1727, %v2116
    %v2118 = vlaneseq
    %v2119 = vshrl.u32 %v2118, 7
    %v2120 = vsub.s32 0, %v2119
    %v2121 = vrot.slane %v1796, %v2120
    %v2122 = vlaneseq
    %v2123 = vshrl.u32 %v2122, 7
    %v2124 = vsub.s32 0, %v2123
    %v2125 = vrot.slane %v1798, %v2124
    %v2126 = vlaneseq
    %v2127 = vshrl.u32 %v2126, 7
    %v2128 = vsub.s32 0, %v2127
    %v2129 = vrot.slane %v1867, %v2128
    %v2130 = vlaneseq
    %v2131 = vshrl.u32 %v2130, 7
    %v2132 = vsub.s32 0, %v2131
    %v2133 = vrot.slane %v1869, %v2132
    %v2134 = vlaneseq
    %v2135 = vshrl.u32 %v2134, 7
    %v2136 = vsub.s32 0, %v2135
    %v2137 = vrot.slane %v1938, %v2136
    %v2138 = vsel %vm2057, %v2105, 0.0
    %v2139 = vsel %vm2058, %v2109, 0.0
    %v2140 = vsel %vm2059, %v2113, 0.0
    %v2141 = vsel %vm2060, %v2117, 0.0
    %v2142 = vsel %vm2061, %v2121, 0.0
    %v2143 = vsel %vm2062, %v2125, 0.0
    %v2144 = vsel %vm2063, %v2129, 0.0
    %v2145 = vsel %vm2064, %v2133, 0.0
    %v2146 = vsel %vm2065, %v2137, 0.0
    %v2147 = vsel %vm2066, %v2105, 0.0
    %v2148 = vsel %vm2067, %v2109, 0.0
    %v2149 = vsel %vm2068, %v2113, 0.0
    %v2150 = vsel %vm2069, %v2117, 0.0
    %v2151 = vsel %vm2070, %v2121, 0.0
    %v2152 = vsel %vm2071, %v2125, 0.0
    %v2153 = vsel %vm2072, %v2129, 0.0
    %v2154 = vsel %vm2073, %v2133, 0.0
    %v2155 = vsel %vm2074, %v2137, 0.0
    %v2156 = vsel %vm2075, %v2105, 0.0
    %v2157 = vsel %vm2076, %v2109, 0.0
    %v2158 = vsel %vm2077, %v2113, 0.0
    %v2159 = vsel %vm2078, %v2117, 0.0
    %v2160 = vsel %vm2079, %v2121, 0.0
    %v2161 = vsel %vm2080, %v2125, 0.0
    %v2162 = vsel %vm2081, %v2129, 0.0
    %v2163 = vsel %vm2082, %v2133, 0.0
    %v2164 = vsel %vm2083, %v2137, 0.0
    %v2165 = vsel %vm2084, %v2105, 0.0
    %v2166 = vsel %vm2085, %v2109, 0.0
    %v2167 = vsel %vm2086, %v2113, 0.0
    %v2168 = vsel %vm2087, %v2117, 0.0
    %v2169 = vsel %vm2088, %v2121, 0.0
    %v2170 = vsel %vm2089, %v2125, 0.0
    %v2171 = vsel %vm2090, %v2129, 0.0
    %v2172 = vsel %vm2091, %v2133, 0.0
    %v2173 = vsel %vm2092, %v2137, 0.0
    %v2174 = vsel %vm2093, %v2105, 0.0
    %v2175 = vsel %vm2094, %v2109, 0.0
    %v2176 = vsel %vm2095, %v2113, 0.0
    %v2177 = vsel %vm2096, %v2117, 0.0
    %v2178 = vsel %vm2097, %v2121, 0.0
    %v2179 = vsel %vm2098, %v2125, 0.0
    %v2180 = vsel %vm2099, %v2129, 0.0
    %v2181 = vsel %vm2100, %v2133, 0.0
    %v2182 = vsel %vm2101, %v2137, 0.0
    %2183 = vmatprep.subr.mxu0 %v389
    %2184 = vmatpush1.msra.mxu0 %v388
    %2185 = vmatprep.subr.mxu0 %v391
    %2186 = vmatpush1.msra.mxu0 %v390
    %2187 = vmatprep.subr.mxu0 %v393
    %2188 = vmatpush1.msra.mxu0 %v392
    %2189 = vmatprep.subr.mxu0 %v395
    %2190 = vmatpush1.msra.mxu0 %v394
    %2191 = vmatprep.subr.mxu0 %v397
    %2192 = vmatpush1.msra.mxu0 %v396
    %2193 = vmatprep.subr.mxu0 %v399
    %2194 = vmatpush1.msra.mxu0 %v398
    %2195 = vmatprep.subr.mxu0 %v401
    %2196 = vmatpush1.msra.mxu0 %v400
    %2197 = vmatprep.subr.mxu0 %v403
    %2198 = vmatpush1.msra.mxu0 %v402
    %2199 = vmatprep.subr.mxu0 %v405
    %2200 = vmatpush1.msra.mxu0 %v404
    %2201 = vmatprep.subr.mxu0 %v407
    %2202 = vmatpush1.msra.mxu0 %v406
    %2203 = vmatprep.subr.mxu0 %v409
    %2204 = vmatpush1.msra.mxu0 %v408
    %2205 = vmatprep.subr.mxu0 %v411
    %2206 = vmatpush1.msra.mxu0 %v410
    %2207 = vmatprep.subr.mxu0 %v413
    %2208 = vmatpush1.msra.mxu0 %v412
    %2209 = vmatprep.subr.mxu0 %v415
    %2210 = vmatpush1.msra.mxu0 %v414
    %2211 = vmatprep.subr.mxu0 %v417
    %2212 = vmatpush1.msra.mxu0 %v416
    %2213 = vmatprep.subr.mxu0 %v419
    %2214 = vmatpush1.msra.mxu0 %v418
    %2215 = vmatprep.subr.mxu0 %v421
    %2216 = vmatpush1.msra.mxu0 %v420
    %2217 = vmatprep.subr.mxu0 %v423
    %2218 = vmatpush1.msra.mxu0 %v422
    %2219 = vmatprep.subr.mxu0 %v425
    %2220 = vmatpush1.msra.mxu0 %v424
    %2221 = vmatprep.subr.mxu0 %v427
    %2222 = vmatpush1.msra.mxu0 %v426
    %2223 = vmatprep.subr.mxu0 %v429
    %2224 = vmatpush1.msra.mxu0 %v428
    %2225 = vmatprep.subr.mxu0 %v431
    %2226 = vmatpush1.msra.mxu0 %v430
    %2227 = vmatprep.subr.mxu0 %v433
    %2228 = vmatpush1.msra.mxu0 %v432
    %2229 = vmatprep.subr.mxu0 %v435
    %2230 = vmatpush1.msra.mxu0 %v434
    %2231 = vmatprep.subr.mxu0 %v437
    %2232 = vmatpush1.msra.mxu0 %v436
    %2233 = vmatprep.subr.mxu0 %v439
    %2234 = vmatpush1.msra.mxu0 %v438
    %2235 = vmatprep.subr.mxu0 %v441
    %2236 = vmatpush1.msra.mxu0 %v440
    %2237 = vmatprep.subr.mxu0 %v443
    %2238 = vmatpush1.msra.mxu0 %v442
    %2239 = vmatprep.subr.mxu0 %v445
    %2240 = vmatpush1.msra.mxu0 %v444
    %2241 = vmatprep.subr.mxu0 %v447
    %2242 = vmatpush1.msra.mxu0 %v446
    %2243 = vmatprep.subr.mxu0 %v449
    %2244 = vmatpush1.msra.mxu0 %v448
    %2245 = vmatprep.subr.mxu0 %v451
    %2246 = vmatpush1.msra.mxu0 %v450
    %2247 = vmatprep.mubr.f32.mxu0 %v2139
    %2248 = vmatmul.mubr.f32.gmra.mrb[0].mxu0 %v2138
    %v2249 = vpop.f32.mrb[0].mxu0
    %v2250 = vadd.f32 0.0, %v2249
    %v2251 = vpop.f32.mrb[0].mxu0
    %v2252 = vadd.f32 0.0, %v2251
    %2253 = vmatprep.mubr.f32.mxu0 %v2148
    %2254 = vmatmul.mubr.f32.gmra.mrb[0].mxu0 %v2147
    %v2255 = vpop.f32.mrb[0].mxu0
    %v2256 = vadd.f32 0.0, %v2255
    %v2257 = vpop.f32.mrb[0].mxu0
    %v2258 = vadd.f32 0.0, %v2257
    %2259 = vmatprep.mubr.f32.mxu0 %v2157
    %2260 = vmatmul.mubr.f32.gmra.mrb[0].mxu0 %v2156
    %v2261 = vpop.f32.mrb[0].mxu0
    %v2262 = vadd.f32 0.0, %v2261
    %v2263 = vpop.f32.mrb[0].mxu0
    %v2264 = vadd.f32 0.0, %v2263
    %2265 = vmatprep.mubr.f32.mxu0 %v2166
    %2266 = vmatmul.mubr.f32.gmra.mrb[0].mxu0 %v2165
    %v2267 = vpop.f32.mrb[0].mxu0
    %v2268 = vadd.f32 0.0, %v2267
    %v2269 = vpop.f32.mrb[0].mxu0
    %v2270 = vadd.f32 0.0, %v2269
    %2271 = vmatprep.mubr.f32.mxu0 %v2175
    %2272 = vmatmul.mubr.f32.gmra.mrb[0].mxu0 %v2174
    %v2273 = vpop.f32.mrb[0].mxu0
    %v2274 = vadd.f32 0.0, %v2273
    %v2275 = vpop.f32.mrb[0].mxu0
    %v2276 = vadd.f32 0.0, %v2275
    %2277 = vdwg.mxu0
    %2278 = vmatprep.subr.mxu0 %v453
    %2279 = vmatpush1.msra.mxu0 %v452
    %2280 = vmatprep.subr.mxu0 %v455
    %2281 = vmatpush1.msra.mxu0 %v454
    %2282 = vmatprep.subr.mxu0 %v457
    %2283 = vmatpush1.msra.mxu0 %v456
    %2284 = vmatprep.subr.mxu0 %v459
    %2285 = vmatpush1.msra.mxu0 %v458
    %2286 = vmatprep.subr.mxu0 %v461
    %2287 = vmatpush1.msra.mxu0 %v460
    %2288 = vmatprep.subr.mxu0 %v463
    %2289 = vmatpush1.msra.mxu0 %v462
    %2290 = vmatprep.subr.mxu0 %v465
    %2291 = vmatpush1.msra.mxu0 %v464
    %2292 = vmatprep.subr.mxu0 %v467
    %2293 = vmatpush1.msra.mxu0 %v466
    %2294 = vmatprep.subr.mxu0 %v469
    %2295 = vmatpush1.msra.mxu0 %v468
    %2296 = vmatprep.subr.mxu0 %v471
    %2297 = vmatpush1.msra.mxu0 %v470
    %2298 = vmatprep.subr.mxu0 %v473
    %2299 = vmatpush1.msra.mxu0 %v472
    %2300 = vmatprep.subr.mxu0 %v475
    %2301 = vmatpush1.msra.mxu0 %v474
    %2302 = vmatprep.subr.mxu0 %v477
    %2303 = vmatpush1.msra.mxu0 %v476
    %2304 = vmatprep.subr.mxu0 %v479
    %2305 = vmatpush1.msra.mxu0 %v478
    %2306 = vmatprep.subr.mxu0 %v481
    %2307 = vmatpush1.msra.mxu0 %v480
    %2308 = vmatprep.subr.mxu0 %v483
    %2309 = vmatpush1.msra.mxu0 %v482
    %2310 = vmatprep.subr.mxu0 %v485
    %2311 = vmatpush1.msra.mxu0 %v484
    %2312 = vmatprep.subr.mxu0 %v487
    %2313 = vmatpush1.msra.mxu0 %v486
    %2314 = vmatprep.subr.mxu0 %v489
    %2315 = vmatpush1.msra.mxu0 %v488
    %2316 = vmatprep.subr.mxu0 %v491
    %2317 = vmatpush1.msra.mxu0 %v490
    %2318 = vmatprep.subr.mxu0 %v493
    %2319 = vmatpush1.msra.mxu0 %v492
    %2320 = vmatprep.subr.mxu0 %v495
    %2321 = vmatpush1.msra.mxu0 %v494
    %2322 = vmatprep.subr.mxu0 %v497
    %2323 = vmatpush1.msra.mxu0 %v496
    %2324 = vmatprep.subr.mxu0 %v499
    %2325 = vmatpush1.msra.mxu0 %v498
    %2326 = vmatprep.subr.mxu0 %v501
    %2327 = vmatpush1.msra.mxu0 %v500
    %2328 = vmatprep.subr.mxu0 %v503
    %2329 = vmatpush1.msra.mxu0 %v502
    %2330 = vmatprep.subr.mxu0 %v505
    %2331 = vmatpush1.msra.mxu0 %v504
    %2332 = vmatprep.subr.mxu0 %v507
    %2333 = vmatpush1.msra.mxu0 %v506
    %2334 = vmatprep.subr.mxu0 %v509
    %2335 = vmatpush1.msra.mxu0 %v508
    %2336 = vmatprep.subr.mxu0 %v511
    %2337 = vmatpush1.msra.mxu0 %v510
    %2338 = vmatprep.subr.mxu0 %v513
    %2339 = vmatpush1.msra.mxu0 %v512
    %2340 = vmatprep.subr.mxu0 %v515
    %2341 = vmatpush1.msra.mxu0 %v514
    %2342 = vmatprep.mubr.f32.mxu0 %v2141
    %2343 = vmatmul.mubr.f32.gmra.mrb[0].mxu0 %v2140
    %v2344 = vpop.f32.mrb[0].mxu0
    %v2345 = vadd.f32 %v2250, %v2344
    %v2346 = vpop.f32.mrb[0].mxu0
    %v2347 = vadd.f32 %v2252, %v2346
    %2348 = vmatprep.mubr.f32.mxu0 %v2150
    %2349 = vmatmul.mubr.f32.gmra.mrb[0].mxu0 %v2149
    %v2350 = vpop.f32.mrb[0].mxu0
    %v2351 = vadd.f32 %v2256, %v2350
    %v2352 = vpop.f32.mrb[0].mxu0
    %v2353 = vadd.f32 %v2258, %v2352
    %2354 = vmatprep.mubr.f32.mxu0 %v2159
    %2355 = vmatmul.mubr.f32.gmra.mrb[0].mxu0 %v2158
    %v2356 = vpop.f32.mrb[0].mxu0
    %v2357 = vadd.f32 %v2262, %v2356
    %v2358 = vpop.f32.mrb[0].mxu0
    %v2359 = vadd.f32 %v2264, %v2358
    %2360 = vmatprep.mubr.f32.mxu0 %v2168
    %2361 = vmatmul.mubr.f32.gmra.mrb[0].mxu0 %v2167
    %v2362 = vpop.f32.mrb[0].mxu0
    %v2363 = vadd.f32 %v2268, %v2362
    %v2364 = vpop.f32.mrb[0].mxu0
    %v2365 = vadd.f32 %v2270, %v2364
    %2366 = vmatprep.mubr.f32.mxu0 %v2177
    %2367 = vmatmul.mubr.f32.gmra.mrb[0].mxu0 %v2176
    %v2368 = vpop.f32.mrb[0].mxu0
    %v2369 = vadd.f32 %v2274, %v2368
    %v2370 = vpop.f32.mrb[0].mxu0
    %v2371 = vadd.f32 %v2276, %v2370
    %2372 = vdwg.mxu0
    %2373 = vmatprep.subr.mxu0 %v517
    %2374 = vmatpush1.msra.mxu0 %v516
    %2375 = vmatprep.subr.mxu0 %v519
    %2376 = vmatpush1.msra.mxu0 %v518
    %2377 = vmatprep.subr.mxu0 %v521
    %2378 = vmatpush1.msra.mxu0 %v520
    %2379 = vmatprep.subr.mxu0 %v523
    %2380 = vmatpush1.msra.mxu0 %v522
    %2381 = vmatprep.subr.mxu0 %v525
    %2382 = vmatpush1.msra.mxu0 %v524
    %2383 = vmatprep.subr.mxu0 %v527
    %2384 = vmatpush1.msra.mxu0 %v526
    %2385 = vmatprep.subr.mxu0 %v529
    %2386 = vmatpush1.msra.mxu0 %v528
    %2387 = vmatprep.subr.mxu0 %v531
    %2388 = vmatpush1.msra.mxu0 %v530
    %2389 = vmatprep.subr.mxu0 %v533
    %2390 = vmatpush1.msra.mxu0 %v532
    %2391 = vmatprep.subr.mxu0 %v535
    %2392 = vmatpush1.msra.mxu0 %v534
    %2393 = vmatprep.subr.mxu0 %v537
    %2394 = vmatpush1.msra.mxu0 %v536
    %2395 = vmatprep.subr.mxu0 %v539
    %2396 = vmatpush1.msra.mxu0 %v538
    %2397 = vmatprep.subr.mxu0 %v541
    %2398 = vmatpush1.msra.mxu0 %v540
    %2399 = vmatprep.subr.mxu0 %v543
    %2400 = vmatpush1.msra.mxu0 %v542
    %2401 = vmatprep.subr.mxu0 %v545
    %2402 = vmatpush1.msra.mxu0 %v544
    %2403 = vmatprep.subr.mxu0 %v547
    %2404 = vmatpush1.msra.mxu0 %v546
    %2405 = vmatprep.subr.mxu0 %v549
    %2406 = vmatpush1.msra.mxu0 %v548
    %2407 = vmatprep.subr.mxu0 %v551
    %2408 = vmatpush1.msra.mxu0 %v550
    %2409 = vmatprep.subr.mxu0 %v553
    %2410 = vmatpush1.msra.mxu0 %v552
    %2411 = vmatprep.subr.mxu0 %v555
    %2412 = vmatpush1.msra.mxu0 %v554
    %2413 = vmatprep.subr.mxu0 %v557
    %2414 = vmatpush1.msra.mxu0 %v556
    %2415 = vmatprep.subr.mxu0 %v559
    %2416 = vmatpush1.msra.mxu0 %v558
    %2417 = vmatprep.subr.mxu0 %v561
    %2418 = vmatpush1.msra.mxu0 %v560
    %2419 = vmatprep.subr.mxu0 %v563
    %2420 = vmatpush1.msra.mxu0 %v562
    %2421 = vmatprep.subr.mxu0 %v565
    %2422 = vmatpush1.msra.mxu0 %v564
    %2423 = vmatprep.subr.mxu0 %v567
    %2424 = vmatpush1.msra.mxu0 %v566
    %2425 = vmatprep.subr.mxu0 %v569
    %2426 = vmatpush1.msra.mxu0 %v568
    %2427 = vmatprep.subr.mxu0 %v571
    %2428 = vmatpush1.msra.mxu0 %v570
    %2429 = vmatprep.subr.mxu0 %v573
    %2430 = vmatpush1.msra.mxu0 %v572
    %2431 = vmatprep.subr.mxu0 %v575
    %2432 = vmatpush1.msra.mxu0 %v574
    %2433 = vmatprep.subr.mxu0 %v577
    %2434 = vmatpush1.msra.mxu0 %v576
    %2435 = vmatprep.subr.mxu0 %v579
    %2436 = vmatpush1.msra.mxu0 %v578
    %2437 = vmatprep.mubr.f32.mxu0 %v2143
    %2438 = vmatmul.mubr.f32.gmra.mrb[0].mxu0 %v2142
    %v2439 = vpop.f32.mrb[0].mxu0
    %v2440 = vadd.f32 %v2345, %v2439
    %v2441 = vpop.f32.mrb[0].mxu0
    %v2442 = vadd.f32 %v2347, %v2441
    %2443 = vmatprep.mubr.f32.mxu0 %v2152
    %2444 = vmatmul.mubr.f32.gmra.mrb[0].mxu0 %v2151
    %v2445 = vpop.f32.mrb[0].mxu0
    %v2446 = vadd.f32 %v2351, %v2445
    %v2447 = vpop.f32.mrb[0].mxu0
    %v2448 = vadd.f32 %v2353, %v2447
    %2449 = vmatprep.mubr.f32.mxu0 %v2161
    %2450 = vmatmul.mubr.f32.gmra.mrb[0].mxu0 %v2160
    %v2451 = vpop.f32.mrb[0].mxu0
    %v2452 = vadd.f32 %v2357, %v2451
    %v2453 = vpop.f32.mrb[0].mxu0
    %v2454 = vadd.f32 %v2359, %v2453
    %2455 = vmatprep.mubr.f32.mxu0 %v2170
    %2456 = vmatmul.mubr.f32.gmra.mrb[0].mxu0 %v2169
    %v2457 = vpop.f32.mrb[0].mxu0
    %v2458 = vadd.f32 %v2363, %v2457
    %v2459 = vpop.f32.mrb[0].mxu0
    %v2460 = vadd.f32 %v2365, %v2459
    %2461 = vmatprep.mubr.f32.mxu0 %v2179
    %2462 = vmatmul.mubr.f32.gmra.mrb[0].mxu0 %v2178
    %v2463 = vpop.f32.mrb[0].mxu0
    %v2464 = vadd.f32 %v2369, %v2463
    %v2465 = vpop.f32.mrb[0].mxu0
    %v2466 = vadd.f32 %v2371, %v2465
    %2467 = vdwg.mxu0
    %2468 = vmatprep.subr.mxu0 %v581
    %2469 = vmatpush1.msra.mxu0 %v580
    %2470 = vmatprep.subr.mxu0 %v583
    %2471 = vmatpush1.msra.mxu0 %v582
    %2472 = vmatprep.subr.mxu0 %v585
    %2473 = vmatpush1.msra.mxu0 %v584
    %2474 = vmatprep.subr.mxu0 %v587
    %2475 = vmatpush1.msra.mxu0 %v586
    %2476 = vmatprep.subr.mxu0 %v589
    %2477 = vmatpush1.msra.mxu0 %v588
    %2478 = vmatprep.subr.mxu0 %v591
    %2479 = vmatpush1.msra.mxu0 %v590
    %2480 = vmatprep.subr.mxu0 %v593
    %2481 = vmatpush1.msra.mxu0 %v592
    %2482 = vmatprep.subr.mxu0 %v595
    %2483 = vmatpush1.msra.mxu0 %v594
    %2484 = vmatprep.subr.mxu0 %v597
    %2485 = vmatpush1.msra.mxu0 %v596
    %2486 = vmatprep.subr.mxu0 %v599
    %2487 = vmatpush1.msra.mxu0 %v598
    %2488 = vmatprep.subr.mxu0 %v601
    %2489 = vmatpush1.msra.mxu0 %v600
    %2490 = vmatprep.subr.mxu0 %v603
    %2491 = vmatpush1.msra.mxu0 %v602
    %2492 = vmatprep.subr.mxu0 %v605
    %2493 = vmatpush1.msra.mxu0 %v604
    %2494 = vmatprep.subr.mxu0 %v607
    %2495 = vmatpush1.msra.mxu0 %v606
    %2496 = vmatprep.subr.mxu0 %v609
    %2497 = vmatpush1.msra.mxu0 %v608
    %2498 = vmatprep.subr.mxu0 %v611
    %2499 = vmatpush1.msra.mxu0 %v610
    %2500 = vmatprep.subr.mxu0 %v613
    %2501 = vmatpush1.msra.mxu0 %v612
    %2502 = vmatprep.subr.mxu0 %v615
    %2503 = vmatpush1.msra.mxu0 %v614
    %2504 = vmatprep.subr.mxu0 %v617
    %2505 = vmatpush1.msra.mxu0 %v616
    %2506 = vmatprep.subr.mxu0 %v619
    %2507 = vmatpush1.msra.mxu0 %v618
    %2508 = vmatprep.subr.mxu0 %v621
    %2509 = vmatpush1.msra.mxu0 %v620
    %2510 = vmatprep.subr.mxu0 %v623
    %2511 = vmatpush1.msra.mxu0 %v622
    %2512 = vmatprep.subr.mxu0 %v625
    %2513 = vmatpush1.msra.mxu0 %v624
    %2514 = vmatprep.subr.mxu0 %v627
    %2515 = vmatpush1.msra.mxu0 %v626
    %2516 = vmatprep.subr.mxu0 %v629
    %2517 = vmatpush1.msra.mxu0 %v628
    %2518 = vmatprep.subr.mxu0 %v631
    %2519 = vmatpush1.msra.mxu0 %v630
    %2520 = vmatprep.subr.mxu0 %v633
    %2521 = vmatpush1.msra.mxu0 %v632
    %2522 = vmatprep.subr.mxu0 %v635
    %2523 = vmatpush1.msra.mxu0 %v634
    %2524 = vmatprep.subr.mxu0 %v637
    %2525 = vmatpush1.msra.mxu0 %v636
    %2526 = vmatprep.subr.mxu0 %v639
    %2527 = vmatpush1.msra.mxu0 %v638
    %2528 = vmatprep.subr.mxu0 %v641
    %2529 = vmatpush1.msra.mxu0 %v640
    %2530 = vmatprep.subr.mxu0 %v643
    %2531 = vmatpush1.msra.mxu0 %v642
    %2532 = vmatprep.mubr.f32.mxu0 %v2145
    %2533 = vmatmul.mubr.f32.gmra.mrb[0].mxu0 %v2144
    %v2534 = vpop.f32.mrb[0].mxu0
    %v2535 = vadd.f32 %v2440, %v2534
    %v2536 = vpop.f32.mrb[0].mxu0
    %v2537 = vadd.f32 %v2442, %v2536
    %2538 = vmatprep.mubr.f32.mxu0 %v2154
    %2539 = vmatmul.mubr.f32.gmra.mrb[0].mxu0 %v2153
    %v2540 = vpop.f32.mrb[0].mxu0
    %v2541 = vadd.f32 %v2446, %v2540
    %v2542 = vpop.f32.mrb[0].mxu0
    %v2543 = vadd.f32 %v2448, %v2542
    %2544 = vmatprep.mubr.f32.mxu0 %v2163
    %2545 = vmatmul.mubr.f32.gmra.mrb[0].mxu0 %v2162
    %v2546 = vpop.f32.mrb[0].mxu0
    %v2547 = vadd.f32 %v2452, %v2546
    %v2548 = vpop.f32.mrb[0].mxu0
    %v2549 = vadd.f32 %v2454, %v2548
    %2550 = vmatprep.mubr.f32.mxu0 %v2172
    %2551 = vmatmul.mubr.f32.gmra.mrb[0].mxu0 %v2171
    %v2552 = vpop.f32.mrb[0].mxu0
    %v2553 = vadd.f32 %v2458, %v2552
    %v2554 = vpop.f32.mrb[0].mxu0
    %v2555 = vadd.f32 %v2460, %v2554
    %2556 = vmatprep.mubr.f32.mxu0 %v2181
    %2557 = vmatmul.mubr.f32.gmra.mrb[0].mxu0 %v2180
    %v2558 = vpop.f32.mrb[0].mxu0
    %v2559 = vadd.f32 %v2464, %v2558
    %v2560 = vpop.f32.mrb[0].mxu0
    %v2561 = vadd.f32 %v2466, %v2560
    %2562 = vdwg.mxu0
    %2563 = vmatprep.subr.mxu0 %v645
    %2564 = vmatpush1.msra.mxu0 %v644
    %2565 = vmatprep.subr.mxu0 %v647
    %2566 = vmatpush1.msra.mxu0 %v646
    %2567 = vmatprep.subr.mxu0 %v649
    %2568 = vmatpush1.msra.mxu0 %v648
    %2569 = vmatprep.subr.mxu0 %v651
    %2570 = vmatpush1.msra.mxu0 %v650
    %2571 = vmatprep.subr.mxu0 %v653
    %2572 = vmatpush1.msra.mxu0 %v652
    %2573 = vmatprep.subr.mxu0 %v655
    %2574 = vmatpush1.msra.mxu0 %v654
    %2575 = vmatprep.subr.mxu0 %v657
    %2576 = vmatpush1.msra.mxu0 %v656
    %2577 = vmatprep.subr.mxu0 %v659
    %2578 = vmatpush1.msra.mxu0 %v658
    %2579 = vmatprep.subr.mxu0 %v661
    %2580 = vmatpush1.msra.mxu0 %v660
    %2581 = vmatprep.subr.mxu0 %v663
    %2582 = vmatpush1.msra.mxu0 %v662
    %2583 = vmatprep.subr.mxu0 %v665
    %2584 = vmatpush1.msra.mxu0 %v664
    %2585 = vmatprep.subr.mxu0 %v667
    %2586 = vmatpush1.msra.mxu0 %v666
    %2587 = vmatprep.subr.mxu0 %v669
    %2588 = vmatpush1.msra.mxu0 %v668
    %2589 = vmatprep.subr.mxu0 %v671
    %2590 = vmatpush1.msra.mxu0 %v670
    %2591 = vmatprep.subr.mxu0 %v673
    %2592 = vmatpush1.msra.mxu0 %v672
    %2593 = vmatprep.subr.mxu0 %v675
    %2594 = vmatpush1.msra.mxu0 %v674
    %2595 = vmatprep.subr.mxu0 0.0
    %2596 = vmatpush1.msra.mxu0 0.0
    %2597 = vmatprep.subr.mxu0 0.0
    %2598 = vmatpush1.msra.mxu0 0.0
    %2599 = vmatprep.subr.mxu0 0.0
    %2600 = vmatpush1.msra.mxu0 0.0
    %2601 = vmatprep.subr.mxu0 0.0
    %2602 = vmatpush1.msra.mxu0 0.0
    %2603 = vmatprep.subr.mxu0 0.0
    %2604 = vmatpush1.msra.mxu0 0.0
    %2605 = vmatprep.subr.mxu0 0.0
    %2606 = vmatpush1.msra.mxu0 0.0
    %2607 = vmatprep.subr.mxu0 0.0
    %2608 = vmatpush1.msra.mxu0 0.0
    %2609 = vmatprep.subr.mxu0 0.0
    %2610 = vmatpush1.msra.mxu0 0.0
    %2611 = vmatprep.subr.mxu0 0.0
    %2612 = vmatpush1.msra.mxu0 0.0
    %2613 = vmatprep.subr.mxu0 0.0
    %2614 = vmatpush1.msra.mxu0 0.0
    %2615 = vmatprep.subr.mxu0 0.0
    %2616 = vmatpush1.msra.mxu0 0.0
    %2617 = vmatprep.subr.mxu0 0.0
    %2618 = vmatpush1.msra.mxu0 0.0
    %2619 = vmatprep.subr.mxu0 0.0
    %2620 = vmatpush1.msra.mxu0 0.0
    %2621 = vmatprep.subr.mxu0 0.0
    %2622 = vmatpush1.msra.mxu0 0.0
    %2623 = vmatprep.subr.mxu0 0.0
    %2624 = vmatpush1.msra.mxu0 0.0
    %2625 = vmatprep.subr.mxu0 0.0
    %2626 = vmatpush1.msra.mxu0 0.0
    %2627 = vmatprep.mubr.f32.mxu0 0.0
    %2628 = vmatmul.mubr.f32.gmra.mrb[0].mxu0 %v2146
    %v2629 = vpop.f32.mrb[0].mxu0
    %v2630 = vadd.f32 %v2535, %v2629
    %v2631 = vpop.f32.mrb[0].mxu0
    %v2632 = vadd.f32 %v2537, %v2631
    %2633 = vmatprep.mubr.f32.mxu0 0.0
    %2634 = vmatmul.mubr.f32.gmra.mrb[0].mxu0 %v2155
    %v2635 = vpop.f32.mrb[0].mxu0
    %v2636 = vadd.f32 %v2541, %v2635
    %v2637 = vpop.f32.mrb[0].mxu0
    %v2638 = vadd.f32 %v2543, %v2637
    %2639 = vmatprep.mubr.f32.mxu0 0.0
    %2640 = vmatmul.mubr.f32.gmra.mrb[0].mxu0 %v2164
    %v2641 = vpop.f32.mrb[0].mxu0
    %v2642 = vadd.f32 %v2547, %v2641
    %v2643 = vpop.f32.mrb[0].mxu0
    %v2644 = vadd.f32 %v2549, %v2643
    %2645 = vmatprep.mubr.f32.mxu0 0.0
    %2646 = vmatmul.mubr.f32.gmra.mrb[0].mxu0 %v2173
    %v2647 = vpop.f32.mrb[0].mxu0
    %v2648 = vadd.f32 %v2553, %v2647
    %v2649 = vpop.f32.mrb[0].mxu0
    %v2650 = vadd.f32 %v2555, %v2649
    %2651 = vmatprep.mubr.f32.mxu0 0.0
    %2652 = vmatmul.mubr.f32.gmra.mrb[0].mxu0 %v2182
    %v2653 = vpop.f32.mrb[0].mxu0
    %v2654 = vadd.f32 %v2559, %v2653
    %v2655 = vpop.f32.mrb[0].mxu0
    %v2656 = vadd.f32 %v2561, %v2655
    %2657 = vdwg.mxu0
    %v2659 = vlaneseq
    %v2660 = vshrl.u32 %v2659, 7
    %v2661 = vsub.s32 0, %v2660
    %v2662 = vrot.slane %v676, %v2661
    %v2663 = vlaneseq
    %v2664 = vshrl.u32 %v2663, 7
    %v2665 = vsub.s32 1, %v2664
    %v2666 = vrot.slane %v676, %v2665
    %v2670 = vsel %vm1555, %v1553, 0
    %v2673 = vsel %vm1559, %v2654, 0
    %v2676 = vsel %vm1559, %v2656, 0
    %2678 = vmatprep.subr.mxu0 %v2632
    %2679 = vmatpush1.msra.mxu0 %v2630
    %2680 = vmatprep.subr.mxu0 %v2638
    %2681 = vmatpush1.msra.mxu0 %v2636
    %2682 = vmatprep.subr.mxu0 %v2644
    %2683 = vmatpush1.msra.mxu0 %v2642
    %2684 = vmatprep.subr.mxu0 %v2650
    %2685 = vmatpush1.msra.mxu0 %v2648
    %2686 = vmatprep.subr.mxu0 %v2676
    %2687 = vmatpush1.msra.mxu0 %v2673
    %2688 = vmatprep.subr.mxu0 0.0
    %2689 = vmatpush1.msra.mxu0 0.0
    %2690 = vmatprep.subr.mxu0 0.0
    %2691 = vmatpush1.msra.mxu0 0.0
    %2692 = vmatprep.subr.mxu0 0.0
    %2693 = vmatpush1.msra.mxu0 0.0
    %2694 = vmatprep.subr.mxu0 0.0
    %2695 = vmatpush1.msra.mxu0 0.0
    %2696 = vmatprep.subr.mxu0 0.0
    %2697 = vmatpush1.msra.mxu0 0.0
    %2698 = vmatprep.subr.mxu0 0.0
    %2699 = vmatpush1.msra.mxu0 0.0
    %2700 = vmatprep.subr.mxu0 0.0
    %2701 = vmatpush1.msra.mxu0 0.0
    %2702 = vmatprep.subr.mxu0 0.0
    %2703 = vmatpush1.msra.mxu0 0.0
    %2704 = vmatprep.subr.mxu0 0.0
    %2705 = vmatpush1.msra.mxu0 0.0
    %2706 = vmatprep.subr.mxu0 0.0
    %2707 = vmatpush1.msra.mxu0 0.0
    %2708 = vmatprep.subr.mxu0 0.0
    %2709 = vmatpush1.msra.mxu0 0.0
    %2710 = vmatprep.subr.mxu0 0.0
    %2711 = vmatpush1.msra.mxu0 0.0
    %2712 = vmatprep.subr.mxu0 0.0
    %2713 = vmatpush1.msra.mxu0 0.0
    %2714 = vmatprep.subr.mxu0 0.0
    %2715 = vmatpush1.msra.mxu0 0.0
    %2716 = vmatprep.subr.mxu0 0.0
    %2717 = vmatpush1.msra.mxu0 0.0
    %2718 = vmatprep.subr.mxu0 0.0
    %2719 = vmatpush1.msra.mxu0 0.0
    %2720 = vmatprep.subr.mxu0 0.0
    %2721 = vmatpush1.msra.mxu0 0.0
    %2722 = vmatprep.subr.mxu0 0.0
    %2723 = vmatpush1.msra.mxu0 0.0
    %2724 = vmatprep.subr.mxu0 0.0
    %2725 = vmatpush1.msra.mxu0 0.0
    %2726 = vmatprep.subr.mxu0 0.0
    %2727 = vmatpush1.msra.mxu0 0.0
    %2728 = vmatprep.subr.mxu0 0.0
    %2729 = vmatpush1.msra.mxu0 0.0
    %2730 = vmatprep.subr.mxu0 0.0
    %2731 = vmatpush1.msra.mxu0 0.0
    %2732 = vmatprep.subr.mxu0 0.0
    %2733 = vmatpush1.msra.mxu0 0.0
    %2734 = vmatprep.subr.mxu0 0.0
    %2735 = vmatpush1.msra.mxu0 0.0
    %2736 = vmatprep.subr.mxu0 0.0
    %2737 = vmatpush1.msra.mxu0 0.0
    %2738 = vmatprep.subr.mxu0 0.0
    %2739 = vmatpush1.msra.mxu0 0.0
    %2740 = vmatprep.subr.mxu0 0.0
    %2741 = vmatpush1.msra.mxu0 0.0
    %2742 = vmatprep.mubr.f32.mxu0 0.0
    %2743 = vmatmul.mubr.f32.gmra.mrb[0].mxu0 %v2670
    %v2744 = vpop.f32.mrb[0].mxu0
    %v2745 = vadd.f32 %v2662, %v2744
    %v2746 = vpop.f32.mrb[0].mxu0
    %v2747 = vadd.f32 %v2666, %v2746
    %2748 = vdwg.mxu0
    %v2749 = vmax.f32 %v2745, 0.0
    %v2750 = vmax.f32 %v2747, 0.0
    %v2752 = vlaneseq
    %v2753 = vshrl.u32 %v2752, 7
    %v2754 = vsub.s32 0, %v2753
    %v2755 = vrot.slane %v741, %v2754
    %v2756 = vlaneseq
    %v2757 = vshrl.u32 %v2756, 7
    %v2758 = vsub.s32 1, %v2757
    %v2759 = vrot.slane %v741, %v2758
    %2762 = vmatprep.subr.mxu0 %v678
    %2763 = vmatpush1.msra.mxu0 %v677
    %2764 = vmatprep.subr.mxu0 %v680
    %2765 = vmatpush1.msra.mxu0 %v679
    %2766 = vmatprep.subr.mxu0 %v682
    %2767 = vmatpush1.msra.mxu0 %v681
    %2768 = vmatprep.subr.mxu0 %v684
    %2769 = vmatpush1.msra.mxu0 %v683
    %2770 = vmatprep.subr.mxu0 %v686
    %2771 = vmatpush1.msra.mxu0 %v685
    %2772 = vmatprep.subr.mxu0 %v688
    %2773 = vmatpush1.msra.mxu0 %v687
    %2774 = vmatprep.subr.mxu0 %v690
    %2775 = vmatpush1.msra.mxu0 %v689
    %2776 = vmatprep.subr.mxu0 %v692
    %2777 = vmatpush1.msra.mxu0 %v691
    %2778 = vmatprep.subr.mxu0 %v694
    %2779 = vmatpush1.msra.mxu0 %v693
    %2780 = vmatprep.subr.mxu0 %v696
    %2781 = vmatpush1.msra.mxu0 %v695
    %2782 = vmatprep.subr.mxu0 %v698
    %2783 = vmatpush1.msra.mxu0 %v697
    %2784 = vmatprep.subr.mxu0 %v700
    %2785 = vmatpush1.msra.mxu0 %v699
    %2786 = vmatprep.subr.mxu0 %v702
    %2787 = vmatpush1.msra.mxu0 %v701
    %2788 = vmatprep.subr.mxu0 %v704
    %2789 = vmatpush1.msra.mxu0 %v703
    %2790 = vmatprep.subr.mxu0 %v706
    %2791 = vmatpush1.msra.mxu0 %v705
    %2792 = vmatprep.subr.mxu0 %v708
    %2793 = vmatpush1.msra.mxu0 %v707
    %2794 = vmatprep.subr.mxu0 %v710
    %2795 = vmatpush1.msra.mxu0 %v709
    %2796 = vmatprep.subr.mxu0 %v712
    %2797 = vmatpush1.msra.mxu0 %v711
    %2798 = vmatprep.subr.mxu0 %v714
    %2799 = vmatpush1.msra.mxu0 %v713
    %2800 = vmatprep.subr.mxu0 %v716
    %2801 = vmatpush1.msra.mxu0 %v715
    %2802 = vmatprep.subr.mxu0 %v718
    %2803 = vmatpush1.msra.mxu0 %v717
    %2804 = vmatprep.subr.mxu0 %v720
    %2805 = vmatpush1.msra.mxu0 %v719
    %2806 = vmatprep.subr.mxu0 %v722
    %2807 = vmatpush1.msra.mxu0 %v721
    %2808 = vmatprep.subr.mxu0 %v724
    %2809 = vmatpush1.msra.mxu0 %v723
    %2810 = vmatprep.subr.mxu0 %v726
    %2811 = vmatpush1.msra.mxu0 %v725
    %2812 = vmatprep.subr.mxu0 %v728
    %2813 = vmatpush1.msra.mxu0 %v727
    %2814 = vmatprep.subr.mxu0 %v730
    %2815 = vmatpush1.msra.mxu0 %v729
    %2816 = vmatprep.subr.mxu0 %v732
    %2817 = vmatpush1.msra.mxu0 %v731
    %2818 = vmatprep.subr.mxu0 %v734
    %2819 = vmatpush1.msra.mxu0 %v733
    %2820 = vmatprep.subr.mxu0 %v736
    %2821 = vmatpush1.msra.mxu0 %v735
    %2822 = vmatprep.subr.mxu0 %v738
    %2823 = vmatpush1.msra.mxu0 %v737
    %2824 = vmatprep.subr.mxu0 %v740
    %2825 = vmatpush1.msra.mxu0 %v739
    %2826 = vmatprep.mubr.f32.mxu0 %v2750
    %2827 = vmatmul.mubr.f32.gmra.mrb[0].mxu0 %v2749
    %v2828 = vpop.f32.mrb[0].mxu0
    %v2829 = vadd.f32 %v2755, %v2828
    %v2830 = vpop.f32.mrb[0].mxu0
    %v2831 = vadd.f32 %v2759, %v2830
    %2832 = vdwg.mxu0
    %v2833 = vmax.f32 %v2829, 0.0
    %v2834 = vmax.f32 %v2831, 0.0
    %v2835 = vld [vmem:[%s5] sm:$0x3]
    %2836 = vmatprep.subr.mxu0 0.0
    %2837 = vmatpush1.msra.mxu0 %v742
    %2838 = vmatprep.subr.mxu0 0.0
    %2839 = vmatpush1.msra.mxu0 %v743
    %2840 = vmatprep.subr.mxu0 0.0
    %2841 = vmatpush1.msra.mxu0 %v744
    %2842 = vmatprep.subr.mxu0 0.0
    %2843 = vmatpush1.msra.mxu0 %v745
    %2844 = vmatprep.subr.mxu0 0.0
    %2845 = vmatpush1.msra.mxu0 %v746
    %2846 = vmatprep.subr.mxu0 0.0
    %2847 = vmatpush1.msra.mxu0 %v747
    %2848 = vmatprep.subr.mxu0 0.0
    %2849 = vmatpush1.msra.mxu0 %v748
    %2850 = vmatprep.subr.mxu0 0.0
    %2851 = vmatpush1.msra.mxu0 %v749
    %2852 = vmatprep.subr.mxu0 0.0
    %2853 = vmatpush1.msra.mxu0 %v750
    %2854 = vmatprep.subr.mxu0 0.0
    %2855 = vmatpush1.msra.mxu0 %v751
    %2856 = vmatprep.subr.mxu0 0.0
    %2857 = vmatpush1.msra.mxu0 %v752
    %2858 = vmatprep.subr.mxu0 0.0
    %2859 = vmatpush1.msra.mxu0 %v753
    %2860 = vmatprep.subr.mxu0 0.0
    %2861 = vmatpush1.msra.mxu0 %v754
    %2862 = vmatprep.subr.mxu0 0.0
    %2863 = vmatpush1.msra.mxu0 %v755
    %2864 = vmatprep.subr.mxu0 0.0
    %2865 = vmatpush1.msra.mxu0 %v756
    %2866 = vmatprep.subr.mxu0 0.0
    %2867 = vmatpush1.msra.mxu0 %v757
    %2868 = vmatprep.subr.mxu0 0.0
    %2869 = vmatpush1.msra.mxu0 %v758
    %2870 = vmatprep.subr.mxu0 0.0
    %2871 = vmatpush1.msra.mxu0 %v759
    %2872 = vmatprep.subr.mxu0 0.0
    %2873 = vmatpush1.msra.mxu0 %v760
    %2874 = vmatprep.subr.mxu0 0.0
    %2875 = vmatpush1.msra.mxu0 %v761
    %2876 = vmatprep.subr.mxu0 0.0
    %2877 = vmatpush1.msra.mxu0 %v762
    %2878 = vmatprep.subr.mxu0 0.0
    %2879 = vmatpush1.msra.mxu0 %v763
    %2880 = vmatprep.subr.mxu0 0.0
    %2881 = vmatpush1.msra.mxu0 %v764
    %2882 = vmatprep.subr.mxu0 0.0
    %2883 = vmatpush1.msra.mxu0 %v765
    %2884 = vmatprep.subr.mxu0 0.0
    %2885 = vmatpush1.msra.mxu0 %v766
    %2886 = vmatprep.subr.mxu0 0.0
    %2887 = vmatpush1.msra.mxu0 %v767
    %2888 = vmatprep.subr.mxu0 0.0
    %2889 = vmatpush1.msra.mxu0 %v768
    %2890 = vmatprep.subr.mxu0 0.0
    %2891 = vmatpush1.msra.mxu0 %v769
    %2892 = vmatprep.subr.mxu0 0.0
    %2893 = vmatpush1.msra.mxu0 %v770
    %2894 = vmatprep.subr.mxu0 0.0
    %2895 = vmatpush1.msra.mxu0 %v771
    %2896 = vmatprep.subr.mxu0 0.0
    %2897 = vmatpush1.msra.mxu0 %v772
    %2898 = vmatprep.subr.mxu0 0.0
    %2899 = vmatpush1.msra.mxu0 %v773
    %2900 = vmatprep.mubr.f32.mxu0 %v2834
    %2901 = vmatmul.mubr.f32.gmra.mrb[0].mxu0 %v2833
    %v2902 = vpop.f32.mrb[0].mxu0
    %v2903 = vadd.f32 %v774, %v2902
    %v2904 = vpop.f32.mrb[0].mxu0
    %2905 = vdwg.mxu0
    %v2907 = vlaneseq
    %v2908 = vshrl.u32 %v2907, 7
    %v2909 = vsub.s32 0, %v2908
    %v2910 = vrot.slane %v2835, %v2909
    %v2911 = vlaneseq
    %v2912 = vshrl.u32 %v2911, 7
    %v2913 = vsub.s32 1, %v2912
    %v2914 = vrot.slane %v2835, %v2913
    %2917 = vmatprep.subr.mxu0 0.0
    %2918 = vmatpush1.msra.mxu0 %v775
    %2919 = vmatprep.subr.mxu0 0.0
    %2920 = vmatpush1.msra.mxu0 %v776
    %2921 = vmatprep.subr.mxu0 0.0
    %2922 = vmatpush1.msra.mxu0 %v777
    %2923 = vmatprep.subr.mxu0 0.0
    %2924 = vmatpush1.msra.mxu0 %v778
    %2925 = vmatprep.subr.mxu0 0.0
    %2926 = vmatpush1.msra.mxu0 %v779
    %2927 = vmatprep.subr.mxu0 0.0
    %2928 = vmatpush1.msra.mxu0 %v780
    %2929 = vmatprep.subr.mxu0 0.0
    %2930 = vmatpush1.msra.mxu0 %v781
    %2931 = vmatprep.subr.mxu0 0.0
    %2932 = vmatpush1.msra.mxu0 %v782
    %2933 = vmatprep.subr.mxu0 0.0
    %2934 = vmatpush1.msra.mxu0 %v783
    %2935 = vmatprep.subr.mxu0 0.0
    %2936 = vmatpush1.msra.mxu0 %v784
    %2937 = vmatprep.subr.mxu0 0.0
    %2938 = vmatpush1.msra.mxu0 %v785
    %2939 = vmatprep.subr.mxu0 0.0
    %2940 = vmatpush1.msra.mxu0 %v786
    %2941 = vmatprep.subr.mxu0 0.0
    %2942 = vmatpush1.msra.mxu0 %v787
    %2943 = vmatprep.subr.mxu0 0.0
    %2944 = vmatpush1.msra.mxu0 %v788
    %2945 = vmatprep.subr.mxu0 0.0
    %2946 = vmatpush1.msra.mxu0 %v789
    %2947 = vmatprep.subr.mxu0 0.0
    %2948 = vmatpush1.msra.mxu0 %v790
    %2949 = vmatprep.subr.mxu0 0.0
    %2950 = vmatpush1.msra.mxu0 %v791
    %2951 = vmatprep.subr.mxu0 0.0
    %2952 = vmatpush1.msra.mxu0 %v792
    %2953 = vmatprep.subr.mxu0 0.0
    %2954 = vmatpush1.msra.mxu0 %v793
    %2955 = vmatprep.subr.mxu0 0.0
    %2956 = vmatpush1.msra.mxu0 %v794
    %2957 = vmatprep.subr.mxu0 0.0
    %2958 = vmatpush1.msra.mxu0 %v795
    %2959 = vmatprep.subr.mxu0 0.0
    %2960 = vmatpush1.msra.mxu0 %v796
    %2961 = vmatprep.subr.mxu0 0.0
    %2962 = vmatpush1.msra.mxu0 %v797
    %2963 = vmatprep.subr.mxu0 0.0
    %2964 = vmatpush1.msra.mxu0 %v798
    %2965 = vmatprep.subr.mxu0 0.0
    %2966 = vmatpush1.msra.mxu0 %v799
    %2967 = vmatprep.subr.mxu0 0.0
    %2968 = vmatpush1.msra.mxu0 %v800
    %2969 = vmatprep.subr.mxu0 0.0
    %2970 = vmatpush1.msra.mxu0 %v801
    %2971 = vmatprep.subr.mxu0 0.0
    %2972 = vmatpush1.msra.mxu0 %v802
    %2973 = vmatprep.subr.mxu0 0.0
    %2974 = vmatpush1.msra.mxu0 %v803
    %2975 = vmatprep.subr.mxu0 0.0
    %2976 = vmatpush1.msra.mxu0 %v804
    %2977 = vmatprep.subr.mxu0 0.0
    %2978 = vmatpush1.msra.mxu0 %v805
    %2979 = vmatprep.subr.mxu0 0.0
    %2980 = vmatpush1.msra.mxu0 %v806
    %2981 = vmatprep.mubr.f32.mxu0 %v2914
    %2982 = vmatmul.mubr.f32.gmra.mrb[0].mxu0 %v2910
    %v2983 = vpop.f32.mrb[0].mxu0
    %v2984 = vadd.f32 %v807, %v2983
    %v2985 = vpop.f32.mrb[0].mxu0
    %2986 = vdwg.mxu0
    %v2987 = vmax.f32 %v2903, 0.0
    %v2988 = vmax.f32 %v2984, 0.0
    %v2989 = vadd.f32 %v2903, %v2984
    %v2990 = vsub.f32 0.0, %v2989
    %v2991 = vmul.f32 %v2990, 1.442695
    %v2992 = vpow.pop %v2991
    %v2993 = vadd.f32 %v2992, 1.0
    %v2994 = vrcp.pop %v2993
    %v2995 = vmul.f32 1.0, %v2994
    %2997 = vrot.lane.b32.xlu0 %v2987, 32
    %v2998 = vpop.permute.xlu0 %2997
    %v3000 = vmul.f32 %v2995, %v2998
    %3002 = vrot.lane.b32.xlu0 %v3000, 96
    %v3003 = vpop.permute.xlu0 %3002
    %v3004 = vsel %vm1398, %v3003, 0
    %3006 = vmatprep.subr.mxu0 0.0
    %3007 = vmatpush1.msra.mxu0 %v808
    %3008 = vmatprep.subr.mxu0 0.0
    %3009 = vmatpush1.msra.mxu0 %v809
    %3010 = vmatprep.subr.mxu0 0.0
    %3011 = vmatpush1.msra.mxu0 %v810
    %3012 = vmatprep.subr.mxu0 0.0
    %3013 = vmatpush1.msra.mxu0 %v811
    %3014 = vmatprep.subr.mxu0 0.0
    %3015 = vmatpush1.msra.mxu0 0.0
    %3016 = vmatprep.subr.mxu0 0.0
    %3017 = vmatpush1.msra.mxu0 0.0
    %3018 = vmatprep.subr.mxu0 0.0
    %3019 = vmatpush1.msra.mxu0 0.0
    %3020 = vmatprep.subr.mxu0 0.0
    %3021 = vmatpush1.msra.mxu0 0.0
    %3022 = vmatprep.subr.mxu0 0.0
    %3023 = vmatpush1.msra.mxu0 0.0
    %3024 = vmatprep.subr.mxu0 0.0
    %3025 = vmatpush1.msra.mxu0 0.0
    %3026 = vmatprep.subr.mxu0 0.0
    %3027 = vmatpush1.msra.mxu0 0.0
    %3028 = vmatprep.subr.mxu0 0.0
    %3029 = vmatpush1.msra.mxu0 0.0
    %3030 = vmatprep.subr.mxu0 0.0
    %3031 = vmatpush1.msra.mxu0 0.0
    %3032 = vmatprep.subr.mxu0 0.0
    %3033 = vmatpush1.msra.mxu0 0.0
    %3034 = vmatprep.subr.mxu0 0.0
    %3035 = vmatpush1.msra.mxu0 0.0
    %3036 = vmatprep.subr.mxu0 0.0
    %3037 = vmatpush1.msra.mxu0 0.0
    %3038 = vmatprep.subr.mxu0 0.0
    %3039 = vmatpush1.msra.mxu0 0.0
    %3040 = vmatprep.subr.mxu0 0.0
    %3041 = vmatpush1.msra.mxu0 0.0
    %3042 = vmatprep.subr.mxu0 0.0
    %3043 = vmatpush1.msra.mxu0 0.0
    %3044 = vmatprep.subr.mxu0 0.0
    %3045 = vmatpush1.msra.mxu0 0.0
    %3046 = vmatprep.subr.mxu0 0.0
    %3047 = vmatpush1.msra.mxu0 0.0
    %3048 = vmatprep.subr.mxu0 0.0
    %3049 = vmatpush1.msra.mxu0 0.0
    %3050 = vmatprep.subr.mxu0 0.0
    %3051 = vmatpush1.msra.mxu0 0.0
    %3052 = vmatprep.subr.mxu0 0.0
    %3053 = vmatpush1.msra.mxu0 0.0
    %3054 = vmatprep.subr.mxu0 0.0
    %3055 = vmatpush1.msra.mxu0 0.0
    %3056 = vmatprep.subr.mxu0 0.0
    %3057 = vmatpush1.msra.mxu0 0.0
    %3058 = vmatprep.subr.mxu0 0.0
    %3059 = vmatpush1.msra.mxu0 0.0
    %3060 = vmatprep.subr.mxu0 0.0
    %3061 = vmatpush1.msra.mxu0 0.0
    %3062 = vmatprep.subr.mxu0 0.0
    %3063 = vmatpush1.msra.mxu0 0.0
    %3064 = vmatprep.subr.mxu0 0.0
    %3065 = vmatpush1.msra.mxu0 0.0
    %3066 = vmatprep.subr.mxu0 0.0
    %3067 = vmatpush1.msra.mxu0 0.0
    %3068 = vmatprep.subr.mxu0 0.0
    %3069 = vmatpush1.msra.mxu0 0.0
    %3070 = vmatprep.mubr.f32.mxu0 0.0
    %3071 = vmatmul.mubr.f32.gmra.mrb[0].mxu0 %v3004
    %v3072 = vpop.f32.mrb[0].mxu0
    %v3073 = vadd.f32 %v812, %v3072
    %v3074 = vpop.f32.mrb[0].mxu0
    %3075 = vdwg.mxu0
    %v3076 = vmax.f32 %v3073, 0.0
    %3078 = vrot.lane.b32.xlu0 %v2988, 64
    %v3079 = vpop.permute.xlu0 %3078
    %v3081 = vmul.f32 %v2995, %v3079
    %3083 = vrot.lane.b32.xlu0 %v3081, 64
    %v3084 = vpop.permute.xlu0 %3083
    %v3085 = vsel %vm1398, %v3084, 0
    %3087 = vmatprep.subr.mxu0 0.0
    %3088 = vmatpush1.msra.mxu0 %v813
    %3089 = vmatprep.subr.mxu0 0.0
    %3090 = vmatpush1.msra.mxu0 %v814
    %3091 = vmatprep.subr.mxu0 0.0
    %3092 = vmatpush1.msra.mxu0 %v815
    %3093 = vmatprep.subr.mxu0 0.0
    %3094 = vmatpush1.msra.mxu0 %v816
    %3095 = vmatprep.subr.mxu0 0.0
    %3096 = vmatpush1.msra.mxu0 0.0
    %3097 = vmatprep.subr.mxu0 0.0
    %3098 = vmatpush1.msra.mxu0 0.0
    %3099 = vmatprep.subr.mxu0 0.0
    %3100 = vmatpush1.msra.mxu0 0.0
    %3101 = vmatprep.subr.mxu0 0.0
    %3102 = vmatpush1.msra.mxu0 0.0
    %3103 = vmatprep.subr.mxu0 0.0
    %3104 = vmatpush1.msra.mxu0 0.0
    %3105 = vmatprep.subr.mxu0 0.0
    %3106 = vmatpush1.msra.mxu0 0.0
    %3107 = vmatprep.subr.mxu0 0.0
    %3108 = vmatpush1.msra.mxu0 0.0
    %3109 = vmatprep.subr.mxu0 0.0
    %3110 = vmatpush1.msra.mxu0 0.0
    %3111 = vmatprep.subr.mxu0 0.0
    %3112 = vmatpush1.msra.mxu0 0.0
    %3113 = vmatprep.subr.mxu0 0.0
    %3114 = vmatpush1.msra.mxu0 0.0
    %3115 = vmatprep.subr.mxu0 0.0
    %3116 = vmatpush1.msra.mxu0 0.0
    %3117 = vmatprep.subr.mxu0 0.0
    %3118 = vmatpush1.msra.mxu0 0.0
    %3119 = vmatprep.subr.mxu0 0.0
    %3120 = vmatpush1.msra.mxu0 0.0
    %3121 = vmatprep.subr.mxu0 0.0
    %3122 = vmatpush1.msra.mxu0 0.0
    %3123 = vmatprep.subr.mxu0 0.0
    %3124 = vmatpush1.msra.mxu0 0.0
    %3125 = vmatprep.subr.mxu0 0.0
    %3126 = vmatpush1.msra.mxu0 0.0
    %3127 = vmatprep.subr.mxu0 0.0
    %3128 = vmatpush1.msra.mxu0 0.0
    %3129 = vmatprep.subr.mxu0 0.0
    %3130 = vmatpush1.msra.mxu0 0.0
    %3131 = vmatprep.subr.mxu0 0.0
    %3132 = vmatpush1.msra.mxu0 0.0
    %3133 = vmatprep.subr.mxu0 0.0
    %3134 = vmatpush1.msra.mxu0 0.0
    %3135 = vmatprep.subr.mxu0 0.0
    %3136 = vmatpush1.msra.mxu0 0.0
    %3137 = vmatprep.subr.mxu0 0.0
    %3138 = vmatpush1.msra.mxu0 0.0
    %3139 = vmatprep.subr.mxu0 0.0
    %3140 = vmatpush1.msra.mxu0 0.0
    %3141 = vmatprep.subr.mxu0 0.0
    %3142 = vmatpush1.msra.mxu0 0.0
    %3143 = vmatprep.subr.mxu0 0.0
    %3144 = vmatpush1.msra.mxu0 0.0
    %3145 = vmatprep.subr.mxu0 0.0
    %3146 = vmatpush1.msra.mxu0 0.0
    %3147 = vmatprep.subr.mxu0 0.0
    %3148 = vmatpush1.msra.mxu0 0.0
    %3149 = vmatprep.subr.mxu0 0.0
    %3150 = vmatpush1.msra.mxu0 0.0
    %3151 = vmatprep.mubr.f32.mxu0 0.0
    %3152 = vmatmul.mubr.f32.gmra.mrb[0].mxu0 %v3085
    %v3153 = vpop.f32.mrb[0].mxu0
    %v3154 = vadd.f32 %v817, %v3153
    %v3155 = vpop.f32.mrb[0].mxu0
    %3156 = vdwg.mxu0
    %v3157 = vmax.f32 %v3154, 0.0
    %v3158 = vsel %vm1398, %v3076, 1.0
    %v3159 = vsel %vm1398, %v3157, 1.0
    %v3161 = vsel %vm1555, %v3159, 0
    %3163 = vmatprep.subr.mxu0 %v1173
    %3164 = vmatpush1.msra.mxu0 %v1172
    %3165 = vmatprep.subr.mxu0 %v1182
    %3166 = vmatpush1.msra.mxu0 %v1181
    %3167 = vmatprep.subr.mxu0 %v1191
    %3168 = vmatpush1.msra.mxu0 %v1190
    %3169 = vmatprep.subr.mxu0 %v1200
    %3170 = vmatpush1.msra.mxu0 %v1199
    %3171 = vmatprep.subr.mxu0 %v1564
    %3172 = vmatpush1.msra.mxu0 %v1561
    %3173 = vmatprep.subr.mxu0 0.0
    %3174 = vmatpush1.msra.mxu0 0.0
    %3175 = vmatprep.subr.mxu0 0.0
    %3176 = vmatpush1.msra.mxu0 0.0
    %3177 = vmatprep.subr.mxu0 0.0
    %3178 = vmatpush1.msra.mxu0 0.0
    %3179 = vmatprep.subr.mxu0 0.0
    %3180 = vmatpush1.msra.mxu0 0.0
    %3181 = vmatprep.subr.mxu0 0.0
    %3182 = vmatpush1.msra.mxu0 0.0
    %3183 = vmatprep.subr.mxu0 0.0
    %3184 = vmatpush1.msra.mxu0 0.0
    %3185 = vmatprep.subr.mxu0 0.0
    %3186 = vmatpush1.msra.mxu0 0.0
    %3187 = vmatprep.subr.mxu0 0.0
    %3188 = vmatpush1.msra.mxu0 0.0
    %3189 = vmatprep.subr.mxu0 0.0
    %3190 = vmatpush1.msra.mxu0 0.0
    %3191 = vmatprep.subr.mxu0 0.0
    %3192 = vmatpush1.msra.mxu0 0.0
    %3193 = vmatprep.subr.mxu0 0.0
    %3194 = vmatpush1.msra.mxu0 0.0
    %3195 = vmatprep.subr.mxu0 0.0
    %3196 = vmatpush1.msra.mxu0 0.0
    %3197 = vmatprep.subr.mxu0 0.0
    %3198 = vmatpush1.msra.mxu0 0.0
    %3199 = vmatprep.subr.mxu0 0.0
    %3200 = vmatpush1.msra.mxu0 0.0
    %3201 = vmatprep.subr.mxu0 0.0
    %3202 = vmatpush1.msra.mxu0 0.0
    %3203 = vmatprep.subr.mxu0 0.0
    %3204 = vmatpush1.msra.mxu0 0.0
    %3205 = vmatprep.subr.mxu0 0.0
    %3206 = vmatpush1.msra.mxu0 0.0
    %3207 = vmatprep.subr.mxu0 0.0
    %3208 = vmatpush1.msra.mxu0 0.0
    %3209 = vmatprep.subr.mxu0 0.0
    %3210 = vmatpush1.msra.mxu0 0.0
    %3211 = vmatprep.subr.mxu0 0.0
    %3212 = vmatpush1.msra.mxu0 0.0
    %3213 = vmatprep.subr.mxu0 0.0
    %3214 = vmatpush1.msra.mxu0 0.0
    %3215 = vmatprep.subr.mxu0 0.0
    %3216 = vmatpush1.msra.mxu0 0.0
    %3217 = vmatprep.subr.mxu0 0.0
    %3218 = vmatpush1.msra.mxu0 0.0
    %3219 = vmatprep.subr.mxu0 0.0
    %3220 = vmatpush1.msra.mxu0 0.0
    %3221 = vmatprep.subr.mxu0 0.0
    %3222 = vmatpush1.msra.mxu0 0.0
    %3223 = vmatprep.subr.mxu0 0.0
    %3224 = vmatpush1.msra.mxu0 0.0
    %3225 = vmatprep.subr.mxu0 0.0
    %3226 = vmatpush1.msra.mxu0 0.0
    %3227 = vmatprep.mubr.f32.mxu0 0.0
    %3228 = vmatmul.mubr.f32.gmra.mrb[0].mxu0 %v3161
    %v3229 = vpop.f32.mrb[0].mxu0
    %v3230 = vadd.f32 0.0, %v3229
    %v3231 = vpop.f32.mrb[0].mxu0
    %v3232 = vadd.f32 0.0, %v3231
    %3233 = vdwg.mxu0
    %3234 = vmatprep.subr.mxu0 %v1175
    %3235 = vmatpush1.msra.mxu0 %v1174
    %3236 = vmatprep.subr.mxu0 %v1184
    %3237 = vmatpush1.msra.mxu0 %v1183
    %3238 = vmatprep.subr.mxu0 %v1193
    %3239 = vmatpush1.msra.mxu0 %v1192
    %3240 = vmatprep.subr.mxu0 %v1202
    %3241 = vmatpush1.msra.mxu0 %v1201
    %3242 = vmatprep.subr.mxu0 %v1570
    %3243 = vmatpush1.msra.mxu0 %v1567
    %3244 = vmatprep.subr.mxu0 0.0
    %3245 = vmatpush1.msra.mxu0 0.0
    %3246 = vmatprep.subr.mxu0 0.0
    %3247 = vmatpush1.msra.mxu0 0.0
    %3248 = vmatprep.subr.mxu0 0.0
    %3249 = vmatpush1.msra.mxu0 0.0
    %3250 = vmatprep.subr.mxu0 0.0
    %3251 = vmatpush1.msra.mxu0 0.0
    %3252 = vmatprep.subr.mxu0 0.0
    %3253 = vmatpush1.msra.mxu0 0.0
    %3254 = vmatprep.subr.mxu0 0.0
    %3255 = vmatpush1.msra.mxu0 0.0
    %3256 = vmatprep.subr.mxu0 0.0
    %3257 = vmatpush1.msra.mxu0 0.0
    %3258 = vmatprep.subr.mxu0 0.0
    %3259 = vmatpush1.msra.mxu0 0.0
    %3260 = vmatprep.subr.mxu0 0.0
    %3261 = vmatpush1.msra.mxu0 0.0
    %3262 = vmatprep.subr.mxu0 0.0
    %3263 = vmatpush1.msra.mxu0 0.0
    %3264 = vmatprep.subr.mxu0 0.0
    %3265 = vmatpush1.msra.mxu0 0.0
    %3266 = vmatprep.subr.mxu0 0.0
    %3267 = vmatpush1.msra.mxu0 0.0
    %3268 = vmatprep.subr.mxu0 0.0
    %3269 = vmatpush1.msra.mxu0 0.0
    %3270 = vmatprep.subr.mxu0 0.0
    %3271 = vmatpush1.msra.mxu0 0.0
    %3272 = vmatprep.subr.mxu0 0.0
    %3273 = vmatpush1.msra.mxu0 0.0
    %3274 = vmatprep.subr.mxu0 0.0
    %3275 = vmatpush1.msra.mxu0 0.0
    %3276 = vmatprep.subr.mxu0 0.0
    %3277 = vmatpush1.msra.mxu0 0.0
    %3278 = vmatprep.subr.mxu0 0.0
    %3279 = vmatpush1.msra.mxu0 0.0
    %3280 = vmatprep.subr.mxu0 0.0
    %3281 = vmatpush1.msra.mxu0 0.0
    %3282 = vmatprep.subr.mxu0 0.0
    %3283 = vmatpush1.msra.mxu0 0.0
    %3284 = vmatprep.subr.mxu0 0.0
    %3285 = vmatpush1.msra.mxu0 0.0
    %3286 = vmatprep.subr.mxu0 0.0
    %3287 = vmatpush1.msra.mxu0 0.0
    %3288 = vmatprep.subr.mxu0 0.0
    %3289 = vmatpush1.msra.mxu0 0.0
    %3290 = vmatprep.subr.mxu0 0.0
    %3291 = vmatpush1.msra.mxu0 0.0
    %3292 = vmatprep.subr.mxu0 0.0
    %3293 = vmatpush1.msra.mxu0 0.0
    %3294 = vmatprep.subr.mxu0 0.0
    %3295 = vmatpush1.msra.mxu0 0.0
    %3296 = vmatprep.subr.mxu0 0.0
    %3297 = vmatpush1.msra.mxu0 0.0
    %3298 = vmatprep.mubr.f32.mxu0 0.0
    %3299 = vmatmul.mubr.f32.gmra.mrb[0].mxu0 %v3161
    %v3300 = vpop.f32.mrb[0].mxu0
    %v3301 = vadd.f32 0.0, %v3300
    %v3302 = vpop.f32.mrb[0].mxu0
    %v3303 = vadd.f32 0.0, %v3302
    %3304 = vdwg.mxu0
    %3305 = vmatprep.subr.mxu0 %v1177
    %3306 = vmatpush1.msra.mxu0 %v1176
    %3307 = vmatprep.subr.mxu0 %v1186
    %3308 = vmatpush1.msra.mxu0 %v1185
    %3309 = vmatprep.subr.mxu0 %v1195
    %3310 = vmatpush1.msra.mxu0 %v1194
    %3311 = vmatprep.subr.mxu0 %v1204
    %3312 = vmatpush1.msra.mxu0 %v1203
    %3313 = vmatprep.subr.mxu0 %v1576
    %3314 = vmatpush1.msra.mxu0 %v1573
    %3315 = vmatprep.subr.mxu0 0.0
    %3316 = vmatpush1.msra.mxu0 0.0
    %3317 = vmatprep.subr.mxu0 0.0
    %3318 = vmatpush1.msra.mxu0 0.0
    %3319 = vmatprep.subr.mxu0 0.0
    %3320 = vmatpush1.msra.mxu0 0.0
    %3321 = vmatprep.subr.mxu0 0.0
    %3322 = vmatpush1.msra.mxu0 0.0
    %3323 = vmatprep.subr.mxu0 0.0
    %3324 = vmatpush1.msra.mxu0 0.0
    %3325 = vmatprep.subr.mxu0 0.0
    %3326 = vmatpush1.msra.mxu0 0.0
    %3327 = vmatprep.subr.mxu0 0.0
    %3328 = vmatpush1.msra.mxu0 0.0
    %3329 = vmatprep.subr.mxu0 0.0
    %3330 = vmatpush1.msra.mxu0 0.0
    %3331 = vmatprep.subr.mxu0 0.0
    %3332 = vmatpush1.msra.mxu0 0.0
    %3333 = vmatprep.subr.mxu0 0.0
    %3334 = vmatpush1.msra.mxu0 0.0
    %3335 = vmatprep.subr.mxu0 0.0
    %3336 = vmatpush1.msra.mxu0 0.0
    %3337 = vmatprep.subr.mxu0 0.0
    %3338 = vmatpush1.msra.mxu0 0.0
    %3339 = vmatprep.subr.mxu0 0.0
    %3340 = vmatpush1.msra.mxu0 0.0
    %3341 = vmatprep.subr.mxu0 0.0
    %3342 = vmatpush1.msra.mxu0 0.0
    %3343 = vmatprep.subr.mxu0 0.0
    %3344 = vmatpush1.msra.mxu0 0.0
    %3345 = vmatprep.subr.mxu0 0.0
    %3346 = vmatpush1.msra.mxu0 0.0
    %3347 = vmatprep.subr.mxu0 0.0
    %3348 = vmatpush1.msra.mxu0 0.0
    %3349 = vmatprep.subr.mxu0 0.0
    %3350 = vmatpush1.msra.mxu0 0.0
    %3351 = vmatprep.subr.mxu0 0.0
    %3352 = vmatpush1.msra.mxu0 0.0
    %3353 = vmatprep.subr.mxu0 0.0
    %3354 = vmatpush1.msra.mxu0 0.0
    %3355 = vmatprep.subr.mxu0 0.0
    %3356 = vmatpush1.msra.mxu0 0.0
    %3357 = vmatprep.subr.mxu0 0.0
    %3358 = vmatpush1.msra.mxu0 0.0
    %3359 = vmatprep.subr.mxu0 0.0
    %3360 = vmatpush1.msra.mxu0 0.0
    %3361 = vmatprep.subr.mxu0 0.0
    %3362 = vmatpush1.msra.mxu0 0.0
    %3363 = vmatprep.subr.mxu0 0.0
    %3364 = vmatpush1.msra.mxu0 0.0
    %3365 = vmatprep.subr.mxu0 0.0
    %3366 = vmatpush1.msra.mxu0 0.0
    %3367 = vmatprep.subr.mxu0 0.0
    %3368 = vmatpush1.msra.mxu0 0.0
    %3369 = vmatprep.mubr.f32.mxu0 0.0
    %3370 = vmatmul.mubr.f32.gmra.mrb[0].mxu0 %v3161
    %v3371 = vpop.f32.mrb[0].mxu0
    %v3372 = vadd.f32 0.0, %v3371
    %v3373 = vpop.f32.mrb[0].mxu0
    %v3374 = vadd.f32 0.0, %v3373
    %3375 = vdwg.mxu0
    %3376 = vmatprep.subr.mxu0 %v1179
    %3377 = vmatpush1.msra.mxu0 %v1178
    %3378 = vmatprep.subr.mxu0 %v1188
    %3379 = vmatpush1.msra.mxu0 %v1187
    %3380 = vmatprep.subr.mxu0 %v1197
    %3381 = vmatpush1.msra.mxu0 %v1196
    %3382 = vmatprep.subr.mxu0 %v1206
    %3383 = vmatpush1.msra.mxu0 %v1205
    %3384 = vmatprep.subr.mxu0 %v1582
    %3385 = vmatpush1.msra.mxu0 %v1579
    %3386 = vmatprep.subr.mxu0 0.0
    %3387 = vmatpush1.msra.mxu0 0.0
    %3388 = vmatprep.subr.mxu0 0.0
    %3389 = vmatpush1.msra.mxu0 0.0
    %3390 = vmatprep.subr.mxu0 0.0
    %3391 = vmatpush1.msra.mxu0 0.0
    %3392 = vmatprep.subr.mxu0 0.0
    %3393 = vmatpush1.msra.mxu0 0.0
    %3394 = vmatprep.subr.mxu0 0.0
    %3395 = vmatpush1.msra.mxu0 0.0
    %3396 = vmatprep.subr.mxu0 0.0
    %3397 = vmatpush1.msra.mxu0 0.0
    %3398 = vmatprep.subr.mxu0 0.0
    %3399 = vmatpush1.msra.mxu0 0.0
    %3400 = vmatprep.subr.mxu0 0.0
    %3401 = vmatpush1.msra.mxu0 0.0
    %3402 = vmatprep.subr.mxu0 0.0
    %3403 = vmatpush1.msra.mxu0 0.0
    %3404 = vmatprep.subr.mxu0 0.0
    %3405 = vmatpush1.msra.mxu0 0.0
    %3406 = vmatprep.subr.mxu0 0.0
    %3407 = vmatpush1.msra.mxu0 0.0
    %3408 = vmatprep.subr.mxu0 0.0
    %3409 = vmatpush1.msra.mxu0 0.0
    %3410 = vmatprep.subr.mxu0 0.0
    %3411 = vmatpush1.msra.mxu0 0.0
    %3412 = vmatprep.subr.mxu0 0.0
    %3413 = vmatpush1.msra.mxu0 0.0
    %3414 = vmatprep.subr.mxu0 0.0
    %3415 = vmatpush1.msra.mxu0 0.0
    %3416 = vmatprep.subr.mxu0 0.0
    %3417 = vmatpush1.msra.mxu0 0.0
    %3418 = vmatprep.subr.mxu0 0.0
    %3419 = vmatpush1.msra.mxu0 0.0
    %3420 = vmatprep.subr.mxu0 0.0
    %3421 = vmatpush1.msra.mxu0 0.0
    %3422 = vmatprep.subr.mxu0 0.0
    %3423 = vmatpush1.msra.mxu0 0.0
    %3424 = vmatprep.subr.mxu0 0.0
    %3425 = vmatpush1.msra.mxu0 0.0
    %3426 = vmatprep.subr.mxu0 0.0
    %3427 = vmatpush1.msra.mxu0 0.0
    %3428 = vmatprep.subr.mxu0 0.0
    %3429 = vmatpush1.msra.mxu0 0.0
    %3430 = vmatprep.subr.mxu0 0.0
    %3431 = vmatpush1.msra.mxu0 0.0
    %3432 = vmatprep.subr.mxu0 0.0
    %3433 = vmatpush1.msra.mxu0 0.0
    %3434 = vmatprep.subr.mxu0 0.0
    %3435 = vmatpush1.msra.mxu0 0.0
    %3436 = vmatprep.subr.mxu0 0.0
    %3437 = vmatpush1.msra.mxu0 0.0
    %3438 = vmatprep.subr.mxu0 0.0
    %3439 = vmatpush1.msra.mxu0 0.0
    %3440 = vmatprep.mubr.f32.mxu0 0.0
    %3441 = vmatmul.mubr.f32.gmra.mrb[0].mxu0 %v3161
    %v3442 = vpop.f32.mrb[0].mxu0
    %v3443 = vadd.f32 0.0, %v3442
    %v3444 = vpop.f32.mrb[0].mxu0
    %v3445 = vadd.f32 0.0, %v3444
    %3446 = vdwg.mxu0
    %3447 = vmatprep.subr.mxu0 0.0
    %3448 = vmatpush1.msra.mxu0 %v1180
    %3449 = vmatprep.subr.mxu0 0.0
    %3450 = vmatpush1.msra.mxu0 %v1189
    %3451 = vmatprep.subr.mxu0 0.0
    %3452 = vmatpush1.msra.mxu0 %v1198
    %3453 = vmatprep.subr.mxu0 0.0
    %3454 = vmatpush1.msra.mxu0 %v1207
    %3455 = vmatprep.subr.mxu0 0.0
    %3456 = vmatpush1.msra.mxu0 %v1585
    %3457 = vmatprep.subr.mxu0 0.0
    %3458 = vmatpush1.msra.mxu0 0.0
    %3459 = vmatprep.subr.mxu0 0.0
    %3460 = vmatpush1.msra.mxu0 0.0
    %3461 = vmatprep.subr.mxu0 0.0
    %3462 = vmatpush1.msra.mxu0 0.0
    %3463 = vmatprep.subr.mxu0 0.0
    %3464 = vmatpush1.msra.mxu0 0.0
    %3465 = vmatprep.subr.mxu0 0.0
    %3466 = vmatpush1.msra.mxu0 0.0
    %3467 = vmatprep.subr.mxu0 0.0
    %3468 = vmatpush1.msra.mxu0 0.0
    %3469 = vmatprep.subr.mxu0 0.0
    %3470 = vmatpush1.msra.mxu0 0.0
    %3471 = vmatprep.subr.mxu0 0.0
    %3472 = vmatpush1.msra.mxu0 0.0
    %3473 = vmatprep.subr.mxu0 0.0
    %3474 = vmatpush1.msra.mxu0 0.0
    %3475 = vmatprep.subr.mxu0 0.0
    %3476 = vmatpush1.msra.mxu0 0.0
    %3477 = vmatprep.subr.mxu0 0.0
    %3478 = vmatpush1.msra.mxu0 0.0
    %3479 = vmatprep.subr.mxu0 0.0
    %3480 = vmatpush1.msra.mxu0 0.0
    %3481 = vmatprep.subr.mxu0 0.0
    %3482 = vmatpush1.msra.mxu0 0.0
    %3483 = vmatprep.subr.mxu0 0.0
    %3484 = vmatpush1.msra.mxu0 0.0
    %3485 = vmatprep.subr.mxu0 0.0
    %3486 = vmatpush1.msra.mxu0 0.0
    %3487 = vmatprep.subr.mxu0 0.0
    %3488 = vmatpush1.msra.mxu0 0.0
    %3489 = vmatprep.subr.mxu0 0.0
    %3490 = vmatpush1.msra.mxu0 0.0
    %3491 = vmatprep.subr.mxu0 0.0
    %3492 = vmatpush1.msra.mxu0 0.0
    %3493 = vmatprep.subr.mxu0 0.0
    %3494 = vmatpush1.msra.mxu0 0.0
    %3495 = vmatprep.subr.mxu0 0.0
    %3496 = vmatpush1.msra.mxu0 0.0
    %3497 = vmatprep.subr.mxu0 0.0
    %3498 = vmatpush1.msra.mxu0 0.0
    %3499 = vmatprep.subr.mxu0 0.0
    %3500 = vmatpush1.msra.mxu0 0.0
    %3501 = vmatprep.subr.mxu0 0.0
    %3502 = vmatpush1.msra.mxu0 0.0
    %3503 = vmatprep.subr.mxu0 0.0
    %3504 = vmatpush1.msra.mxu0 0.0
    %3505 = vmatprep.subr.mxu0 0.0
    %3506 = vmatpush1.msra.mxu0 0.0
    %3507 = vmatprep.subr.mxu0 0.0
    %3508 = vmatpush1.msra.mxu0 0.0
    %3509 = vmatprep.subr.mxu0 0.0
    %3510 = vmatpush1.msra.mxu0 0.0
    %3511 = vmatprep.mubr.f32.mxu0 0.0
    %3512 = vmatmul.mubr.f32.gmra.mrb[0].mxu0 %v3161
    %v3513 = vpop.f32.mrb[0].mxu0
    %v3514 = vadd.f32 0.0, %v3513
    %v3515 = vpop.f32.mrb[0].mxu0
    %3516 = vdwg.mxu0
    %v3517 = vlaneseq
    %v3518 = vshrl.u32 %v3517, 7
    %v3519 = vsub.s32 0, %v3518
    %v3520 = vrot.slane %v3230, %v3519
    %v3521 = vlaneseq
    %v3522 = vshrl.u32 %v3521, 7
    %v3523 = vsub.s32 0, %v3522
    %v3524 = vrot.slane %v3232, %v3523
    %v3525 = vlaneseq
    %v3526 = vshrl.u32 %v3525, 7
    %v3527 = vsub.s32 0, %v3526
    %v3528 = vrot.slane %v3301, %v3527
    %v3529 = vlaneseq
    %v3530 = vshrl.u32 %v3529, 7
    %v3531 = vsub.s32 0, %v3530
    %v3532 = vrot.slane %v3303, %v3531
    %v3533 = vlaneseq
    %v3534 = vshrl.u32 %v3533, 7
    %v3535 = vsub.s32 0, %v3534
    %v3536 = vrot.slane %v3372, %v3535
    %v3537 = vlaneseq
    %v3538 = vshrl.u32 %v3537, 7
    %v3539 = vsub.s32 0, %v3538
    %v3540 = vrot.slane %v3374, %v3539
    %v3541 = vlaneseq
    %v3542 = vshrl.u32 %v3541, 7
    %v3543 = vsub.s32 0, %v3542
    %v3544 = vrot.slane %v3443, %v3543
    %v3545 = vlaneseq
    %v3546 = vshrl.u32 %v3545, 7
    %v3547 = vsub.s32 0, %v3546
    %v3548 = vrot.slane %v3445, %v3547
    %v3549 = vlaneseq
    %v3550 = vshrl.u32 %v3549, 7
    %v3551 = vsub.s32 0, %v3550
    %v3552 = vrot.slane %v3514, %v3551
    %v3553 = vsel %vm2057, %v3520, 0.0
    %v3554 = vsel %vm2058, %v3524, 0.0
    %v3555 = vsel %vm2059, %v3528, 0.0
    %v3556 = vsel %vm2060, %v3532, 0.0
    %v3557 = vsel %vm2061, %v3536, 0.0
    %v3558 = vsel %vm2062, %v3540, 0.0
    %v3559 = vsel %vm2063, %v3544, 0.0
    %v3560 = vsel %vm2064, %v3548, 0.0
    %v3561 = vsel %vm2065, %v3552, 0.0
    %v3562 = vsel %vm2066, %v3520, 0.0
    %v3563 = vsel %vm2067, %v3524, 0.0
    %v3564 = vsel %vm2068, %v3528, 0.0
    %v3565 = vsel %vm2069, %v3532, 0.0
    %v3566 = vsel %vm2070, %v3536, 0.0
    %v3567 = vsel %vm2071, %v3540, 0.0
    %v3568 = vsel %vm2072, %v3544, 0.0
    %v3569 = vsel %vm2073, %v3548, 0.0
    %v3570 = vsel %vm2074, %v3552, 0.0
    %v3571 = vsel %vm2075, %v3520, 0.0
    %v3572 = vsel %vm2076, %v3524, 0.0
    %v3573 = vsel %vm2077, %v3528, 0.0
    %v3574 = vsel %vm2078, %v3532, 0.0
    %v3575 = vsel %vm2079, %v3536, 0.0
    %v3576 = vsel %vm2080, %v3540, 0.0
    %v3577 = vsel %vm2081, %v3544, 0.0
    %v3578 = vsel %vm2082, %v3548, 0.0
    %v3579 = vsel %vm2083, %v3552, 0.0
    %v3580 = vsel %vm2084, %v3520, 0.0
    %v3581 = vsel %vm2085, %v3524, 0.0
    %v3582 = vsel %vm2086, %v3528, 0.0
    %v3583 = vsel %vm2087, %v3532, 0.0
    %v3584 = vsel %vm2088, %v3536, 0.0
    %v3585 = vsel %vm2089, %v3540, 0.0
    %v3586 = vsel %vm2090, %v3544, 0.0
    %v3587 = vsel %vm2091, %v3548, 0.0
    %v3588 = vsel %vm2092, %v3552, 0.0
    %v3589 = vsel %vm2093, %v3520, 0.0
    %v3590 = vsel %vm2094, %v3524, 0.0
    %v3591 = vsel %vm2095, %v3528, 0.0
    %v3592 = vsel %vm2096, %v3532, 0.0
    %v3593 = vsel %vm2097, %v3536, 0.0
    %v3594 = vsel %vm2098, %v3540, 0.0
    %v3595 = vsel %vm2099, %v3544, 0.0
    %v3596 = vsel %vm2100, %v3548, 0.0
    %v3597 = vsel %vm2101, %v3552, 0.0
    %3598 = vmatprep.subr.mxu0 %v819
    %3599 = vmatpush1.msra.mxu0 %v818
    %3600 = vmatprep.subr.mxu0 %v821
    %3601 = vmatpush1.msra.mxu0 %v820
    %3602 = vmatprep.subr.mxu0 %v823
    %3603 = vmatpush1.msra.mxu0 %v822
    %3604 = vmatprep.subr.mxu0 %v825
    %3605 = vmatpush1.msra.mxu0 %v824
    %3606 = vmatprep.subr.mxu0 %v827
    %3607 = vmatpush1.msra.mxu0 %v826
    %3608 = vmatprep.subr.mxu0 %v829
    %3609 = vmatpush1.msra.mxu0 %v828
    %3610 = vmatprep.subr.mxu0 %v831
    %3611 = vmatpush1.msra.mxu0 %v830
    %3612 = vmatprep.subr.mxu0 %v833
    %3613 = vmatpush1.msra.mxu0 %v832
    %3614 = vmatprep.subr.mxu0 %v835
    %3615 = vmatpush1.msra.mxu0 %v834
    %3616 = vmatprep.subr.mxu0 %v837
    %3617 = vmatpush1.msra.mxu0 %v836
    %3618 = vmatprep.subr.mxu0 %v839
    %3619 = vmatpush1.msra.mxu0 %v838
    %3620 = vmatprep.subr.mxu0 %v841
    %3621 = vmatpush1.msra.mxu0 %v840
    %3622 = vmatprep.subr.mxu0 %v843
    %3623 = vmatpush1.msra.mxu0 %v842
    %3624 = vmatprep.subr.mxu0 %v845
    %3625 = vmatpush1.msra.mxu0 %v844
    %3626 = vmatprep.subr.mxu0 %v847
    %3627 = vmatpush1.msra.mxu0 %v846
    %3628 = vmatprep.subr.mxu0 %v849
    %3629 = vmatpush1.msra.mxu0 %v848
    %3630 = vmatprep.subr.mxu0 %v851
    %3631 = vmatpush1.msra.mxu0 %v850
    %3632 = vmatprep.subr.mxu0 %v853
    %3633 = vmatpush1.msra.mxu0 %v852
    %3634 = vmatprep.subr.mxu0 %v855
    %3635 = vmatpush1.msra.mxu0 %v854
    %3636 = vmatprep.subr.mxu0 %v857
    %3637 = vmatpush1.msra.mxu0 %v856
    %3638 = vmatprep.subr.mxu0 %v859
    %3639 = vmatpush1.msra.mxu0 %v858
    %3640 = vmatprep.subr.mxu0 %v861
    %3641 = vmatpush1.msra.mxu0 %v860
    %3642 = vmatprep.subr.mxu0 %v863
    %3643 = vmatpush1.msra.mxu0 %v862
    %3644 = vmatprep.subr.mxu0 %v865
    %3645 = vmatpush1.msra.mxu0 %v864
    %3646 = vmatprep.subr.mxu0 %v867
    %3647 = vmatpush1.msra.mxu0 %v866
    %3648 = vmatprep.subr.mxu0 %v869
    %3649 = vmatpush1.msra.mxu0 %v868
    %3650 = vmatprep.subr.mxu0 %v871
    %3651 = vmatpush1.msra.mxu0 %v870
    %3652 = vmatprep.subr.mxu0 %v873
    %3653 = vmatpush1.msra.mxu0 %v872
    %3654 = vmatprep.subr.mxu0 %v875
    %3655 = vmatpush1.msra.mxu0 %v874
    %3656 = vmatprep.subr.mxu0 %v877
    %3657 = vmatpush1.msra.mxu0 %v876
    %3658 = vmatprep.subr.mxu0 %v879
    %3659 = vmatpush1.msra.mxu0 %v878
    %3660 = vmatprep.subr.mxu0 %v881
    %3661 = vmatpush1.msra.mxu0 %v880
    %3662 = vmatprep.mubr.f32.mxu0 %v3554
    %3663 = vmatmul.mubr.f32.gmra.mrb[0].mxu0 %v3553
    %v3664 = vpop.f32.mrb[0].mxu0
    %v3665 = vadd.f32 0.0, %v3664
    %v3666 = vpop.f32.mrb[0].mxu0
    %v3667 = vadd.f32 0.0, %v3666
    %3668 = vmatprep.mubr.f32.mxu0 %v3563
    %3669 = vmatmul.mubr.f32.gmra.mrb[0].mxu0 %v3562
    %v3670 = vpop.f32.mrb[0].mxu0
    %v3671 = vadd.f32 0.0, %v3670
    %v3672 = vpop.f32.mrb[0].mxu0
    %v3673 = vadd.f32 0.0, %v3672
    %3674 = vmatprep.mubr.f32.mxu0 %v3572
    %3675 = vmatmul.mubr.f32.gmra.mrb[0].mxu0 %v3571
    %v3676 = vpop.f32.mrb[0].mxu0
    %v3677 = vadd.f32 0.0, %v3676
    %v3678 = vpop.f32.mrb[0].mxu0
    %v3679 = vadd.f32 0.0, %v3678
    %3680 = vmatprep.mubr.f32.mxu0 %v3581
    %3681 = vmatmul.mubr.f32.gmra.mrb[0].mxu0 %v3580
    %v3682 = vpop.f32.mrb[0].mxu0
    %v3683 = vadd.f32 0.0, %v3682
    %v3684 = vpop.f32.mrb[0].mxu0
    %v3685 = vadd.f32 0.0, %v3684
    %3686 = vmatprep.mubr.f32.mxu0 %v3590
    %3687 = vmatmul.mubr.f32.gmra.mrb[0].mxu0 %v3589
    %v3688 = vpop.f32.mrb[0].mxu0
    %v3689 = vadd.f32 0.0, %v3688
    %v3690 = vpop.f32.mrb[0].mxu0
    %v3691 = vadd.f32 0.0, %v3690
    %3692 = vdwg.mxu0
    %3693 = vmatprep.subr.mxu0 %v883
    %3694 = vmatpush1.msra.mxu0 %v882
    %3695 = vmatprep.subr.mxu0 %v885
    %3696 = vmatpush1.msra.mxu0 %v884
    %3697 = vmatprep.subr.mxu0 %v887
    %3698 = vmatpush1.msra.mxu0 %v886
    %3699 = vmatprep.subr.mxu0 %v889
    %3700 = vmatpush1.msra.mxu0 %v888
    %3701 = vmatprep.subr.mxu0 %v891
    %3702 = vmatpush1.msra.mxu0 %v890
    %3703 = vmatprep.subr.mxu0 %v893
    %3704 = vmatpush1.msra.mxu0 %v892
    %3705 = vmatprep.subr.mxu0 %v895
    %3706 = vmatpush1.msra.mxu0 %v894
    %3707 = vmatprep.subr.mxu0 %v897
    %3708 = vmatpush1.msra.mxu0 %v896
    %3709 = vmatprep.subr.mxu0 %v899
    %3710 = vmatpush1.msra.mxu0 %v898
    %3711 = vmatprep.subr.mxu0 %v901
    %3712 = vmatpush1.msra.mxu0 %v900
    %3713 = vmatprep.subr.mxu0 %v903
    %3714 = vmatpush1.msra.mxu0 %v902
    %3715 = vmatprep.subr.mxu0 %v905
    %3716 = vmatpush1.msra.mxu0 %v904
    %3717 = vmatprep.subr.mxu0 %v907
    %3718 = vmatpush1.msra.mxu0 %v906
    %3719 = vmatprep.subr.mxu0 %v909
    %3720 = vmatpush1.msra.mxu0 %v908
    %3721 = vmatprep.subr.mxu0 %v911
    %3722 = vmatpush1.msra.mxu0 %v910
    %3723 = vmatprep.subr.mxu0 %v913
    %3724 = vmatpush1.msra.mxu0 %v912
    %3725 = vmatprep.subr.mxu0 %v915
    %3726 = vmatpush1.msra.mxu0 %v914
    %3727 = vmatprep.subr.mxu0 %v917
    %3728 = vmatpush1.msra.mxu0 %v916
    %3729 = vmatprep.subr.mxu0 %v919
    %3730 = vmatpush1.msra.mxu0 %v918
    %3731 = vmatprep.subr.mxu0 %v921
    %3732 = vmatpush1.msra.mxu0 %v920
    %3733 = vmatprep.subr.mxu0 %v923
    %3734 = vmatpush1.msra.mxu0 %v922
    %3735 = vmatprep.subr.mxu0 %v925
    %3736 = vmatpush1.msra.mxu0 %v924
    %3737 = vmatprep.subr.mxu0 %v927
    %3738 = vmatpush1.msra.mxu0 %v926
    %3739 = vmatprep.subr.mxu0 %v929
    %3740 = vmatpush1.msra.mxu0 %v928
    %3741 = vmatprep.subr.mxu0 %v931
    %3742 = vmatpush1.msra.mxu0 %v930
    %3743 = vmatprep.subr.mxu0 %v933
    %3744 = vmatpush1.msra.mxu0 %v932
    %3745 = vmatprep.subr.mxu0 %v935
    %3746 = vmatpush1.msra.mxu0 %v934
    %3747 = vmatprep.subr.mxu0 %v937
    %3748 = vmatpush1.msra.mxu0 %v936
    %3749 = vmatprep.subr.mxu0 %v939
    %3750 = vmatpush1.msra.mxu0 %v938
    %3751 = vmatprep.subr.mxu0 %v941
    %3752 = vmatpush1.msra.mxu0 %v940
    %3753 = vmatprep.subr.mxu0 %v943
    %3754 = vmatpush1.msra.mxu0 %v942
    %3755 = vmatprep.subr.mxu0 %v945
    %3756 = vmatpush1.msra.mxu0 %v944
    %3757 = vmatprep.mubr.f32.mxu0 %v3556
    %3758 = vmatmul.mubr.f32.gmra.mrb[0].mxu0 %v3555
    %v3759 = vpop.f32.mrb[0].mxu0
    %v3760 = vadd.f32 %v3665, %v3759
    %v3761 = vpop.f32.mrb[0].mxu0
    %v3762 = vadd.f32 %v3667, %v3761
    %3763 = vmatprep.mubr.f32.mxu0 %v3565
    %3764 = vmatmul.mubr.f32.gmra.mrb[0].mxu0 %v3564
    %v3765 = vpop.f32.mrb[0].mxu0
    %v3766 = vadd.f32 %v3671, %v3765
    %v3767 = vpop.f32.mrb[0].mxu0
    %v3768 = vadd.f32 %v3673, %v3767
    %3769 = vmatprep.mubr.f32.mxu0 %v3574
    %3770 = vmatmul.mubr.f32.gmra.mrb[0].mxu0 %v3573
    %v3771 = vpop.f32.mrb[0].mxu0
    %v3772 = vadd.f32 %v3677, %v3771
    %v3773 = vpop.f32.mrb[0].mxu0
    %v3774 = vadd.f32 %v3679, %v3773
    %3775 = vmatprep.mubr.f32.mxu0 %v3583
    %3776 = vmatmul.mubr.f32.gmra.mrb[0].mxu0 %v3582
    %v3777 = vpop.f32.mrb[0].mxu0
    %v3778 = vadd.f32 %v3683, %v3777
    %v3779 = vpop.f32.mrb[0].mxu0
    %v3780 = vadd.f32 %v3685, %v3779
    %3781 = vmatprep.mubr.f32.mxu0 %v3592
    %3782 = vmatmul.mubr.f32.gmra.mrb[0].mxu0 %v3591
    %v3783 = vpop.f32.mrb[0].mxu0
    %v3784 = vadd.f32 %v3689, %v3783
    %v3785 = vpop.f32.mrb[0].mxu0
    %v3786 = vadd.f32 %v3691, %v3785
    %3787 = vdwg.mxu0
    %3788 = vmatprep.subr.mxu0 %v947
    %3789 = vmatpush1.msra.mxu0 %v946
    %3790 = vmatprep.subr.mxu0 %v949
    %3791 = vmatpush1.msra.mxu0 %v948
    %3792 = vmatprep.subr.mxu0 %v951
    %3793 = vmatpush1.msra.mxu0 %v950
    %3794 = vmatprep.subr.mxu0 %v953
    %3795 = vmatpush1.msra.mxu0 %v952
    %3796 = vmatprep.subr.mxu0 %v955
    %3797 = vmatpush1.msra.mxu0 %v954
    %3798 = vmatprep.subr.mxu0 %v957
    %3799 = vmatpush1.msra.mxu0 %v956
    %3800 = vmatprep.subr.mxu0 %v959
    %3801 = vmatpush1.msra.mxu0 %v958
    %3802 = vmatprep.subr.mxu0 %v961
    %3803 = vmatpush1.msra.mxu0 %v960
    %3804 = vmatprep.subr.mxu0 %v963
    %3805 = vmatpush1.msra.mxu0 %v962
    %3806 = vmatprep.subr.mxu0 %v965
    %3807 = vmatpush1.msra.mxu0 %v964
    %3808 = vmatprep.subr.mxu0 %v967
    %3809 = vmatpush1.msra.mxu0 %v966
    %3810 = vmatprep.subr.mxu0 %v969
    %3811 = vmatpush1.msra.mxu0 %v968
    %3812 = vmatprep.subr.mxu0 %v971
    %3813 = vmatpush1.msra.mxu0 %v970
    %3814 = vmatprep.subr.mxu0 %v973
    %3815 = vmatpush1.msra.mxu0 %v972
    %3816 = vmatprep.subr.mxu0 %v975
    %3817 = vmatpush1.msra.mxu0 %v974
    %3818 = vmatprep.subr.mxu0 %v977
    %3819 = vmatpush1.msra.mxu0 %v976
    %3820 = vmatprep.subr.mxu0 %v979
    %3821 = vmatpush1.msra.mxu0 %v978
    %3822 = vmatprep.subr.mxu0 %v981
    %3823 = vmatpush1.msra.mxu0 %v980
    %3824 = vmatprep.subr.mxu0 %v983
    %3825 = vmatpush1.msra.mxu0 %v982
    %3826 = vmatprep.subr.mxu0 %v985
    %3827 = vmatpush1.msra.mxu0 %v984
    %3828 = vmatprep.subr.mxu0 %v987
    %3829 = vmatpush1.msra.mxu0 %v986
    %3830 = vmatprep.subr.mxu0 %v989
    %3831 = vmatpush1.msra.mxu0 %v988
    %3832 = vmatprep.subr.mxu0 %v991
    %3833 = vmatpush1.msra.mxu0 %v990
    %3834 = vmatprep.subr.mxu0 %v993
    %3835 = vmatpush1.msra.mxu0 %v992
    %3836 = vmatprep.subr.mxu0 %v995
    %3837 = vmatpush1.msra.mxu0 %v994
    %3838 = vmatprep.subr.mxu0 %v997
    %3839 = vmatpush1.msra.mxu0 %v996
    %3840 = vmatprep.subr.mxu0 %v999
    %3841 = vmatpush1.msra.mxu0 %v998
    %3842 = vmatprep.subr.mxu0 %v1001
    %3843 = vmatpush1.msra.mxu0 %v1000
    %3844 = vmatprep.subr.mxu0 %v1003
    %3845 = vmatpush1.msra.mxu0 %v1002
    %3846 = vmatprep.subr.mxu0 %v1005
    %3847 = vmatpush1.msra.mxu0 %v1004
    %3848 = vmatprep.subr.mxu0 %v1007
    %3849 = vmatpush1.msra.mxu0 %v1006
    %3850 = vmatprep.subr.mxu0 %v1009
    %3851 = vmatpush1.msra.mxu0 %v1008
    %3852 = vmatprep.mubr.f32.mxu0 %v3558
    %3853 = vmatmul.mubr.f32.gmra.mrb[0].mxu0 %v3557
    %v3854 = vpop.f32.mrb[0].mxu0
    %v3855 = vadd.f32 %v3760, %v3854
    %v3856 = vpop.f32.mrb[0].mxu0
    %v3857 = vadd.f32 %v3762, %v3856
    %3858 = vmatprep.mubr.f32.mxu0 %v3567
    %3859 = vmatmul.mubr.f32.gmra.mrb[0].mxu0 %v3566
    %v3860 = vpop.f32.mrb[0].mxu0
    %v3861 = vadd.f32 %v3766, %v3860
    %v3862 = vpop.f32.mrb[0].mxu0
    %v3863 = vadd.f32 %v3768, %v3862
    %3864 = vmatprep.mubr.f32.mxu0 %v3576
    %3865 = vmatmul.mubr.f32.gmra.mrb[0].mxu0 %v3575
    %v3866 = vpop.f32.mrb[0].mxu0
    %v3867 = vadd.f32 %v3772, %v3866
    %v3868 = vpop.f32.mrb[0].mxu0
    %v3869 = vadd.f32 %v3774, %v3868
    %3870 = vmatprep.mubr.f32.mxu0 %v3585
    %3871 = vmatmul.mubr.f32.gmra.mrb[0].mxu0 %v3584
    %v3872 = vpop.f32.mrb[0].mxu0
    %v3873 = vadd.f32 %v3778, %v3872
    %v3874 = vpop.f32.mrb[0].mxu0
    %v3875 = vadd.f32 %v3780, %v3874
    %3876 = vmatprep.mubr.f32.mxu0 %v3594
    %3877 = vmatmul.mubr.f32.gmra.mrb[0].mxu0 %v3593
    %v3878 = vpop.f32.mrb[0].mxu0
    %v3879 = vadd.f32 %v3784, %v3878
    %v3880 = vpop.f32.mrb[0].mxu0
    %v3881 = vadd.f32 %v3786, %v3880
    %3882 = vdwg.mxu0
    %3883 = vmatprep.subr.mxu0 %v1011
    %3884 = vmatpush1.msra.mxu0 %v1010
    %3885 = vmatprep.subr.mxu0 %v1013
    %3886 = vmatpush1.msra.mxu0 %v1012
    %3887 = vmatprep.subr.mxu0 %v1015
    %3888 = vmatpush1.msra.mxu0 %v1014
    %3889 = vmatprep.subr.mxu0 %v1017
    %3890 = vmatpush1.msra.mxu0 %v1016
    %3891 = vmatprep.subr.mxu0 %v1019
    %3892 = vmatpush1.msra.mxu0 %v1018
    %3893 = vmatprep.subr.mxu0 %v1021
    %3894 = vmatpush1.msra.mxu0 %v1020
    %3895 = vmatprep.subr.mxu0 %v1023
    %3896 = vmatpush1.msra.mxu0 %v1022
    %3897 = vmatprep.subr.mxu0 %v1025
    %3898 = vmatpush1.msra.mxu0 %v1024
    %3899 = vmatprep.subr.mxu0 %v1027
    %3900 = vmatpush1.msra.mxu0 %v1026
    %3901 = vmatprep.subr.mxu0 %v1029
    %3902 = vmatpush1.msra.mxu0 %v1028
    %3903 = vmatprep.subr.mxu0 %v1031
    %3904 = vmatpush1.msra.mxu0 %v1030
    %3905 = vmatprep.subr.mxu0 %v1033
    %3906 = vmatpush1.msra.mxu0 %v1032
    %3907 = vmatprep.subr.mxu0 %v1035
    %3908 = vmatpush1.msra.mxu0 %v1034
    %3909 = vmatprep.subr.mxu0 %v1037
    %3910 = vmatpush1.msra.mxu0 %v1036
    %3911 = vmatprep.subr.mxu0 %v1039
    %3912 = vmatpush1.msra.mxu0 %v1038
    %3913 = vmatprep.subr.mxu0 %v1041
    %3914 = vmatpush1.msra.mxu0 %v1040
    %3915 = vmatprep.subr.mxu0 %v1043
    %3916 = vmatpush1.msra.mxu0 %v1042
    %3917 = vmatprep.subr.mxu0 %v1045
    %3918 = vmatpush1.msra.mxu0 %v1044
    %3919 = vmatprep.subr.mxu0 %v1047
    %3920 = vmatpush1.msra.mxu0 %v1046
    %3921 = vmatprep.subr.mxu0 %v1049
    %3922 = vmatpush1.msra.mxu0 %v1048
    %3923 = vmatprep.subr.mxu0 %v1051
    %3924 = vmatpush1.msra.mxu0 %v1050
    %3925 = vmatprep.subr.mxu0 %v1053
    %3926 = vmatpush1.msra.mxu0 %v1052
    %3927 = vmatprep.subr.mxu0 %v1055
    %3928 = vmatpush1.msra.mxu0 %v1054
    %3929 = vmatprep.subr.mxu0 %v1057
    %3930 = vmatpush1.msra.mxu0 %v1056
    %3931 = vmatprep.subr.mxu0 %v1059
    %3932 = vmatpush1.msra.mxu0 %v1058
    %3933 = vmatprep.subr.mxu0 %v1061
    %3934 = vmatpush1.msra.mxu0 %v1060
    %3935 = vmatprep.subr.mxu0 %v1063
    %3936 = vmatpush1.msra.mxu0 %v1062
    %3937 = vmatprep.subr.mxu0 %v1065
    %3938 = vmatpush1.msra.mxu0 %v1064
    %3939 = vmatprep.subr.mxu0 %v1067
    %3940 = vmatpush1.msra.mxu0 %v1066
    %3941 = vmatprep.subr.mxu0 %v1069
    %3942 = vmatpush1.msra.mxu0 %v1068
    %3943 = vmatprep.subr.mxu0 %v1071
    %3944 = vmatpush1.msra.mxu0 %v1070
    %3945 = vmatprep.subr.mxu0 %v1073
    %3946 = vmatpush1.msra.mxu0 %v1072
    %3947 = vmatprep.mubr.f32.mxu0 %v3560
    %3948 = vmatmul.mubr.f32.gmra.mrb[0].mxu0 %v3559
    %v3949 = vpop.f32.mrb[0].mxu0
    %v3950 = vadd.f32 %v3855, %v3949
    %v3951 = vpop.f32.mrb[0].mxu0
    %v3952 = vadd.f32 %v3857, %v3951
    %3953 = vmatprep.mubr.f32.mxu0 %v3569
    %3954 = vmatmul.mubr.f32.gmra.mrb[0].mxu0 %v3568
    %v3955 = vpop.f32.mrb[0].mxu0
    %v3956 = vadd.f32 %v3861, %v3955
    %v3957 = vpop.f32.mrb[0].mxu0
    %v3958 = vadd.f32 %v3863, %v3957
    %3959 = vmatprep.mubr.f32.mxu0 %v3578
    %3960 = vmatmul.mubr.f32.gmra.mrb[0].mxu0 %v3577
    %v3961 = vpop.f32.mrb[0].mxu0
    %v3962 = vadd.f32 %v3867, %v3961
    %v3963 = vpop.f32.mrb[0].mxu0
    %v3964 = vadd.f32 %v3869, %v3963
    %3965 = vmatprep.mubr.f32.mxu0 %v3587
    %3966 = vmatmul.mubr.f32.gmra.mrb[0].mxu0 %v3586
    %v3967 = vpop.f32.mrb[0].mxu0
    %v3968 = vadd.f32 %v3873, %v3967
    %v3969 = vpop.f32.mrb[0].mxu0
    %v3970 = vadd.f32 %v3875, %v3969
    %3971 = vmatprep.mubr.f32.mxu0 %v3596
    %3972 = vmatmul.mubr.f32.gmra.mrb[0].mxu0 %v3595
    %v3973 = vpop.f32.mrb[0].mxu0
    %v3974 = vadd.f32 %v3879, %v3973
    %v3975 = vpop.f32.mrb[0].mxu0
    %v3976 = vadd.f32 %v3881, %v3975
    %3977 = vdwg.mxu0
    %3978 = vmatprep.subr.mxu0 %v1075
    %3979 = vmatpush1.msra.mxu0 %v1074
    %3980 = vmatprep.subr.mxu0 %v1077
    %3981 = vmatpush1.msra.mxu0 %v1076
    %3982 = vmatprep.subr.mxu0 %v1079
    %3983 = vmatpush1.msra.mxu0 %v1078
    %3984 = vmatprep.subr.mxu0 %v1081
    %3985 = vmatpush1.msra.mxu0 %v1080
    %3986 = vmatprep.subr.mxu0 %v1083
    %3987 = vmatpush1.msra.mxu0 %v1082
    %3988 = vmatprep.subr.mxu0 %v1085
    %3989 = vmatpush1.msra.mxu0 %v1084
    %3990 = vmatprep.subr.mxu0 %v1087
    %3991 = vmatpush1.msra.mxu0 %v1086
    %3992 = vmatprep.subr.mxu0 %v1089
    %3993 = vmatpush1.msra.mxu0 %v1088
    %3994 = vmatprep.subr.mxu0 %v1091
    %3995 = vmatpush1.msra.mxu0 %v1090
    %3996 = vmatprep.subr.mxu0 %v1093
    %3997 = vmatpush1.msra.mxu0 %v1092
    %3998 = vmatprep.subr.mxu0 %v1095
    %3999 = vmatpush1.msra.mxu0 %v1094
    %4000 = vmatprep.subr.mxu0 %v1097
    %4001 = vmatpush1.msra.mxu0 %v1096
    %4002 = vmatprep.subr.mxu0 %v1099
    %4003 = vmatpush1.msra.mxu0 %v1098
    %4004 = vmatprep.subr.mxu0 %v1101
    %4005 = vmatpush1.msra.mxu0 %v1100
    %4006 = vmatprep.subr.mxu0 %v1103
    %4007 = vmatpush1.msra.mxu0 %v1102
    %4008 = vmatprep.subr.mxu0 %v1105
    %4009 = vmatpush1.msra.mxu0 %v1104
    %4010 = vmatprep.subr.mxu0 0.0
    %4011 = vmatpush1.msra.mxu0 0.0
    %4012 = vmatprep.subr.mxu0 0.0
    %4013 = vmatpush1.msra.mxu0 0.0
    %4014 = vmatprep.subr.mxu0 0.0
    %4015 = vmatpush1.msra.mxu0 0.0
    %4016 = vmatprep.subr.mxu0 0.0
    %4017 = vmatpush1.msra.mxu0 0.0
    %4018 = vmatprep.subr.mxu0 0.0
    %4019 = vmatpush1.msra.mxu0 0.0
    %4020 = vmatprep.subr.mxu0 0.0
    %4021 = vmatpush1.msra.mxu0 0.0
    %4022 = vmatprep.subr.mxu0 0.0
    %4023 = vmatpush1.msra.mxu0 0.0
    %4024 = vmatprep.subr.mxu0 0.0
    %4025 = vmatpush1.msra.mxu0 0.0
    %4026 = vmatprep.subr.mxu0 0.0
    %4027 = vmatpush1.msra.mxu0 0.0
    %4028 = vmatprep.subr.mxu0 0.0
    %4029 = vmatpush1.msra.mxu0 0.0
    %4030 = vmatprep.subr.mxu0 0.0
    %4031 = vmatpush1.msra.mxu0 0.0
    %4032 = vmatprep.subr.mxu0 0.0
    %4033 = vmatpush1.msra.mxu0 0.0
    %4034 = vmatprep.subr.mxu0 0.0
    %4035 = vmatpush1.msra.mxu0 0.0
    %4036 = vmatprep.subr.mxu0 0.0
    %4037 = vmatpush1.msra.mxu0 0.0
    %4038 = vmatprep.subr.mxu0 0.0
    %4039 = vmatpush1.msra.mxu0 0.0
    %4040 = vmatprep.subr.mxu0 0.0
    %4041 = vmatpush1.msra.mxu0 0.0
    %4042 = vmatprep.mubr.f32.mxu0 0.0
    %4043 = vmatmul.mubr.f32.gmra.mrb[0].mxu0 %v3561
    %v4044 = vpop.f32.mrb[0].mxu0
    %v4045 = vadd.f32 %v3950, %v4044
    %v4046 = vpop.f32.mrb[0].mxu0
    %v4047 = vadd.f32 %v3952, %v4046
    %4048 = vmatprep.mubr.f32.mxu0 0.0
    %4049 = vmatmul.mubr.f32.gmra.mrb[0].mxu0 %v3570
    %v4050 = vpop.f32.mrb[0].mxu0
    %v4051 = vadd.f32 %v3956, %v4050
    %v4052 = vpop.f32.mrb[0].mxu0
    %v4053 = vadd.f32 %v3958, %v4052
    %4054 = vmatprep.mubr.f32.mxu0 0.0
    %4055 = vmatmul.mubr.f32.gmra.mrb[0].mxu0 %v3579
    %v4056 = vpop.f32.mrb[0].mxu0
    %v4057 = vadd.f32 %v3962, %v4056
    %v4058 = vpop.f32.mrb[0].mxu0
    %v4059 = vadd.f32 %v3964, %v4058
    %4060 = vmatprep.mubr.f32.mxu0 0.0
    %4061 = vmatmul.mubr.f32.gmra.mrb[0].mxu0 %v3588
    %v4062 = vpop.f32.mrb[0].mxu0
    %v4063 = vadd.f32 %v3968, %v4062
    %v4064 = vpop.f32.mrb[0].mxu0
    %v4065 = vadd.f32 %v3970, %v4064
    %4066 = vmatprep.mubr.f32.mxu0 0.0
    %4067 = vmatmul.mubr.f32.gmra.mrb[0].mxu0 %v3597
    %v4068 = vpop.f32.mrb[0].mxu0
    %v4069 = vadd.f32 %v3974, %v4068
    %v4070 = vpop.f32.mrb[0].mxu0
    %v4071 = vadd.f32 %v3976, %v4070
    %4072 = vdwg.mxu0
    %v4074 = vlaneseq
    %v4075 = vshrl.u32 %v4074, 7
    %v4076 = vsub.s32 0, %v4075
    %v4077 = vrot.slane %v1106, %v4076
    %v4078 = vlaneseq
    %v4079 = vshrl.u32 %v4078, 7
    %v4080 = vsub.s32 1, %v4079
    %v4081 = vrot.slane %v1106, %v4080
    %v4085 = vsel %vm1555, %v3158, 0
    %v4088 = vsel %vm1559, %v4069, 0
    %v4091 = vsel %vm1559, %v4071, 0
    %4093 = vmatprep.subr.mxu0 %v4047
    %4094 = vmatpush1.msra.mxu0 %v4045
    %4095 = vmatprep.subr.mxu0 %v4053
    %4096 = vmatpush1.msra.mxu0 %v4051
    %4097 = vmatprep.subr.mxu0 %v4059
    %4098 = vmatpush1.msra.mxu0 %v4057
    %4099 = vmatprep.subr.mxu0 %v4065
    %4100 = vmatpush1.msra.mxu0 %v4063
    %4101 = vmatprep.subr.mxu0 %v4091
    %4102 = vmatpush1.msra.mxu0 %v4088
    %4103 = vmatprep.subr.mxu0 0.0
    %4104 = vmatpush1.msra.mxu0 0.0
    %4105 = vmatprep.subr.mxu0 0.0
    %4106 = vmatpush1.msra.mxu0 0.0
    %4107 = vmatprep.subr.mxu0 0.0
    %4108 = vmatpush1.msra.mxu0 0.0
    %4109 = vmatprep.subr.mxu0 0.0
    %4110 = vmatpush1.msra.mxu0 0.0
    %4111 = vmatprep.subr.mxu0 0.0
    %4112 = vmatpush1.msra.mxu0 0.0
    %4113 = vmatprep.subr.mxu0 0.0
    %4114 = vmatpush1.msra.mxu0 0.0
    %4115 = vmatprep.subr.mxu0 0.0
    %4116 = vmatpush1.msra.mxu0 0.0
    %4117 = vmatprep.subr.mxu0 0.0
    %4118 = vmatpush1.msra.mxu0 0.0
    %4119 = vmatprep.subr.mxu0 0.0
    %4120 = vmatpush1.msra.mxu0 0.0
    %4121 = vmatprep.subr.mxu0 0.0
    %4122 = vmatpush1.msra.mxu0 0.0
    %4123 = vmatprep.subr.mxu0 0.0
    %4124 = vmatpush1.msra.mxu0 0.0
    %4125 = vmatprep.subr.mxu0 0.0
    %4126 = vmatpush1.msra.mxu0 0.0
    %4127 = vmatprep.subr.mxu0 0.0
    %4128 = vmatpush1.msra.mxu0 0.0
    %4129 = vmatprep.subr.mxu0 0.0
    %4130 = vmatpush1.msra.mxu0 0.0
    %4131 = vmatprep.subr.mxu0 0.0
    %4132 = vmatpush1.msra.mxu0 0.0
    %4133 = vmatprep.subr.mxu0 0.0
    %4134 = vmatpush1.msra.mxu0 0.0
    %4135 = vmatprep.subr.mxu0 0.0
    %4136 = vmatpush1.msra.mxu0 0.0
    %4137 = vmatprep.subr.mxu0 0.0
    %4138 = vmatpush1.msra.mxu0 0.0
    %4139 = vmatprep.subr.mxu0 0.0
    %4140 = vmatpush1.msra.mxu0 0.0
    %4141 = vmatprep.subr.mxu0 0.0
    %4142 = vmatpush1.msra.mxu0 0.0
    %4143 = vmatprep.subr.mxu0 0.0
    %4144 = vmatpush1.msra.mxu0 0.0
    %4145 = vmatprep.subr.mxu0 0.0
    %4146 = vmatpush1.msra.mxu0 0.0
    %4147 = vmatprep.subr.mxu0 0.0
    %4148 = vmatpush1.msra.mxu0 0.0
    %4149 = vmatprep.subr.mxu0 0.0
    %4150 = vmatpush1.msra.mxu0 0.0
    %4151 = vmatprep.subr.mxu0 0.0
    %4152 = vmatpush1.msra.mxu0 0.0
    %4153 = vmatprep.subr.mxu0 0.0
    %4154 = vmatpush1.msra.mxu0 0.0
    %4155 = vmatprep.subr.mxu0 0.0
    %4156 = vmatpush1.msra.mxu0 0.0
    %4157 = vmatprep.mubr.f32.mxu0 0.0
    %4158 = vmatmul.mubr.f32.gmra.mrb[0].mxu0 %v4085
    %v4159 = vpop.f32.mrb[0].mxu0
    %v4160 = vadd.f32 %v4077, %v4159
    %v4161 = vpop.f32.mrb[0].mxu0
    %v4162 = vadd.f32 %v4081, %v4161
    %4163 = vdwg.mxu0
    %v4164 = vmax.f32 %v4160, 0.0
    %v4165 = vmax.f32 %v4162, 0.0
    %v4167 = vlaneseq
    %v4168 = vshrl.u32 %v4167, 7
    %v4169 = vsub.s32 0, %v4168
    %v4170 = vrot.slane %v1171, %v4169
    %v4171 = vlaneseq
    %v4172 = vshrl.u32 %v4171, 7
    %v4173 = vsub.s32 1, %v4172
    %v4174 = vrot.slane %v1171, %v4173
    %4177 = vmatprep.subr.mxu0 %v1108
    %4178 = vmatpush1.msra.mxu0 %v1107
    %4179 = vmatprep.subr.mxu0 %v1110
    %4180 = vmatpush1.msra.mxu0 %v1109
    %4181 = vmatprep.subr.mxu0 %v1112
    %4182 = vmatpush1.msra.mxu0 %v1111
    %4183 = vmatprep.subr.mxu0 %v1114
    %4184 = vmatpush1.msra.mxu0 %v1113
    %4185 = vmatprep.subr.mxu0 %v1116
    %4186 = vmatpush1.msra.mxu0 %v1115
    %4187 = vmatprep.subr.mxu0 %v1118
    %4188 = vmatpush1.msra.mxu0 %v1117
    %4189 = vmatprep.subr.mxu0 %v1120
    %4190 = vmatpush1.msra.mxu0 %v1119
    %4191 = vmatprep.subr.mxu0 %v1122
    %4192 = vmatpush1.msra.mxu0 %v1121
    %4193 = vmatprep.subr.mxu0 %v1124
    %4194 = vmatpush1.msra.mxu0 %v1123
    %4195 = vmatprep.subr.mxu0 %v1126
    %4196 = vmatpush1.msra.mxu0 %v1125
    %4197 = vmatprep.subr.mxu0 %v1128
    %4198 = vmatpush1.msra.mxu0 %v1127
    %4199 = vmatprep.subr.mxu0 %v1130
    %4200 = vmatpush1.msra.mxu0 %v1129
    %4201 = vmatprep.subr.mxu0 %v1132
    %4202 = vmatpush1.msra.mxu0 %v1131
    %4203 = vmatprep.subr.mxu0 %v1134
    %4204 = vmatpush1.msra.mxu0 %v1133
    %4205 = vmatprep.subr.mxu0 %v1136
    %4206 = vmatpush1.msra.mxu0 %v1135
    %4207 = vmatprep.subr.mxu0 %v1138
    %4208 = vmatpush1.msra.mxu0 %v1137
    %4209 = vmatprep.subr.mxu0 %v1140
    %4210 = vmatpush1.msra.mxu0 %v1139
    %4211 = vmatprep.subr.mxu0 %v1142
    %4212 = vmatpush1.msra.mxu0 %v1141
    %4213 = vmatprep.subr.mxu0 %v1144
    %4214 = vmatpush1.msra.mxu0 %v1143
    %4215 = vmatprep.subr.mxu0 %v1146
    %4216 = vmatpush1.msra.mxu0 %v1145
    %4217 = vmatprep.subr.mxu0 %v1148
    %4218 = vmatpush1.msra.mxu0 %v1147
    %4219 = vmatprep.subr.mxu0 %v1150
    %4220 = vmatpush1.msra.mxu0 %v1149
    %4221 = vmatprep.subr.mxu0 %v1152
    %4222 = vmatpush1.msra.mxu0 %v1151
    %4223 = vmatprep.subr.mxu0 %v1154
    %4224 = vmatpush1.msra.mxu0 %v1153
    %4225 = vmatprep.subr.mxu0 %v1156
    %4226 = vmatpush1.msra.mxu0 %v1155
    %4227 = vmatprep.subr.mxu0 %v1158
    %4228 = vmatpush1.msra.mxu0 %v1157
    %4229 = vmatprep.subr.mxu0 %v1160
    %4230 = vmatpush1.msra.mxu0 %v1159
    %4231 = vmatprep.subr.mxu0 %v1162
    %4232 = vmatpush1.msra.mxu0 %v1161
    %4233 = vmatprep.subr.mxu0 %v1164
    %4234 = vmatpush1.msra.mxu0 %v1163
    %4235 = vmatprep.subr.mxu0 %v1166
    %4236 = vmatpush1.msra.mxu0 %v1165
    %4237 = vmatprep.subr.mxu0 %v1168
    %4238 = vmatpush1.msra.mxu0 %v1167
    %4239 = vmatprep.subr.mxu0 %v1170
    %4240 = vmatpush1.msra.mxu0 %v1169
    %4241 = vmatprep.mubr.f32.mxu0 %v4165
    %4242 = vmatmul.mubr.f32.gmra.mrb[0].mxu0 %v4164
    %v4243 = vpop.f32.mrb[0].mxu0
    %v4244 = vadd.f32 %v4170, %v4243
    %v4245 = vpop.f32.mrb[0].mxu0
    %v4246 = vadd.f32 %v4174, %v4245
    %4247 = vdwg.mxu0
    %v4248 = vmax.f32 %v4244, 0.0
    %v4249 = vmax.f32 %v4246, 0.0
    %v4252 = vcombine.low %v4248, %v4249
    %v4254 = vunpack.c.l.s4 1966171168
    %v4255 = vunpack.c.0.s8 %v4254
    %v4256 = vlaneseq
    %v4257 = vshrl.u32 %v4256, 7
    %v4258 = vsub.s32 %v4255, %v4257
    %v4259 = vrot.slane %v4252, %v4258
    %v4261 = vunpack.c.l.s4 1966171168
    %v4262 = vunpack.c.0.s8 %v4261
    %v4263 = vlaneseq
    %v4264 = vshrl.u32 %v4263, 7
    %v4265 = vsub.s32 %v4262, %v4264
    %v4266 = vrot.slane %v4259, %v4265
    %v4268 = vlaneseq
    %vm4269 = vcmp.ge.s32.totalorder %v4268, 0
    %vm4270 = vcmp.lt.s32.totalorder %v4268, 256
    %vm4271 = vmand %vm4269, %vm4270
    %4272 = vst.msk [vmem:[#allocation27] sm:$0x3] %vm4271, %v4266
    %v4273 = vld [vmem:[%s57] sm:$0xff]
    %v4274 = vld [vmem:[%s57 + $0x8] sm:$0xff]
    %v4275 = vld [vmem:[%s57 + $0x10] sm:$0xff]
    %v4276 = vld [vmem:[%s57 + $0x18] sm:$0xff]
    %v4277 = vld [vmem:[%s57 + $0x20] sm:$0xff]
    %v4278 = vld [vmem:[%s57 + $0x28] sm:$0xff]
    %v4279 = vld [vmem:[%s57 + $0x30] sm:$0xff]
    %v4280 = vld [vmem:[%s57 + $0x38] sm:$0xff]
    %v4281 = vld [vmem:[%s57 + $0x40] sm:$0xff]
    %v4282 = vld [vmem:[%s57 + $0x48] sm:$0xff]
    %v4283 = vld [vmem:[%s57 + $0x50] sm:$0xff]
    %v4284 = vld [vmem:[%s57 + $0x58] sm:$0xff]
    %v4285 = vld [vmem:[%s57 + $0x60] sm:$0xff]
    %v4286 = vld [vmem:[%s57 + $0x68] sm:$0xff]
    %v4287 = vld [vmem:[%s57 + $0x70] sm:$0xff]
    %v4288 = vld [vmem:[%s57 + $0x78] sm:$0xff]
    %v4289 = vld [vmem:[%s57 + $0x80] sm:$0xff]
    %v4290 = vld [vmem:[%s57 + $0x88] sm:$0xff]
    %v4291 = vld [vmem:[%s57 + $0x90] sm:$0xff]
    %v4292 = vld [vmem:[%s57 + $0x98] sm:$0xff]
    %v4293 = vld [vmem:[%s57 + $0xa0] sm:$0xff]
    %v4294 = vld [vmem:[%s57 + $0xa8] sm:$0xff]
    %v4295 = vld [vmem:[%s57 + $0xb0] sm:$0xff]
    %v4296 = vld [vmem:[%s57 + $0xb8] sm:$0xff]
    %v4297 = vld [vmem:[%s57 + $0xc0] sm:$0xff]
    %v4298 = vld [vmem:[%s57 + $0xc8] sm:$0xff]
    %v4299 = vld [vmem:[%s57 + $0xd0] sm:$0xff]
    %v4300 = vld [vmem:[%s57 + $0xd8] sm:$0xff]
    %v4301 = vld [vmem:[%s57 + $0xe0] sm:$0xff]
    %v4302 = vld [vmem:[%s57 + $0xe8] sm:$0xff]
    %v4303 = vld [vmem:[%s57 + $0xf0] sm:$0xff]
    %v4304 = vld [vmem:[%s57 + $0xf8] sm:$0xff]
    %v4305 = vld [vmem:[#allocation25] sm:$0x1]
    %4306 = vmatprep.subr.mxu0 0.0
    %4307 = vmatpush1.msra.mxu0 %v4273
    %4308 = vmatprep.subr.mxu0 0.0
    %4309 = vmatpush1.msra.mxu0 %v4274
    %4310 = vmatprep.subr.mxu0 0.0
    %4311 = vmatpush1.msra.mxu0 %v4275
    %4312 = vmatprep.subr.mxu0 0.0
    %4313 = vmatpush1.msra.mxu0 %v4276
    %4314 = vmatprep.subr.mxu0 0.0
    %4315 = vmatpush1.msra.mxu0 %v4277
    %4316 = vmatprep.subr.mxu0 0.0
    %4317 = vmatpush1.msra.mxu0 %v4278
    %4318 = vmatprep.subr.mxu0 0.0
    %4319 = vmatpush1.msra.mxu0 %v4279
    %4320 = vmatprep.subr.mxu0 0.0
    %4321 = vmatpush1.msra.mxu0 %v4280
    %4322 = vmatprep.subr.mxu0 0.0
    %4323 = vmatpush1.msra.mxu0 %v4281
    %4324 = vmatprep.subr.mxu0 0.0
    %4325 = vmatpush1.msra.mxu0 %v4282
    %4326 = vmatprep.subr.mxu0 0.0
    %4327 = vmatpush1.msra.mxu0 %v4283
    %4328 = vmatprep.subr.mxu0 0.0
    %4329 = vmatpush1.msra.mxu0 %v4284
    %4330 = vmatprep.subr.mxu0 0.0
    %4331 = vmatpush1.msra.mxu0 %v4285
    %4332 = vmatprep.subr.mxu0 0.0
    %4333 = vmatpush1.msra.mxu0 %v4286
    %4334 = vmatprep.subr.mxu0 0.0
    %4335 = vmatpush1.msra.mxu0 %v4287
    %4336 = vmatprep.subr.mxu0 0.0
    %4337 = vmatpush1.msra.mxu0 %v4288
    %4338 = vmatprep.subr.mxu0 0.0
    %4339 = vmatpush1.msra.mxu0 %v4289
    %4340 = vmatprep.subr.mxu0 0.0
    %4341 = vmatpush1.msra.mxu0 %v4290
    %4342 = vmatprep.subr.mxu0 0.0
    %4343 = vmatpush1.msra.mxu0 %v4291
    %4344 = vmatprep.subr.mxu0 0.0
    %4345 = vmatpush1.msra.mxu0 %v4292
    %4346 = vmatprep.subr.mxu0 0.0
    %4347 = vmatpush1.msra.mxu0 %v4293
    %4348 = vmatprep.subr.mxu0 0.0
    %4349 = vmatpush1.msra.mxu0 %v4294
    %4350 = vmatprep.subr.mxu0 0.0
    %4351 = vmatpush1.msra.mxu0 %v4295
    %4352 = vmatprep.subr.mxu0 0.0
    %4353 = vmatpush1.msra.mxu0 %v4296
    %4354 = vmatprep.subr.mxu0 0.0
    %4355 = vmatpush1.msra.mxu0 %v4297
    %4356 = vmatprep.subr.mxu0 0.0
    %4357 = vmatpush1.msra.mxu0 %v4298
    %4358 = vmatprep.subr.mxu0 0.0
    %4359 = vmatpush1.msra.mxu0 %v4299
    %4360 = vmatprep.subr.mxu0 0.0
    %4361 = vmatpush1.msra.mxu0 %v4300
    %4362 = vmatprep.subr.mxu0 0.0
    %4363 = vmatpush1.msra.mxu0 %v4301
    %4364 = vmatprep.subr.mxu0 0.0
    %4365 = vmatpush1.msra.mxu0 %v4302
    %4366 = vmatprep.subr.mxu0 0.0
    %4367 = vmatpush1.msra.mxu0 %v4303
    %4368 = vmatprep.subr.mxu0 0.0
    %4369 = vmatpush1.msra.mxu0 %v4304
    %4370 = vmatprep.mubr.f32.mxu0 %v4249
    %4371 = vmatmul.mubr.f32.gmra.mrb[0].mxu0 %v4248
    %v4372 = vpop.f32.mrb[0].mxu0
    %v4373 = vadd.f32 %v4305, %v4372
    %v4374 = vpop.f32.mrb[0].mxu0
    %4375 = vdwg.mxu0
    %vm4376 = vcmask 24576
    %4377 = vst.msk [vmem:[%s61] sm:$0x1] %vm4376, %v4373
    %v4378 = vsel %vm4376, %v4373, -inf
    %4379 = vmax.xlane.f32.xlu0 %v4378
    %v4380 = vpop.xlane.xlu0 %4379
    %v4381 = vsub.f32 %v4373, %v4380
    %v4382 = vmul.f32 %v4381, 1.442695
    %v4383 = vpow.pop %v4382
    %v4384 = vsel %vm4376, %v4383, 0.0
    %4385 = vadd.xlane.f32.xlu0 %v4384
    %v4386 = vpop.xlane.xlu0 %4385
    %v4387 = vrcp.pop %v4386
    %v4388 = vmul.f32 %v4383, %v4387
    %4389 = vst.msk [vmem:[#allocation26] sm:$0x1] %vm4376, %v4388
    // Predicated region
    $region182: #{abmil_snn_forward.5} parent=1 // pred_check
      _
    $region183: #{abmil_snn_forward.5} parent=1 // pred_check_branch
      %4391 = sbr.rel (0) target = $region185
    $region184: #{abmil_snn_forward.5} parent=1 // pred_region
      _
    $region185: #{abmil_snn_forward.5} parent=1 // pred_fallthru
      _
    // Predicated region
    $region186: #{abmil_snn_forward.5} parent=1 // pred_check
      _
    $region187: #{abmil_snn_forward.5} parent=1 // pred_check_branch
      %4393 = sbr.rel (0) target = $region189
    $region188: #{abmil_snn_forward.5} parent=1 // pred_region
      %s4395 = ssub.s32 16, 16
      %4396 = vsyncadd [#allocation4], %s4395
      %s4398 = sshll.u32 [#allocation26], 4
      %s4399 = int_to_ptr.vmem [resolvable:$true] %s4398
      %4401 = dma.vmem_to_hbm [thread:$0]  %s4399, 16, %s63, [#allocation4]
    $region189: #{abmil_snn_forward.5} parent=1 // pred_fallthru
      _
    // Predicated region
    $region190: #{abmil_snn_forward.5} parent=1 // pred_check
      _
    $region191: #{abmil_snn_forward.5} parent=1 // pred_check_branch
      %4403 = sbr.rel (0) target = $region193
    $region192: #{abmil_snn_forward.5} parent=1 // pred_region
      %s4405 = ssub.s32 32, 32
      %4406 = vsyncadd [#allocation28], %s4405
      %s4408 = sshll.u32 [#allocation27], 4
      %s4409 = int_to_ptr.vmem [resolvable:$true] %s4408
      %4411 = dma.vmem_to_hbm [thread:$0]  %s4409, 32, %s65, [#allocation28]
    $region193: #{abmil_snn_forward.5} parent=1 // pred_fallthru
      _
    // Predicated region
    $region194: #{abmil_snn_forward.5} parent=1 // pred_check
      _
    $region195: #{abmil_snn_forward.5} parent=1 // pred_check_branch
      %4413 = sbr.rel (0) target = $region197
    $region196: #{abmil_snn_forward.5} parent=1 // pred_region
      _
    $region197: #{abmil_snn_forward.5} parent=1 // pred_fallthru
      _
    // Predicated region
    $region198: #{abmil_snn_forward.5} parent=1 // pred_check
      _
    $region199: #{abmil_snn_forward.5} parent=1 // pred_check_branch
      %4415 = sbr.rel (0) target = $region201
    $region200: #{abmil_snn_forward.5} parent=1 // pred_region
      %4416 = dma.done [#allocation4], 16
    $region201: #{abmil_snn_forward.5} parent=1 // pred_fallthru
      _
    // Predicated region
    $region202: #{abmil_snn_forward.5} parent=1 // pred_check
      _
    $region203: #{abmil_snn_forward.5} parent=1 // pred_check_branch
      %4418 = sbr.rel (0) target = $region205
    $region204: #{abmil_snn_forward.5} parent=1 // pred_region
      %4419 = dma.done [#allocation28], 32
    $region205: #{abmil_snn_forward.5} parent=1 // pred_fallthru
      _
    %4420 = vsyncpa [#allocation3], 1
    %4421 = vsyncpa [#allocation6], 1
    %4422 = vsyncpa [#allocation9], 1
    %4423 = vsyncpa [#allocation12], 1
    %4424 = vsyncpa [#allocation15], 1
    %4425 = vsyncpa [#allocation18], 1
    %4426 = vsyncpa [#allocation21], 1
    %4427 = vsyncpa [#allocation24], 1
    %4428 = vsyncpa [#allocation4], 1
    %4429 = vsyncpa [#allocation28], 1

</llo_original>
